<compile_context>
chip_gen: v7x
topology: tpu7x:2x2x1
jax: 0.10.0
libtpu: 0.0.40
codegen_flags: <defaults>
</compile_context>

<pallas_src>
import functools

import jax
import jax.numpy as jnp
import numpy as np
from jax.experimental import pallas as pl
from jax.experimental.pallas import tpu as pltpu


def _round_up(x, m):
    return ((x + m - 1) // m) * m


def _vmem_budget_bytes():
    """~80% of this generation's physical VMEM; 64 MiB fallback."""
    try:
        info = pltpu.get_tpu_info()
        cap = getattr(info, "vmem_capacity_bytes", None)
        if cap:
            return int(cap * 0.8)
    except Exception:
        pass
    return 64 * 1024 * 1024


def _auto_time_chunk(requested, bb, din_pad, h_pad, dout_pad, budget):
    """Largest time chunk whose per-chunk VMEM footprint fits the budget."""
    tc = max(1, requested)

    def footprint(t):
        byt = 2 * t * bb * din_pad * 4            # x chunk (double-buffered f32)
        byt += 2 * t * bb * h_pad * 4             # hidden-output chunk
        byt += 2 * t * bb * dout_pad * 4          # fused projection chunk (last layer)
        byt += t * bb * 4 * h_pad * 2             # gx scratch (bf16)
        byt += 2 * (din_pad + h_pad) * 4 * h_pad * 2   # W_ih + W_hh (bf16, <=2 bufs)
        byt += 2 * h_pad * dout_pad * 2           # projection weight (bf16)
        byt += 2 * bb * h_pad * 4 * 2             # h / c cross-chunk carries
        return byt

    while tc > 8 and footprint(tc) > budget:
        tc = max(8, tc // 2)
    return tc


def _sigmoid(x):
    # single EUP op (tanh) instead of exp + reciprocal
    return jnp.tanh(x * 0.5) * 0.5 + 0.5


def _const_spec(shape, buffered):
    """BlockSpec for a grid-invariant operand; single-buffered when supported."""
    idx = lambda b, t: (0,) * len(shape)
    if buffered and hasattr(pl, "Buffered"):
        try:
            return pl.BlockSpec(shape, idx, pipeline_mode=pl.Buffered(1))
        except TypeError:
            pass
    return pl.BlockSpec(shape, idx)


# -----------------------------------------------------------------------------
# LSTM layer kernel
#   grid = (batch_blocks [parallel], time_chunks [arbitrary / sequential])
#   per grid step: one hoisted bf16 GEMM for the chunk's input projection, an inner
#   fori_loop over the Tc timesteps carrying (h, c) as loop values, then a chunk-wide
#   epilogue (mask + residual + optional fused final projection).
# -----------------------------------------------------------------------------
def _lstm_layer_kernel(*refs, hidden_pad, time_chunk, residual, fuse_proj, unroll):
    if fuse_proj:
        (x_ref, len_ref, wih_ref, whh_ref, b_ref, wproj_ref, bproj_ref,
         out_ref, proj_ref, h_scr, c_scr, gx_scr) = refs
    else:
        (x_ref, len_ref, wih_ref, whh_ref, b_ref,
         out_ref, h_scr, c_scr, gx_scr) = refs

    H = hidden_pad
    tc, bb, din = x_ref.shape

    # (re)initialize the cross-chunk carry at the first time chunk of a batch block
    @pl.when(pl.program_id(1) == 0)
    def _():
        h_scr[...] = jnp.zeros_like(h_scr)
        c_scr[...] = jnp.zeros_like(c_scr)

    # -------- hoisted input projection: one bf16 MXU GEMM per chunk --------
    x2d = x_ref[...].reshape(tc * bb, din)
    gx = jnp.dot(x2d.astype(jnp.bfloat16), wih_ref[...],
                 preferred_element_type=jnp.float32)
    gx = gx + b_ref[...]
    gx_scr[...] = gx.reshape(tc, bb, 4 * H).astype(gx_scr.dtype)   # bf16 scratch

    # -------- serial recurrence: only h @ W_hh + gates + state update --------
    def step(t, carry):
        h_prev, c_prev = carry
        gates = gx_scr[t] + jnp.dot(h_prev.astype(jnp.bfloat16), whh_ref[...],
                                    preferred_element_type=jnp.float32)
        # gate order i|f|g|o; H padded to 128 so gate slices are aligned views
        i = _sigmoid(gates[:, 0:H])
        f = _sigmoid(gates[:, H:2 * H])
        g = jnp.tanh(gates[:, 2 * H:3 * H])
        o = _sigmoid(gates[:, 3 * H:4 * H])
        c_new = f * c_prev + i * g
        h_new = o * jnp.tanh(c_new)
        out_ref[t] = h_new.astype(out_ref.dtype)   # raw h; mask/residual in epilogue
        return (h_new, c_new)

    h_fin, c_fin = jax.lax.fori_loop(0, time_chunk, step,
                                     (h_scr[...], c_scr[...]), unroll=unroll)
    h_scr[...] = h_fin
    c_scr[...] = c_fin

    # -------- chunk epilogue: length mask, residual, fused final projection --------
    t0 = pl.program_id(1) * tc
    t_ids = t0 + jax.lax.broadcasted_iota(jnp.int32, (tc, bb, 1), 0)
    lens = len_ref[...].reshape(1, bb, 1)                     # (bb,1) -> (1,bb,1)
    mask = (t_ids < lens).astype(jnp.float32)                 # pad_packed_sequence
    y = out_ref[...] * mask
    if residual:
        y = y + x_ref[...]                                    # residual on layer input
    out_ref[...] = y.astype(out_ref.dtype)

    if fuse_proj:
        p = jnp.dot(y.reshape(tc * bb, H).astype(jnp.bfloat16), wproj_ref[...],
                    preferred_element_type=jnp.float32) + bproj_ref[...]
        proj_ref[...] = p.reshape(tc, bb, -1).astype(proj_ref.dtype)


def lstm_layer_pallas(x, len_col, wih_p, whh_p, b_p, *, hidden_pad, residual,
                      time_chunk, batch_block, vmem_limit,
                      proj_w=None, proj_b=None):
    T_pad, B_pad, Din_pad = x.shape
    H_pad = hidden_pad
    bb = batch_block
    assert B_pad % bb == 0 and T_pad % time_chunk == 0
    nb, nt = B_pad // bb, T_pad // time_chunk
    fuse_proj = proj_w is not None
    unroll = True if time_chunk <= 16 else 8

    kernel = functools.partial(
        _lstm_layer_kernel, hidden_pad=H_pad, time_chunk=time_chunk,
        residual=residual, fuse_proj=fuse_proj, unroll=unroll)

    def _call(buffered):
        in_specs = [
            pl.BlockSpec((time_chunk, bb, Din_pad), lambda b, t: (t, b, 0)),
            pl.BlockSpec((bb, 1), lambda b, t: (b, 0)),          # per-row lengths
            _const_spec((Din_pad, 4 * H_pad), buffered),          # W_ih (bf16)
            _const_spec((H_pad, 4 * H_pad), buffered),            # W_hh (bf16)
            _const_spec((1, 4 * H_pad), buffered),                # bias (f32)
        ]
        args = [x, len_col, wih_p, whh_p, b_p]
        out_spec_h = pl.BlockSpec((time_chunk, bb, H_pad), lambda b, t: (t, b, 0))
        if fuse_proj:
            Dout_pad = proj_w.shape[1]
            in_specs += [_const_spec((H_pad, Dout_pad), buffered),
                         _const_spec((1, Dout_pad), buffered)]
            args += [proj_w, proj_b]
            out_shape = (jax.ShapeDtypeStruct((T_pad, B_pad, H_pad), jnp.float32),
                         jax.ShapeDtypeStruct((T_pad, B_pad, Dout_pad), jnp.float32))
            out_specs = (out_spec_h,
                         pl.BlockSpec((time_chunk, bb, Dout_pad),
                                      lambda b, t: (t, b, 0)))
        else:
            out_shape = jax.ShapeDtypeStruct((T_pad, B_pad, H_pad), jnp.float32)
            out_specs = out_spec_h

        return pl.pallas_call(
            kernel,
            out_shape=out_shape,
            grid_spec=pltpu.PrefetchScalarGridSpec(
                num_scalar_prefetch=0,
                grid=(nb, nt),
                in_specs=in_specs,
                out_specs=out_specs,
                scratch_shapes=[
                    pltpu.VMEM((bb, H_pad), jnp.float32),                   # h carry
                    pltpu.VMEM((bb, H_pad), jnp.float32),                   # c carry
                    pltpu.VMEM((time_chunk, bb, 4 * H_pad), jnp.bfloat16),  # gates_x
                ],
            ),
            compiler_params=pltpu.CompilerParams(
                dimension_semantics=("parallel", "arbitrary"),
                vmem_limit_bytes=vmem_limit),
        )(*args)

    last_err = None
    for buffered in (True, False):   # fall back if Buffered(1) isn't supported
        try:
            return _call(buffered)
        except Exception as e:       # noqa: BLE001 - retry once without Buffered
            last_err = e
    raise last_err


# -----------------------------------------------------------------------------
# Weight padding: pad each gate block separately so gate slices stay 128-aligned
# -----------------------------------------------------------------------------
def _pad_gate_matrix(w, H, H_pad, din, din_pad):
    # w: (4H, din), PyTorch gate order [i; f; g; o]  ->  (din_pad, 4*H_pad)
    w4 = w.reshape(4, H, din)
    w4 = jnp.pad(w4, ((0, 0), (0, H_pad - H), (0, din_pad - din)))
    return jnp.transpose(w4.reshape(4 * H_pad, din_pad), (1, 0))


def _pad_gate_bias(b, H, H_pad):
    b4 = jnp.pad(b.reshape(4, H), ((0, 0), (0, H_pad - H)))
    return b4.reshape(1, 4 * H_pad)


# -----------------------------------------------------------------------------
# VanillaAPC forward (wrapper / glue)
# -----------------------------------------------------------------------------
def vanilla_apc_forward(params, feat, length, *, residual_flag=True,
                        time_chunk=64, batch_block=None):
    # feat: (B, T, input_size) batch-first (PyTorch convention); length: (B,)
    feat = feat.astype(jnp.float32)
    B, T, D0 = feat.shape
    H = params["lstms"][0][1].shape[1]       # w_hh: (4H, H)
    Dout = params["proj_w"].shape[0]

    B_pad = _round_up(B, 8)                  # sublane alignment
    H_pad = _round_up(H, 128)                # lane alignment
    D0_pad = _round_up(D0, 128)
    Dout_pad = _round_up(Dout, 128)

    # batch block: split only when each half still feeds the MXU well (>=256 rows);
    # keeps the leading "parallel" axis shardable across v7x's two TensorCores.
    if batch_block is None:
        if B_pad >= 512 and (B_pad // 2) % 8 == 0:
            batch_block = B_pad // 2
        else:
            batch_block = B_pad
    bb = batch_block

    vmem_limit = _vmem_budget_bytes()
    din_max = max(D0_pad, H_pad)
    Tc = _auto_time_chunk(min(time_chunk, max(T, 1)), bb, din_max, H_pad,
                          Dout_pad, vmem_limit)
    T_pad = _round_up(T, Tc)

    # per-row valid lengths (column vector; padded batch rows get length 0)
    len_col = jnp.zeros((B_pad, 1), jnp.int32).at[:B, 0].set(
        length.astype(jnp.int32))

    # time-major, zero-padded activations
    x = jnp.transpose(feat, (1, 0, 2))
    x = jnp.pad(x, ((0, T_pad - T), (0, B_pad - B), (0, D0_pad - D0)))

    # padded bf16 weights / f32 biases
    layers = []
    cur_dim = D0
    for (w_ih, w_hh, b_ih, b_hh) in params["lstms"]:
        din = w_ih.shape[1]
        assert din == cur_dim
        din_pad = _round_up(din, 128)
        wih_p = _pad_gate_matrix(w_ih, H, H_pad, din, din_pad).astype(jnp.bfloat16)
        whh_p = _pad_gate_matrix(w_hh, H, H_pad, H, H_pad).astype(jnp.bfloat16)
        b_p = _pad_gate_bias(b_ih + b_hh, H, H_pad)                    # f32
        residual = residual_flag and (cur_dim == H)    # decided on LOGICAL dims
        layers.append((wih_p, whh_p, b_p, residual))
        cur_dim = H

    wproj_p = jnp.pad(jnp.transpose(params["proj_w"], (1, 0)),
                      ((0, H_pad - H), (0, Dout_pad - Dout))).astype(jnp.bfloat16)
    bproj_p = jnp.pad(params["proj_b"], (0, Dout_pad - Dout)).reshape(1, Dout_pad)

    proj_full = None
    for li, (wih_p, whh_p, b_p, residual) in enumerate(layers):
        last = li == len(layers) - 1
        out = lstm_layer_pallas(
            x, len_col, wih_p, whh_p, b_p,
            hidden_pad=H_pad, residual=residual, time_chunk=Tc,
            batch_block=bb, vmem_limit=vmem_limit,
            proj_w=wproj_p if last else None,
            proj_b=bproj_p if last else None)
        if last:
            x, proj_full = out            # projection fused into the last layer
        else:
            x = out

    seq_unpacked = jnp.transpose(x[:T, :B, :H], (1, 0, 2))             # (B, T, H)
    proj = jnp.transpose(proj_full[:T, :B, :Dout], (1, 0, 2))          # (B, T, Dout)
    return seq_unpacked, proj


# -----------------------------------------------------------------------------
# Pure-JAX reference (mirrors PyTorch pack/LSTM/pad + residual + Linear)
# -----------------------------------------------------------------------------
def _lstm_layer_ref(x, mask, w_ih, w_hh, b_ih, b_hh, residual):
    T, B, _ = x.shape
    H = w_hh.shape[1]
    wih_t, whh_t = w_ih.T, w_hh.T
    b = b_ih + b_hh

    def step(carry, x_t):
        h, c = carry
        gates = x_t @ wih_t + h @ whh_t + b
        i = jax.nn.sigmoid(gates[:, :H])
        f = jax.nn.sigmoid(gates[:, H:2 * H])
        g = jnp.tanh(gates[:, 2 * H:3 * H])
        o = jax.nn.sigmoid(gates[:, 3 * H:4 * H])
        c = f * c + i * g
        h = o * jnp.tanh(c)
        return (h, c), h

    init = (jnp.zeros((B, H), jnp.float32), jnp.zeros((B, H), jnp.float32))
    _, hs = jax.lax.scan(step, init, x)
    out = hs * mask
    if residual:
        out = out + x
    return out


def vanilla_apc_ref(params, feat, length, *, residual_flag=True):
    B, T, _ = feat.shape
    H = params["lstms"][0][1].shape[1]
    mask = (jnp.arange(T, dtype=jnp.int32)[:, None]
            < length[None, :].astype(jnp.int32)).astype(jnp.float32)[:, :, None]
    x = jnp.transpose(feat, (1, 0, 2)).astype(jnp.float32)
    for (w_ih, w_hh, b_ih, b_hh) in params["lstms"]:
        residual = residual_flag and (x.shape[-1] == H)
        x = _lstm_layer_ref(x, mask, w_ih, w_hh, b_ih, b_hh, residual)
    seq_unpacked = jnp.transpose(x, (1, 0, 2))
    proj = seq_unpacked @ params["proj_w"].T + params["proj_b"]
    return seq_unpacked, proj


# -----------------------------------------------------------------------------
# Deterministic parameter init (PyTorch LSTM/Linear: U(-1/sqrt(H), 1/sqrt(H)))
# -----------------------------------------------------------------------------
def init_params(key, input_size, hidden_size, num_layers):
    bound = 1.0 / np.sqrt(hidden_size)
    in_sizes = [input_size] + [hidden_size] * (num_layers - 1)
    lstms = []
    for l in range(num_layers):
        key, k1, k2, k3, k4 = jax.random.split(key, 5)
        w_ih = jax.random.uniform(k1, (4 * hidden_size, in_sizes[l]),
                                  jnp.float32, -bound, bound)
        w_hh = jax.random.uniform(k2, (4 * hidden_size, hidden_size),
                                  jnp.float32, -bound, bound)
        b_ih = jax.random.uniform(k3, (4 * hidden_size,), jnp.float32,
                                  -bound, bound)
        b_hh = jax.random.uniform(k4, (4 * hidden_size,), jnp.float32,
                                  -bound, bound)
        lstms.append((w_ih, w_hh, b_ih, b_hh))
    key, k5, k6 = jax.random.split(key, 3)
    proj_w = jax.random.uniform(k5, (input_size, hidden_size), jnp.float32,
                                -bound, bound)
    proj_b = jax.random.uniform(k6, (input_size,), jnp.float32, -bound, bound)
    return {"lstms": lstms, "proj_w": proj_w, "proj_b": proj_b}


if __name__ == "__main__":
    INPUT_SIZE = 20
    HIDDEN_SIZE = 32
    NUM_LAYERS = 3
    B, T = 2, 8

    key = jax.random.PRNGKey(0)
    key, kp, kx = jax.random.split(key, 3)
    params = init_params(kp, INPUT_SIZE, HIDDEN_SIZE, NUM_LAYERS)

    feat = jax.random.normal(kx, (B, T, INPUT_SIZE), jnp.float32)
    length = jnp.array([8, 5], dtype=jnp.int32)

    seq_out, proj_out = vanilla_apc_forward(params, feat, length)
    seq_out = jax.block_until_ready(seq_out)
    proj_out = jax.block_until_ready(proj_out)

    seq_ref, proj_ref = vanilla_apc_ref(params, feat, length)
    # bf16 MXU operands / bf16 gate-preactivation scratch vs pure f32 reference.
    np.testing.assert_allclose(np.asarray(seq_out), np.asarray(seq_ref),
                               rtol=5e-2, atol=1e-2)
    np.testing.assert_allclose(np.asarray(proj_out), np.asarray(proj_ref),
                               rtol=5e-2, atol=1e-2)

    print("KERNEL_OK")
</pallas_src>

<mosaic_0001>
module attributes {stable_mosaic.version = 11 : i64} {
  func.func @_lstm_layer_kernel(%arg0: i32, %arg1: i32, %arg2: memref<8x8x128xf32, #tpu.memory_space<vmem>>, %arg3: memref<8x1xi32, #tpu.memory_space<vmem>>, %arg4: memref<128x512xbf16, #tpu.memory_space<vmem>>, %arg5: memref<128x512xbf16, #tpu.memory_space<vmem>>, %arg6: memref<1x512xf32, #tpu.memory_space<vmem>>, %arg7: memref<8x8x128xf32, #tpu.memory_space<vmem>>, %arg8: memref<8x128xf32, #tpu.memory_space<vmem>>, %arg9: memref<8x128xf32, #tpu.memory_space<vmem>>, %arg10: memref<8x8x512xbf16, #tpu.memory_space<vmem>>) attributes {dimension_semantics = [#tpu.dimension_semantics<parallel>, #tpu.dimension_semantics<arbitrary>], iteration_bounds = array<i64: 1, 1>, scalar_prefetch = 0 : i64, scratch_operands = 3 : i64, tpu.core_type = #tpu.core_type<tc>, window_params = [{transform_indices = @transform_0, window_bounds = array<i64: 8, 8, 128>}, {transform_indices = @transform_1, window_bounds = array<i64: 8, 1>}, {pipeline_mode = #tpu.pipeline_mode<synchronous>, transform_indices = @transform_2, window_bounds = array<i64: 128, 512>}, {pipeline_mode = #tpu.pipeline_mode<synchronous>, transform_indices = @transform_3, window_bounds = array<i64: 128, 512>}, {pipeline_mode = #tpu.pipeline_mode<synchronous>, transform_indices = @transform_4, window_bounds = array<i64: 1, 512>}, {transform_indices = @transform_5, window_bounds = array<i64: 8, 8, 128>}]} {
    %c0_i32 = arith.constant 0 : i32
    %0 = arith.cmpi eq, %arg1, %c0_i32 : i32
    %1 = arith.extui %0 : i1 to i32
    %c0_i32_0 = arith.constant 0 : i32
    %2 = arith.cmpi ne, %1, %c0_i32_0 : i32
    scf.if %2 {
      %cst_156 = arith.constant 0.000000e+00 : f32
      %376 = vector.broadcast %cst_156 : f32 to vector<8x128xf32>
      %c0_157 = arith.constant 0 : index
      %c0_158 = arith.constant 0 : index
      %377 = vector.load %arg8[%c0_157, %c0_158] : memref<8x128xf32, #tpu.memory_space<vmem>>, vector<8x128xf32>
      tpu.vector_store %arg8[%c0_157, %c0_158], %376 {strides = array<i32>} : memref<8x128xf32, #tpu.memory_space<vmem>>, vector<8x128xf32>,
      %cst_159 = arith.constant 0.000000e+00 : f32
      %378 = vector.broadcast %cst_159 : f32 to vector<8x128xf32>
      %c0_160 = arith.constant 0 : index
      %c0_161 = arith.constant 0 : index
      %379 = vector.load %arg9[%c0_160, %c0_161] : memref<8x128xf32, #tpu.memory_space<vmem>>, vector<8x128xf32>
      tpu.vector_store %arg9[%c0_160, %c0_161], %378 {strides = array<i32>} : memref<8x128xf32, #tpu.memory_space<vmem>>, vector<8x128xf32>,
    } else {
    }
    %c0 = arith.constant 0 : index
    %c0_1 = arith.constant 0 : index
    %c0_2 = arith.constant 0 : index
    %3 = vector.load %arg2[%c0, %c0_1, %c0_2] : memref<8x8x128xf32, #tpu.memory_space<vmem>>, vector<8x8x128xf32>
    %4 = vector.shape_cast %3 : vector<8x8x128xf32> to vector<64x128xf32>
    %5 = arith.truncf %4 : vector<64x128xf32> to vector<64x128xbf16>
    %c0_3 = arith.constant 0 : index
    %c0_4 = arith.constant 0 : index
    %6 = vector.load %arg4[%c0_3, %c0_4] : memref<128x512xbf16, #tpu.memory_space<vmem>>, vector<128x512xbf16>
    %cst = arith.constant dense<0.000000e+00> : vector<64x512xf32>
    %7 = tpu.matmul %5, %6, %cst {dimension_numbers = #tpu.dot_dimension_numbers<[1], [0], [0], [1], [0, 0, 1, 1], [], []>} : vector<64x128xbf16>, vector<128x512xbf16>, vector<64x512xf32> -> vector<64x512xf32>
    %c0_5 = arith.constant 0 : index
    %c0_6 = arith.constant 0 : index
    %8 = vector.load %arg6[%c0_5, %c0_6] : memref<1x512xf32, #tpu.memory_space<vmem>>, vector<1x512xf32>
    %9 = vector.broadcast %8 : vector<1x512xf32> to vector<64x512xf32>
    %10 = arith.addf %7, %9 : vector<64x512xf32>
    %11 = vector.shape_cast %10 : vector<64x512xf32> to vector<8x8x512xf32>
    %12 = arith.truncf %11 : vector<8x8x512xf32> to vector<8x8x512xbf16>
    %c0_7 = arith.constant 0 : index
    %c0_8 = arith.constant 0 : index
    %c0_9 = arith.constant 0 : index
    %13 = vector.load %arg10[%c0_7, %c0_8, %c0_9] : memref<8x8x512xbf16, #tpu.memory_space<vmem>>, vector<8x8x512xbf16>
    tpu.vector_store %arg10[%c0_7, %c0_8, %c0_9], %12 {strides = array<i32>} : memref<8x8x512xbf16, #tpu.memory_space<vmem>>, vector<8x8x512xbf16>,
    %c0_10 = arith.constant 0 : index
    %c0_11 = arith.constant 0 : index
    %14 = vector.load %arg8[%c0_10, %c0_11] : memref<8x128xf32, #tpu.memory_space<vmem>>, vector<8x128xf32>
    %c0_12 = arith.constant 0 : index
    %c0_13 = arith.constant 0 : index
    %15 = vector.load %arg9[%c0_12, %c0_13] : memref<8x128xf32, #tpu.memory_space<vmem>>, vector<8x128xf32>
    %c0_i32_14 = arith.constant 0 : i32
    %16 = arith.index_cast %c0_i32_14 : i32 to index
    %c0_15 = arith.constant 0 : index
    %c0_16 = arith.constant 0 : index
    %17 = vector.load %arg10[%16, %c0_15, %c0_16] : memref<8x8x512xbf16, #tpu.memory_space<vmem>>, vector<1x8x512xbf16>
    %18 = vector.shape_cast %17 : vector<1x8x512xbf16> to vector<8x512xbf16>
    %19 = arith.truncf %14 : vector<8x128xf32> to vector<8x128xbf16>
    %c0_17 = arith.constant 0 : index
    %c0_18 = arith.constant 0 : index
    %20 = vector.load %arg5[%c0_17, %c0_18] : memref<128x512xbf16, #tpu.memory_space<vmem>>, vector<128x512xbf16>
    %cst_19 = arith.constant dense<0.000000e+00> : vector<8x512xf32>
    %21 = tpu.matmul %19, %20, %cst_19 {dimension_numbers = #tpu.dot_dimension_numbers<[1], [0], [0], [1], [0, 0, 1, 1], [], []>} : vector<8x128xbf16>, vector<128x512xbf16>, vector<8x512xf32> -> vector<8x512xf32>
    %22 = arith.extf %18 : vector<8x512xbf16> to vector<8x512xf32>
    %23 = arith.addf %22, %21 : vector<8x512xf32>
    %24 = vector.extract_strided_slice %23 {offsets = [0, 0], sizes = [8, 128], strides = [1, 1]} : vector<8x512xf32> to vector<8x128xf32>
    %cst_20 = arith.constant 5.000000e-01 : f32
    %25 = vector.broadcast %cst_20 : f32 to vector<8x128xf32>
    %26 = arith.mulf %24, %25 : vector<8x128xf32>
    %27 = math.tanh %26 : vector<8x128xf32>
    %cst_21 = arith.constant 5.000000e-01 : f32
    %28 = vector.broadcast %cst_21 : f32 to vector<8x128xf32>
    %29 = arith.mulf %27, %28 : vector<8x128xf32>
    %cst_22 = arith.constant 5.000000e-01 : f32
    %30 = vector.broadcast %cst_22 : f32 to vector<8x128xf32>
    %31 = arith.addf %29, %30 : vector<8x128xf32>
    %32 = vector.extract_strided_slice %23 {offsets = [0, 128], sizes = [8, 128], strides = [1, 1]} : vector<8x512xf32> to vector<8x128xf32>
    %cst_23 = arith.constant 5.000000e-01 : f32
    %33 = vector.broadcast %cst_23 : f32 to vector<8x128xf32>
    %34 = arith.mulf %32, %33 : vector<8x128xf32>
    %35 = math.tanh %34 : vector<8x128xf32>
    %cst_24 = arith.constant 5.000000e-01 : f32
    %36 = vector.broadcast %cst_24 : f32 to vector<8x128xf32>
    %37 = arith.mulf %35, %36 : vector<8x128xf32>
    %cst_25 = arith.constant 5.000000e-01 : f32
    %38 = vector.broadcast %cst_25 : f32 to vector<8x128xf32>
    %39 = arith.addf %37, %38 : vector<8x128xf32>
    %40 = vector.extract_strided_slice %23 {offsets = [0, 256], sizes = [8, 128], strides = [1, 1]} : vector<8x512xf32> to vector<8x128xf32>
    %41 = math.tanh %40 : vector<8x128xf32>
    %42 = vector.extract_strided_slice %23 {offsets = [0, 384], sizes = [8, 128], strides = [1, 1]} : vector<8x512xf32> to vector<8x128xf32>
    %cst_26 = arith.constant 5.000000e-01 : f32
    %43 = vector.broadcast %cst_26 : f32 to vector<8x128xf32>
    %44 = arith.mulf %42, %43 : vector<8x128xf32>
    %45 = math.tanh %44 : vector<8x128xf32>
    %cst_27 = arith.constant 5.000000e-01 : f32
    %46 = vector.broadcast %cst_27 : f32 to vector<8x128xf32>
    %47 = arith.mulf %45, %46 : vector<8x128xf32>
    %cst_28 = arith.constant 5.000000e-01 : f32
    %48 = vector.broadcast %cst_28 : f32 to vector<8x128xf32>
    %49 = arith.addf %47, %48 : vector<8x128xf32>
    %50 = arith.mulf %39, %15 : vector<8x128xf32>
    %51 = arith.mulf %31, %41 : vector<8x128xf32>
    %52 = arith.addf %50, %51 : vector<8x128xf32>
    %53 = math.tanh %52 : vector<8x128xf32>
    %54 = arith.mulf %49, %53 : vector<8x128xf32>
    %55 = arith.index_cast %c0_i32_14 : i32 to index
    %c0_29 = arith.constant 0 : index
    %c0_30 = arith.constant 0 : index
    %56 = vector.load %arg7[%55, %c0_29, %c0_30] : memref<8x8x128xf32, #tpu.memory_space<vmem>>, vector<1x8x128xf32>
    %57 = vector.shape_cast %56 : vector<1x8x128xf32> to vector<8x128xf32>
    %58 = vector.shape_cast %54 : vector<8x128xf32> to vector<1x8x128xf32>
    tpu.vector_store %arg7[%55, %c0_29, %c0_30], %58 {strides = array<i32>} : memref<8x8x128xf32, #tpu.memory_space<vmem>>, vector<1x8x128xf32>,
    %c1_i32 = arith.constant 1 : i32
    %59 = arith.index_cast %c1_i32 : i32 to index
    %c0_31 = arith.constant 0 : index
    %c0_32 = arith.constant 0 : index
    %60 = vector.load %arg10[%59, %c0_31, %c0_32] : memref<8x8x512xbf16, #tpu.memory_space<vmem>>, vector<1x8x512xbf16>
    %61 = vector.shape_cast %60 : vector<1x8x512xbf16> to vector<8x512xbf16>
    %62 = arith.truncf %54 : vector<8x128xf32> to vector<8x128xbf16>
    %c0_33 = arith.constant 0 : index
    %c0_34 = arith.constant 0 : index
    %63 = vector.load %arg5[%c0_33, %c0_34] : memref<128x512xbf16, #tpu.memory_space<vmem>>, vector<128x512xbf16>
    %cst_35 = arith.constant dense<0.000000e+00> : vector<8x512xf32>
    %64 = tpu.matmul %62, %63, %cst_35 {dimension_numbers = #tpu.dot_dimension_numbers<[1], [0], [0], [1], [0, 0, 1, 1], [], []>} : vector<8x128xbf16>, vector<128x512xbf16>, vector<8x512xf32> -> vector<8x512xf32>
    %65 = arith.extf %61 : vector<8x512xbf16> to vector<8x512xf32>
    %66 = arith.addf %65, %64 : vector<8x512xf32>
    %67 = vector.extract_strided_slice %66 {offsets = [0, 0], sizes = [8, 128], strides = [1, 1]} : vector<8x512xf32> to vector<8x128xf32>
    %cst_36 = arith.constant 5.000000e-01 : f32
    %68 = vector.broadcast %cst_36 : f32 to vector<8x128xf32>
    %69 = arith.mulf %67, %68 : vector<8x128xf32>
    %70 = math.tanh %69 : vector<8x128xf32>
    %cst_37 = arith.constant 5.000000e-01 : f32
    %71 = vector.broadcast %cst_37 : f32 to vector<8x128xf32>
    %72 = arith.mulf %70, %71 : vector<8x128xf32>
    %cst_38 = arith.constant 5.000000e-01 : f32
    %73 = vector.broadcast %cst_38 : f32 to vector<8x128xf32>
    %74 = arith.addf %72, %73 : vector<8x128xf32>
    %75 = vector.extract_strided_slice %66 {offsets = [0, 128], sizes = [8, 128], strides = [1, 1]} : vector<8x512xf32> to vector<8x128xf32>
    %cst_39 = arith.constant 5.000000e-01 : f32
    %76 = vector.broadcast %cst_39 : f32 to vector<8x128xf32>
    %77 = arith.mulf %75, %76 : vector<8x128xf32>
    %78 = math.tanh %77 : vector<8x128xf32>
    %cst_40 = arith.constant 5.000000e-01 : f32
    %79 = vector.broadcast %cst_40 : f32 to vector<8x128xf32>
    %80 = arith.mulf %78, %79 : vector<8x128xf32>
    %cst_41 = arith.constant 5.000000e-01 : f32
    %81 = vector.broadcast %cst_41 : f32 to vector<8x128xf32>
    %82 = arith.addf %80, %81 : vector<8x128xf32>
    %83 = vector.extract_strided_slice %66 {offsets = [0, 256], sizes = [8, 128], strides = [1, 1]} : vector<8x512xf32> to vector<8x128xf32>
    %84 = math.tanh %83 : vector<8x128xf32>
    %85 = vector.extract_strided_slice %66 {offsets = [0, 384], sizes = [8, 128], strides = [1, 1]} : vector<8x512xf32> to vector<8x128xf32>
    %cst_42 = arith.constant 5.000000e-01 : f32
    %86 = vector.broadcast %cst_42 : f32 to vector<8x128xf32>
    %87 = arith.mulf %85, %86 : vector<8x128xf32>
    %88 = math.tanh %87 : vector<8x128xf32>
    %cst_43 = arith.constant 5.000000e-01 : f32
    %89 = vector.broadcast %cst_43 : f32 to vector<8x128xf32>
    %90 = arith.mulf %88, %89 : vector<8x128xf32>
    %cst_44 = arith.constant 5.000000e-01 : f32
    %91 = vector.broadcast %cst_44 : f32 to vector<8x128xf32>
    %92 = arith.addf %90, %91 : vector<8x128xf32>
    %93 = arith.mulf %82, %52 : vector<8x128xf32>
    %94 = arith.mulf %74, %84 : vector<8x128xf32>
    %95 = arith.addf %93, %94 : vector<8x128xf32>
    %96 = math.tanh %95 : vector<8x128xf32>
    %97 = arith.mulf %92, %96 : vector<8x128xf32>
    %98 = arith.index_cast %c1_i32 : i32 to index
    %c0_45 = arith.constant 0 : index
    %c0_46 = arith.constant 0 : index
    %99 = vector.load %arg7[%98, %c0_45, %c0_46] : memref<8x8x128xf32, #tpu.memory_space<vmem>>, vector<1x8x128xf32>
    %100 = vector.shape_cast %99 : vector<1x8x128xf32> to vector<8x128xf32>
    %101 = vector.shape_cast %97 : vector<8x128xf32> to vector<1x8x128xf32>
    tpu.vector_store %arg7[%98, %c0_45, %c0_46], %101 {strides = array<i32>} : memref<8x8x128xf32, #tpu.memory_space<vmem>>, vector<1x8x128xf32>,
    %c2_i32 = arith.constant 2 : i32
    %102 = arith.index_cast %c2_i32 : i32 to index
    %c0_47 = arith.constant 0 : index
    %c0_48 = arith.constant 0 : index
    %103 = vector.load %arg10[%102, %c0_47, %c0_48] : memref<8x8x512xbf16, #tpu.memory_space<vmem>>, vector<1x8x512xbf16>
    %104 = vector.shape_cast %103 : vector<1x8x512xbf16> to vector<8x512xbf16>
    %105 = arith.truncf %97 : vector<8x128xf32> to vector<8x128xbf16>
    %c0_49 = arith.constant 0 : index
    %c0_50 = arith.constant 0 : index
    %106 = vector.load %arg5[%c0_49, %c0_50] : memref<128x512xbf16, #tpu.memory_space<vmem>>, vector<128x512xbf16>
    %cst_51 = arith.constant dense<0.000000e+00> : vector<8x512xf32>
    %107 = tpu.matmul %105, %106, %cst_51 {dimension_numbers = #tpu.dot_dimension_numbers<[1], [0], [0], [1], [0, 0, 1, 1], [], []>} : vector<8x128xbf16>, vector<128x512xbf16>, vector<8x512xf32> -> vector<8x512xf32>
    %108 = arith.extf %104 : vector<8x512xbf16> to vector<8x512xf32>
    %109 = arith.addf %108, %107 : vector<8x512xf32>
    %110 = vector.extract_strided_slice %109 {offsets = [0, 0], sizes = [8, 128], strides = [1, 1]} : vector<8x512xf32> to vector<8x128xf32>
    %cst_52 = arith.constant 5.000000e-01 : f32
    %111 = vector.broadcast %cst_52 : f32 to vector<8x128xf32>
    %112 = arith.mulf %110, %111 : vector<8x128xf32>
    %113 = math.tanh %112 : vector<8x128xf32>
    %cst_53 = arith.constant 5.000000e-01 : f32
    %114 = vector.broadcast %cst_53 : f32 to vector<8x128xf32>
    %115 = arith.mulf %113, %114 : vector<8x128xf32>
    %cst_54 = arith.constant 5.000000e-01 : f32
    %116 = vector.broadcast %cst_54 : f32 to vector<8x128xf32>
    %117 = arith.addf %115, %116 : vector<8x128xf32>
    %118 = vector.extract_strided_slice %109 {offsets = [0, 128], sizes = [8, 128], strides = [1, 1]} : vector<8x512xf32> to vector<8x128xf32>
    %cst_55 = arith.constant 5.000000e-01 : f32
    %119 = vector.broadcast %cst_55 : f32 to vector<8x128xf32>
    %120 = arith.mulf %118, %119 : vector<8x128xf32>
    %121 = math.tanh %120 : vector<8x128xf32>
    %cst_56 = arith.constant 5.000000e-01 : f32
    %122 = vector.broadcast %cst_56 : f32 to vector<8x128xf32>
    %123 = arith.mulf %121, %122 : vector<8x128xf32>
    %cst_57 = arith.constant 5.000000e-01 : f32
    %124 = vector.broadcast %cst_57 : f32 to vector<8x128xf32>
    %125 = arith.addf %123, %124 : vector<8x128xf32>
    %126 = vector.extract_strided_slice %109 {offsets = [0, 256], sizes = [8, 128], strides = [1, 1]} : vector<8x512xf32> to vector<8x128xf32>
    %127 = math.tanh %126 : vector<8x128xf32>
    %128 = vector.extract_strided_slice %109 {offsets = [0, 384], sizes = [8, 128], strides = [1, 1]} : vector<8x512xf32> to vector<8x128xf32>
    %cst_58 = arith.constant 5.000000e-01 : f32
    %129 = vector.broadcast %cst_58 : f32 to vector<8x128xf32>
    %130 = arith.mulf %128, %129 : vector<8x128xf32>
    %131 = math.tanh %130 : vector<8x128xf32>
    %cst_59 = arith.constant 5.000000e-01 : f32
    %132 = vector.broadcast %cst_59 : f32 to vector<8x128xf32>
    %133 = arith.mulf %131, %132 : vector<8x128xf32>
    %cst_60 = arith.constant 5.000000e-01 : f32
    %134 = vector.broadcast %cst_60 : f32 to vector<8x128xf32>
    %135 = arith.addf %133, %134 : vector<8x128xf32>
    %136 = arith.mulf %125, %95 : vector<8x128xf32>
    %137 = arith.mulf %117, %127 : vector<8x128xf32>
    %138 = arith.addf %136, %137 : vector<8x128xf32>
    %139 = math.tanh %138 : vector<8x128xf32>
    %140 = arith.mulf %135, %139 : vector<8x128xf32>
    %141 = arith.index_cast %c2_i32 : i32 to index
    %c0_61 = arith.constant 0 : index
    %c0_62 = arith.constant 0 : index
    %142 = vector.load %arg7[%141, %c0_61, %c0_62] : memref<8x8x128xf32, #tpu.memory_space<vmem>>, vector<1x8x128xf32>
    %143 = vector.shape_cast %142 : vector<1x8x128xf32> to vector<8x128xf32>
    %144 = vector.shape_cast %140 : vector<8x128xf32> to vector<1x8x128xf32>
    tpu.vector_store %arg7[%141, %c0_61, %c0_62], %144 {strides = array<i32>} : memref<8x8x128xf32, #tpu.memory_space<vmem>>, vector<1x8x128xf32>,
    %c3_i32 = arith.constant 3 : i32
    %145 = arith.index_cast %c3_i32 : i32 to index
    %c0_63 = arith.constant 0 : index
    %c0_64 = arith.constant 0 : index
    %146 = vector.load %arg10[%145, %c0_63, %c0_64] : memref<8x8x512xbf16, #tpu.memory_space<vmem>>, vector<1x8x512xbf16>
    %147 = vector.shape_cast %146 : vector<1x8x512xbf16> to vector<8x512xbf16>
    %148 = arith.truncf %140 : vector<8x128xf32> to vector<8x128xbf16>
    %c0_65 = arith.constant 0 : index
    %c0_66 = arith.constant 0 : index
    %149 = vector.load %arg5[%c0_65, %c0_66] : memref<128x512xbf16, #tpu.memory_space<vmem>>, vector<128x512xbf16>
    %cst_67 = arith.constant dense<0.000000e+00> : vector<8x512xf32>
    %150 = tpu.matmul %148, %149, %cst_67 {dimension_numbers = #tpu.dot_dimension_numbers<[1], [0], [0], [1], [0, 0, 1, 1], [], []>} : vector<8x128xbf16>, vector<128x512xbf16>, vector<8x512xf32> -> vector<8x512xf32>
    %151 = arith.extf %147 : vector<8x512xbf16> to vector<8x512xf32>
    %152 = arith.addf %151, %150 : vector<8x512xf32>
    %153 = vector.extract_strided_slice %152 {offsets = [0, 0], sizes = [8, 128], strides = [1, 1]} : vector<8x512xf32> to vector<8x128xf32>
    %cst_68 = arith.constant 5.000000e-01 : f32
    %154 = vector.broadcast %cst_68 : f32 to vector<8x128xf32>
    %155 = arith.mulf %153, %154 : vector<8x128xf32>
    %156 = math.tanh %155 : vector<8x128xf32>
    %cst_69 = arith.constant 5.000000e-01 : f32
    %157 = vector.broadcast %cst_69 : f32 to vector<8x128xf32>
    %158 = arith.mulf %156, %157 : vector<8x128xf32>
    %cst_70 = arith.constant 5.000000e-01 : f32
    %159 = vector.broadcast %cst_70 : f32 to vector<8x128xf32>
    %160 = arith.addf %158, %159 : vector<8x128xf32>
    %161 = vector.extract_strided_slice %152 {offsets = [0, 128], sizes = [8, 128], strides = [1, 1]} : vector<8x512xf32> to vector<8x128xf32>
    %cst_71 = arith.constant 5.000000e-01 : f32
    %162 = vector.broadcast %cst_71 : f32 to vector<8x128xf32>
    %163 = arith.mulf %161, %162 : vector<8x128xf32>
    %164 = math.tanh %163 : vector<8x128xf32>
    %cst_72 = arith.constant 5.000000e-01 : f32
    %165 = vector.broadcast %cst_72 : f32 to vector<8x128xf32>
    %166 = arith.mulf %164, %165 : vector<8x128xf32>
    %cst_73 = arith.constant 5.000000e-01 : f32
    %167 = vector.broadcast %cst_73 : f32 to vector<8x128xf32>
    %168 = arith.addf %166, %167 : vector<8x128xf32>
    %169 = vector.extract_strided_slice %152 {offsets = [0, 256], sizes = [8, 128], strides = [1, 1]} : vector<8x512xf32> to vector<8x128xf32>
    %170 = math.tanh %169 : vector<8x128xf32>
    %171 = vector.extract_strided_slice %152 {offsets = [0, 384], sizes = [8, 128], strides = [1, 1]} : vector<8x512xf32> to vector<8x128xf32>
    %cst_74 = arith.constant 5.000000e-01 : f32
    %172 = vector.broadcast %cst_74 : f32 to vector<8x128xf32>
    %173 = arith.mulf %171, %172 : vector<8x128xf32>
    %174 = math.tanh %173 : vector<8x128xf32>
    %cst_75 = arith.constant 5.000000e-01 : f32
    %175 = vector.broadcast %cst_75 : f32 to vector<8x128xf32>
    %176 = arith.mulf %174, %175 : vector<8x128xf32>
    %cst_76 = arith.constant 5.000000e-01 : f32
    %177 = vector.broadcast %cst_76 : f32 to vector<8x128xf32>
    %178 = arith.addf %176, %177 : vector<8x128xf32>
    %179 = arith.mulf %168, %138 : vector<8x128xf32>
    %180 = arith.mulf %160, %170 : vector<8x128xf32>
    %181 = arith.addf %179, %180 : vector<8x128xf32>
    %182 = math.tanh %181 : vector<8x128xf32>
    %183 = arith.mulf %178, %182 : vector<8x128xf32>
    %184 = arith.index_cast %c3_i32 : i32 to index
    %c0_77 = arith.constant 0 : index
    %c0_78 = arith.constant 0 : index
    %185 = vector.load %arg7[%184, %c0_77, %c0_78] : memref<8x8x128xf32, #tpu.memory_space<vmem>>, vector<1x8x128xf32>
    %186 = vector.shape_cast %185 : vector<1x8x128xf32> to vector<8x128xf32>
    %187 = vector.shape_cast %183 : vector<8x128xf32> to vector<1x8x128xf32>
    tpu.vector_store %arg7[%184, %c0_77, %c0_78], %187 {strides = array<i32>} : memref<8x8x128xf32, #tpu.memory_space<vmem>>, vector<1x8x128xf32>,
    %c4_i32 = arith.constant 4 : i32
    %188 = arith.index_cast %c4_i32 : i32 to index
    %c0_79 = arith.constant 0 : index
    %c0_80 = arith.constant 0 : index
    %189 = vector.load %arg10[%188, %c0_79, %c0_80] : memref<8x8x512xbf16, #tpu.memory_space<vmem>>, vector<1x8x512xbf16>
    %190 = vector.shape_cast %189 : vector<1x8x512xbf16> to vector<8x512xbf16>
    %191 = arith.truncf %183 : vector<8x128xf32> to vector<8x128xbf16>
    %c0_81 = arith.constant 0 : index
    %c0_82 = arith.constant 0 : index
    %192 = vector.load %arg5[%c0_81, %c0_82] : memref<128x512xbf16, #tpu.memory_space<vmem>>, vector<128x512xbf16>
    %cst_83 = arith.constant dense<0.000000e+00> : vector<8x512xf32>
    %193 = tpu.matmul %191, %192, %cst_83 {dimension_numbers = #tpu.dot_dimension_numbers<[1], [0], [0], [1], [0, 0, 1, 1], [], []>} : vector<8x128xbf16>, vector<128x512xbf16>, vector<8x512xf32> -> vector<8x512xf32>
    %194 = arith.extf %190 : vector<8x512xbf16> to vector<8x512xf32>
    %195 = arith.addf %194, %193 : vector<8x512xf32>
    %196 = vector.extract_strided_slice %195 {offsets = [0, 0], sizes = [8, 128], strides = [1, 1]} : vector<8x512xf32> to vector<8x128xf32>
    %cst_84 = arith.constant 5.000000e-01 : f32
    %197 = vector.broadcast %cst_84 : f32 to vector<8x128xf32>
    %198 = arith.mulf %196, %197 : vector<8x128xf32>
    %199 = math.tanh %198 : vector<8x128xf32>
    %cst_85 = arith.constant 5.000000e-01 : f32
    %200 = vector.broadcast %cst_85 : f32 to vector<8x128xf32>
    %201 = arith.mulf %199, %200 : vector<8x128xf32>
    %cst_86 = arith.constant 5.000000e-01 : f32
    %202 = vector.broadcast %cst_86 : f32 to vector<8x128xf32>
    %203 = arith.addf %201, %202 : vector<8x128xf32>
    %204 = vector.extract_strided_slice %195 {offsets = [0, 128], sizes = [8, 128], strides = [1, 1]} : vector<8x512xf32> to vector<8x128xf32>
    %cst_87 = arith.constant 5.000000e-01 : f32
    %205 = vector.broadcast %cst_87 : f32 to vector<8x128xf32>
    %206 = arith.mulf %204, %205 : vector<8x128xf32>
    %207 = math.tanh %206 : vector<8x128xf32>
    %cst_88 = arith.constant 5.000000e-01 : f32
    %208 = vector.broadcast %cst_88 : f32 to vector<8x128xf32>
    %209 = arith.mulf %207, %208 : vector<8x128xf32>
    %cst_89 = arith.constant 5.000000e-01 : f32
    %210 = vector.broadcast %cst_89 : f32 to vector<8x128xf32>
    %211 = arith.addf %209, %210 : vector<8x128xf32>
    %212 = vector.extract_strided_slice %195 {offsets = [0, 256], sizes = [8, 128], strides = [1, 1]} : vector<8x512xf32> to vector<8x128xf32>
    %213 = math.tanh %212 : vector<8x128xf32>
    %214 = vector.extract_strided_slice %195 {offsets = [0, 384], sizes = [8, 128], strides = [1, 1]} : vector<8x512xf32> to vector<8x128xf32>
    %cst_90 = arith.constant 5.000000e-01 : f32
    %215 = vector.broadcast %cst_90 : f32 to vector<8x128xf32>
    %216 = arith.mulf %214, %215 : vector<8x128xf32>
    %217 = math.tanh %216 : vector<8x128xf32>
    %cst_91 = arith.constant 5.000000e-01 : f32
    %218 = vector.broadcast %cst_91 : f32 to vector<8x128xf32>
    %219 = arith.mulf %217, %218 : vector<8x128xf32>
    %cst_92 = arith.constant 5.000000e-01 : f32
    %220 = vector.broadcast %cst_92 : f32 to vector<8x128xf32>
    %221 = arith.addf %219, %220 : vector<8x128xf32>
    %222 = arith.mulf %211, %181 : vector<8x128xf32>
    %223 = arith.mulf %203, %213 : vector<8x128xf32>
    %224 = arith.addf %222, %223 : vector<8x128xf32>
    %225 = math.tanh %224 : vector<8x128xf32>
    %226 = arith.mulf %221, %225 : vector<8x128xf32>
    %227 = arith.index_cast %c4_i32 : i32 to index
    %c0_93 = arith.constant 0 : index
    %c0_94 = arith.constant 0 : index
    %228 = vector.load %arg7[%227, %c0_93, %c0_94] : memref<8x8x128xf32, #tpu.memory_space<vmem>>, vector<1x8x128xf32>
    %229 = vector.shape_cast %228 : vector<1x8x128xf32> to vector<8x128xf32>
    %230 = vector.shape_cast %226 : vector<8x128xf32> to vector<1x8x128xf32>
    tpu.vector_store %arg7[%227, %c0_93, %c0_94], %230 {strides = array<i32>} : memref<8x8x128xf32, #tpu.memory_space<vmem>>, vector<1x8x128xf32>,
    %c5_i32 = arith.constant 5 : i32
    %231 = arith.index_cast %c5_i32 : i32 to index
    %c0_95 = arith.constant 0 : index
    %c0_96 = arith.constant 0 : index
    %232 = vector.load %arg10[%231, %c0_95, %c0_96] : memref<8x8x512xbf16, #tpu.memory_space<vmem>>, vector<1x8x512xbf16>
    %233 = vector.shape_cast %232 : vector<1x8x512xbf16> to vector<8x512xbf16>
    %234 = arith.truncf %226 : vector<8x128xf32> to vector<8x128xbf16>
    %c0_97 = arith.constant 0 : index
    %c0_98 = arith.constant 0 : index
    %235 = vector.load %arg5[%c0_97, %c0_98] : memref<128x512xbf16, #tpu.memory_space<vmem>>, vector<128x512xbf16>
    %cst_99 = arith.constant dense<0.000000e+00> : vector<8x512xf32>
    %236 = tpu.matmul %234, %235, %cst_99 {dimension_numbers = #tpu.dot_dimension_numbers<[1], [0], [0], [1], [0, 0, 1, 1], [], []>} : vector<8x128xbf16>, vector<128x512xbf16>, vector<8x512xf32> -> vector<8x512xf32>
    %237 = arith.extf %233 : vector<8x512xbf16> to vector<8x512xf32>
    %238 = arith.addf %237, %236 : vector<8x512xf32>
    %239 = vector.extract_strided_slice %238 {offsets = [0, 0], sizes = [8, 128], strides = [1, 1]} : vector<8x512xf32> to vector<8x128xf32>
    %cst_100 = arith.constant 5.000000e-01 : f32
    %240 = vector.broadcast %cst_100 : f32 to vector<8x128xf32>
    %241 = arith.mulf %239, %240 : vector<8x128xf32>
    %242 = math.tanh %241 : vector<8x128xf32>
    %cst_101 = arith.constant 5.000000e-01 : f32
    %243 = vector.broadcast %cst_101 : f32 to vector<8x128xf32>
    %244 = arith.mulf %242, %243 : vector<8x128xf32>
    %cst_102 = arith.constant 5.000000e-01 : f32
    %245 = vector.broadcast %cst_102 : f32 to vector<8x128xf32>
    %246 = arith.addf %244, %245 : vector<8x128xf32>
    %247 = vector.extract_strided_slice %238 {offsets = [0, 128], sizes = [8, 128], strides = [1, 1]} : vector<8x512xf32> to vector<8x128xf32>
    %cst_103 = arith.constant 5.000000e-01 : f32
    %248 = vector.broadcast %cst_103 : f32 to vector<8x128xf32>
    %249 = arith.mulf %247, %248 : vector<8x128xf32>
    %250 = math.tanh %249 : vector<8x128xf32>
    %cst_104 = arith.constant 5.000000e-01 : f32
    %251 = vector.broadcast %cst_104 : f32 to vector<8x128xf32>
    %252 = arith.mulf %250, %251 : vector<8x128xf32>
    %cst_105 = arith.constant 5.000000e-01 : f32
    %253 = vector.broadcast %cst_105 : f32 to vector<8x128xf32>
    %254 = arith.addf %252, %253 : vector<8x128xf32>
    %255 = vector.extract_strided_slice %238 {offsets = [0, 256], sizes = [8, 128], strides = [1, 1]} : vector<8x512xf32> to vector<8x128xf32>
    %256 = math.tanh %255 : vector<8x128xf32>
    %257 = vector.extract_strided_slice %238 {offsets = [0, 384], sizes = [8, 128], strides = [1, 1]} : vector<8x512xf32> to vector<8x128xf32>
    %cst_106 = arith.constant 5.000000e-01 : f32
    %258 = vector.broadcast %cst_106 : f32 to vector<8x128xf32>
    %259 = arith.mulf %257, %258 : vector<8x128xf32>
    %260 = math.tanh %259 : vector<8x128xf32>
    %cst_107 = arith.constant 5.000000e-01 : f32
    %261 = vector.broadcast %cst_107 : f32 to vector<8x128xf32>
    %262 = arith.mulf %260, %261 : vector<8x128xf32>
    %cst_108 = arith.constant 5.000000e-01 : f32
    %263 = vector.broadcast %cst_108 : f32 to vector<8x128xf32>
    %264 = arith.addf %262, %263 : vector<8x128xf32>
    %265 = arith.mulf %254, %224 : vector<8x128xf32>
    %266 = arith.mulf %246, %256 : vector<8x128xf32>
    %267 = arith.addf %265, %266 : vector<8x128xf32>
    %268 = math.tanh %267 : vector<8x128xf32>
    %269 = arith.mulf %264, %268 : vector<8x128xf32>
    %270 = arith.index_cast %c5_i32 : i32 to index
    %c0_109 = arith.constant 0 : index
    %c0_110 = arith.constant 0 : index
    %271 = vector.load %arg7[%270, %c0_109, %c0_110] : memref<8x8x128xf32, #tpu.memory_space<vmem>>, vector<1x8x128xf32>
    %272 = vector.shape_cast %271 : vector<1x8x128xf32> to vector<8x128xf32>
    %273 = vector.shape_cast %269 : vector<8x128xf32> to vector<1x8x128xf32>
    tpu.vector_store %arg7[%270, %c0_109, %c0_110], %273 {strides = array<i32>} : memref<8x8x128xf32, #tpu.memory_space<vmem>>, vector<1x8x128xf32>,
    %c6_i32 = arith.constant 6 : i32
    %274 = arith.index_cast %c6_i32 : i32 to index
    %c0_111 = arith.constant 0 : index
    %c0_112 = arith.constant 0 : index
    %275 = vector.load %arg10[%274, %c0_111, %c0_112] : memref<8x8x512xbf16, #tpu.memory_space<vmem>>, vector<1x8x512xbf16>
    %276 = vector.shape_cast %275 : vector<1x8x512xbf16> to vector<8x512xbf16>
    %277 = arith.truncf %269 : vector<8x128xf32> to vector<8x128xbf16>
    %c0_113 = arith.constant 0 : index
    %c0_114 = arith.constant 0 : index
    %278 = vector.load %arg5[%c0_113, %c0_114] : memref<128x512xbf16, #tpu.memory_space<vmem>>, vector<128x512xbf16>
    %cst_115 = arith.constant dense<0.000000e+00> : vector<8x512xf32>
    %279 = tpu.matmul %277, %278, %cst_115 {dimension_numbers = #tpu.dot_dimension_numbers<[1], [0], [0], [1], [0, 0, 1, 1], [], []>} : vector<8x128xbf16>, vector<128x512xbf16>, vector<8x512xf32> -> vector<8x512xf32>
    %280 = arith.extf %276 : vector<8x512xbf16> to vector<8x512xf32>
    %281 = arith.addf %280, %279 : vector<8x512xf32>
    %282 = vector.extract_strided_slice %281 {offsets = [0, 0], sizes = [8, 128], strides = [1, 1]} : vector<8x512xf32> to vector<8x128xf32>
    %cst_116 = arith.constant 5.000000e-01 : f32
    %283 = vector.broadcast %cst_116 : f32 to vector<8x128xf32>
    %284 = arith.mulf %282, %283 : vector<8x128xf32>
    %285 = math.tanh %284 : vector<8x128xf32>
    %cst_117 = arith.constant 5.000000e-01 : f32
    %286 = vector.broadcast %cst_117 : f32 to vector<8x128xf32>
    %287 = arith.mulf %285, %286 : vector<8x128xf32>
    %cst_118 = arith.constant 5.000000e-01 : f32
    %288 = vector.broadcast %cst_118 : f32 to vector<8x128xf32>
    %289 = arith.addf %287, %288 : vector<8x128xf32>
    %290 = vector.extract_strided_slice %281 {offsets = [0, 128], sizes = [8, 128], strides = [1, 1]} : vector<8x512xf32> to vector<8x128xf32>
    %cst_119 = arith.constant 5.000000e-01 : f32
    %291 = vector.broadcast %cst_119 : f32 to vector<8x128xf32>
    %292 = arith.mulf %290, %291 : vector<8x128xf32>
    %293 = math.tanh %292 : vector<8x128xf32>
    %cst_120 = arith.constant 5.000000e-01 : f32
    %294 = vector.broadcast %cst_120 : f32 to vector<8x128xf32>
    %295 = arith.mulf %293, %294 : vector<8x128xf32>
    %cst_121 = arith.constant 5.000000e-01 : f32
    %296 = vector.broadcast %cst_121 : f32 to vector<8x128xf32>
    %297 = arith.addf %295, %296 : vector<8x128xf32>
    %298 = vector.extract_strided_slice %281 {offsets = [0, 256], sizes = [8, 128], strides = [1, 1]} : vector<8x512xf32> to vector<8x128xf32>
    %299 = math.tanh %298 : vector<8x128xf32>
    %300 = vector.extract_strided_slice %281 {offsets = [0, 384], sizes = [8, 128], strides = [1, 1]} : vector<8x512xf32> to vector<8x128xf32>
    %cst_122 = arith.constant 5.000000e-01 : f32
    %301 = vector.broadcast %cst_122 : f32 to vector<8x128xf32>
    %302 = arith.mulf %300, %301 : vector<8x128xf32>
    %303 = math.tanh %302 : vector<8x128xf32>
    %cst_123 = arith.constant 5.000000e-01 : f32
    %304 = vector.broadcast %cst_123 : f32 to vector<8x128xf32>
    %305 = arith.mulf %303, %304 : vector<8x128xf32>
    %cst_124 = arith.constant 5.000000e-01 : f32
    %306 = vector.broadcast %cst_124 : f32 to vector<8x128xf32>
    %307 = arith.addf %305, %306 : vector<8x128xf32>
    %308 = arith.mulf %297, %267 : vector<8x128xf32>
    %309 = arith.mulf %289, %299 : vector<8x128xf32>
    %310 = arith.addf %308, %309 : vector<8x128xf32>
    %311 = math.tanh %310 : vector<8x128xf32>
    %312 = arith.mulf %307, %311 : vector<8x128xf32>
    %313 = arith.index_cast %c6_i32 : i32 to index
    %c0_125 = arith.constant 0 : index
    %c0_126 = arith.constant 0 : index
    %314 = vector.load %arg7[%313, %c0_125, %c0_126] : memref<8x8x128xf32, #tpu.memory_space<vmem>>, vector<1x8x128xf32>
    %315 = vector.shape_cast %314 : vector<1x8x128xf32> to vector<8x128xf32>
    %316 = vector.shape_cast %312 : vector<8x128xf32> to vector<1x8x128xf32>
    tpu.vector_store %arg7[%313, %c0_125, %c0_126], %316 {strides = array<i32>} : memref<8x8x128xf32, #tpu.memory_space<vmem>>, vector<1x8x128xf32>,
    %c7_i32 = arith.constant 7 : i32
    %317 = arith.index_cast %c7_i32 : i32 to index
    %c0_127 = arith.constant 0 : index
    %c0_128 = arith.constant 0 : index
    %318 = vector.load %arg10[%317, %c0_127, %c0_128] : memref<8x8x512xbf16, #tpu.memory_space<vmem>>, vector<1x8x512xbf16>
    %319 = vector.shape_cast %318 : vector<1x8x512xbf16> to vector<8x512xbf16>
    %320 = arith.truncf %312 : vector<8x128xf32> to vector<8x128xbf16>
    %c0_129 = arith.constant 0 : index
    %c0_130 = arith.constant 0 : index
    %321 = vector.load %arg5[%c0_129, %c0_130] : memref<128x512xbf16, #tpu.memory_space<vmem>>, vector<128x512xbf16>
    %cst_131 = arith.constant dense<0.000000e+00> : vector<8x512xf32>
    %322 = tpu.matmul %320, %321, %cst_131 {dimension_numbers = #tpu.dot_dimension_numbers<[1], [0], [0], [1], [0, 0, 1, 1], [], []>} : vector<8x128xbf16>, vector<128x512xbf16>, vector<8x512xf32> -> vector<8x512xf32>
    %323 = arith.extf %319 : vector<8x512xbf16> to vector<8x512xf32>
    %324 = arith.addf %323, %322 : vector<8x512xf32>
    %325 = vector.extract_strided_slice %324 {offsets = [0, 0], sizes = [8, 128], strides = [1, 1]} : vector<8x512xf32> to vector<8x128xf32>
    %cst_132 = arith.constant 5.000000e-01 : f32
    %326 = vector.broadcast %cst_132 : f32 to vector<8x128xf32>
    %327 = arith.mulf %325, %326 : vector<8x128xf32>
    %328 = math.tanh %327 : vector<8x128xf32>
    %cst_133 = arith.constant 5.000000e-01 : f32
    %329 = vector.broadcast %cst_133 : f32 to vector<8x128xf32>
    %330 = arith.mulf %328, %329 : vector<8x128xf32>
    %cst_134 = arith.constant 5.000000e-01 : f32
    %331 = vector.broadcast %cst_134 : f32 to vector<8x128xf32>
    %332 = arith.addf %330, %331 : vector<8x128xf32>
    %333 = vector.extract_strided_slice %324 {offsets = [0, 128], sizes = [8, 128], strides = [1, 1]} : vector<8x512xf32> to vector<8x128xf32>
    %cst_135 = arith.constant 5.000000e-01 : f32
    %334 = vector.broadcast %cst_135 : f32 to vector<8x128xf32>
    %335 = arith.mulf %333, %334 : vector<8x128xf32>
    %336 = math.tanh %335 : vector<8x128xf32>
    %cst_136 = arith.constant 5.000000e-01 : f32
    %337 = vector.broadcast %cst_136 : f32 to vector<8x128xf32>
    %338 = arith.mulf %336, %337 : vector<8x128xf32>
    %cst_137 = arith.constant 5.000000e-01 : f32
    %339 = vector.broadcast %cst_137 : f32 to vector<8x128xf32>
    %340 = arith.addf %338, %339 : vector<8x128xf32>
    %341 = vector.extract_strided_slice %324 {offsets = [0, 256], sizes = [8, 128], strides = [1, 1]} : vector<8x512xf32> to vector<8x128xf32>
    %342 = math.tanh %341 : vector<8x128xf32>
    %343 = vector.extract_strided_slice %324 {offsets = [0, 384], sizes = [8, 128], strides = [1, 1]} : vector<8x512xf32> to vector<8x128xf32>
    %cst_138 = arith.constant 5.000000e-01 : f32
    %344 = vector.broadcast %cst_138 : f32 to vector<8x128xf32>
    %345 = arith.mulf %343, %344 : vector<8x128xf32>
    %346 = math.tanh %345 : vector<8x128xf32>
    %cst_139 = arith.constant 5.000000e-01 : f32
    %347 = vector.broadcast %cst_139 : f32 to vector<8x128xf32>
    %348 = arith.mulf %346, %347 : vector<8x128xf32>
    %cst_140 = arith.constant 5.000000e-01 : f32
    %349 = vector.broadcast %cst_140 : f32 to vector<8x128xf32>
    %350 = arith.addf %348, %349 : vector<8x128xf32>
    %351 = arith.mulf %340, %310 : vector<8x128xf32>
    %352 = arith.mulf %332, %342 : vector<8x128xf32>
    %353 = arith.addf %351, %352 : vector<8x128xf32>
    %354 = math.tanh %353 : vector<8x128xf32>
    %355 = arith.mulf %350, %354 : vector<8x128xf32>
    %356 = arith.index_cast %c7_i32 : i32 to index
    %c0_141 = arith.constant 0 : index
    %c0_142 = arith.constant 0 : index
    %357 = vector.load %arg7[%356, %c0_141, %c0_142] : memref<8x8x128xf32, #tpu.memory_space<vmem>>, vector<1x8x128xf32>
    %358 = vector.shape_cast %357 : vector<1x8x128xf32> to vector<8x128xf32>
    %359 = vector.shape_cast %355 : vector<8x128xf32> to vector<1x8x128xf32>
    tpu.vector_store %arg7[%356, %c0_141, %c0_142], %359 {strides = array<i32>} : memref<8x8x128xf32, #tpu.memory_space<vmem>>, vector<1x8x128xf32>,
    %c8_i32 = arith.constant 8 : i32
    %c0_143 = arith.constant 0 : index
    %c0_144 = arith.constant 0 : index
    %360 = vector.load %arg8[%c0_143, %c0_144] : memref<8x128xf32, #tpu.memory_space<vmem>>, vector<8x128xf32>
    tpu.vector_store %arg8[%c0_143, %c0_144], %355 {strides = array<i32>} : memref<8x128xf32, #tpu.memory_space<vmem>>, vector<8x128xf32>,
    %c0_145 = arith.constant 0 : index
    %c0_146 = arith.constant 0 : index
    %361 = vector.load %arg9[%c0_145, %c0_146] : memref<8x128xf32, #tpu.memory_space<vmem>>, vector<8x128xf32>
    tpu.vector_store %arg9[%c0_145, %c0_146], %353 {strides = array<i32>} : memref<8x128xf32, #tpu.memory_space<vmem>>, vector<8x128xf32>,
    %c8_i32_147 = arith.constant 8 : i32
    %362 = arith.muli %arg1, %c8_i32_147 : i32
    %363 = tpu.iota {dimensions = array<i32: 0>} : vector<8x8x1xi32>
    %364 = vector.broadcast %362 : i32 to vector<8x8x1xi32>
    %365 = arith.addi %364, %363 : vector<8x8x1xi32>
    %c0_148 = arith.constant 0 : index
    %c0_149 = arith.constant 0 : index
    %366 = vector.load %arg3[%c0_148, %c0_149] : memref<8x1xi32, #tpu.memory_space<vmem>>, vector<8x1xi32>
    %367 = vector.shape_cast %366 : vector<8x1xi32> to vector<1x8x1xi32>
    %368 = vector.broadcast %367 : vector<1x8x1xi32> to vector<8x8x1xi32>
    %369 = arith.cmpi slt, %365, %368 : vector<8x8x1xi32>
    %370 = arith.extui %369 : vector<8x8x1xi1> to vector<8x8x1xi32>
    %371 = arith.sitofp %370 : vector<8x8x1xi32> to vector<8x8x1xf32>
    %c0_150 = arith.constant 0 : index
    %c0_151 = arith.constant 0 : index
    %c0_152 = arith.constant 0 : index
    %372 = vector.load %arg7[%c0_150, %c0_151, %c0_152] : memref<8x8x128xf32, #tpu.memory_space<vmem>>, vector<8x8x128xf32>
    %373 = vector.broadcast %371 : vector<8x8x1xf32> to vector<8x8x128xf32>
    %374 = arith.mulf %372, %373 : vector<8x8x128xf32>
    %c0_153 = arith.constant 0 : index
    %c0_154 = arith.constant 0 : index
    %c0_155 = arith.constant 0 : index
    %375 = vector.load %arg7[%c0_153, %c0_154, %c0_155] : memref<8x8x128xf32, #tpu.memory_space<vmem>>, vector<8x8x128xf32>
    tpu.vector_store %arg7[%c0_153, %c0_154, %c0_155], %374 {strides = array<i32>} : memref<8x8x128xf32, #tpu.memory_space<vmem>>, vector<8x8x128xf32>,
    return
  }
  func.func @transform_0(%arg0: i32, %arg1: i32) -> (i32, i32, i32) {
    %c0_i32 = arith.constant 0 : i32
    %c0_i32_0 = arith.constant 0 : i32
    return %arg1, %arg0, %c0_i32 : i32, i32, i32
  }
  func.func @transform_1(%arg0: i32, %arg1: i32) -> (i32, i32) {
    %c0_i32 = arith.constant 0 : i32
    %c0_i32_0 = arith.constant 0 : i32
    return %arg0, %c0_i32 : i32, i32
  }
  func.func @transform_2(%arg0: i32, %arg1: i32) -> (i32, i32) {
    %c0_i32 = arith.constant 0 : i32
    %c0_i32_0 = arith.constant 0 : i32
    %c0_i32_1 = arith.constant 0 : i32
    return %c0_i32, %c0_i32_0 : i32, i32
  }
  func.func @transform_3(%arg0: i32, %arg1: i32) -> (i32, i32) {
    %c0_i32 = arith.constant 0 : i32
    %c0_i32_0 = arith.constant 0 : i32
    %c0_i32_1 = arith.constant 0 : i32
    return %c0_i32, %c0_i32_0 : i32, i32
  }
  func.func @transform_4(%arg0: i32, %arg1: i32) -> (i32, i32) {
    %c0_i32 = arith.constant 0 : i32
    %c0_i32_0 = arith.constant 0 : i32
    %c0_i32_1 = arith.constant 0 : i32
    return %c0_i32, %c0_i32_0 : i32, i32
  }
  func.func @transform_5(%arg0: i32, %arg1: i32) -> (i32, i32, i32) {
    %c0_i32 = arith.constant 0 : i32
    %c0_i32_0 = arith.constant 0 : i32
    return %arg1, %arg0, %c0_i32 : i32, i32, i32
  }
}

module attributes {stable_mosaic.version = 11 : i64} {
  func.func @_lstm_layer_kernel(%arg0: i32, %arg1: i32, %arg2: memref<8x8x128xf32, #tpu.memory_space<vmem>>, %arg3: memref<8x1xi32, #tpu.memory_space<vmem>>, %arg4: memref<128x512xbf16, #tpu.memory_space<vmem>>, %arg5: memref<128x512xbf16, #tpu.memory_space<vmem>>, %arg6: memref<1x512xf32, #tpu.memory_space<vmem>>, %arg7: memref<8x8x128xf32, #tpu.memory_space<vmem>>, %arg8: memref<8x128xf32, #tpu.memory_space<vmem>>, %arg9: memref<8x128xf32, #tpu.memory_space<vmem>>, %arg10: memref<8x8x512xbf16, #tpu.memory_space<vmem>>) attributes {dimension_semantics = [#tpu.dimension_semantics<parallel>, #tpu.dimension_semantics<arbitrary>], iteration_bounds = array<i64: 1, 1>, scalar_prefetch = 0 : i64, scratch_operands = 3 : i64, tpu.core_type = #tpu.core_type<tc>, window_params = [{transform_indices = @transform_0, window_bounds = array<i64: 8, 8, 128>}, {transform_indices = @transform_1, window_bounds = array<i64: 8, 1>}, {pipeline_mode = #tpu.pipeline_mode<synchronous>, transform_indices = @transform_2, window_bounds = array<i64: 128, 512>}, {pipeline_mode = #tpu.pipeline_mode<synchronous>, transform_indices = @transform_3, window_bounds = array<i64: 128, 512>}, {pipeline_mode = #tpu.pipeline_mode<synchronous>, transform_indices = @transform_4, window_bounds = array<i64: 1, 512>}, {transform_indices = @transform_5, window_bounds = array<i64: 8, 8, 128>}]} {
    %c0_i32 = arith.constant 0 : i32
    %0 = arith.cmpi eq, %arg1, %c0_i32 : i32
    %1 = arith.extui %0 : i1 to i32
    %c0_i32_0 = arith.constant 0 : i32
    %2 = arith.cmpi ne, %1, %c0_i32_0 : i32
    scf.if %2 {
      %cst_156 = arith.constant 0.000000e+00 : f32
      %376 = vector.broadcast %cst_156 : f32 to vector<8x128xf32>
      %c0_157 = arith.constant 0 : index
      %c0_158 = arith.constant 0 : index
      %377 = vector.load %arg8[%c0_157, %c0_158] : memref<8x128xf32, #tpu.memory_space<vmem>>, vector<8x128xf32>
      tpu.vector_store %arg8[%c0_157, %c0_158], %376 {strides = array<i32>} : memref<8x128xf32, #tpu.memory_space<vmem>>, vector<8x128xf32>,
      %cst_159 = arith.constant 0.000000e+00 : f32
      %378 = vector.broadcast %cst_159 : f32 to vector<8x128xf32>
      %c0_160 = arith.constant 0 : index
      %c0_161 = arith.constant 0 : index
      %379 = vector.load %arg9[%c0_160, %c0_161] : memref<8x128xf32, #tpu.memory_space<vmem>>, vector<8x128xf32>
      tpu.vector_store %arg9[%c0_160, %c0_161], %378 {strides = array<i32>} : memref<8x128xf32, #tpu.memory_space<vmem>>, vector<8x128xf32>,
    } else {
    }
    %c0 = arith.constant 0 : index
    %c0_1 = arith.constant 0 : index
    %c0_2 = arith.constant 0 : index
    %3 = vector.load %arg2[%c0, %c0_1, %c0_2] : memref<8x8x128xf32, #tpu.memory_space<vmem>>, vector<8x8x128xf32>
    %4 = vector.shape_cast %3 : vector<8x8x128xf32> to vector<64x128xf32>
    %5 = arith.truncf %4 : vector<64x128xf32> to vector<64x128xbf16>
    %c0_3 = arith.constant 0 : index
    %c0_4 = arith.constant 0 : index
    %6 = vector.load %arg4[%c0_3, %c0_4] : memref<128x512xbf16, #tpu.memory_space<vmem>>, vector<128x512xbf16>
    %cst = arith.constant dense<0.000000e+00> : vector<64x512xf32>
    %7 = tpu.matmul %5, %6, %cst {dimension_numbers = #tpu.dot_dimension_numbers<[1], [0], [0], [1], [0, 0, 1, 1], [], []>} : vector<64x128xbf16>, vector<128x512xbf16>, vector<64x512xf32> -> vector<64x512xf32>
    %c0_5 = arith.constant 0 : index
    %c0_6 = arith.constant 0 : index
    %8 = vector.load %arg6[%c0_5, %c0_6] : memref<1x512xf32, #tpu.memory_space<vmem>>, vector<1x512xf32>
    %9 = vector.broadcast %8 : vector<1x512xf32> to vector<64x512xf32>
    %10 = arith.addf %7, %9 : vector<64x512xf32>
    %11 = vector.shape_cast %10 : vector<64x512xf32> to vector<8x8x512xf32>
    %12 = arith.truncf %11 : vector<8x8x512xf32> to vector<8x8x512xbf16>
    %c0_7 = arith.constant 0 : index
    %c0_8 = arith.constant 0 : index
    %c0_9 = arith.constant 0 : index
    %13 = vector.load %arg10[%c0_7, %c0_8, %c0_9] : memref<8x8x512xbf16, #tpu.memory_space<vmem>>, vector<8x8x512xbf16>
    tpu.vector_store %arg10[%c0_7, %c0_8, %c0_9], %12 {strides = array<i32>} : memref<8x8x512xbf16, #tpu.memory_space<vmem>>, vector<8x8x512xbf16>,
    %c0_10 = arith.constant 0 : index
    %c0_11 = arith.constant 0 : index
    %14 = vector.load %arg8[%c0_10, %c0_11] : memref<8x128xf32, #tpu.memory_space<vmem>>, vector<8x128xf32>
    %c0_12 = arith.constant 0 : index
    %c0_13 = arith.constant 0 : index
    %15 = vector.load %arg9[%c0_12, %c0_13] : memref<8x128xf32, #tpu.memory_space<vmem>>, vector<8x128xf32>
    %c0_i32_14 = arith.constant 0 : i32
    %16 = arith.index_cast %c0_i32_14 : i32 to index
    %c0_15 = arith.constant 0 : index
    %c0_16 = arith.constant 0 : index
    %17 = vector.load %arg10[%16, %c0_15, %c0_16] : memref<8x8x512xbf16, #tpu.memory_space<vmem>>, vector<1x8x512xbf16>
    %18 = vector.shape_cast %17 : vector<1x8x512xbf16> to vector<8x512xbf16>
    %19 = arith.truncf %14 : vector<8x128xf32> to vector<8x128xbf16>
    %c0_17 = arith.constant 0 : index
    %c0_18 = arith.constant 0 : index
    %20 = vector.load %arg5[%c0_17, %c0_18] : memref<128x512xbf16, #tpu.memory_space<vmem>>, vector<128x512xbf16>
    %cst_19 = arith.constant dense<0.000000e+00> : vector<8x512xf32>
    %21 = tpu.matmul %19, %20, %cst_19 {dimension_numbers = #tpu.dot_dimension_numbers<[1], [0], [0], [1], [0, 0, 1, 1], [], []>} : vector<8x128xbf16>, vector<128x512xbf16>, vector<8x512xf32> -> vector<8x512xf32>
    %22 = arith.extf %18 : vector<8x512xbf16> to vector<8x512xf32>
    %23 = arith.addf %22, %21 : vector<8x512xf32>
    %24 = vector.extract_strided_slice %23 {offsets = [0, 0], sizes = [8, 128], strides = [1, 1]} : vector<8x512xf32> to vector<8x128xf32>
    %cst_20 = arith.constant 5.000000e-01 : f32
    %25 = vector.broadcast %cst_20 : f32 to vector<8x128xf32>
    %26 = arith.mulf %24, %25 : vector<8x128xf32>
    %27 = math.tanh %26 : vector<8x128xf32>
    %cst_21 = arith.constant 5.000000e-01 : f32
    %28 = vector.broadcast %cst_21 : f32 to vector<8x128xf32>
    %29 = arith.mulf %27, %28 : vector<8x128xf32>
    %cst_22 = arith.constant 5.000000e-01 : f32
    %30 = vector.broadcast %cst_22 : f32 to vector<8x128xf32>
    %31 = arith.addf %29, %30 : vector<8x128xf32>
    %32 = vector.extract_strided_slice %23 {offsets = [0, 128], sizes = [8, 128], strides = [1, 1]} : vector<8x512xf32> to vector<8x128xf32>
    %cst_23 = arith.constant 5.000000e-01 : f32
    %33 = vector.broadcast %cst_23 : f32 to vector<8x128xf32>
    %34 = arith.mulf %32, %33 : vector<8x128xf32>
    %35 = math.tanh %34 : vector<8x128xf32>
    %cst_24 = arith.constant 5.000000e-01 : f32
    %36 = vector.broadcast %cst_24 : f32 to vector<8x128xf32>
    %37 = arith.mulf %35, %36 : vector<8x128xf32>
    %cst_25 = arith.constant 5.000000e-01 : f32
    %38 = vector.broadcast %cst_25 : f32 to vector<8x128xf32>
    %39 = arith.addf %37, %38 : vector<8x128xf32>
    %40 = vector.extract_strided_slice %23 {offsets = [0, 256], sizes = [8, 128], strides = [1, 1]} : vector<8x512xf32> to vector<8x128xf32>
    %41 = math.tanh %40 : vector<8x128xf32>
    %42 = vector.extract_strided_slice %23 {offsets = [0, 384], sizes = [8, 128], strides = [1, 1]} : vector<8x512xf32> to vector<8x128xf32>
    %cst_26 = arith.constant 5.000000e-01 : f32
    %43 = vector.broadcast %cst_26 : f32 to vector<8x128xf32>
    %44 = arith.mulf %42, %43 : vector<8x128xf32>
    %45 = math.tanh %44 : vector<8x128xf32>
    %cst_27 = arith.constant 5.000000e-01 : f32
    %46 = vector.broadcast %cst_27 : f32 to vector<8x128xf32>
    %47 = arith.mulf %45, %46 : vector<8x128xf32>
    %cst_28 = arith.constant 5.000000e-01 : f32
    %48 = vector.broadcast %cst_28 : f32 to vector<8x128xf32>
    %49 = arith.addf %47, %48 : vector<8x128xf32>
    %50 = arith.mulf %39, %15 : vector<8x128xf32>
    %51 = arith.mulf %31, %41 : vector<8x128xf32>
    %52 = arith.addf %50, %51 : vector<8x128xf32>
    %53 = math.tanh %52 : vector<8x128xf32>
    %54 = arith.mulf %49, %53 : vector<8x128xf32>
    %55 = arith.index_cast %c0_i32_14 : i32 to index
    %c0_29 = arith.constant 0 : index
    %c0_30 = arith.constant 0 : index
    %56 = vector.load %arg7[%55, %c0_29, %c0_30] : memref<8x8x128xf32, #tpu.memory_space<vmem>>, vector<1x8x128xf32>
    %57 = vector.shape_cast %56 : vector<1x8x128xf32> to vector<8x128xf32>
    %58 = vector.shape_cast %54 : vector<8x128xf32> to vector<1x8x128xf32>
    tpu.vector_store %arg7[%55, %c0_29, %c0_30], %58 {strides = array<i32>} : memref<8x8x128xf32, #tpu.memory_space<vmem>>, vector<1x8x128xf32>,
    %c1_i32 = arith.constant 1 : i32
    %59 = arith.index_cast %c1_i32 : i32 to index
    %c0_31 = arith.constant 0 : index
    %c0_32 = arith.constant 0 : index
    %60 = vector.load %arg10[%59, %c0_31, %c0_32] : memref<8x8x512xbf16, #tpu.memory_space<vmem>>, vector<1x8x512xbf16>
    %61 = vector.shape_cast %60 : vector<1x8x512xbf16> to vector<8x512xbf16>
    %62 = arith.truncf %54 : vector<8x128xf32> to vector<8x128xbf16>
    %c0_33 = arith.constant 0 : index
    %c0_34 = arith.constant 0 : index
    %63 = vector.load %arg5[%c0_33, %c0_34] : memref<128x512xbf16, #tpu.memory_space<vmem>>, vector<128x512xbf16>
    %cst_35 = arith.constant dense<0.000000e+00> : vector<8x512xf32>
    %64 = tpu.matmul %62, %63, %cst_35 {dimension_numbers = #tpu.dot_dimension_numbers<[1], [0], [0], [1], [0, 0, 1, 1], [], []>} : vector<8x128xbf16>, vector<128x512xbf16>, vector<8x512xf32> -> vector<8x512xf32>
    %65 = arith.extf %61 : vector<8x512xbf16> to vector<8x512xf32>
    %66 = arith.addf %65, %64 : vector<8x512xf32>
    %67 = vector.extract_strided_slice %66 {offsets = [0, 0], sizes = [8, 128], strides = [1, 1]} : vector<8x512xf32> to vector<8x128xf32>
    %cst_36 = arith.constant 5.000000e-01 : f32
    %68 = vector.broadcast %cst_36 : f32 to vector<8x128xf32>
    %69 = arith.mulf %67, %68 : vector<8x128xf32>
    %70 = math.tanh %69 : vector<8x128xf32>
    %cst_37 = arith.constant 5.000000e-01 : f32
    %71 = vector.broadcast %cst_37 : f32 to vector<8x128xf32>
    %72 = arith.mulf %70, %71 : vector<8x128xf32>
    %cst_38 = arith.constant 5.000000e-01 : f32
    %73 = vector.broadcast %cst_38 : f32 to vector<8x128xf32>
    %74 = arith.addf %72, %73 : vector<8x128xf32>
    %75 = vector.extract_strided_slice %66 {offsets = [0, 128], sizes = [8, 128], strides = [1, 1]} : vector<8x512xf32> to vector<8x128xf32>
    %cst_39 = arith.constant 5.000000e-01 : f32
    %76 = vector.broadcast %cst_39 : f32 to vector<8x128xf32>
    %77 = arith.mulf %75, %76 : vector<8x128xf32>
    %78 = math.tanh %77 : vector<8x128xf32>
    %cst_40 = arith.constant 5.000000e-01 : f32
    %79 = vector.broadcast %cst_40 : f32 to vector<8x128xf32>
    %80 = arith.mulf %78, %79 : vector<8x128xf32>
    %cst_41 = arith.constant 5.000000e-01 : f32
    %81 = vector.broadcast %cst_41 : f32 to vector<8x128xf32>
    %82 = arith.addf %80, %81 : vector<8x128xf32>
    %83 = vector.extract_strided_slice %66 {offsets = [0, 256], sizes = [8, 128], strides = [1, 1]} : vector<8x512xf32> to vector<8x128xf32>
    %84 = math.tanh %83 : vector<8x128xf32>
    %85 = vector.extract_strided_slice %66 {offsets = [0, 384], sizes = [8, 128], strides = [1, 1]} : vector<8x512xf32> to vector<8x128xf32>
    %cst_42 = arith.constant 5.000000e-01 : f32
    %86 = vector.broadcast %cst_42 : f32 to vector<8x128xf32>
    %87 = arith.mulf %85, %86 : vector<8x128xf32>
    %88 = math.tanh %87 : vector<8x128xf32>
    %cst_43 = arith.constant 5.000000e-01 : f32
    %89 = vector.broadcast %cst_43 : f32 to vector<8x128xf32>
    %90 = arith.mulf %88, %89 : vector<8x128xf32>
    %cst_44 = arith.constant 5.000000e-01 : f32
    %91 = vector.broadcast %cst_44 : f32 to vector<8x128xf32>
    %92 = arith.addf %90, %91 : vector<8x128xf32>
    %93 = arith.mulf %82, %52 : vector<8x128xf32>
    %94 = arith.mulf %74, %84 : vector<8x128xf32>
    %95 = arith.addf %93, %94 : vector<8x128xf32>
    %96 = math.tanh %95 : vector<8x128xf32>
    %97 = arith.mulf %92, %96 : vector<8x128xf32>
    %98 = arith.index_cast %c1_i32 : i32 to index
    %c0_45 = arith.constant 0 : index
    %c0_46 = arith.constant 0 : index
    %99 = vector.load %arg7[%98, %c0_45, %c0_46] : memref<8x8x128xf32, #tpu.memory_space<vmem>>, vector<1x8x128xf32>
    %100 = vector.shape_cast %99 : vector<1x8x128xf32> to vector<8x128xf32>
    %101 = vector.shape_cast %97 : vector<8x128xf32> to vector<1x8x128xf32>
    tpu.vector_store %arg7[%98, %c0_45, %c0_46], %101 {strides = array<i32>} : memref<8x8x128xf32, #tpu.memory_space<vmem>>, vector<1x8x128xf32>,
    %c2_i32 = arith.constant 2 : i32
    %102 = arith.index_cast %c2_i32 : i32 to index
    %c0_47 = arith.constant 0 : index
    %c0_48 = arith.constant 0 : index
    %103 = vector.load %arg10[%102, %c0_47, %c0_48] : memref<8x8x512xbf16, #tpu.memory_space<vmem>>, vector<1x8x512xbf16>
    %104 = vector.shape_cast %103 : vector<1x8x512xbf16> to vector<8x512xbf16>
    %105 = arith.truncf %97 : vector<8x128xf32> to vector<8x128xbf16>
    %c0_49 = arith.constant 0 : index
    %c0_50 = arith.constant 0 : index
    %106 = vector.load %arg5[%c0_49, %c0_50] : memref<128x512xbf16, #tpu.memory_space<vmem>>, vector<128x512xbf16>
    %cst_51 = arith.constant dense<0.000000e+00> : vector<8x512xf32>
    %107 = tpu.matmul %105, %106, %cst_51 {dimension_numbers = #tpu.dot_dimension_numbers<[1], [0], [0], [1], [0, 0, 1, 1], [], []>} : vector<8x128xbf16>, vector<128x512xbf16>, vector<8x512xf32> -> vector<8x512xf32>
    %108 = arith.extf %104 : vector<8x512xbf16> to vector<8x512xf32>
    %109 = arith.addf %108, %107 : vector<8x512xf32>
    %110 = vector.extract_strided_slice %109 {offsets = [0, 0], sizes = [8, 128], strides = [1, 1]} : vector<8x512xf32> to vector<8x128xf32>
    %cst_52 = arith.constant 5.000000e-01 : f32
    %111 = vector.broadcast %cst_52 : f32 to vector<8x128xf32>
    %112 = arith.mulf %110, %111 : vector<8x128xf32>
    %113 = math.tanh %112 : vector<8x128xf32>
    %cst_53 = arith.constant 5.000000e-01 : f32
    %114 = vector.broadcast %cst_53 : f32 to vector<8x128xf32>
    %115 = arith.mulf %113, %114 : vector<8x128xf32>
    %cst_54 = arith.constant 5.000000e-01 : f32
    %116 = vector.broadcast %cst_54 : f32 to vector<8x128xf32>
    %117 = arith.addf %115, %116 : vector<8x128xf32>
    %118 = vector.extract_strided_slice %109 {offsets = [0, 128], sizes = [8, 128], strides = [1, 1]} : vector<8x512xf32> to vector<8x128xf32>
    %cst_55 = arith.constant 5.000000e-01 : f32
    %119 = vector.broadcast %cst_55 : f32 to vector<8x128xf32>
    %120 = arith.mulf %118, %119 : vector<8x128xf32>
    %121 = math.tanh %120 : vector<8x128xf32>
    %cst_56 = arith.constant 5.000000e-01 : f32
    %122 = vector.broadcast %cst_56 : f32 to vector<8x128xf32>
    %123 = arith.mulf %121, %122 : vector<8x128xf32>
    %cst_57 = arith.constant 5.000000e-01 : f32
    %124 = vector.broadcast %cst_57 : f32 to vector<8x128xf32>
    %125 = arith.addf %123, %124 : vector<8x128xf32>
    %126 = vector.extract_strided_slice %109 {offsets = [0, 256], sizes = [8, 128], strides = [1, 1]} : vector<8x512xf32> to vector<8x128xf32>
    %127 = math.tanh %126 : vector<8x128xf32>
    %128 = vector.extract_strided_slice %109 {offsets = [0, 384], sizes = [8, 128], strides = [1, 1]} : vector<8x512xf32> to vector<8x128xf32>
    %cst_58 = arith.constant 5.000000e-01 : f32
    %129 = vector.broadcast %cst_58 : f32 to vector<8x128xf32>
    %130 = arith.mulf %128, %129 : vector<8x128xf32>
    %131 = math.tanh %130 : vector<8x128xf32>
    %cst_59 = arith.constant 5.000000e-01 : f32
    %132 = vector.broadcast %cst_59 : f32 to vector<8x128xf32>
    %133 = arith.mulf %131, %132 : vector<8x128xf32>
    %cst_60 = arith.constant 5.000000e-01 : f32
    %134 = vector.broadcast %cst_60 : f32 to vector<8x128xf32>
    %135 = arith.addf %133, %134 : vector<8x128xf32>
    %136 = arith.mulf %125, %95 : vector<8x128xf32>
    %137 = arith.mulf %117, %127 : vector<8x128xf32>
    %138 = arith.addf %136, %137 : vector<8x128xf32>
    %139 = math.tanh %138 : vector<8x128xf32>
    %140 = arith.mulf %135, %139 : vector<8x128xf32>
    %141 = arith.index_cast %c2_i32 : i32 to index
    %c0_61 = arith.constant 0 : index
    %c0_62 = arith.constant 0 : index
    %142 = vector.load %arg7[%141, %c0_61, %c0_62] : memref<8x8x128xf32, #tpu.memory_space<vmem>>, vector<1x8x128xf32>
    %143 = vector.shape_cast %142 : vector<1x8x128xf32> to vector<8x128xf32>
    %144 = vector.shape_cast %140 : vector<8x128xf32> to vector<1x8x128xf32>
    tpu.vector_store %arg7[%141, %c0_61, %c0_62], %144 {strides = array<i32>} : memref<8x8x128xf32, #tpu.memory_space<vmem>>, vector<1x8x128xf32>,
    %c3_i32 = arith.constant 3 : i32
    %145 = arith.index_cast %c3_i32 : i32 to index
    %c0_63 = arith.constant 0 : index
    %c0_64 = arith.constant 0 : index
    %146 = vector.load %arg10[%145, %c0_63, %c0_64] : memref<8x8x512xbf16, #tpu.memory_space<vmem>>, vector<1x8x512xbf16>
    %147 = vector.shape_cast %146 : vector<1x8x512xbf16> to vector<8x512xbf16>
    %148 = arith.truncf %140 : vector<8x128xf32> to vector<8x128xbf16>
    %c0_65 = arith.constant 0 : index
    %c0_66 = arith.constant 0 : index
    %149 = vector.load %arg5[%c0_65, %c0_66] : memref<128x512xbf16, #tpu.memory_space<vmem>>, vector<128x512xbf16>
    %cst_67 = arith.constant dense<0.000000e+00> : vector<8x512xf32>
    %150 = tpu.matmul %148, %149, %cst_67 {dimension_numbers = #tpu.dot_dimension_numbers<[1], [0], [0], [1], [0, 0, 1, 1], [], []>} : vector<8x128xbf16>, vector<128x512xbf16>, vector<8x512xf32> -> vector<8x512xf32>
    %151 = arith.extf %147 : vector<8x512xbf16> to vector<8x512xf32>
    %152 = arith.addf %151, %150 : vector<8x512xf32>
    %153 = vector.extract_strided_slice %152 {offsets = [0, 0], sizes = [8, 128], strides = [1, 1]} : vector<8x512xf32> to vector<8x128xf32>
    %cst_68 = arith.constant 5.000000e-01 : f32
    %154 = vector.broadcast %cst_68 : f32 to vector<8x128xf32>
    %155 = arith.mulf %153, %154 : vector<8x128xf32>
    %156 = math.tanh %155 : vector<8x128xf32>
    %cst_69 = arith.constant 5.000000e-01 : f32
    %157 = vector.broadcast %cst_69 : f32 to vector<8x128xf32>
    %158 = arith.mulf %156, %157 : vector<8x128xf32>
    %cst_70 = arith.constant 5.000000e-01 : f32
    %159 = vector.broadcast %cst_70 : f32 to vector<8x128xf32>
    %160 = arith.addf %158, %159 : vector<8x128xf32>
    %161 = vector.extract_strided_slice %152 {offsets = [0, 128], sizes = [8, 128], strides = [1, 1]} : vector<8x512xf32> to vector<8x128xf32>
    %cst_71 = arith.constant 5.000000e-01 : f32
    %162 = vector.broadcast %cst_71 : f32 to vector<8x128xf32>
    %163 = arith.mulf %161, %162 : vector<8x128xf32>
    %164 = math.tanh %163 : vector<8x128xf32>
    %cst_72 = arith.constant 5.000000e-01 : f32
    %165 = vector.broadcast %cst_72 : f32 to vector<8x128xf32>
    %166 = arith.mulf %164, %165 : vector<8x128xf32>
    %cst_73 = arith.constant 5.000000e-01 : f32
    %167 = vector.broadcast %cst_73 : f32 to vector<8x128xf32>
    %168 = arith.addf %166, %167 : vector<8x128xf32>
    %169 = vector.extract_strided_slice %152 {offsets = [0, 256], sizes = [8, 128], strides = [1, 1]} : vector<8x512xf32> to vector<8x128xf32>
    %170 = math.tanh %169 : vector<8x128xf32>
    %171 = vector.extract_strided_slice %152 {offsets = [0, 384], sizes = [8, 128], strides = [1, 1]} : vector<8x512xf32> to vector<8x128xf32>
    %cst_74 = arith.constant 5.000000e-01 : f32
    %172 = vector.broadcast %cst_74 : f32 to vector<8x128xf32>
    %173 = arith.mulf %171, %172 : vector<8x128xf32>
    %174 = math.tanh %173 : vector<8x128xf32>
    %cst_75 = arith.constant 5.000000e-01 : f32
    %175 = vector.broadcast %cst_75 : f32 to vector<8x128xf32>
    %176 = arith.mulf %174, %175 : vector<8x128xf32>
    %cst_76 = arith.constant 5.000000e-01 : f32
    %177 = vector.broadcast %cst_76 : f32 to vector<8x128xf32>
    %178 = arith.addf %176, %177 : vector<8x128xf32>
    %179 = arith.mulf %168, %138 : vector<8x128xf32>
    %180 = arith.mulf %160, %170 : vector<8x128xf32>
    %181 = arith.addf %179, %180 : vector<8x128xf32>
    %182 = math.tanh %181 : vector<8x128xf32>
    %183 = arith.mulf %178, %182 : vector<8x128xf32>
    %184 = arith.index_cast %c3_i32 : i32 to index
    %c0_77 = arith.constant 0 : index
    %c0_78 = arith.constant 0 : index
    %185 = vector.load %arg7[%184, %c0_77, %c0_78] : memref<8x8x128xf32, #tpu.memory_space<vmem>>, vector<1x8x128xf32>
    %186 = vector.shape_cast %185 : vector<1x8x128xf32> to vector<8x128xf32>
    %187 = vector.shape_cast %183 : vector<8x128xf32> to vector<1x8x128xf32>
    tpu.vector_store %arg7[%184, %c0_77, %c0_78], %187 {strides = array<i32>} : memref<8x8x128xf32, #tpu.memory_space<vmem>>, vector<1x8x128xf32>,
    %c4_i32 = arith.constant 4 : i32
    %188 = arith.index_cast %c4_i32 : i32 to index
    %c0_79 = arith.constant 0 : index
    %c0_80 = arith.constant 0 : index
    %189 = vector.load %arg10[%188, %c0_79, %c0_80] : memref<8x8x512xbf16, #tpu.memory_space<vmem>>, vector<1x8x512xbf16>
    %190 = vector.shape_cast %189 : vector<1x8x512xbf16> to vector<8x512xbf16>
    %191 = arith.truncf %183 : vector<8x128xf32> to vector<8x128xbf16>
    %c0_81 = arith.constant 0 : index
    %c0_82 = arith.constant 0 : index
    %192 = vector.load %arg5[%c0_81, %c0_82] : memref<128x512xbf16, #tpu.memory_space<vmem>>, vector<128x512xbf16>
    %cst_83 = arith.constant dense<0.000000e+00> : vector<8x512xf32>
    %193 = tpu.matmul %191, %192, %cst_83 {dimension_numbers = #tpu.dot_dimension_numbers<[1], [0], [0], [1], [0, 0, 1, 1], [], []>} : vector<8x128xbf16>, vector<128x512xbf16>, vector<8x512xf32> -> vector<8x512xf32>
    %194 = arith.extf %190 : vector<8x512xbf16> to vector<8x512xf32>
    %195 = arith.addf %194, %193 : vector<8x512xf32>
    %196 = vector.extract_strided_slice %195 {offsets = [0, 0], sizes = [8, 128], strides = [1, 1]} : vector<8x512xf32> to vector<8x128xf32>
    %cst_84 = arith.constant 5.000000e-01 : f32
    %197 = vector.broadcast %cst_84 : f32 to vector<8x128xf32>
    %198 = arith.mulf %196, %197 : vector<8x128xf32>
    %199 = math.tanh %198 : vector<8x128xf32>
    %cst_85 = arith.constant 5.000000e-01 : f32
    %200 = vector.broadcast %cst_85 : f32 to vector<8x128xf32>
    %201 = arith.mulf %199, %200 : vector<8x128xf32>
    %cst_86 = arith.constant 5.000000e-01 : f32
    %202 = vector.broadcast %cst_86 : f32 to vector<8x128xf32>
    %203 = arith.addf %201, %202 : vector<8x128xf32>
    %204 = vector.extract_strided_slice %195 {offsets = [0, 128], sizes = [8, 128], strides = [1, 1]} : vector<8x512xf32> to vector<8x128xf32>
    %cst_87 = arith.constant 5.000000e-01 : f32
    %205 = vector.broadcast %cst_87 : f32 to vector<8x128xf32>
    %206 = arith.mulf %204, %205 : vector<8x128xf32>
    %207 = math.tanh %206 : vector<8x128xf32>
    %cst_88 = arith.constant 5.000000e-01 : f32
    %208 = vector.broadcast %cst_88 : f32 to vector<8x128xf32>
    %209 = arith.mulf %207, %208 : vector<8x128xf32>
    %cst_89 = arith.constant 5.000000e-01 : f32
    %210 = vector.broadcast %cst_89 : f32 to vector<8x128xf32>
    %211 = arith.addf %209, %210 : vector<8x128xf32>
    %212 = vector.extract_strided_slice %195 {offsets = [0, 256], sizes = [8, 128], strides = [1, 1]} : vector<8x512xf32> to vector<8x128xf32>
    %213 = math.tanh %212 : vector<8x128xf32>
    %214 = vector.extract_strided_slice %195 {offsets = [0, 384], sizes = [8, 128], strides = [1, 1]} : vector<8x512xf32> to vector<8x128xf32>
    %cst_90 = arith.constant 5.000000e-01 : f32
    %215 = vector.broadcast %cst_90 : f32 to vector<8x128xf32>
    %216 = arith.mulf %214, %215 : vector<8x128xf32>
    %217 = math.tanh %216 : vector<8x128xf32>
    %cst_91 = arith.constant 5.000000e-01 : f32
    %218 = vector.broadcast %cst_91 : f32 to vector<8x128xf32>
    %219 = arith.mulf %217, %218 : vector<8x128xf32>
    %cst_92 = arith.constant 5.000000e-01 : f32
    %220 = vector.broadcast %cst_92 : f32 to vector<8x128xf32>
    %221 = arith.addf %219, %220 : vector<8x128xf32>
    %222 = arith.mulf %211, %181 : vector<8x128xf32>
    %223 = arith.mulf %203, %213 : vector<8x128xf32>
    %224 = arith.addf %222, %223 : vector<8x128xf32>
    %225 = math.tanh %224 : vector<8x128xf32>
    %226 = arith.mulf %221, %225 : vector<8x128xf32>
    %227 = arith.index_cast %c4_i32 : i32 to index
    %c0_93 = arith.constant 0 : index
    %c0_94 = arith.constant 0 : index
    %228 = vector.load %arg7[%227, %c0_93, %c0_94] : memref<8x8x128xf32, #tpu.memory_space<vmem>>, vector<1x8x128xf32>
    %229 = vector.shape_cast %228 : vector<1x8x128xf32> to vector<8x128xf32>
    %230 = vector.shape_cast %226 : vector<8x128xf32> to vector<1x8x128xf32>
    tpu.vector_store %arg7[%227, %c0_93, %c0_94], %230 {strides = array<i32>} : memref<8x8x128xf32, #tpu.memory_space<vmem>>, vector<1x8x128xf32>,
    %c5_i32 = arith.constant 5 : i32
    %231 = arith.index_cast %c5_i32 : i32 to index
    %c0_95 = arith.constant 0 : index
    %c0_96 = arith.constant 0 : index
    %232 = vector.load %arg10[%231, %c0_95, %c0_96] : memref<8x8x512xbf16, #tpu.memory_space<vmem>>, vector<1x8x512xbf16>
    %233 = vector.shape_cast %232 : vector<1x8x512xbf16> to vector<8x512xbf16>
    %234 = arith.truncf %226 : vector<8x128xf32> to vector<8x128xbf16>
    %c0_97 = arith.constant 0 : index
    %c0_98 = arith.constant 0 : index
    %235 = vector.load %arg5[%c0_97, %c0_98] : memref<128x512xbf16, #tpu.memory_space<vmem>>, vector<128x512xbf16>
    %cst_99 = arith.constant dense<0.000000e+00> : vector<8x512xf32>
    %236 = tpu.matmul %234, %235, %cst_99 {dimension_numbers = #tpu.dot_dimension_numbers<[1], [0], [0], [1], [0, 0, 1, 1], [], []>} : vector<8x128xbf16>, vector<128x512xbf16>, vector<8x512xf32> -> vector<8x512xf32>
    %237 = arith.extf %233 : vector<8x512xbf16> to vector<8x512xf32>
    %238 = arith.addf %237, %236 : vector<8x512xf32>
    %239 = vector.extract_strided_slice %238 {offsets = [0, 0], sizes = [8, 128], strides = [1, 1]} : vector<8x512xf32> to vector<8x128xf32>
    %cst_100 = arith.constant 5.000000e-01 : f32
    %240 = vector.broadcast %cst_100 : f32 to vector<8x128xf32>
    %241 = arith.mulf %239, %240 : vector<8x128xf32>
    %242 = math.tanh %241 : vector<8x128xf32>
    %cst_101 = arith.constant 5.000000e-01 : f32
    %243 = vector.broadcast %cst_101 : f32 to vector<8x128xf32>
    %244 = arith.mulf %242, %243 : vector<8x128xf32>
    %cst_102 = arith.constant 5.000000e-01 : f32
    %245 = vector.broadcast %cst_102 : f32 to vector<8x128xf32>
    %246 = arith.addf %244, %245 : vector<8x128xf32>
    %247 = vector.extract_strided_slice %238 {offsets = [0, 128], sizes = [8, 128], strides = [1, 1]} : vector<8x512xf32> to vector<8x128xf32>
    %cst_103 = arith.constant 5.000000e-01 : f32
    %248 = vector.broadcast %cst_103 : f32 to vector<8x128xf32>
    %249 = arith.mulf %247, %248 : vector<8x128xf32>
    %250 = math.tanh %249 : vector<8x128xf32>
    %cst_104 = arith.constant 5.000000e-01 : f32
    %251 = vector.broadcast %cst_104 : f32 to vector<8x128xf32>
    %252 = arith.mulf %250, %251 : vector<8x128xf32>
    %cst_105 = arith.constant 5.000000e-01 : f32
    %253 = vector.broadcast %cst_105 : f32 to vector<8x128xf32>
    %254 = arith.addf %252, %253 : vector<8x128xf32>
    %255 = vector.extract_strided_slice %238 {offsets = [0, 256], sizes = [8, 128], strides = [1, 1]} : vector<8x512xf32> to vector<8x128xf32>
    %256 = math.tanh %255 : vector<8x128xf32>
    %257 = vector.extract_strided_slice %238 {offsets = [0, 384], sizes = [8, 128], strides = [1, 1]} : vector<8x512xf32> to vector<8x128xf32>
    %cst_106 = arith.constant 5.000000e-01 : f32
    %258 = vector.broadcast %cst_106 : f32 to vector<8x128xf32>
    %259 = arith.mulf %257, %258 : vector<8x128xf32>
    %260 = math.tanh %259 : vector<8x128xf32>
    %cst_107 = arith.constant 5.000000e-01 : f32
    %261 = vector.broadcast %cst_107 : f32 to vector<8x128xf32>
    %262 = arith.mulf %260, %261 : vector<8x128xf32>
    %cst_108 = arith.constant 5.000000e-01 : f32
    %263 = vector.broadcast %cst_108 : f32 to vector<8x128xf32>
    %264 = arith.addf %262, %263 : vector<8x128xf32>
    %265 = arith.mulf %254, %224 : vector<8x128xf32>
    %266 = arith.mulf %246, %256 : vector<8x128xf32>
    %267 = arith.addf %265, %266 : vector<8x128xf32>
    %268 = math.tanh %267 : vector<8x128xf32>
    %269 = arith.mulf %264, %268 : vector<8x128xf32>
    %270 = arith.index_cast %c5_i32 : i32 to index
    %c0_109 = arith.constant 0 : index
    %c0_110 = arith.constant 0 : index
    %271 = vector.load %arg7[%270, %c0_109, %c0_110] : memref<8x8x128xf32, #tpu.memory_space<vmem>>, vector<1x8x128xf32>
    %272 = vector.shape_cast %271 : vector<1x8x128xf32> to vector<8x128xf32>
    %273 = vector.shape_cast %269 : vector<8x128xf32> to vector<1x8x128xf32>
    tpu.vector_store %arg7[%270, %c0_109, %c0_110], %273 {strides = array<i32>} : memref<8x8x128xf32, #tpu.memory_space<vmem>>, vector<1x8x128xf32>,
    %c6_i32 = arith.constant 6 : i32
    %274 = arith.index_cast %c6_i32 : i32 to index
    %c0_111 = arith.constant 0 : index
    %c0_112 = arith.constant 0 : index
    %275 = vector.load %arg10[%274, %c0_111, %c0_112] : memref<8x8x512xbf16, #tpu.memory_space<vmem>>, vector<1x8x512xbf16>
    %276 = vector.shape_cast %275 : vector<1x8x512xbf16> to vector<8x512xbf16>
    %277 = arith.truncf %269 : vector<8x128xf32> to vector<8x128xbf16>
    %c0_113 = arith.constant 0 : index
    %c0_114 = arith.constant 0 : index
    %278 = vector.load %arg5[%c0_113, %c0_114] : memref<128x512xbf16, #tpu.memory_space<vmem>>, vector<128x512xbf16>
    %cst_115 = arith.constant dense<0.000000e+00> : vector<8x512xf32>
    %279 = tpu.matmul %277, %278, %cst_115 {dimension_numbers = #tpu.dot_dimension_numbers<[1], [0], [0], [1], [0, 0, 1, 1], [], []>} : vector<8x128xbf16>, vector<128x512xbf16>, vector<8x512xf32> -> vector<8x512xf32>
    %280 = arith.extf %276 : vector<8x512xbf16> to vector<8x512xf32>
    %281 = arith.addf %280, %279 : vector<8x512xf32>
    %282 = vector.extract_strided_slice %281 {offsets = [0, 0], sizes = [8, 128], strides = [1, 1]} : vector<8x512xf32> to vector<8x128xf32>
    %cst_116 = arith.constant 5.000000e-01 : f32
    %283 = vector.broadcast %cst_116 : f32 to vector<8x128xf32>
    %284 = arith.mulf %282, %283 : vector<8x128xf32>
    %285 = math.tanh %284 : vector<8x128xf32>
    %cst_117 = arith.constant 5.000000e-01 : f32
    %286 = vector.broadcast %cst_117 : f32 to vector<8x128xf32>
    %287 = arith.mulf %285, %286 : vector<8x128xf32>
    %cst_118 = arith.constant 5.000000e-01 : f32
    %288 = vector.broadcast %cst_118 : f32 to vector<8x128xf32>
    %289 = arith.addf %287, %288 : vector<8x128xf32>
    %290 = vector.extract_strided_slice %281 {offsets = [0, 128], sizes = [8, 128], strides = [1, 1]} : vector<8x512xf32> to vector<8x128xf32>
    %cst_119 = arith.constant 5.000000e-01 : f32
    %291 = vector.broadcast %cst_119 : f32 to vector<8x128xf32>
    %292 = arith.mulf %290, %291 : vector<8x128xf32>
    %293 = math.tanh %292 : vector<8x128xf32>
    %cst_120 = arith.constant 5.000000e-01 : f32
    %294 = vector.broadcast %cst_120 : f32 to vector<8x128xf32>
    %295 = arith.mulf %293, %294 : vector<8x128xf32>
    %cst_121 = arith.constant 5.000000e-01 : f32
    %296 = vector.broadcast %cst_121 : f32 to vector<8x128xf32>
    %297 = arith.addf %295, %296 : vector<8x128xf32>
    %298 = vector.extract_strided_slice %281 {offsets = [0, 256], sizes = [8, 128], strides = [1, 1]} : vector<8x512xf32> to vector<8x128xf32>
    %299 = math.tanh %298 : vector<8x128xf32>
    %300 = vector.extract_strided_slice %281 {offsets = [0, 384], sizes = [8, 128], strides = [1, 1]} : vector<8x512xf32> to vector<8x128xf32>
    %cst_122 = arith.constant 5.000000e-01 : f32
    %301 = vector.broadcast %cst_122 : f32 to vector<8x128xf32>
    %302 = arith.mulf %300, %301 : vector<8x128xf32>
    %303 = math.tanh %302 : vector<8x128xf32>
    %cst_123 = arith.constant 5.000000e-01 : f32
    %304 = vector.broadcast %cst_123 : f32 to vector<8x128xf32>
    %305 = arith.mulf %303, %304 : vector<8x128xf32>
    %cst_124 = arith.constant 5.000000e-01 : f32
    %306 = vector.broadcast %cst_124 : f32 to vector<8x128xf32>
    %307 = arith.addf %305, %306 : vector<8x128xf32>
    %308 = arith.mulf %297, %267 : vector<8x128xf32>
    %309 = arith.mulf %289, %299 : vector<8x128xf32>
    %310 = arith.addf %308, %309 : vector<8x128xf32>
    %311 = math.tanh %310 : vector<8x128xf32>
    %312 = arith.mulf %307, %311 : vector<8x128xf32>
    %313 = arith.index_cast %c6_i32 : i32 to index
    %c0_125 = arith.constant 0 : index
    %c0_126 = arith.constant 0 : index
    %314 = vector.load %arg7[%313, %c0_125, %c0_126] : memref<8x8x128xf32, #tpu.memory_space<vmem>>, vector<1x8x128xf32>
    %315 = vector.shape_cast %314 : vector<1x8x128xf32> to vector<8x128xf32>
    %316 = vector.shape_cast %312 : vector<8x128xf32> to vector<1x8x128xf32>
    tpu.vector_store %arg7[%313, %c0_125, %c0_126], %316 {strides = array<i32>} : memref<8x8x128xf32, #tpu.memory_space<vmem>>, vector<1x8x128xf32>,
    %c7_i32 = arith.constant 7 : i32
    %317 = arith.index_cast %c7_i32 : i32 to index
    %c0_127 = arith.constant 0 : index
    %c0_128 = arith.constant 0 : index
    %318 = vector.load %arg10[%317, %c0_127, %c0_128] : memref<8x8x512xbf16, #tpu.memory_space<vmem>>, vector<1x8x512xbf16>
    %319 = vector.shape_cast %318 : vector<1x8x512xbf16> to vector<8x512xbf16>
    %320 = arith.truncf %312 : vector<8x128xf32> to vector<8x128xbf16>
    %c0_129 = arith.constant 0 : index
    %c0_130 = arith.constant 0 : index
    %321 = vector.load %arg5[%c0_129, %c0_130] : memref<128x512xbf16, #tpu.memory_space<vmem>>, vector<128x512xbf16>
    %cst_131 = arith.constant dense<0.000000e+00> : vector<8x512xf32>
    %322 = tpu.matmul %320, %321, %cst_131 {dimension_numbers = #tpu.dot_dimension_numbers<[1], [0], [0], [1], [0, 0, 1, 1], [], []>} : vector<8x128xbf16>, vector<128x512xbf16>, vector<8x512xf32> -> vector<8x512xf32>
    %323 = arith.extf %319 : vector<8x512xbf16> to vector<8x512xf32>
    %324 = arith.addf %323, %322 : vector<8x512xf32>
    %325 = vector.extract_strided_slice %324 {offsets = [0, 0], sizes = [8, 128], strides = [1, 1]} : vector<8x512xf32> to vector<8x128xf32>
    %cst_132 = arith.constant 5.000000e-01 : f32
    %326 = vector.broadcast %cst_132 : f32 to vector<8x128xf32>
    %327 = arith.mulf %325, %326 : vector<8x128xf32>
    %328 = math.tanh %327 : vector<8x128xf32>
    %cst_133 = arith.constant 5.000000e-01 : f32
    %329 = vector.broadcast %cst_133 : f32 to vector<8x128xf32>
    %330 = arith.mulf %328, %329 : vector<8x128xf32>
    %cst_134 = arith.constant 5.000000e-01 : f32
    %331 = vector.broadcast %cst_134 : f32 to vector<8x128xf32>
    %332 = arith.addf %330, %331 : vector<8x128xf32>
    %333 = vector.extract_strided_slice %324 {offsets = [0, 128], sizes = [8, 128], strides = [1, 1]} : vector<8x512xf32> to vector<8x128xf32>
    %cst_135 = arith.constant 5.000000e-01 : f32
    %334 = vector.broadcast %cst_135 : f32 to vector<8x128xf32>
    %335 = arith.mulf %333, %334 : vector<8x128xf32>
    %336 = math.tanh %335 : vector<8x128xf32>
    %cst_136 = arith.constant 5.000000e-01 : f32
    %337 = vector.broadcast %cst_136 : f32 to vector<8x128xf32>
    %338 = arith.mulf %336, %337 : vector<8x128xf32>
    %cst_137 = arith.constant 5.000000e-01 : f32
    %339 = vector.broadcast %cst_137 : f32 to vector<8x128xf32>
    %340 = arith.addf %338, %339 : vector<8x128xf32>
    %341 = vector.extract_strided_slice %324 {offsets = [0, 256], sizes = [8, 128], strides = [1, 1]} : vector<8x512xf32> to vector<8x128xf32>
    %342 = math.tanh %341 : vector<8x128xf32>
    %343 = vector.extract_strided_slice %324 {offsets = [0, 384], sizes = [8, 128], strides = [1, 1]} : vector<8x512xf32> to vector<8x128xf32>
    %cst_138 = arith.constant 5.000000e-01 : f32
    %344 = vector.broadcast %cst_138 : f32 to vector<8x128xf32>
    %345 = arith.mulf %343, %344 : vector<8x128xf32>
    %346 = math.tanh %345 : vector<8x128xf32>
    %cst_139 = arith.constant 5.000000e-01 : f32
    %347 = vector.broadcast %cst_139 : f32 to vector<8x128xf32>
    %348 = arith.mulf %346, %347 : vector<8x128xf32>
    %cst_140 = arith.constant 5.000000e-01 : f32
    %349 = vector.broadcast %cst_140 : f32 to vector<8x128xf32>
    %350 = arith.addf %348, %349 : vector<8x128xf32>
    %351 = arith.mulf %340, %310 : vector<8x128xf32>
    %352 = arith.mulf %332, %342 : vector<8x128xf32>
    %353 = arith.addf %351, %352 : vector<8x128xf32>
    %354 = math.tanh %353 : vector<8x128xf32>
    %355 = arith.mulf %350, %354 : vector<8x128xf32>
    %356 = arith.index_cast %c7_i32 : i32 to index
    %c0_141 = arith.constant 0 : index
    %c0_142 = arith.constant 0 : index
    %357 = vector.load %arg7[%356, %c0_141, %c0_142] : memref<8x8x128xf32, #tpu.memory_space<vmem>>, vector<1x8x128xf32>
    %358 = vector.shape_cast %357 : vector<1x8x128xf32> to vector<8x128xf32>
    %359 = vector.shape_cast %355 : vector<8x128xf32> to vector<1x8x128xf32>
    tpu.vector_store %arg7[%356, %c0_141, %c0_142], %359 {strides = array<i32>} : memref<8x8x128xf32, #tpu.memory_space<vmem>>, vector<1x8x128xf32>,
    %c8_i32 = arith.constant 8 : i32
    %c0_143 = arith.constant 0 : index
    %c0_144 = arith.constant 0 : index
    %360 = vector.load %arg8[%c0_143, %c0_144] : memref<8x128xf32, #tpu.memory_space<vmem>>, vector<8x128xf32>
    tpu.vector_store %arg8[%c0_143, %c0_144], %355 {strides = array<i32>} : memref<8x128xf32, #tpu.memory_space<vmem>>, vector<8x128xf32>,
    %c0_145 = arith.constant 0 : index
    %c0_146 = arith.constant 0 : index
    %361 = vector.load %arg9[%c0_145, %c0_146] : memref<8x128xf32, #tpu.memory_space<vmem>>, vector<8x128xf32>
    tpu.vector_store %arg9[%c0_145, %c0_146], %353 {strides = array<i32>} : memref<8x128xf32, #tpu.memory_space<vmem>>, vector<8x128xf32>,
    %c8_i32_147 = arith.constant 8 : i32
    %362 = arith.muli %arg1, %c8_i32_147 : i32
    %363 = tpu.iota {dimensions = array<i32: 0>} : vector<8x8x1xi32>
    %364 = vector.broadcast %362 : i32 to vector<8x8x1xi32>
    %365 = arith.addi %364, %363 : vector<8x8x1xi32>
    %c0_148 = arith.constant 0 : index
    %c0_149 = arith.constant 0 : index
    %366 = vector.load %arg3[%c0_148, %c0_149] : memref<8x1xi32, #tpu.memory_space<vmem>>, vector<8x1xi32>
    %367 = vector.shape_cast %366 : vector<8x1xi32> to vector<1x8x1xi32>
    %368 = vector.broadcast %367 : vector<1x8x1xi32> to vector<8x8x1xi32>
    %369 = arith.cmpi slt, %365, %368 : vector<8x8x1xi32>
    %370 = arith.extui %369 : vector<8x8x1xi1> to vector<8x8x1xi32>
    %371 = arith.sitofp %370 : vector<8x8x1xi32> to vector<8x8x1xf32>
    %c0_150 = arith.constant 0 : index
    %c0_151 = arith.constant 0 : index
    %c0_152 = arith.constant 0 : index
    %372 = vector.load %arg7[%c0_150, %c0_151, %c0_152] : memref<8x8x128xf32, #tpu.memory_space<vmem>>, vector<8x8x128xf32>
    %373 = vector.broadcast %371 : vector<8x8x1xf32> to vector<8x8x128xf32>
    %374 = arith.mulf %372, %373 : vector<8x8x128xf32>
    %c0_153 = arith.constant 0 : index
    %c0_154 = arith.constant 0 : index
    %c0_155 = arith.constant 0 : index
    %375 = vector.load %arg7[%c0_153, %c0_154, %c0_155] : memref<8x8x128xf32, #tpu.memory_space<vmem>>, vector<8x8x128xf32>
    tpu.vector_store %arg7[%c0_153, %c0_154, %c0_155], %374 {strides = array<i32>} : memref<8x8x128xf32, #tpu.memory_space<vmem>>, vector<8x8x128xf32>,
    return
  }
  func.func @transform_0(%arg0: i32, %arg1: i32) -> (i32, i32, i32) {
    %c0_i32 = arith.constant 0 : i32
    %c0_i32_0 = arith.constant 0 : i32
    return %arg1, %arg0, %c0_i32 : i32, i32, i32
  }
  func.func @transform_1(%arg0: i32, %arg1: i32) -> (i32, i32) {
    %c0_i32 = arith.constant 0 : i32
    %c0_i32_0 = arith.constant 0 : i32
    return %arg0, %c0_i32 : i32, i32
  }
  func.func @transform_2(%arg0: i32, %arg1: i32) -> (i32, i32) {
    %c0_i32 = arith.constant 0 : i32
    %c0_i32_0 = arith.constant 0 : i32
    %c0_i32_1 = arith.constant 0 : i32
    return %c0_i32, %c0_i32_0 : i32, i32
  }
  func.func @transform_3(%arg0: i32, %arg1: i32) -> (i32, i32) {
    %c0_i32 = arith.constant 0 : i32
    %c0_i32_0 = arith.constant 0 : i32
    %c0_i32_1 = arith.constant 0 : i32
    return %c0_i32, %c0_i32_0 : i32, i32
  }
  func.func @transform_4(%arg0: i32, %arg1: i32) -> (i32, i32) {
    %c0_i32 = arith.constant 0 : i32
    %c0_i32_0 = arith.constant 0 : i32
    %c0_i32_1 = arith.constant 0 : i32
    return %c0_i32, %c0_i32_0 : i32, i32
  }
  func.func @transform_5(%arg0: i32, %arg1: i32) -> (i32, i32, i32) {
    %c0_i32 = arith.constant 0 : i32
    %c0_i32_0 = arith.constant 0 : i32
    return %arg1, %arg0, %c0_i32 : i32, i32, i32
  }
}

</mosaic_0001>

<llo_original>
// kernel: tpu_custom_call.1
$region0: #{tpu_custom_call.1}
  #allocation0 [shape = 'u32[]', space=smem, size = 0x4, offset = 0x4, fixed_abs, tag = 'smem constant byte address 0x4 - core index']
  #allocation1 [shape = 'u32[144,128]{1,0:T(1,128)}', space=vmem, size = 0x12000, scoped, tag = 'internal scratch']
  #allocation2 [shape = 'f32[8,128]{1,0:T(8,128)}', space=vmem, size = 0x1000, scoped, tag = 'scratch operand']
  #allocation3 [shape = 'f32[8,128]{1,0:T(8,128)}', space=vmem, size = 0x1000, scoped, tag = 'scratch operand']
  #allocation4 [shape = 'bf16[8,8,512]{2,1,0:T(8,128)(2,1)}', space=vmem, size = 0x10000, scoped, tag = 'scratch operand']
  %s0 = inlined_call_operand.hbm [shape: f32[8,8,128], index: 0, kind: input, shape index: {}]
  %s1 = inlined_call_operand.hbm [shape: s32[8,1], index: 1, kind: input, shape index: {}]
  %s2 = inlined_call_operand.hbm [shape: bf16[128,512], index: 2, kind: input, shape index: {}]
  %s3 = inlined_call_operand.hbm [shape: bf16[128,512], index: 3, kind: input, shape index: {}]
  %s4 = inlined_call_operand.hbm [shape: f32[1,512], index: 4, kind: input, shape index: {}]
  %s5 = inlined_call_operand.hbm [shape: f32[8,8,128], index: 5, kind: output, shape index: {}]
  %s6 = sld [smem:[#allocation0]]
  $region54: #{tpu_custom_call.1} parent=0
    _
  %s8 = ssub.s32 1, %s6
  %s9 = scalar_select 0, %s8, %s6
  $region1: #{tpu_custom_call.1} parent=0
    #allocation5 [shape = 'u8[32768]{0}', space=vmem, size = 0x8000, scoped, tag = 'input window, operand 0, single buffered']
    #allocation6 [shape = 's32[1]{0}', space=sflag, size = 0x4, scoped, tag = 'scoped memory for tpu_custom_call.1']
    #allocation7 [shape = 's32[1]{0}', space=sflag, size = 0x4, scoped, tag = 'scoped memory for tpu_custom_call.1']
    #allocation8 [shape = 'u8[4096]{0}', space=vmem, size = 0x1000, scoped, tag = 'input window, operand 1, single buffered']
    #allocation9 [shape = 's32[1]{0}', space=sflag, size = 0x4, scoped, tag = 'scoped memory for tpu_custom_call.1']
    #allocation10 [shape = 'u8[131072]{0}', space=vmem, size = 0x20000, scoped, tag = 'input window, operand 2, single buffered']
    #allocation11 [shape = 'u8[131072]{0}', space=vmem, size = 0x20000, scoped, tag = 'input window, operand 3, single buffered']
    #allocation12 [shape = 's32[1]{0}', space=sflag, size = 0x4, scoped, tag = 'scoped memory for tpu_custom_call.1']
    #allocation13 [shape = 'u8[2048]{0}', space=vmem, size = 0x800, scoped, tag = 'input window, operand 4, single buffered']
    #allocation14 [shape = 'u8[32768]{0}', space=vmem, size = 0x8000, scoped, tag = 'output window, operand 0, single buffered']
    %10 = vsyncpa [#allocation6], 0
    %11 = vsyncpa [#allocation9], 0
    %12 = vsyncpa [#allocation12], 0
    %13 = vsyncpa [#allocation7], 0
    // Predicated region
    $region2: #{tpu_custom_call.1} parent=1 // pred_check
      _
    $region3: #{tpu_custom_call.1} parent=1 // pred_check_branch
      %15 = sbr.rel (0) target = $region5
    $region4: #{tpu_custom_call.1} parent=1 // pred_region
      %s17 = ssub.s32 1024, 1024
      %18 = vsyncadd [#allocation6], %s17
      %s19 = sshll.u32 [#allocation5], 4
      %s20 = int_to_ptr.vmem [resolvable:$true] %s19
      %25 = dma.hbm_to_vmem [thread:$0]  %s0, 1024, %s20, [#allocation6], 128, 128, 8
    $region5: #{tpu_custom_call.1} parent=1 // pred_fallthru
      _
    // Predicated region
    $region6: #{tpu_custom_call.1} parent=1 // pred_check
      _
    $region7: #{tpu_custom_call.1} parent=1 // pred_check_branch
      %27 = sbr.rel (0) target = $region9
    $region8: #{tpu_custom_call.1} parent=1 // pred_region
      %s29 = ssub.s32 128, 128
      %30 = vsyncadd [#allocation9], %s29
      %s32 = sshll.u32 [#allocation8], 4
      %s33 = int_to_ptr.vmem [resolvable:$true] %s32
      %35 = dma.hbm_to_vmem [thread:$0]  %s1, 128, %s33, [#allocation9]
    $region9: #{tpu_custom_call.1} parent=1 // pred_fallthru
      _
    // Predicated region
    $region10: #{tpu_custom_call.1} parent=1 // pred_check
      _
    $region11: #{tpu_custom_call.1} parent=1 // pred_check_branch
      %37 = sbr.rel (0) target = $region13
    $region12: #{tpu_custom_call.1} parent=1 // pred_region
      %s39 = ssub.s32 4096, 4096
      %40 = vsyncadd [#allocation9], %s39
      %s41 = sshll.u32 [#allocation10], 4
      %s42 = int_to_ptr.vmem [resolvable:$true] %s41
      %47 = dma.hbm_to_vmem [thread:$0]  %s2, 4096, %s42, [#allocation9], 256, 256, 16
    $region13: #{tpu_custom_call.1} parent=1 // pred_fallthru
      _
    // Predicated region
    $region14: #{tpu_custom_call.1} parent=1 // pred_check
      _
    $region15: #{tpu_custom_call.1} parent=1 // pred_check_branch
      %49 = sbr.rel (0) target = $region17
    $region16: #{tpu_custom_call.1} parent=1 // pred_region
      %s51 = ssub.s32 4096, 4096
      %52 = vsyncadd [#allocation12], %s51
      %s53 = sshll.u32 [#allocation11], 4
      %s54 = int_to_ptr.vmem [resolvable:$true] %s53
      %59 = dma.hbm_to_vmem [thread:$0]  %s3, 4096, %s54, [#allocation12], 256, 256, 16
    $region17: #{tpu_custom_call.1} parent=1 // pred_fallthru
      _
    // Predicated region
    $region18: #{tpu_custom_call.1} parent=1 // pred_check
      _
    $region19: #{tpu_custom_call.1} parent=1 // pred_check_branch
      %61 = sbr.rel (0) target = $region21
    $region20: #{tpu_custom_call.1} parent=1 // pred_region
      %s63 = ssub.s32 64, 64
      %64 = vsyncadd [#allocation12], %s63
      %s66 = sshll.u32 [#allocation13], 4
      %s67 = int_to_ptr.vmem [resolvable:$true] %s66
      %69 = dma.hbm_to_vmem [thread:$0]  %s4, 64, %s67, [#allocation12]
    $region21: #{tpu_custom_call.1} parent=1 // pred_fallthru
      _
    // Predicated region
    $region22: #{tpu_custom_call.1} parent=1 // pred_check
      _
    $region23: #{tpu_custom_call.1} parent=1 // pred_check_branch
      %71 = sbr.rel (0) target = $region25
    $region24: #{tpu_custom_call.1} parent=1 // pred_region
      %72 = dma.done [#allocation6], 1024
    $region25: #{tpu_custom_call.1} parent=1 // pred_fallthru
      _
    // Predicated region
    $region26: #{tpu_custom_call.1} parent=1 // pred_check
      _
    $region27: #{tpu_custom_call.1} parent=1 // pred_check_branch
      %74 = sbr.rel (0) target = $region29
    $region28: #{tpu_custom_call.1} parent=1 // pred_region
      %75 = dma.done [#allocation9], 128
    $region29: #{tpu_custom_call.1} parent=1 // pred_fallthru
      _
    // Predicated region
    $region30: #{tpu_custom_call.1} parent=1 // pred_check
      _
    $region31: #{tpu_custom_call.1} parent=1 // pred_check_branch
      %77 = sbr.rel (0) target = $region33
    $region32: #{tpu_custom_call.1} parent=1 // pred_region
      %78 = dma.done [#allocation9], 4096
    $region33: #{tpu_custom_call.1} parent=1 // pred_fallthru
      _
    // Predicated region
    $region34: #{tpu_custom_call.1} parent=1 // pred_check
      _
    $region35: #{tpu_custom_call.1} parent=1 // pred_check_branch
      %80 = sbr.rel (0) target = $region37
    $region36: #{tpu_custom_call.1} parent=1 // pred_region
      %81 = dma.done [#allocation12], 4096
    $region37: #{tpu_custom_call.1} parent=1 // pred_fallthru
      _
    // Predicated region
    $region38: #{tpu_custom_call.1} parent=1 // pred_check
      _
    $region39: #{tpu_custom_call.1} parent=1 // pred_check_branch
      %83 = sbr.rel (0) target = $region41
    $region40: #{tpu_custom_call.1} parent=1 // pred_region
      %84 = dma.done [#allocation12], 64
    $region41: #{tpu_custom_call.1} parent=1 // pred_fallthru
      _
    %p86 = scmp.eq.s32.totalorder 0, 0
    // Predicated region
    $region42: #{tpu_custom_call.1} parent=1 // pred_check
      %p87 = pneg %p86
    $region43: #{tpu_custom_call.1} parent=1 // pred_check_branch
      %89 = sbr.rel (%p87) target = $region45
    $region44: #{tpu_custom_call.1} parent=1 // pred_region
      %90 = vst [vmem:[#allocation2] sm:$0xff] 0.0
      %91 = vst [vmem:[#allocation3] sm:$0xff] 0.0
    $region45: #{tpu_custom_call.1} parent=1 // pred_fallthru
      _
    %v92 = vld [vmem:[#allocation5] sm:$0xff]
    %v93 = vld [vmem:[#allocation5 + $0x8] sm:$0xff]
    %v94 = vld [vmem:[#allocation5 + $0x10] sm:$0xff]
    %v95 = vld [vmem:[#allocation5 + $0x18] sm:$0xff]
    %v96 = vld [vmem:[#allocation5 + $0x20] sm:$0xff]
    %v97 = vld [vmem:[#allocation5 + $0x28] sm:$0xff]
    %v98 = vld [vmem:[#allocation5 + $0x30] sm:$0xff]
    %v99 = vld [vmem:[#allocation5 + $0x38] sm:$0xff]
    %v100 = vpack.c.bf16 %v93, %v92
    %v101 = vpack.c.bf16 %v95, %v94
    %v102 = vpack.c.bf16 %v97, %v96
    %v103 = vpack.c.bf16 %v99, %v98
    %v104 = vld [vmem:[#allocation10] sm:$0xff]
    %v105 = vld [vmem:[#allocation10 + $0x8] sm:$0xff]
    %v106 = vld [vmem:[#allocation10 + $0x10] sm:$0xff]
    %v107 = vld [vmem:[#allocation10 + $0x18] sm:$0xff]
    %v108 = vld [vmem:[#allocation10 + $0x20] sm:$0xff]
    %v109 = vld [vmem:[#allocation10 + $0x28] sm:$0xff]
    %v110 = vld [vmem:[#allocation10 + $0x30] sm:$0xff]
    %v111 = vld [vmem:[#allocation10 + $0x38] sm:$0xff]
    %v112 = vld [vmem:[#allocation10 + $0x40] sm:$0xff]
    %v113 = vld [vmem:[#allocation10 + $0x48] sm:$0xff]
    %v114 = vld [vmem:[#allocation10 + $0x50] sm:$0xff]
    %v115 = vld [vmem:[#allocation10 + $0x58] sm:$0xff]
    %v116 = vld [vmem:[#allocation10 + $0x60] sm:$0xff]
    %v117 = vld [vmem:[#allocation10 + $0x68] sm:$0xff]
    %v118 = vld [vmem:[#allocation10 + $0x70] sm:$0xff]
    %v119 = vld [vmem:[#allocation10 + $0x78] sm:$0xff]
    %v120 = vld [vmem:[#allocation10 + $0x80] sm:$0xff]
    %v121 = vld [vmem:[#allocation10 + $0x88] sm:$0xff]
    %v122 = vld [vmem:[#allocation10 + $0x90] sm:$0xff]
    %v123 = vld [vmem:[#allocation10 + $0x98] sm:$0xff]
    %v124 = vld [vmem:[#allocation10 + $0xa0] sm:$0xff]
    %v125 = vld [vmem:[#allocation10 + $0xa8] sm:$0xff]
    %v126 = vld [vmem:[#allocation10 + $0xb0] sm:$0xff]
    %v127 = vld [vmem:[#allocation10 + $0xb8] sm:$0xff]
    %v128 = vld [vmem:[#allocation10 + $0xc0] sm:$0xff]
    %v129 = vld [vmem:[#allocation10 + $0xc8] sm:$0xff]
    %v130 = vld [vmem:[#allocation10 + $0xd0] sm:$0xff]
    %v131 = vld [vmem:[#allocation10 + $0xd8] sm:$0xff]
    %v132 = vld [vmem:[#allocation10 + $0xe0] sm:$0xff]
    %v133 = vld [vmem:[#allocation10 + $0xe8] sm:$0xff]
    %v134 = vld [vmem:[#allocation10 + $0xf0] sm:$0xff]
    %v135 = vld [vmem:[#allocation10 + $0xf8] sm:$0xff]
    %v136 = vld [vmem:[#allocation13] sm:$0xf]
    %v138 = vlaneseq
    %v139 = vshrl.u32 %v138, 7
    %v140 = vsub.s32 0, %v139
    %v141 = vrot.slane %v136, %v140
    %v142 = vlaneseq
    %v143 = vshrl.u32 %v142, 7
    %v144 = vsub.s32 1, %v143
    %v145 = vrot.slane %v136, %v144
    %v146 = vlaneseq
    %v147 = vshrl.u32 %v146, 7
    %v148 = vsub.s32 2, %v147
    %v149 = vrot.slane %v136, %v148
    %v150 = vlaneseq
    %v151 = vshrl.u32 %v150, 7
    %v152 = vsub.s32 3, %v151
    %v153 = vrot.slane %v136, %v152
    %v190 = vunpack.c.l.b16 %v104
    %v191 = vunpack.c.h.b16 %v104
    %v192 = vunpack.c.l.b16 %v105
    %v193 = vunpack.c.h.b16 %v105
    %v194 = vunpack.c.l.b16 %v106
    %v195 = vunpack.c.h.b16 %v106
    %v196 = vunpack.c.l.b16 %v107
    %v197 = vunpack.c.h.b16 %v107
    %v198 = vunpack.c.l.b16 %v108
    %v199 = vunpack.c.h.b16 %v108
    %v200 = vunpack.c.l.b16 %v109
    %v201 = vunpack.c.h.b16 %v109
    %v202 = vunpack.c.l.b16 %v110
    %v203 = vunpack.c.h.b16 %v110
    %v204 = vunpack.c.l.b16 %v111
    %v205 = vunpack.c.h.b16 %v111
    %v206 = vunpack.c.l.b16 %v112
    %v207 = vunpack.c.h.b16 %v112
    %v208 = vunpack.c.l.b16 %v113
    %v209 = vunpack.c.h.b16 %v113
    %v210 = vunpack.c.l.b16 %v114
    %v211 = vunpack.c.h.b16 %v114
    %v212 = vunpack.c.l.b16 %v115
    %v213 = vunpack.c.h.b16 %v115
    %v214 = vunpack.c.l.b16 %v116
    %v215 = vunpack.c.h.b16 %v116
    %v216 = vunpack.c.l.b16 %v117
    %v217 = vunpack.c.h.b16 %v117
    %v218 = vunpack.c.l.b16 %v118
    %v219 = vunpack.c.h.b16 %v118
    %v220 = vunpack.c.l.b16 %v119
    %v221 = vunpack.c.h.b16 %v119
    %v222 = vunpack.c.l.b16 %v120
    %v223 = vunpack.c.h.b16 %v120
    %v224 = vunpack.c.l.b16 %v121
    %v225 = vunpack.c.h.b16 %v121
    %v226 = vunpack.c.l.b16 %v122
    %v227 = vunpack.c.h.b16 %v122
    %v228 = vunpack.c.l.b16 %v123
    %v229 = vunpack.c.h.b16 %v123
    %v230 = vunpack.c.l.b16 %v124
    %v231 = vunpack.c.h.b16 %v124
    %v232 = vunpack.c.l.b16 %v125
    %v233 = vunpack.c.h.b16 %v125
    %v234 = vunpack.c.l.b16 %v126
    %v235 = vunpack.c.h.b16 %v126
    %v236 = vunpack.c.l.b16 %v127
    %v237 = vunpack.c.h.b16 %v127
    %v238 = vunpack.c.l.b16 %v128
    %v239 = vunpack.c.h.b16 %v128
    %v240 = vunpack.c.l.b16 %v129
    %v241 = vunpack.c.h.b16 %v129
    %v242 = vunpack.c.l.b16 %v130
    %v243 = vunpack.c.h.b16 %v130
    %v244 = vunpack.c.l.b16 %v131
    %v245 = vunpack.c.h.b16 %v131
    %v246 = vunpack.c.l.b16 %v132
    %v247 = vunpack.c.h.b16 %v132
    %v248 = vunpack.c.l.b16 %v133
    %v249 = vunpack.c.h.b16 %v133
    %v250 = vunpack.c.l.b16 %v134
    %v251 = vunpack.c.h.b16 %v134
    %v252 = vunpack.c.l.b16 %v135
    %v253 = vunpack.c.h.b16 %v135
    %v254 = vpack.c.b16 %v194, %v190
    %v255 = vpack.c.b16 %v195, %v191
    %v256 = vpack.c.b16 %v196, %v192
    %v257 = vpack.c.b16 %v197, %v193
    %v258 = vpack.c.b16 %v202, %v198
    %v259 = vpack.c.b16 %v203, %v199
    %v260 = vpack.c.b16 %v204, %v200
    %v261 = vpack.c.b16 %v205, %v201
    %v262 = vpack.c.b16 %v210, %v206
    %v263 = vpack.c.b16 %v211, %v207
    %v264 = vpack.c.b16 %v212, %v208
    %v265 = vpack.c.b16 %v213, %v209
    %v266 = vpack.c.b16 %v218, %v214
    %v267 = vpack.c.b16 %v219, %v215
    %v268 = vpack.c.b16 %v220, %v216
    %v269 = vpack.c.b16 %v221, %v217
    %v270 = vpack.c.b16 %v226, %v222
    %v271 = vpack.c.b16 %v227, %v223
    %v272 = vpack.c.b16 %v228, %v224
    %v273 = vpack.c.b16 %v229, %v225
    %v274 = vpack.c.b16 %v234, %v230
    %v275 = vpack.c.b16 %v235, %v231
    %v276 = vpack.c.b16 %v236, %v232
    %v277 = vpack.c.b16 %v237, %v233
    %v278 = vpack.c.b16 %v242, %v238
    %v279 = vpack.c.b16 %v243, %v239
    %v280 = vpack.c.b16 %v244, %v240
    %v281 = vpack.c.b16 %v245, %v241
    %v282 = vpack.c.b16 %v250, %v246
    %v283 = vpack.c.b16 %v251, %v247
    %v284 = vpack.c.b16 %v252, %v248
    %v285 = vpack.c.b16 %v253, %v249
    %318 = vmatprep.subr.bf16.mxu0 %v255
    %319 = vmatpush1.bf16.msra.mxu0 %v254
    %320 = vmatprep.subr.bf16.mxu0 %v259
    %321 = vmatpush1.bf16.msra.mxu0 %v258
    %322 = vmatprep.subr.bf16.mxu0 %v263
    %323 = vmatpush1.bf16.msra.mxu0 %v262
    %324 = vmatprep.subr.bf16.mxu0 %v267
    %325 = vmatpush1.bf16.msra.mxu0 %v266
    %326 = vmatprep.subr.bf16.mxu0 %v271
    %327 = vmatpush1.bf16.msra.mxu0 %v270
    %328 = vmatprep.subr.bf16.mxu0 %v275
    %329 = vmatpush1.bf16.msra.mxu0 %v274
    %330 = vmatprep.subr.bf16.mxu0 %v279
    %331 = vmatpush1.bf16.msra.mxu0 %v278
    %332 = vmatprep.subr.bf16.mxu0 %v283
    %333 = vmatpush1.bf16.msra.mxu0 %v282
    %334 = vmatprep.subr.bf16.mxu0 0
    %335 = vmatpush1.bf16.msra.mxu0 0
    %336 = vmatprep.subr.bf16.mxu0 0
    %337 = vmatpush1.bf16.msra.mxu0 0
    %338 = vmatprep.subr.bf16.mxu0 0
    %339 = vmatpush1.bf16.msra.mxu0 0
    %340 = vmatprep.subr.bf16.mxu0 0
    %341 = vmatpush1.bf16.msra.mxu0 0
    %342 = vmatprep.subr.bf16.mxu0 0
    %343 = vmatpush1.bf16.msra.mxu0 0
    %344 = vmatprep.subr.bf16.mxu0 0
    %345 = vmatpush1.bf16.msra.mxu0 0
    %346 = vmatprep.subr.bf16.mxu0 0
    %347 = vmatpush1.bf16.msra.mxu0 0
    %348 = vmatprep.subr.bf16.mxu0 0
    %349 = vmatpush1.bf16.msra.mxu0 0
    %350 = vmatprep.mubr.bf16.mxu0 0
    %351 = vmatmul.mubr.bf16.gmra.mrb[0].mxu0 %v100
    %v352 = vpop.f32.mrb[0].mxu0
    %v353 = vadd.f32 %v141, %v352
    %v354 = vpop.f32.mrb[0].mxu0
    %v355 = vadd.f32 %v145, %v354
    %v356 = vpop.f32.mrb[0].mxu0
    %v357 = vadd.f32 %v141, %v356
    %v358 = vpop.f32.mrb[0].mxu0
    %v359 = vadd.f32 %v145, %v358
    %360 = vmatprep.mubr.bf16.mxu0 0
    %361 = vmatmul.mubr.bf16.gmra.mrb[0].mxu0 %v101
    %v362 = vpop.f32.mrb[0].mxu0
    %v363 = vadd.f32 %v141, %v362
    %v364 = vpop.f32.mrb[0].mxu0
    %v365 = vadd.f32 %v145, %v364
    %v366 = vpop.f32.mrb[0].mxu0
    %v367 = vadd.f32 %v141, %v366
    %v368 = vpop.f32.mrb[0].mxu0
    %v369 = vadd.f32 %v145, %v368
    %370 = vmatprep.mubr.bf16.mxu0 0
    %371 = vmatmul.mubr.bf16.gmra.mrb[0].mxu0 %v102
    %v372 = vpop.f32.mrb[0].mxu0
    %v373 = vadd.f32 %v141, %v372
    %v374 = vpop.f32.mrb[0].mxu0
    %v375 = vadd.f32 %v145, %v374
    %v376 = vpop.f32.mrb[0].mxu0
    %v377 = vadd.f32 %v141, %v376
    %v378 = vpop.f32.mrb[0].mxu0
    %v379 = vadd.f32 %v145, %v378
    %380 = vmatprep.mubr.bf16.mxu0 0
    %381 = vmatmul.mubr.bf16.gmra.mrb[0].mxu0 %v103
    %v382 = vpop.f32.mrb[0].mxu0
    %v383 = vadd.f32 %v141, %v382
    %v384 = vpop.f32.mrb[0].mxu0
    %v385 = vadd.f32 %v145, %v384
    %v386 = vpop.f32.mrb[0].mxu0
    %v387 = vadd.f32 %v141, %v386
    %v388 = vpop.f32.mrb[0].mxu0
    %v389 = vadd.f32 %v145, %v388
    %390 = vdwg.mxu0
    %391 = vmatprep.subr.bf16.mxu0 %v257
    %392 = vmatpush1.bf16.msra.mxu0 %v256
    %393 = vmatprep.subr.bf16.mxu0 %v261
    %394 = vmatpush1.bf16.msra.mxu0 %v260
    %395 = vmatprep.subr.bf16.mxu0 %v265
    %396 = vmatpush1.bf16.msra.mxu0 %v264
    %397 = vmatprep.subr.bf16.mxu0 %v269
    %398 = vmatpush1.bf16.msra.mxu0 %v268
    %399 = vmatprep.subr.bf16.mxu0 %v273
    %400 = vmatpush1.bf16.msra.mxu0 %v272
    %401 = vmatprep.subr.bf16.mxu0 %v277
    %402 = vmatpush1.bf16.msra.mxu0 %v276
    %403 = vmatprep.subr.bf16.mxu0 %v281
    %404 = vmatpush1.bf16.msra.mxu0 %v280
    %405 = vmatprep.subr.bf16.mxu0 %v285
    %406 = vmatpush1.bf16.msra.mxu0 %v284
    %407 = vmatprep.subr.bf16.mxu0 0
    %408 = vmatpush1.bf16.msra.mxu0 0
    %409 = vmatprep.subr.bf16.mxu0 0
    %410 = vmatpush1.bf16.msra.mxu0 0
    %411 = vmatprep.subr.bf16.mxu0 0
    %412 = vmatpush1.bf16.msra.mxu0 0
    %413 = vmatprep.subr.bf16.mxu0 0
    %414 = vmatpush1.bf16.msra.mxu0 0
    %415 = vmatprep.subr.bf16.mxu0 0
    %416 = vmatpush1.bf16.msra.mxu0 0
    %417 = vmatprep.subr.bf16.mxu0 0
    %418 = vmatpush1.bf16.msra.mxu0 0
    %419 = vmatprep.subr.bf16.mxu0 0
    %420 = vmatpush1.bf16.msra.mxu0 0
    %421 = vmatprep.subr.bf16.mxu0 0
    %422 = vmatpush1.bf16.msra.mxu0 0
    %423 = vmatprep.mubr.bf16.mxu0 0
    %424 = vmatmul.mubr.bf16.gmra.mrb[0].mxu0 %v100
    %v425 = vpop.f32.mrb[0].mxu0
    %v426 = vadd.f32 %v149, %v425
    %v427 = vpop.f32.mrb[0].mxu0
    %v428 = vadd.f32 %v153, %v427
    %v429 = vpop.f32.mrb[0].mxu0
    %v430 = vadd.f32 %v149, %v429
    %v431 = vpop.f32.mrb[0].mxu0
    %v432 = vadd.f32 %v153, %v431
    %433 = vmatprep.mubr.bf16.mxu0 0
    %434 = vmatmul.mubr.bf16.gmra.mrb[0].mxu0 %v101
    %v435 = vpop.f32.mrb[0].mxu0
    %v436 = vadd.f32 %v149, %v435
    %v437 = vpop.f32.mrb[0].mxu0
    %v438 = vadd.f32 %v153, %v437
    %v439 = vpop.f32.mrb[0].mxu0
    %v440 = vadd.f32 %v149, %v439
    %v441 = vpop.f32.mrb[0].mxu0
    %v442 = vadd.f32 %v153, %v441
    %443 = vmatprep.mubr.bf16.mxu0 0
    %444 = vmatmul.mubr.bf16.gmra.mrb[0].mxu0 %v102
    %v445 = vpop.f32.mrb[0].mxu0
    %v446 = vadd.f32 %v149, %v445
    %v447 = vpop.f32.mrb[0].mxu0
    %v448 = vadd.f32 %v153, %v447
    %v449 = vpop.f32.mrb[0].mxu0
    %v450 = vadd.f32 %v149, %v449
    %v451 = vpop.f32.mrb[0].mxu0
    %v452 = vadd.f32 %v153, %v451
    %453 = vmatprep.mubr.bf16.mxu0 0
    %454 = vmatmul.mubr.bf16.gmra.mrb[0].mxu0 %v103
    %v455 = vpop.f32.mrb[0].mxu0
    %v456 = vadd.f32 %v149, %v455
    %v457 = vpop.f32.mrb[0].mxu0
    %v458 = vadd.f32 %v153, %v457
    %v459 = vpop.f32.mrb[0].mxu0
    %v460 = vadd.f32 %v149, %v459
    %v461 = vpop.f32.mrb[0].mxu0
    %v462 = vadd.f32 %v153, %v461
    %463 = vdwg.mxu0
    %v464 = vpack.c.bf16 %v353, %v353
    %v465 = vpack.c.bf16 %v355, %v355
    %v466 = vpack.c.bf16 %v426, %v426
    %v467 = vpack.c.bf16 %v428, %v428
    %v468 = vpack.c.bf16 %v357, %v357
    %v469 = vpack.c.bf16 %v359, %v359
    %v470 = vpack.c.bf16 %v430, %v430
    %v471 = vpack.c.bf16 %v432, %v432
    %v472 = vpack.c.bf16 %v363, %v363
    %v473 = vpack.c.bf16 %v365, %v365
    %v474 = vpack.c.bf16 %v436, %v436
    %v475 = vpack.c.bf16 %v438, %v438
    %v476 = vpack.c.bf16 %v367, %v367
    %v477 = vpack.c.bf16 %v369, %v369
    %v478 = vpack.c.bf16 %v440, %v440
    %v479 = vpack.c.bf16 %v442, %v442
    %v480 = vpack.c.bf16 %v373, %v373
    %v481 = vpack.c.bf16 %v375, %v375
    %v482 = vpack.c.bf16 %v446, %v446
    %v483 = vpack.c.bf16 %v448, %v448
    %v484 = vpack.c.bf16 %v377, %v377
    %v485 = vpack.c.bf16 %v379, %v379
    %v486 = vpack.c.bf16 %v450, %v450
    %v487 = vpack.c.bf16 %v452, %v452
    %v488 = vpack.c.bf16 %v383, %v383
    %v489 = vpack.c.bf16 %v385, %v385
    %v490 = vpack.c.bf16 %v456, %v456
    %v491 = vpack.c.bf16 %v458, %v458
    %v492 = vpack.c.bf16 %v387, %v387
    %v493 = vpack.c.bf16 %v389, %v389
    %v494 = vpack.c.bf16 %v460, %v460
    %v495 = vpack.c.bf16 %v462, %v462
    %v528 = vunpack.c.l.b16 %v464
    %v529 = vunpack.c.l.b16 %v465
    %v530 = vunpack.c.l.b16 %v466
    %v531 = vunpack.c.l.b16 %v467
    %v532 = vunpack.c.l.b16 %v468
    %v533 = vunpack.c.l.b16 %v469
    %v534 = vunpack.c.l.b16 %v470
    %v535 = vunpack.c.l.b16 %v471
    %v536 = vunpack.c.l.b16 %v472
    %v537 = vunpack.c.l.b16 %v473
    %v538 = vunpack.c.l.b16 %v474
    %v539 = vunpack.c.l.b16 %v475
    %v540 = vunpack.c.l.b16 %v476
    %v541 = vunpack.c.l.b16 %v477
    %v542 = vunpack.c.l.b16 %v478
    %v543 = vunpack.c.l.b16 %v479
    %v544 = vunpack.c.l.b16 %v480
    %v545 = vunpack.c.l.b16 %v481
    %v546 = vunpack.c.l.b16 %v482
    %v547 = vunpack.c.l.b16 %v483
    %v548 = vunpack.c.l.b16 %v484
    %v549 = vunpack.c.l.b16 %v485
    %v550 = vunpack.c.l.b16 %v486
    %v551 = vunpack.c.l.b16 %v487
    %v552 = vunpack.c.l.b16 %v488
    %v553 = vunpack.c.l.b16 %v489
    %v554 = vunpack.c.l.b16 %v490
    %v555 = vunpack.c.l.b16 %v491
    %v556 = vunpack.c.l.b16 %v492
    %v557 = vunpack.c.l.b16 %v493
    %v558 = vunpack.c.l.b16 %v494
    %v559 = vunpack.c.l.b16 %v495
    %v560 = vpack.c.b16 %v529, %v528
    %v561 = vpack.c.b16 %v531, %v530
    %v562 = vpack.c.b16 %v533, %v532
    %v563 = vpack.c.b16 %v535, %v534
    %v564 = vpack.c.b16 %v537, %v536
    %v565 = vpack.c.b16 %v539, %v538
    %v566 = vpack.c.b16 %v541, %v540
    %v567 = vpack.c.b16 %v543, %v542
    %v568 = vpack.c.b16 %v545, %v544
    %v569 = vpack.c.b16 %v547, %v546
    %v570 = vpack.c.b16 %v549, %v548
    %v571 = vpack.c.b16 %v551, %v550
    %v572 = vpack.c.b16 %v553, %v552
    %v573 = vpack.c.b16 %v555, %v554
    %v574 = vpack.c.b16 %v557, %v556
    %v575 = vpack.c.b16 %v559, %v558
    %592 = vst [vmem:[#allocation4] sm:$0xff] %v560
    %593 = vst [vmem:[#allocation4 + $0x8] sm:$0xff] %v561
    %594 = vst [vmem:[#allocation4 + $0x10] sm:$0xff] %v562
    %595 = vst [vmem:[#allocation4 + $0x18] sm:$0xff] %v563
    %596 = vst [vmem:[#allocation4 + $0x20] sm:$0xff] %v564
    %597 = vst [vmem:[#allocation4 + $0x28] sm:$0xff] %v565
    %598 = vst [vmem:[#allocation4 + $0x30] sm:$0xff] %v566
    %599 = vst [vmem:[#allocation4 + $0x38] sm:$0xff] %v567
    %600 = vst [vmem:[#allocation4 + $0x40] sm:$0xff] %v568
    %601 = vst [vmem:[#allocation4 + $0x48] sm:$0xff] %v569
    %602 = vst [vmem:[#allocation4 + $0x50] sm:$0xff] %v570
    %603 = vst [vmem:[#allocation4 + $0x58] sm:$0xff] %v571
    %604 = vst [vmem:[#allocation4 + $0x60] sm:$0xff] %v572
    %605 = vst [vmem:[#allocation4 + $0x68] sm:$0xff] %v573
    %606 = vst [vmem:[#allocation4 + $0x70] sm:$0xff] %v574
    %607 = vst [vmem:[#allocation4 + $0x78] sm:$0xff] %v575
    %v608 = vld [vmem:[#allocation2] sm:$0xff]
    %v609 = vld [vmem:[#allocation3] sm:$0xff]
    %v610 = vld [vmem:[#allocation4] sm:$0xff]
    %v611 = vld [vmem:[#allocation4 + $0x8] sm:$0xff]
    %v612 = vpack.c.bf16 %v608, %v608
    %v613 = vld [vmem:[#allocation11] sm:$0xff]
    %v614 = vld [vmem:[#allocation11 + $0x8] sm:$0xff]
    %v615 = vld [vmem:[#allocation11 + $0x10] sm:$0xff]
    %v616 = vld [vmem:[#allocation11 + $0x18] sm:$0xff]
    %v617 = vld [vmem:[#allocation11 + $0x20] sm:$0xff]
    %v618 = vld [vmem:[#allocation11 + $0x28] sm:$0xff]
    %v619 = vld [vmem:[#allocation11 + $0x30] sm:$0xff]
    %v620 = vld [vmem:[#allocation11 + $0x38] sm:$0xff]
    %v621 = vld [vmem:[#allocation11 + $0x40] sm:$0xff]
    %v622 = vld [vmem:[#allocation11 + $0x48] sm:$0xff]
    %v623 = vld [vmem:[#allocation11 + $0x50] sm:$0xff]
    %v624 = vld [vmem:[#allocation11 + $0x58] sm:$0xff]
    %v625 = vld [vmem:[#allocation11 + $0x60] sm:$0xff]
    %v626 = vld [vmem:[#allocation11 + $0x68] sm:$0xff]
    %v627 = vld [vmem:[#allocation11 + $0x70] sm:$0xff]
    %v628 = vld [vmem:[#allocation11 + $0x78] sm:$0xff]
    %v629 = vld [vmem:[#allocation11 + $0x80] sm:$0xff]
    %v630 = vld [vmem:[#allocation11 + $0x88] sm:$0xff]
    %v631 = vld [vmem:[#allocation11 + $0x90] sm:$0xff]
    %v632 = vld [vmem:[#allocation11 + $0x98] sm:$0xff]
    %v633 = vld [vmem:[#allocation11 + $0xa0] sm:$0xff]
    %v634 = vld [vmem:[#allocation11 + $0xa8] sm:$0xff]
    %v635 = vld [vmem:[#allocation11 + $0xb0] sm:$0xff]
    %v636 = vld [vmem:[#allocation11 + $0xb8] sm:$0xff]
    %v637 = vld [vmem:[#allocation11 + $0xc0] sm:$0xff]
    %v638 = vld [vmem:[#allocation11 + $0xc8] sm:$0xff]
    %v639 = vld [vmem:[#allocation11 + $0xd0] sm:$0xff]
    %v640 = vld [vmem:[#allocation11 + $0xd8] sm:$0xff]
    %v641 = vld [vmem:[#allocation11 + $0xe0] sm:$0xff]
    %v642 = vld [vmem:[#allocation11 + $0xe8] sm:$0xff]
    %v643 = vld [vmem:[#allocation11 + $0xf0] sm:$0xff]
    %v644 = vld [vmem:[#allocation11 + $0xf8] sm:$0xff]
    %v677 = vunpack.c.l.b16 %v613
    %v678 = vunpack.c.h.b16 %v613
    %v679 = vunpack.c.l.b16 %v614
    %v680 = vunpack.c.h.b16 %v614
    %v681 = vunpack.c.l.b16 %v615
    %v682 = vunpack.c.h.b16 %v615
    %v683 = vunpack.c.l.b16 %v616
    %v684 = vunpack.c.h.b16 %v616
    %v685 = vunpack.c.l.b16 %v617
    %v686 = vunpack.c.h.b16 %v617
    %v687 = vunpack.c.l.b16 %v618
    %v688 = vunpack.c.h.b16 %v618
    %v689 = vunpack.c.l.b16 %v619
    %v690 = vunpack.c.h.b16 %v619
    %v691 = vunpack.c.l.b16 %v620
    %v692 = vunpack.c.h.b16 %v620
    %v693 = vunpack.c.l.b16 %v621
    %v694 = vunpack.c.h.b16 %v621
    %v695 = vunpack.c.l.b16 %v622
    %v696 = vunpack.c.h.b16 %v622
    %v697 = vunpack.c.l.b16 %v623
    %v698 = vunpack.c.h.b16 %v623
    %v699 = vunpack.c.l.b16 %v624
    %v700 = vunpack.c.h.b16 %v624
    %v701 = vunpack.c.l.b16 %v625
    %v702 = vunpack.c.h.b16 %v625
    %v703 = vunpack.c.l.b16 %v626
    %v704 = vunpack.c.h.b16 %v626
    %v705 = vunpack.c.l.b16 %v627
    %v706 = vunpack.c.h.b16 %v627
    %v707 = vunpack.c.l.b16 %v628
    %v708 = vunpack.c.h.b16 %v628
    %v709 = vunpack.c.l.b16 %v629
    %v710 = vunpack.c.h.b16 %v629
    %v711 = vunpack.c.l.b16 %v630
    %v712 = vunpack.c.h.b16 %v630
    %v713 = vunpack.c.l.b16 %v631
    %v714 = vunpack.c.h.b16 %v631
    %v715 = vunpack.c.l.b16 %v632
    %v716 = vunpack.c.h.b16 %v632
    %v717 = vunpack.c.l.b16 %v633
    %v718 = vunpack.c.h.b16 %v633
    %v719 = vunpack.c.l.b16 %v634
    %v720 = vunpack.c.h.b16 %v634
    %v721 = vunpack.c.l.b16 %v635
    %v722 = vunpack.c.h.b16 %v635
    %v723 = vunpack.c.l.b16 %v636
    %v724 = vunpack.c.h.b16 %v636
    %v725 = vunpack.c.l.b16 %v637
    %v726 = vunpack.c.h.b16 %v637
    %v727 = vunpack.c.l.b16 %v638
    %v728 = vunpack.c.h.b16 %v638
    %v729 = vunpack.c.l.b16 %v639
    %v730 = vunpack.c.h.b16 %v639
    %v731 = vunpack.c.l.b16 %v640
    %v732 = vunpack.c.h.b16 %v640
    %v733 = vunpack.c.l.b16 %v641
    %v734 = vunpack.c.h.b16 %v641
    %v735 = vunpack.c.l.b16 %v642
    %v736 = vunpack.c.h.b16 %v642
    %v737 = vunpack.c.l.b16 %v643
    %v738 = vunpack.c.h.b16 %v643
    %v739 = vunpack.c.l.b16 %v644
    %v740 = vunpack.c.h.b16 %v644
    %v741 = vpack.c.b16 %v681, %v677
    %v742 = vpack.c.b16 %v682, %v678
    %v743 = vpack.c.b16 %v683, %v679
    %v744 = vpack.c.b16 %v684, %v680
    %v745 = vpack.c.b16 %v689, %v685
    %v746 = vpack.c.b16 %v690, %v686
    %v747 = vpack.c.b16 %v691, %v687
    %v748 = vpack.c.b16 %v692, %v688
    %v749 = vpack.c.b16 %v697, %v693
    %v750 = vpack.c.b16 %v698, %v694
    %v751 = vpack.c.b16 %v699, %v695
    %v752 = vpack.c.b16 %v700, %v696
    %v753 = vpack.c.b16 %v705, %v701
    %v754 = vpack.c.b16 %v706, %v702
    %v755 = vpack.c.b16 %v707, %v703
    %v756 = vpack.c.b16 %v708, %v704
    %v757 = vpack.c.b16 %v713, %v709
    %v758 = vpack.c.b16 %v714, %v710
    %v759 = vpack.c.b16 %v715, %v711
    %v760 = vpack.c.b16 %v716, %v712
    %v761 = vpack.c.b16 %v721, %v717
    %v762 = vpack.c.b16 %v722, %v718
    %v763 = vpack.c.b16 %v723, %v719
    %v764 = vpack.c.b16 %v724, %v720
    %v765 = vpack.c.b16 %v729, %v725
    %v766 = vpack.c.b16 %v730, %v726
    %v767 = vpack.c.b16 %v731, %v727
    %v768 = vpack.c.b16 %v732, %v728
    %v769 = vpack.c.b16 %v737, %v733
    %v770 = vpack.c.b16 %v738, %v734
    %v771 = vpack.c.b16 %v739, %v735
    %v772 = vpack.c.b16 %v740, %v736
    %805 = vmatprep.subr.bf16.mxu0 %v742
    %806 = vmatpush1.bf16.msra.mxu0 %v741
    %807 = vmatprep.subr.bf16.mxu0 %v746
    %808 = vmatpush1.bf16.msra.mxu0 %v745
    %809 = vmatprep.subr.bf16.mxu0 %v750
    %810 = vmatpush1.bf16.msra.mxu0 %v749
    %811 = vmatprep.subr.bf16.mxu0 %v754
    %812 = vmatpush1.bf16.msra.mxu0 %v753
    %813 = vmatprep.subr.bf16.mxu0 %v758
    %814 = vmatpush1.bf16.msra.mxu0 %v757
    %815 = vmatprep.subr.bf16.mxu0 %v762
    %816 = vmatpush1.bf16.msra.mxu0 %v761
    %817 = vmatprep.subr.bf16.mxu0 %v766
    %818 = vmatpush1.bf16.msra.mxu0 %v765
    %819 = vmatprep.subr.bf16.mxu0 %v770
    %820 = vmatpush1.bf16.msra.mxu0 %v769
    %821 = vmatprep.subr.bf16.mxu0 0
    %822 = vmatpush1.bf16.msra.mxu0 0
    %823 = vmatprep.subr.bf16.mxu0 0
    %824 = vmatpush1.bf16.msra.mxu0 0
    %825 = vmatprep.subr.bf16.mxu0 0
    %826 = vmatpush1.bf16.msra.mxu0 0
    %827 = vmatprep.subr.bf16.mxu0 0
    %828 = vmatpush1.bf16.msra.mxu0 0
    %829 = vmatprep.subr.bf16.mxu0 0
    %830 = vmatpush1.bf16.msra.mxu0 0
    %831 = vmatprep.subr.bf16.mxu0 0
    %832 = vmatpush1.bf16.msra.mxu0 0
    %833 = vmatprep.subr.bf16.mxu0 0
    %834 = vmatpush1.bf16.msra.mxu0 0
    %835 = vmatprep.subr.bf16.mxu0 0
    %836 = vmatpush1.bf16.msra.mxu0 0
    %837 = vmatprep.mubr.bf16.mxu0 0
    %838 = vmatmul.mubr.bf16.gmra.mrb[0].mxu0 %v612
    %v839 = vpop.f32.mrb[0].mxu0
    %v840 = vadd.f32 0.0, %v839
    %v841 = vpop.f32.mrb[0].mxu0
    %v842 = vadd.f32 0.0, %v841
    %v843 = vpop.f32.mrb[0].mxu0
    %v844 = vpop.f32.mrb[0].mxu0
    %845 = vdwg.mxu0
    %846 = vmatprep.subr.bf16.mxu0 %v744
    %847 = vmatpush1.bf16.msra.mxu0 %v743
    %848 = vmatprep.subr.bf16.mxu0 %v748
    %849 = vmatpush1.bf16.msra.mxu0 %v747
    %850 = vmatprep.subr.bf16.mxu0 %v752
    %851 = vmatpush1.bf16.msra.mxu0 %v751
    %852 = vmatprep.subr.bf16.mxu0 %v756
    %853 = vmatpush1.bf16.msra.mxu0 %v755
    %854 = vmatprep.subr.bf16.mxu0 %v760
    %855 = vmatpush1.bf16.msra.mxu0 %v759
    %856 = vmatprep.subr.bf16.mxu0 %v764
    %857 = vmatpush1.bf16.msra.mxu0 %v763
    %858 = vmatprep.subr.bf16.mxu0 %v768
    %859 = vmatpush1.bf16.msra.mxu0 %v767
    %860 = vmatprep.subr.bf16.mxu0 %v772
    %861 = vmatpush1.bf16.msra.mxu0 %v771
    %862 = vmatprep.subr.bf16.mxu0 0
    %863 = vmatpush1.bf16.msra.mxu0 0
    %864 = vmatprep.subr.bf16.mxu0 0
    %865 = vmatpush1.bf16.msra.mxu0 0
    %866 = vmatprep.subr.bf16.mxu0 0
    %867 = vmatpush1.bf16.msra.mxu0 0
    %868 = vmatprep.subr.bf16.mxu0 0
    %869 = vmatpush1.bf16.msra.mxu0 0
    %870 = vmatprep.subr.bf16.mxu0 0
    %871 = vmatpush1.bf16.msra.mxu0 0
    %872 = vmatprep.subr.bf16.mxu0 0
    %873 = vmatpush1.bf16.msra.mxu0 0
    %874 = vmatprep.subr.bf16.mxu0 0
    %875 = vmatpush1.bf16.msra.mxu0 0
    %876 = vmatprep.subr.bf16.mxu0 0
    %877 = vmatpush1.bf16.msra.mxu0 0
    %878 = vmatprep.mubr.bf16.mxu0 0
    %879 = vmatmul.mubr.bf16.gmra.mrb[0].mxu0 %v612
    %v880 = vpop.f32.mrb[0].mxu0
    %v881 = vadd.f32 0.0, %v880
    %v882 = vpop.f32.mrb[0].mxu0
    %v883 = vadd.f32 0.0, %v882
    %v884 = vpop.f32.mrb[0].mxu0
    %v885 = vpop.f32.mrb[0].mxu0
    %886 = vdwg.mxu0
    %v887 = vunpack.c.l.bf16 %v610
    %v888 = vunpack.c.h.bf16 %v610
    %v889 = vunpack.c.l.bf16 %v611
    %v890 = vunpack.c.h.bf16 %v611
    %v891 = vadd.f32 %v887, %v840
    %v892 = vadd.f32 %v888, %v842
    %v893 = vadd.f32 %v889, %v881
    %v894 = vadd.f32 %v890, %v883
    %v895 = vmul.f32 %v891, 0.5
    %v896 = vtanh.pop %v895
    %v897 = vmul.f32 %v896, 0.5
    %v898 = vadd.f32 %v897, 0.5
    %v899 = vmul.f32 %v892, 0.5
    %v900 = vtanh.pop %v899
    %v901 = vmul.f32 %v900, 0.5
    %v902 = vadd.f32 %v901, 0.5
    %v903 = vtanh.pop %v893
    %v904 = vmul.f32 %v894, 0.5
    %v905 = vtanh.pop %v904
    %v906 = vmul.f32 %v905, 0.5
    %v907 = vadd.f32 %v906, 0.5
    %v908 = vmul.f32 %v902, %v609
    %v909 = vmul.f32 %v898, %v903
    %v910 = vadd.f32 %v908, %v909
    %v911 = vtanh.pop %v910
    %v912 = vmul.f32 %v907, %v911
    %913 = vst [vmem:[#allocation14] sm:$0xff] %v912
    %s914 = scalar_lea.vmem [#allocation4], 16
    %v915 = vld [vmem:[%s914] sm:$0xff]
    %v916 = vld [vmem:[%s914 + $0x8] sm:$0xff]
    %v917 = vpack.c.bf16 %v912, %v912
    %v918 = vld [vmem:[#allocation11] sm:$0xff]
    %v919 = vld [vmem:[#allocation11 + $0x8] sm:$0xff]
    %v920 = vld [vmem:[#allocation11 + $0x10] sm:$0xff]
    %v921 = vld [vmem:[#allocation11 + $0x18] sm:$0xff]
    %v922 = vld [vmem:[#allocation11 + $0x20] sm:$0xff]
    %v923 = vld [vmem:[#allocation11 + $0x28] sm:$0xff]
    %v924 = vld [vmem:[#allocation11 + $0x30] sm:$0xff]
    %v925 = vld [vmem:[#allocation11 + $0x38] sm:$0xff]
    %v926 = vld [vmem:[#allocation11 + $0x40] sm:$0xff]
    %v927 = vld [vmem:[#allocation11 + $0x48] sm:$0xff]
    %v928 = vld [vmem:[#allocation11 + $0x50] sm:$0xff]
    %v929 = vld [vmem:[#allocation11 + $0x58] sm:$0xff]
    %v930 = vld [vmem:[#allocation11 + $0x60] sm:$0xff]
    %v931 = vld [vmem:[#allocation11 + $0x68] sm:$0xff]
    %v932 = vld [vmem:[#allocation11 + $0x70] sm:$0xff]
    %v933 = vld [vmem:[#allocation11 + $0x78] sm:$0xff]
    %v934 = vld [vmem:[#allocation11 + $0x80] sm:$0xff]
    %v935 = vld [vmem:[#allocation11 + $0x88] sm:$0xff]
    %v936 = vld [vmem:[#allocation11 + $0x90] sm:$0xff]
    %v937 = vld [vmem:[#allocation11 + $0x98] sm:$0xff]
    %v938 = vld [vmem:[#allocation11 + $0xa0] sm:$0xff]
    %v939 = vld [vmem:[#allocation11 + $0xa8] sm:$0xff]
    %v940 = vld [vmem:[#allocation11 + $0xb0] sm:$0xff]
    %v941 = vld [vmem:[#allocation11 + $0xb8] sm:$0xff]
    %v942 = vld [vmem:[#allocation11 + $0xc0] sm:$0xff]
    %v943 = vld [vmem:[#allocation11 + $0xc8] sm:$0xff]
    %v944 = vld [vmem:[#allocation11 + $0xd0] sm:$0xff]
    %v945 = vld [vmem:[#allocation11 + $0xd8] sm:$0xff]
    %v946 = vld [vmem:[#allocation11 + $0xe0] sm:$0xff]
    %v947 = vld [vmem:[#allocation11 + $0xe8] sm:$0xff]
    %v948 = vld [vmem:[#allocation11 + $0xf0] sm:$0xff]
    %v949 = vld [vmem:[#allocation11 + $0xf8] sm:$0xff]
    %v982 = vunpack.c.l.b16 %v918
    %v983 = vunpack.c.h.b16 %v918
    %v984 = vunpack.c.l.b16 %v919
    %v985 = vunpack.c.h.b16 %v919
    %v986 = vunpack.c.l.b16 %v920
    %v987 = vunpack.c.h.b16 %v920
    %v988 = vunpack.c.l.b16 %v921
    %v989 = vunpack.c.h.b16 %v921
    %v990 = vunpack.c.l.b16 %v922
    %v991 = vunpack.c.h.b16 %v922
    %v992 = vunpack.c.l.b16 %v923
    %v993 = vunpack.c.h.b16 %v923
    %v994 = vunpack.c.l.b16 %v924
    %v995 = vunpack.c.h.b16 %v924
    %v996 = vunpack.c.l.b16 %v925
    %v997 = vunpack.c.h.b16 %v925
    %v998 = vunpack.c.l.b16 %v926
    %v999 = vunpack.c.h.b16 %v926
    %v1000 = vunpack.c.l.b16 %v927
    %v1001 = vunpack.c.h.b16 %v927
    %v1002 = vunpack.c.l.b16 %v928
    %v1003 = vunpack.c.h.b16 %v928
    %v1004 = vunpack.c.l.b16 %v929
    %v1005 = vunpack.c.h.b16 %v929
    %v1006 = vunpack.c.l.b16 %v930
    %v1007 = vunpack.c.h.b16 %v930
    %v1008 = vunpack.c.l.b16 %v931
    %v1009 = vunpack.c.h.b16 %v931
    %v1010 = vunpack.c.l.b16 %v932
    %v1011 = vunpack.c.h.b16 %v932
    %v1012 = vunpack.c.l.b16 %v933
    %v1013 = vunpack.c.h.b16 %v933
    %v1014 = vunpack.c.l.b16 %v934
    %v1015 = vunpack.c.h.b16 %v934
    %v1016 = vunpack.c.l.b16 %v935
    %v1017 = vunpack.c.h.b16 %v935
    %v1018 = vunpack.c.l.b16 %v936
    %v1019 = vunpack.c.h.b16 %v936
    %v1020 = vunpack.c.l.b16 %v937
    %v1021 = vunpack.c.h.b16 %v937
    %v1022 = vunpack.c.l.b16 %v938
    %v1023 = vunpack.c.h.b16 %v938
    %v1024 = vunpack.c.l.b16 %v939
    %v1025 = vunpack.c.h.b16 %v939
    %v1026 = vunpack.c.l.b16 %v940
    %v1027 = vunpack.c.h.b16 %v940
    %v1028 = vunpack.c.l.b16 %v941
    %v1029 = vunpack.c.h.b16 %v941
    %v1030 = vunpack.c.l.b16 %v942
    %v1031 = vunpack.c.h.b16 %v942
    %v1032 = vunpack.c.l.b16 %v943
    %v1033 = vunpack.c.h.b16 %v943
    %v1034 = vunpack.c.l.b16 %v944
    %v1035 = vunpack.c.h.b16 %v944
    %v1036 = vunpack.c.l.b16 %v945
    %v1037 = vunpack.c.h.b16 %v945
    %v1038 = vunpack.c.l.b16 %v946
    %v1039 = vunpack.c.h.b16 %v946
    %v1040 = vunpack.c.l.b16 %v947
    %v1041 = vunpack.c.h.b16 %v947
    %v1042 = vunpack.c.l.b16 %v948
    %v1043 = vunpack.c.h.b16 %v948
    %v1044 = vunpack.c.l.b16 %v949
    %v1045 = vunpack.c.h.b16 %v949
    %v1046 = vpack.c.b16 %v986, %v982
    %v1047 = vpack.c.b16 %v987, %v983
    %v1048 = vpack.c.b16 %v988, %v984
    %v1049 = vpack.c.b16 %v989, %v985
    %v1050 = vpack.c.b16 %v994, %v990
    %v1051 = vpack.c.b16 %v995, %v991
    %v1052 = vpack.c.b16 %v996, %v992
    %v1053 = vpack.c.b16 %v997, %v993
    %v1054 = vpack.c.b16 %v1002, %v998
    %v1055 = vpack.c.b16 %v1003, %v999
    %v1056 = vpack.c.b16 %v1004, %v1000
    %v1057 = vpack.c.b16 %v1005, %v1001
    %v1058 = vpack.c.b16 %v1010, %v1006
    %v1059 = vpack.c.b16 %v1011, %v1007
    %v1060 = vpack.c.b16 %v1012, %v1008
    %v1061 = vpack.c.b16 %v1013, %v1009
    %v1062 = vpack.c.b16 %v1018, %v1014
    %v1063 = vpack.c.b16 %v1019, %v1015
    %v1064 = vpack.c.b16 %v1020, %v1016
    %v1065 = vpack.c.b16 %v1021, %v1017
    %v1066 = vpack.c.b16 %v1026, %v1022
    %v1067 = vpack.c.b16 %v1027, %v1023
    %v1068 = vpack.c.b16 %v1028, %v1024
    %v1069 = vpack.c.b16 %v1029, %v1025
    %v1070 = vpack.c.b16 %v1034, %v1030
    %v1071 = vpack.c.b16 %v1035, %v1031
    %v1072 = vpack.c.b16 %v1036, %v1032
    %v1073 = vpack.c.b16 %v1037, %v1033
    %v1074 = vpack.c.b16 %v1042, %v1038
    %v1075 = vpack.c.b16 %v1043, %v1039
    %v1076 = vpack.c.b16 %v1044, %v1040
    %v1077 = vpack.c.b16 %v1045, %v1041
    %1110 = vmatprep.subr.bf16.mxu0 %v1047
    %1111 = vmatpush1.bf16.msra.mxu0 %v1046
    %1112 = vmatprep.subr.bf16.mxu0 %v1051
    %1113 = vmatpush1.bf16.msra.mxu0 %v1050
    %1114 = vmatprep.subr.bf16.mxu0 %v1055
    %1115 = vmatpush1.bf16.msra.mxu0 %v1054
    %1116 = vmatprep.subr.bf16.mxu0 %v1059
    %1117 = vmatpush1.bf16.msra.mxu0 %v1058
    %1118 = vmatprep.subr.bf16.mxu0 %v1063
    %1119 = vmatpush1.bf16.msra.mxu0 %v1062
    %1120 = vmatprep.subr.bf16.mxu0 %v1067
    %1121 = vmatpush1.bf16.msra.mxu0 %v1066
    %1122 = vmatprep.subr.bf16.mxu0 %v1071
    %1123 = vmatpush1.bf16.msra.mxu0 %v1070
    %1124 = vmatprep.subr.bf16.mxu0 %v1075
    %1125 = vmatpush1.bf16.msra.mxu0 %v1074
    %1126 = vmatprep.subr.bf16.mxu0 0
    %1127 = vmatpush1.bf16.msra.mxu0 0
    %1128 = vmatprep.subr.bf16.mxu0 0
    %1129 = vmatpush1.bf16.msra.mxu0 0
    %1130 = vmatprep.subr.bf16.mxu0 0
    %1131 = vmatpush1.bf16.msra.mxu0 0
    %1132 = vmatprep.subr.bf16.mxu0 0
    %1133 = vmatpush1.bf16.msra.mxu0 0
    %1134 = vmatprep.subr.bf16.mxu0 0
    %1135 = vmatpush1.bf16.msra.mxu0 0
    %1136 = vmatprep.subr.bf16.mxu0 0
    %1137 = vmatpush1.bf16.msra.mxu0 0
    %1138 = vmatprep.subr.bf16.mxu0 0
    %1139 = vmatpush1.bf16.msra.mxu0 0
    %1140 = vmatprep.subr.bf16.mxu0 0
    %1141 = vmatpush1.bf16.msra.mxu0 0
    %1142 = vmatprep.mubr.bf16.mxu0 0
    %1143 = vmatmul.mubr.bf16.gmra.mrb[0].mxu0 %v917
    %v1144 = vpop.f32.mrb[0].mxu0
    %v1145 = vadd.f32 0.0, %v1144
    %v1146 = vpop.f32.mrb[0].mxu0
    %v1147 = vadd.f32 0.0, %v1146
    %v1148 = vpop.f32.mrb[0].mxu0
    %v1149 = vpop.f32.mrb[0].mxu0
    %1150 = vdwg.mxu0
    %1151 = vmatprep.subr.bf16.mxu0 %v1049
    %1152 = vmatpush1.bf16.msra.mxu0 %v1048
    %1153 = vmatprep.subr.bf16.mxu0 %v1053
    %1154 = vmatpush1.bf16.msra.mxu0 %v1052
    %1155 = vmatprep.subr.bf16.mxu0 %v1057
    %1156 = vmatpush1.bf16.msra.mxu0 %v1056
    %1157 = vmatprep.subr.bf16.mxu0 %v1061
    %1158 = vmatpush1.bf16.msra.mxu0 %v1060
    %1159 = vmatprep.subr.bf16.mxu0 %v1065
    %1160 = vmatpush1.bf16.msra.mxu0 %v1064
    %1161 = vmatprep.subr.bf16.mxu0 %v1069
    %1162 = vmatpush1.bf16.msra.mxu0 %v1068
    %1163 = vmatprep.subr.bf16.mxu0 %v1073
    %1164 = vmatpush1.bf16.msra.mxu0 %v1072
    %1165 = vmatprep.subr.bf16.mxu0 %v1077
    %1166 = vmatpush1.bf16.msra.mxu0 %v1076
    %1167 = vmatprep.subr.bf16.mxu0 0
    %1168 = vmatpush1.bf16.msra.mxu0 0
    %1169 = vmatprep.subr.bf16.mxu0 0
    %1170 = vmatpush1.bf16.msra.mxu0 0
    %1171 = vmatprep.subr.bf16.mxu0 0
    %1172 = vmatpush1.bf16.msra.mxu0 0
    %1173 = vmatprep.subr.bf16.mxu0 0
    %1174 = vmatpush1.bf16.msra.mxu0 0
    %1175 = vmatprep.subr.bf16.mxu0 0
    %1176 = vmatpush1.bf16.msra.mxu0 0
    %1177 = vmatprep.subr.bf16.mxu0 0
    %1178 = vmatpush1.bf16.msra.mxu0 0
    %1179 = vmatprep.subr.bf16.mxu0 0
    %1180 = vmatpush1.bf16.msra.mxu0 0
    %1181 = vmatprep.subr.bf16.mxu0 0
    %1182 = vmatpush1.bf16.msra.mxu0 0
    %1183 = vmatprep.mubr.bf16.mxu0 0
    %1184 = vmatmul.mubr.bf16.gmra.mrb[0].mxu0 %v917
    %v1185 = vpop.f32.mrb[0].mxu0
    %v1186 = vadd.f32 0.0, %v1185
    %v1187 = vpop.f32.mrb[0].mxu0
    %v1188 = vadd.f32 0.0, %v1187
    %v1189 = vpop.f32.mrb[0].mxu0
    %v1190 = vpop.f32.mrb[0].mxu0
    %1191 = vdwg.mxu0
    %v1192 = vunpack.c.l.bf16 %v915
    %v1193 = vunpack.c.h.bf16 %v915
    %v1194 = vunpack.c.l.bf16 %v916
    %v1195 = vunpack.c.h.bf16 %v916
    %v1196 = vadd.f32 %v1192, %v1145
    %v1197 = vadd.f32 %v1193, %v1147
    %v1198 = vadd.f32 %v1194, %v1186
    %v1199 = vadd.f32 %v1195, %v1188
    %v1200 = vmul.f32 %v1196, 0.5
    %v1201 = vtanh.pop %v1200
    %v1202 = vmul.f32 %v1201, 0.5
    %v1203 = vadd.f32 %v1202, 0.5
    %v1204 = vmul.f32 %v1197, 0.5
    %v1205 = vtanh.pop %v1204
    %v1206 = vmul.f32 %v1205, 0.5
    %v1207 = vadd.f32 %v1206, 0.5
    %v1208 = vtanh.pop %v1198
    %v1209 = vmul.f32 %v1199, 0.5
    %v1210 = vtanh.pop %v1209
    %v1211 = vmul.f32 %v1210, 0.5
    %v1212 = vadd.f32 %v1211, 0.5
    %v1213 = vmul.f32 %v1207, %v910
    %v1214 = vmul.f32 %v1203, %v1208
    %v1215 = vadd.f32 %v1213, %v1214
    %v1216 = vtanh.pop %v1215
    %v1217 = vmul.f32 %v1212, %v1216
    %s1218 = scalar_lea.vmem [#allocation14], 8
    %1219 = vst [vmem:[%s1218] sm:$0xff] %v1217
    %s1220 = scalar_lea.vmem [#allocation4], 32
    %v1221 = vld [vmem:[%s1220] sm:$0xff]
    %v1222 = vld [vmem:[%s1220 + $0x8] sm:$0xff]
    %v1223 = vpack.c.bf16 %v1217, %v1217
    %v1224 = vld [vmem:[#allocation11] sm:$0xff]
    %v1225 = vld [vmem:[#allocation11 + $0x8] sm:$0xff]
    %v1226 = vld [vmem:[#allocation11 + $0x10] sm:$0xff]
    %v1227 = vld [vmem:[#allocation11 + $0x18] sm:$0xff]
    %v1228 = vld [vmem:[#allocation11 + $0x20] sm:$0xff]
    %v1229 = vld [vmem:[#allocation11 + $0x28] sm:$0xff]
    %v1230 = vld [vmem:[#allocation11 + $0x30] sm:$0xff]
    %v1231 = vld [vmem:[#allocation11 + $0x38] sm:$0xff]
    %v1232 = vld [vmem:[#allocation11 + $0x40] sm:$0xff]
    %v1233 = vld [vmem:[#allocation11 + $0x48] sm:$0xff]
    %v1234 = vld [vmem:[#allocation11 + $0x50] sm:$0xff]
    %v1235 = vld [vmem:[#allocation11 + $0x58] sm:$0xff]
    %v1236 = vld [vmem:[#allocation11 + $0x60] sm:$0xff]
    %v1237 = vld [vmem:[#allocation11 + $0x68] sm:$0xff]
    %v1238 = vld [vmem:[#allocation11 + $0x70] sm:$0xff]
    %v1239 = vld [vmem:[#allocation11 + $0x78] sm:$0xff]
    %v1240 = vld [vmem:[#allocation11 + $0x80] sm:$0xff]
    %v1241 = vld [vmem:[#allocation11 + $0x88] sm:$0xff]
    %v1242 = vld [vmem:[#allocation11 + $0x90] sm:$0xff]
    %v1243 = vld [vmem:[#allocation11 + $0x98] sm:$0xff]
    %v1244 = vld [vmem:[#allocation11 + $0xa0] sm:$0xff]
    %v1245 = vld [vmem:[#allocation11 + $0xa8] sm:$0xff]
    %v1246 = vld [vmem:[#allocation11 + $0xb0] sm:$0xff]
    %v1247 = vld [vmem:[#allocation11 + $0xb8] sm:$0xff]
    %v1248 = vld [vmem:[#allocation11 + $0xc0] sm:$0xff]
    %v1249 = vld [vmem:[#allocation11 + $0xc8] sm:$0xff]
    %v1250 = vld [vmem:[#allocation11 + $0xd0] sm:$0xff]
    %v1251 = vld [vmem:[#allocation11 + $0xd8] sm:$0xff]
    %v1252 = vld [vmem:[#allocation11 + $0xe0] sm:$0xff]
    %v1253 = vld [vmem:[#allocation11 + $0xe8] sm:$0xff]
    %v1254 = vld [vmem:[#allocation11 + $0xf0] sm:$0xff]
    %v1255 = vld [vmem:[#allocation11 + $0xf8] sm:$0xff]
    %v1288 = vunpack.c.l.b16 %v1224
    %v1289 = vunpack.c.h.b16 %v1224
    %v1290 = vunpack.c.l.b16 %v1225
    %v1291 = vunpack.c.h.b16 %v1225
    %v1292 = vunpack.c.l.b16 %v1226
    %v1293 = vunpack.c.h.b16 %v1226
    %v1294 = vunpack.c.l.b16 %v1227
    %v1295 = vunpack.c.h.b16 %v1227
    %v1296 = vunpack.c.l.b16 %v1228
    %v1297 = vunpack.c.h.b16 %v1228
    %v1298 = vunpack.c.l.b16 %v1229
    %v1299 = vunpack.c.h.b16 %v1229
    %v1300 = vunpack.c.l.b16 %v1230
    %v1301 = vunpack.c.h.b16 %v1230
    %v1302 = vunpack.c.l.b16 %v1231
    %v1303 = vunpack.c.h.b16 %v1231
    %v1304 = vunpack.c.l.b16 %v1232
    %v1305 = vunpack.c.h.b16 %v1232
    %v1306 = vunpack.c.l.b16 %v1233
    %v1307 = vunpack.c.h.b16 %v1233
    %v1308 = vunpack.c.l.b16 %v1234
    %v1309 = vunpack.c.h.b16 %v1234
    %v1310 = vunpack.c.l.b16 %v1235
    %v1311 = vunpack.c.h.b16 %v1235
    %v1312 = vunpack.c.l.b16 %v1236
    %v1313 = vunpack.c.h.b16 %v1236
    %v1314 = vunpack.c.l.b16 %v1237
    %v1315 = vunpack.c.h.b16 %v1237
    %v1316 = vunpack.c.l.b16 %v1238
    %v1317 = vunpack.c.h.b16 %v1238
    %v1318 = vunpack.c.l.b16 %v1239
    %v1319 = vunpack.c.h.b16 %v1239
    %v1320 = vunpack.c.l.b16 %v1240
    %v1321 = vunpack.c.h.b16 %v1240
    %v1322 = vunpack.c.l.b16 %v1241
    %v1323 = vunpack.c.h.b16 %v1241
    %v1324 = vunpack.c.l.b16 %v1242
    %v1325 = vunpack.c.h.b16 %v1242
    %v1326 = vunpack.c.l.b16 %v1243
    %v1327 = vunpack.c.h.b16 %v1243
    %v1328 = vunpack.c.l.b16 %v1244
    %v1329 = vunpack.c.h.b16 %v1244
    %v1330 = vunpack.c.l.b16 %v1245
    %v1331 = vunpack.c.h.b16 %v1245
    %v1332 = vunpack.c.l.b16 %v1246
    %v1333 = vunpack.c.h.b16 %v1246
    %v1334 = vunpack.c.l.b16 %v1247
    %v1335 = vunpack.c.h.b16 %v1247
    %v1336 = vunpack.c.l.b16 %v1248
    %v1337 = vunpack.c.h.b16 %v1248
    %v1338 = vunpack.c.l.b16 %v1249
    %v1339 = vunpack.c.h.b16 %v1249
    %v1340 = vunpack.c.l.b16 %v1250
    %v1341 = vunpack.c.h.b16 %v1250
    %v1342 = vunpack.c.l.b16 %v1251
    %v1343 = vunpack.c.h.b16 %v1251
    %v1344 = vunpack.c.l.b16 %v1252
    %v1345 = vunpack.c.h.b16 %v1252
    %v1346 = vunpack.c.l.b16 %v1253
    %v1347 = vunpack.c.h.b16 %v1253
    %v1348 = vunpack.c.l.b16 %v1254
    %v1349 = vunpack.c.h.b16 %v1254
    %v1350 = vunpack.c.l.b16 %v1255
    %v1351 = vunpack.c.h.b16 %v1255
    %v1352 = vpack.c.b16 %v1292, %v1288
    %v1353 = vpack.c.b16 %v1293, %v1289
    %v1354 = vpack.c.b16 %v1294, %v1290
    %v1355 = vpack.c.b16 %v1295, %v1291
    %v1356 = vpack.c.b16 %v1300, %v1296
    %v1357 = vpack.c.b16 %v1301, %v1297
    %v1358 = vpack.c.b16 %v1302, %v1298
    %v1359 = vpack.c.b16 %v1303, %v1299
    %v1360 = vpack.c.b16 %v1308, %v1304
    %v1361 = vpack.c.b16 %v1309, %v1305
    %v1362 = vpack.c.b16 %v1310, %v1306
    %v1363 = vpack.c.b16 %v1311, %v1307
    %v1364 = vpack.c.b16 %v1316, %v1312
    %v1365 = vpack.c.b16 %v1317, %v1313
    %v1366 = vpack.c.b16 %v1318, %v1314
    %v1367 = vpack.c.b16 %v1319, %v1315
    %v1368 = vpack.c.b16 %v1324, %v1320
    %v1369 = vpack.c.b16 %v1325, %v1321
    %v1370 = vpack.c.b16 %v1326, %v1322
    %v1371 = vpack.c.b16 %v1327, %v1323
    %v1372 = vpack.c.b16 %v1332, %v1328
    %v1373 = vpack.c.b16 %v1333, %v1329
    %v1374 = vpack.c.b16 %v1334, %v1330
    %v1375 = vpack.c.b16 %v1335, %v1331
    %v1376 = vpack.c.b16 %v1340, %v1336
    %v1377 = vpack.c.b16 %v1341, %v1337
    %v1378 = vpack.c.b16 %v1342, %v1338
    %v1379 = vpack.c.b16 %v1343, %v1339
    %v1380 = vpack.c.b16 %v1348, %v1344
    %v1381 = vpack.c.b16 %v1349, %v1345
    %v1382 = vpack.c.b16 %v1350, %v1346
    %v1383 = vpack.c.b16 %v1351, %v1347
    %1416 = vmatprep.subr.bf16.mxu0 %v1353
    %1417 = vmatpush1.bf16.msra.mxu0 %v1352
    %1418 = vmatprep.subr.bf16.mxu0 %v1357
    %1419 = vmatpush1.bf16.msra.mxu0 %v1356
    %1420 = vmatprep.subr.bf16.mxu0 %v1361
    %1421 = vmatpush1.bf16.msra.mxu0 %v1360
    %1422 = vmatprep.subr.bf16.mxu0 %v1365
    %1423 = vmatpush1.bf16.msra.mxu0 %v1364
    %1424 = vmatprep.subr.bf16.mxu0 %v1369
    %1425 = vmatpush1.bf16.msra.mxu0 %v1368
    %1426 = vmatprep.subr.bf16.mxu0 %v1373
    %1427 = vmatpush1.bf16.msra.mxu0 %v1372
    %1428 = vmatprep.subr.bf16.mxu0 %v1377
    %1429 = vmatpush1.bf16.msra.mxu0 %v1376
    %1430 = vmatprep.subr.bf16.mxu0 %v1381
    %1431 = vmatpush1.bf16.msra.mxu0 %v1380
    %1432 = vmatprep.subr.bf16.mxu0 0
    %1433 = vmatpush1.bf16.msra.mxu0 0
    %1434 = vmatprep.subr.bf16.mxu0 0
    %1435 = vmatpush1.bf16.msra.mxu0 0
    %1436 = vmatprep.subr.bf16.mxu0 0
    %1437 = vmatpush1.bf16.msra.mxu0 0
    %1438 = vmatprep.subr.bf16.mxu0 0
    %1439 = vmatpush1.bf16.msra.mxu0 0
    %1440 = vmatprep.subr.bf16.mxu0 0
    %1441 = vmatpush1.bf16.msra.mxu0 0
    %1442 = vmatprep.subr.bf16.mxu0 0
    %1443 = vmatpush1.bf16.msra.mxu0 0
    %1444 = vmatprep.subr.bf16.mxu0 0
    %1445 = vmatpush1.bf16.msra.mxu0 0
    %1446 = vmatprep.subr.bf16.mxu0 0
    %1447 = vmatpush1.bf16.msra.mxu0 0
    %1448 = vmatprep.mubr.bf16.mxu0 0
    %1449 = vmatmul.mubr.bf16.gmra.mrb[0].mxu0 %v1223
    %v1450 = vpop.f32.mrb[0].mxu0
    %v1451 = vadd.f32 0.0, %v1450
    %v1452 = vpop.f32.mrb[0].mxu0
    %v1453 = vadd.f32 0.0, %v1452
    %v1454 = vpop.f32.mrb[0].mxu0
    %v1455 = vpop.f32.mrb[0].mxu0
    %1456 = vdwg.mxu0
    %1457 = vmatprep.subr.bf16.mxu0 %v1355
    %1458 = vmatpush1.bf16.msra.mxu0 %v1354
    %1459 = vmatprep.subr.bf16.mxu0 %v1359
    %1460 = vmatpush1.bf16.msra.mxu0 %v1358
    %1461 = vmatprep.subr.bf16.mxu0 %v1363
    %1462 = vmatpush1.bf16.msra.mxu0 %v1362
    %1463 = vmatprep.subr.bf16.mxu0 %v1367
    %1464 = vmatpush1.bf16.msra.mxu0 %v1366
    %1465 = vmatprep.subr.bf16.mxu0 %v1371
    %1466 = vmatpush1.bf16.msra.mxu0 %v1370
    %1467 = vmatprep.subr.bf16.mxu0 %v1375
    %1468 = vmatpush1.bf16.msra.mxu0 %v1374
    %1469 = vmatprep.subr.bf16.mxu0 %v1379
    %1470 = vmatpush1.bf16.msra.mxu0 %v1378
    %1471 = vmatprep.subr.bf16.mxu0 %v1383
    %1472 = vmatpush1.bf16.msra.mxu0 %v1382
    %1473 = vmatprep.subr.bf16.mxu0 0
    %1474 = vmatpush1.bf16.msra.mxu0 0
    %1475 = vmatprep.subr.bf16.mxu0 0
    %1476 = vmatpush1.bf16.msra.mxu0 0
    %1477 = vmatprep.subr.bf16.mxu0 0
    %1478 = vmatpush1.bf16.msra.mxu0 0
    %1479 = vmatprep.subr.bf16.mxu0 0
    %1480 = vmatpush1.bf16.msra.mxu0 0
    %1481 = vmatprep.subr.bf16.mxu0 0
    %1482 = vmatpush1.bf16.msra.mxu0 0
    %1483 = vmatprep.subr.bf16.mxu0 0
    %1484 = vmatpush1.bf16.msra.mxu0 0
    %1485 = vmatprep.subr.bf16.mxu0 0
    %1486 = vmatpush1.bf16.msra.mxu0 0
    %1487 = vmatprep.subr.bf16.mxu0 0
    %1488 = vmatpush1.bf16.msra.mxu0 0
    %1489 = vmatprep.mubr.bf16.mxu0 0
    %1490 = vmatmul.mubr.bf16.gmra.mrb[0].mxu0 %v1223
    %v1491 = vpop.f32.mrb[0].mxu0
    %v1492 = vadd.f32 0.0, %v1491
    %v1493 = vpop.f32.mrb[0].mxu0
    %v1494 = vadd.f32 0.0, %v1493
    %v1495 = vpop.f32.mrb[0].mxu0
    %v1496 = vpop.f32.mrb[0].mxu0
    %1497 = vdwg.mxu0
    %v1498 = vunpack.c.l.bf16 %v1221
    %v1499 = vunpack.c.h.bf16 %v1221
    %v1500 = vunpack.c.l.bf16 %v1222
    %v1501 = vunpack.c.h.bf16 %v1222
    %v1502 = vadd.f32 %v1498, %v1451
    %v1503 = vadd.f32 %v1499, %v1453
    %v1504 = vadd.f32 %v1500, %v1492
    %v1505 = vadd.f32 %v1501, %v1494
    %v1506 = vmul.f32 %v1502, 0.5
    %v1507 = vtanh.pop %v1506
    %v1508 = vmul.f32 %v1507, 0.5
    %v1509 = vadd.f32 %v1508, 0.5
    %v1510 = vmul.f32 %v1503, 0.5
    %v1511 = vtanh.pop %v1510
    %v1512 = vmul.f32 %v1511, 0.5
    %v1513 = vadd.f32 %v1512, 0.5
    %v1514 = vtanh.pop %v1504
    %v1515 = vmul.f32 %v1505, 0.5
    %v1516 = vtanh.pop %v1515
    %v1517 = vmul.f32 %v1516, 0.5
    %v1518 = vadd.f32 %v1517, 0.5
    %v1519 = vmul.f32 %v1513, %v1215
    %v1520 = vmul.f32 %v1509, %v1514
    %v1521 = vadd.f32 %v1519, %v1520
    %v1522 = vtanh.pop %v1521
    %v1523 = vmul.f32 %v1518, %v1522
    %s1524 = scalar_lea.vmem [#allocation14], 16
    %1525 = vst [vmem:[%s1524] sm:$0xff] %v1523
    %s1526 = scalar_lea.vmem [#allocation4], 48
    %v1527 = vld [vmem:[%s1526] sm:$0xff]
    %v1528 = vld [vmem:[%s1526 + $0x8] sm:$0xff]
    %v1529 = vpack.c.bf16 %v1523, %v1523
    %v1530 = vld [vmem:[#allocation11] sm:$0xff]
    %v1531 = vld [vmem:[#allocation11 + $0x8] sm:$0xff]
    %v1532 = vld [vmem:[#allocation11 + $0x10] sm:$0xff]
    %v1533 = vld [vmem:[#allocation11 + $0x18] sm:$0xff]
    %v1534 = vld [vmem:[#allocation11 + $0x20] sm:$0xff]
    %v1535 = vld [vmem:[#allocation11 + $0x28] sm:$0xff]
    %v1536 = vld [vmem:[#allocation11 + $0x30] sm:$0xff]
    %v1537 = vld [vmem:[#allocation11 + $0x38] sm:$0xff]
    %v1538 = vld [vmem:[#allocation11 + $0x40] sm:$0xff]
    %v1539 = vld [vmem:[#allocation11 + $0x48] sm:$0xff]
    %v1540 = vld [vmem:[#allocation11 + $0x50] sm:$0xff]
    %v1541 = vld [vmem:[#allocation11 + $0x58] sm:$0xff]
    %v1542 = vld [vmem:[#allocation11 + $0x60] sm:$0xff]
    %v1543 = vld [vmem:[#allocation11 + $0x68] sm:$0xff]
    %v1544 = vld [vmem:[#allocation11 + $0x70] sm:$0xff]
    %v1545 = vld [vmem:[#allocation11 + $0x78] sm:$0xff]
    %v1546 = vld [vmem:[#allocation11 + $0x80] sm:$0xff]
    %v1547 = vld [vmem:[#allocation11 + $0x88] sm:$0xff]
    %v1548 = vld [vmem:[#allocation11 + $0x90] sm:$0xff]
    %v1549 = vld [vmem:[#allocation11 + $0x98] sm:$0xff]
    %v1550 = vld [vmem:[#allocation11 + $0xa0] sm:$0xff]
    %v1551 = vld [vmem:[#allocation11 + $0xa8] sm:$0xff]
    %v1552 = vld [vmem:[#allocation11 + $0xb0] sm:$0xff]
    %v1553 = vld [vmem:[#allocation11 + $0xb8] sm:$0xff]
    %v1554 = vld [vmem:[#allocation11 + $0xc0] sm:$0xff]
    %v1555 = vld [vmem:[#allocation11 + $0xc8] sm:$0xff]
    %v1556 = vld [vmem:[#allocation11 + $0xd0] sm:$0xff]
    %v1557 = vld [vmem:[#allocation11 + $0xd8] sm:$0xff]
    %v1558 = vld [vmem:[#allocation11 + $0xe0] sm:$0xff]
    %v1559 = vld [vmem:[#allocation11 + $0xe8] sm:$0xff]
    %v1560 = vld [vmem:[#allocation11 + $0xf0] sm:$0xff]
    %v1561 = vld [vmem:[#allocation11 + $0xf8] sm:$0xff]
    %v1594 = vunpack.c.l.b16 %v1530
    %v1595 = vunpack.c.h.b16 %v1530
    %v1596 = vunpack.c.l.b16 %v1531
    %v1597 = vunpack.c.h.b16 %v1531
    %v1598 = vunpack.c.l.b16 %v1532
    %v1599 = vunpack.c.h.b16 %v1532
    %v1600 = vunpack.c.l.b16 %v1533
    %v1601 = vunpack.c.h.b16 %v1533
    %v1602 = vunpack.c.l.b16 %v1534
    %v1603 = vunpack.c.h.b16 %v1534
    %v1604 = vunpack.c.l.b16 %v1535
    %v1605 = vunpack.c.h.b16 %v1535
    %v1606 = vunpack.c.l.b16 %v1536
    %v1607 = vunpack.c.h.b16 %v1536
    %v1608 = vunpack.c.l.b16 %v1537
    %v1609 = vunpack.c.h.b16 %v1537
    %v1610 = vunpack.c.l.b16 %v1538
    %v1611 = vunpack.c.h.b16 %v1538
    %v1612 = vunpack.c.l.b16 %v1539
    %v1613 = vunpack.c.h.b16 %v1539
    %v1614 = vunpack.c.l.b16 %v1540
    %v1615 = vunpack.c.h.b16 %v1540
    %v1616 = vunpack.c.l.b16 %v1541
    %v1617 = vunpack.c.h.b16 %v1541
    %v1618 = vunpack.c.l.b16 %v1542
    %v1619 = vunpack.c.h.b16 %v1542
    %v1620 = vunpack.c.l.b16 %v1543
    %v1621 = vunpack.c.h.b16 %v1543
    %v1622 = vunpack.c.l.b16 %v1544
    %v1623 = vunpack.c.h.b16 %v1544
    %v1624 = vunpack.c.l.b16 %v1545
    %v1625 = vunpack.c.h.b16 %v1545
    %v1626 = vunpack.c.l.b16 %v1546
    %v1627 = vunpack.c.h.b16 %v1546
    %v1628 = vunpack.c.l.b16 %v1547
    %v1629 = vunpack.c.h.b16 %v1547
    %v1630 = vunpack.c.l.b16 %v1548
    %v1631 = vunpack.c.h.b16 %v1548
    %v1632 = vunpack.c.l.b16 %v1549
    %v1633 = vunpack.c.h.b16 %v1549
    %v1634 = vunpack.c.l.b16 %v1550
    %v1635 = vunpack.c.h.b16 %v1550
    %v1636 = vunpack.c.l.b16 %v1551
    %v1637 = vunpack.c.h.b16 %v1551
    %v1638 = vunpack.c.l.b16 %v1552
    %v1639 = vunpack.c.h.b16 %v1552
    %v1640 = vunpack.c.l.b16 %v1553
    %v1641 = vunpack.c.h.b16 %v1553
    %v1642 = vunpack.c.l.b16 %v1554
    %v1643 = vunpack.c.h.b16 %v1554
    %v1644 = vunpack.c.l.b16 %v1555
    %v1645 = vunpack.c.h.b16 %v1555
    %v1646 = vunpack.c.l.b16 %v1556
    %v1647 = vunpack.c.h.b16 %v1556
    %v1648 = vunpack.c.l.b16 %v1557
    %v1649 = vunpack.c.h.b16 %v1557
    %v1650 = vunpack.c.l.b16 %v1558
    %v1651 = vunpack.c.h.b16 %v1558
    %v1652 = vunpack.c.l.b16 %v1559
    %v1653 = vunpack.c.h.b16 %v1559
    %v1654 = vunpack.c.l.b16 %v1560
    %v1655 = vunpack.c.h.b16 %v1560
    %v1656 = vunpack.c.l.b16 %v1561
    %v1657 = vunpack.c.h.b16 %v1561
    %v1658 = vpack.c.b16 %v1598, %v1594
    %v1659 = vpack.c.b16 %v1599, %v1595
    %v1660 = vpack.c.b16 %v1600, %v1596
    %v1661 = vpack.c.b16 %v1601, %v1597
    %v1662 = vpack.c.b16 %v1606, %v1602
    %v1663 = vpack.c.b16 %v1607, %v1603
    %v1664 = vpack.c.b16 %v1608, %v1604
    %v1665 = vpack.c.b16 %v1609, %v1605
    %v1666 = vpack.c.b16 %v1614, %v1610
    %v1667 = vpack.c.b16 %v1615, %v1611
    %v1668 = vpack.c.b16 %v1616, %v1612
    %v1669 = vpack.c.b16 %v1617, %v1613
    %v1670 = vpack.c.b16 %v1622, %v1618
    %v1671 = vpack.c.b16 %v1623, %v1619
    %v1672 = vpack.c.b16 %v1624, %v1620
    %v1673 = vpack.c.b16 %v1625, %v1621
    %v1674 = vpack.c.b16 %v1630, %v1626
    %v1675 = vpack.c.b16 %v1631, %v1627
    %v1676 = vpack.c.b16 %v1632, %v1628
    %v1677 = vpack.c.b16 %v1633, %v1629
    %v1678 = vpack.c.b16 %v1638, %v1634
    %v1679 = vpack.c.b16 %v1639, %v1635
    %v1680 = vpack.c.b16 %v1640, %v1636
    %v1681 = vpack.c.b16 %v1641, %v1637
    %v1682 = vpack.c.b16 %v1646, %v1642
    %v1683 = vpack.c.b16 %v1647, %v1643
    %v1684 = vpack.c.b16 %v1648, %v1644
    %v1685 = vpack.c.b16 %v1649, %v1645
    %v1686 = vpack.c.b16 %v1654, %v1650
    %v1687 = vpack.c.b16 %v1655, %v1651
    %v1688 = vpack.c.b16 %v1656, %v1652
    %v1689 = vpack.c.b16 %v1657, %v1653
    %1722 = vmatprep.subr.bf16.mxu0 %v1659
    %1723 = vmatpush1.bf16.msra.mxu0 %v1658
    %1724 = vmatprep.subr.bf16.mxu0 %v1663
    %1725 = vmatpush1.bf16.msra.mxu0 %v1662
    %1726 = vmatprep.subr.bf16.mxu0 %v1667
    %1727 = vmatpush1.bf16.msra.mxu0 %v1666
    %1728 = vmatprep.subr.bf16.mxu0 %v1671
    %1729 = vmatpush1.bf16.msra.mxu0 %v1670
    %1730 = vmatprep.subr.bf16.mxu0 %v1675
    %1731 = vmatpush1.bf16.msra.mxu0 %v1674
    %1732 = vmatprep.subr.bf16.mxu0 %v1679
    %1733 = vmatpush1.bf16.msra.mxu0 %v1678
    %1734 = vmatprep.subr.bf16.mxu0 %v1683
    %1735 = vmatpush1.bf16.msra.mxu0 %v1682
    %1736 = vmatprep.subr.bf16.mxu0 %v1687
    %1737 = vmatpush1.bf16.msra.mxu0 %v1686
    %1738 = vmatprep.subr.bf16.mxu0 0
    %1739 = vmatpush1.bf16.msra.mxu0 0
    %1740 = vmatprep.subr.bf16.mxu0 0
    %1741 = vmatpush1.bf16.msra.mxu0 0
    %1742 = vmatprep.subr.bf16.mxu0 0
    %1743 = vmatpush1.bf16.msra.mxu0 0
    %1744 = vmatprep.subr.bf16.mxu0 0
    %1745 = vmatpush1.bf16.msra.mxu0 0
    %1746 = vmatprep.subr.bf16.mxu0 0
    %1747 = vmatpush1.bf16.msra.mxu0 0
    %1748 = vmatprep.subr.bf16.mxu0 0
    %1749 = vmatpush1.bf16.msra.mxu0 0
    %1750 = vmatprep.subr.bf16.mxu0 0
    %1751 = vmatpush1.bf16.msra.mxu0 0
    %1752 = vmatprep.subr.bf16.mxu0 0
    %1753 = vmatpush1.bf16.msra.mxu0 0
    %1754 = vmatprep.mubr.bf16.mxu0 0
    %1755 = vmatmul.mubr.bf16.gmra.mrb[0].mxu0 %v1529
    %v1756 = vpop.f32.mrb[0].mxu0
    %v1757 = vadd.f32 0.0, %v1756
    %v1758 = vpop.f32.mrb[0].mxu0
    %v1759 = vadd.f32 0.0, %v1758
    %v1760 = vpop.f32.mrb[0].mxu0
    %v1761 = vpop.f32.mrb[0].mxu0
    %1762 = vdwg.mxu0
    %1763 = vmatprep.subr.bf16.mxu0 %v1661
    %1764 = vmatpush1.bf16.msra.mxu0 %v1660
    %1765 = vmatprep.subr.bf16.mxu0 %v1665
    %1766 = vmatpush1.bf16.msra.mxu0 %v1664
    %1767 = vmatprep.subr.bf16.mxu0 %v1669
    %1768 = vmatpush1.bf16.msra.mxu0 %v1668
    %1769 = vmatprep.subr.bf16.mxu0 %v1673
    %1770 = vmatpush1.bf16.msra.mxu0 %v1672
    %1771 = vmatprep.subr.bf16.mxu0 %v1677
    %1772 = vmatpush1.bf16.msra.mxu0 %v1676
    %1773 = vmatprep.subr.bf16.mxu0 %v1681
    %1774 = vmatpush1.bf16.msra.mxu0 %v1680
    %1775 = vmatprep.subr.bf16.mxu0 %v1685
    %1776 = vmatpush1.bf16.msra.mxu0 %v1684
    %1777 = vmatprep.subr.bf16.mxu0 %v1689
    %1778 = vmatpush1.bf16.msra.mxu0 %v1688
    %1779 = vmatprep.subr.bf16.mxu0 0
    %1780 = vmatpush1.bf16.msra.mxu0 0
    %1781 = vmatprep.subr.bf16.mxu0 0
    %1782 = vmatpush1.bf16.msra.mxu0 0
    %1783 = vmatprep.subr.bf16.mxu0 0
    %1784 = vmatpush1.bf16.msra.mxu0 0
    %1785 = vmatprep.subr.bf16.mxu0 0
    %1786 = vmatpush1.bf16.msra.mxu0 0
    %1787 = vmatprep.subr.bf16.mxu0 0
    %1788 = vmatpush1.bf16.msra.mxu0 0
    %1789 = vmatprep.subr.bf16.mxu0 0
    %1790 = vmatpush1.bf16.msra.mxu0 0
    %1791 = vmatprep.subr.bf16.mxu0 0
    %1792 = vmatpush1.bf16.msra.mxu0 0
    %1793 = vmatprep.subr.bf16.mxu0 0
    %1794 = vmatpush1.bf16.msra.mxu0 0
    %1795 = vmatprep.mubr.bf16.mxu0 0
    %1796 = vmatmul.mubr.bf16.gmra.mrb[0].mxu0 %v1529
    %v1797 = vpop.f32.mrb[0].mxu0
    %v1798 = vadd.f32 0.0, %v1797
    %v1799 = vpop.f32.mrb[0].mxu0
    %v1800 = vadd.f32 0.0, %v1799
    %v1801 = vpop.f32.mrb[0].mxu0
    %v1802 = vpop.f32.mrb[0].mxu0
    %1803 = vdwg.mxu0
    %v1804 = vunpack.c.l.bf16 %v1527
    %v1805 = vunpack.c.h.bf16 %v1527
    %v1806 = vunpack.c.l.bf16 %v1528
    %v1807 = vunpack.c.h.bf16 %v1528
    %v1808 = vadd.f32 %v1804, %v1757
    %v1809 = vadd.f32 %v1805, %v1759
    %v1810 = vadd.f32 %v1806, %v1798
    %v1811 = vadd.f32 %v1807, %v1800
    %v1812 = vmul.f32 %v1808, 0.5
    %v1813 = vtanh.pop %v1812
    %v1814 = vmul.f32 %v1813, 0.5
    %v1815 = vadd.f32 %v1814, 0.5
    %v1816 = vmul.f32 %v1809, 0.5
    %v1817 = vtanh.pop %v1816
    %v1818 = vmul.f32 %v1817, 0.5
    %v1819 = vadd.f32 %v1818, 0.5
    %v1820 = vtanh.pop %v1810
    %v1821 = vmul.f32 %v1811, 0.5
    %v1822 = vtanh.pop %v1821
    %v1823 = vmul.f32 %v1822, 0.5
    %v1824 = vadd.f32 %v1823, 0.5
    %v1825 = vmul.f32 %v1819, %v1521
    %v1826 = vmul.f32 %v1815, %v1820
    %v1827 = vadd.f32 %v1825, %v1826
    %v1828 = vtanh.pop %v1827
    %v1829 = vmul.f32 %v1824, %v1828
    %s1830 = scalar_lea.vmem [#allocation14], 24
    %1831 = vst [vmem:[%s1830] sm:$0xff] %v1829
    %s1832 = scalar_lea.vmem [#allocation4], 64
    %v1833 = vld [vmem:[%s1832] sm:$0xff]
    %v1834 = vld [vmem:[%s1832 + $0x8] sm:$0xff]
    %v1835 = vpack.c.bf16 %v1829, %v1829
    %v1836 = vld [vmem:[#allocation11] sm:$0xff]
    %v1837 = vld [vmem:[#allocation11 + $0x8] sm:$0xff]
    %v1838 = vld [vmem:[#allocation11 + $0x10] sm:$0xff]
    %v1839 = vld [vmem:[#allocation11 + $0x18] sm:$0xff]
    %v1840 = vld [vmem:[#allocation11 + $0x20] sm:$0xff]
    %v1841 = vld [vmem:[#allocation11 + $0x28] sm:$0xff]
    %v1842 = vld [vmem:[#allocation11 + $0x30] sm:$0xff]
    %v1843 = vld [vmem:[#allocation11 + $0x38] sm:$0xff]
    %v1844 = vld [vmem:[#allocation11 + $0x40] sm:$0xff]
    %v1845 = vld [vmem:[#allocation11 + $0x48] sm:$0xff]
    %v1846 = vld [vmem:[#allocation11 + $0x50] sm:$0xff]
    %v1847 = vld [vmem:[#allocation11 + $0x58] sm:$0xff]
    %v1848 = vld [vmem:[#allocation11 + $0x60] sm:$0xff]
    %v1849 = vld [vmem:[#allocation11 + $0x68] sm:$0xff]
    %v1850 = vld [vmem:[#allocation11 + $0x70] sm:$0xff]
    %v1851 = vld [vmem:[#allocation11 + $0x78] sm:$0xff]
    %v1852 = vld [vmem:[#allocation11 + $0x80] sm:$0xff]
    %v1853 = vld [vmem:[#allocation11 + $0x88] sm:$0xff]
    %v1854 = vld [vmem:[#allocation11 + $0x90] sm:$0xff]
    %v1855 = vld [vmem:[#allocation11 + $0x98] sm:$0xff]
    %v1856 = vld [vmem:[#allocation11 + $0xa0] sm:$0xff]
    %v1857 = vld [vmem:[#allocation11 + $0xa8] sm:$0xff]
    %v1858 = vld [vmem:[#allocation11 + $0xb0] sm:$0xff]
    %v1859 = vld [vmem:[#allocation11 + $0xb8] sm:$0xff]
    %v1860 = vld [vmem:[#allocation11 + $0xc0] sm:$0xff]
    %v1861 = vld [vmem:[#allocation11 + $0xc8] sm:$0xff]
    %v1862 = vld [vmem:[#allocation11 + $0xd0] sm:$0xff]
    %v1863 = vld [vmem:[#allocation11 + $0xd8] sm:$0xff]
    %v1864 = vld [vmem:[#allocation11 + $0xe0] sm:$0xff]
    %v1865 = vld [vmem:[#allocation11 + $0xe8] sm:$0xff]
    %v1866 = vld [vmem:[#allocation11 + $0xf0] sm:$0xff]
    %v1867 = vld [vmem:[#allocation11 + $0xf8] sm:$0xff]
    %v1900 = vunpack.c.l.b16 %v1836
    %v1901 = vunpack.c.h.b16 %v1836
    %v1902 = vunpack.c.l.b16 %v1837
    %v1903 = vunpack.c.h.b16 %v1837
    %v1904 = vunpack.c.l.b16 %v1838
    %v1905 = vunpack.c.h.b16 %v1838
    %v1906 = vunpack.c.l.b16 %v1839
    %v1907 = vunpack.c.h.b16 %v1839
    %v1908 = vunpack.c.l.b16 %v1840
    %v1909 = vunpack.c.h.b16 %v1840
    %v1910 = vunpack.c.l.b16 %v1841
    %v1911 = vunpack.c.h.b16 %v1841
    %v1912 = vunpack.c.l.b16 %v1842
    %v1913 = vunpack.c.h.b16 %v1842
    %v1914 = vunpack.c.l.b16 %v1843
    %v1915 = vunpack.c.h.b16 %v1843
    %v1916 = vunpack.c.l.b16 %v1844
    %v1917 = vunpack.c.h.b16 %v1844
    %v1918 = vunpack.c.l.b16 %v1845
    %v1919 = vunpack.c.h.b16 %v1845
    %v1920 = vunpack.c.l.b16 %v1846
    %v1921 = vunpack.c.h.b16 %v1846
    %v1922 = vunpack.c.l.b16 %v1847
    %v1923 = vunpack.c.h.b16 %v1847
    %v1924 = vunpack.c.l.b16 %v1848
    %v1925 = vunpack.c.h.b16 %v1848
    %v1926 = vunpack.c.l.b16 %v1849
    %v1927 = vunpack.c.h.b16 %v1849
    %v1928 = vunpack.c.l.b16 %v1850
    %v1929 = vunpack.c.h.b16 %v1850
    %v1930 = vunpack.c.l.b16 %v1851
    %v1931 = vunpack.c.h.b16 %v1851
    %v1932 = vunpack.c.l.b16 %v1852
    %v1933 = vunpack.c.h.b16 %v1852
    %v1934 = vunpack.c.l.b16 %v1853
    %v1935 = vunpack.c.h.b16 %v1853
    %v1936 = vunpack.c.l.b16 %v1854
    %v1937 = vunpack.c.h.b16 %v1854
    %v1938 = vunpack.c.l.b16 %v1855
    %v1939 = vunpack.c.h.b16 %v1855
    %v1940 = vunpack.c.l.b16 %v1856
    %v1941 = vunpack.c.h.b16 %v1856
    %v1942 = vunpack.c.l.b16 %v1857
    %v1943 = vunpack.c.h.b16 %v1857
    %v1944 = vunpack.c.l.b16 %v1858
    %v1945 = vunpack.c.h.b16 %v1858
    %v1946 = vunpack.c.l.b16 %v1859
    %v1947 = vunpack.c.h.b16 %v1859
    %v1948 = vunpack.c.l.b16 %v1860
    %v1949 = vunpack.c.h.b16 %v1860
    %v1950 = vunpack.c.l.b16 %v1861
    %v1951 = vunpack.c.h.b16 %v1861
    %v1952 = vunpack.c.l.b16 %v1862
    %v1953 = vunpack.c.h.b16 %v1862
    %v1954 = vunpack.c.l.b16 %v1863
    %v1955 = vunpack.c.h.b16 %v1863
    %v1956 = vunpack.c.l.b16 %v1864
    %v1957 = vunpack.c.h.b16 %v1864
    %v1958 = vunpack.c.l.b16 %v1865
    %v1959 = vunpack.c.h.b16 %v1865
    %v1960 = vunpack.c.l.b16 %v1866
    %v1961 = vunpack.c.h.b16 %v1866
    %v1962 = vunpack.c.l.b16 %v1867
    %v1963 = vunpack.c.h.b16 %v1867
    %v1964 = vpack.c.b16 %v1904, %v1900
    %v1965 = vpack.c.b16 %v1905, %v1901
    %v1966 = vpack.c.b16 %v1906, %v1902
    %v1967 = vpack.c.b16 %v1907, %v1903
    %v1968 = vpack.c.b16 %v1912, %v1908
    %v1969 = vpack.c.b16 %v1913, %v1909
    %v1970 = vpack.c.b16 %v1914, %v1910
    %v1971 = vpack.c.b16 %v1915, %v1911
    %v1972 = vpack.c.b16 %v1920, %v1916
    %v1973 = vpack.c.b16 %v1921, %v1917
    %v1974 = vpack.c.b16 %v1922, %v1918
    %v1975 = vpack.c.b16 %v1923, %v1919
    %v1976 = vpack.c.b16 %v1928, %v1924
    %v1977 = vpack.c.b16 %v1929, %v1925
    %v1978 = vpack.c.b16 %v1930, %v1926
    %v1979 = vpack.c.b16 %v1931, %v1927
    %v1980 = vpack.c.b16 %v1936, %v1932
    %v1981 = vpack.c.b16 %v1937, %v1933
    %v1982 = vpack.c.b16 %v1938, %v1934
    %v1983 = vpack.c.b16 %v1939, %v1935
    %v1984 = vpack.c.b16 %v1944, %v1940
    %v1985 = vpack.c.b16 %v1945, %v1941
    %v1986 = vpack.c.b16 %v1946, %v1942
    %v1987 = vpack.c.b16 %v1947, %v1943
    %v1988 = vpack.c.b16 %v1952, %v1948
    %v1989 = vpack.c.b16 %v1953, %v1949
    %v1990 = vpack.c.b16 %v1954, %v1950
    %v1991 = vpack.c.b16 %v1955, %v1951
    %v1992 = vpack.c.b16 %v1960, %v1956
    %v1993 = vpack.c.b16 %v1961, %v1957
    %v1994 = vpack.c.b16 %v1962, %v1958
    %v1995 = vpack.c.b16 %v1963, %v1959
    %2028 = vmatprep.subr.bf16.mxu0 %v1965
    %2029 = vmatpush1.bf16.msra.mxu0 %v1964
    %2030 = vmatprep.subr.bf16.mxu0 %v1969
    %2031 = vmatpush1.bf16.msra.mxu0 %v1968
    %2032 = vmatprep.subr.bf16.mxu0 %v1973
    %2033 = vmatpush1.bf16.msra.mxu0 %v1972
    %2034 = vmatprep.subr.bf16.mxu0 %v1977
    %2035 = vmatpush1.bf16.msra.mxu0 %v1976
    %2036 = vmatprep.subr.bf16.mxu0 %v1981
    %2037 = vmatpush1.bf16.msra.mxu0 %v1980
    %2038 = vmatprep.subr.bf16.mxu0 %v1985
    %2039 = vmatpush1.bf16.msra.mxu0 %v1984
    %2040 = vmatprep.subr.bf16.mxu0 %v1989
    %2041 = vmatpush1.bf16.msra.mxu0 %v1988
    %2042 = vmatprep.subr.bf16.mxu0 %v1993
    %2043 = vmatpush1.bf16.msra.mxu0 %v1992
    %2044 = vmatprep.subr.bf16.mxu0 0
    %2045 = vmatpush1.bf16.msra.mxu0 0
    %2046 = vmatprep.subr.bf16.mxu0 0
    %2047 = vmatpush1.bf16.msra.mxu0 0
    %2048 = vmatprep.subr.bf16.mxu0 0
    %2049 = vmatpush1.bf16.msra.mxu0 0
    %2050 = vmatprep.subr.bf16.mxu0 0
    %2051 = vmatpush1.bf16.msra.mxu0 0
    %2052 = vmatprep.subr.bf16.mxu0 0
    %2053 = vmatpush1.bf16.msra.mxu0 0
    %2054 = vmatprep.subr.bf16.mxu0 0
    %2055 = vmatpush1.bf16.msra.mxu0 0
    %2056 = vmatprep.subr.bf16.mxu0 0
    %2057 = vmatpush1.bf16.msra.mxu0 0
    %2058 = vmatprep.subr.bf16.mxu0 0
    %2059 = vmatpush1.bf16.msra.mxu0 0
    %2060 = vmatprep.mubr.bf16.mxu0 0
    %2061 = vmatmul.mubr.bf16.gmra.mrb[0].mxu0 %v1835
    %v2062 = vpop.f32.mrb[0].mxu0
    %v2063 = vadd.f32 0.0, %v2062
    %v2064 = vpop.f32.mrb[0].mxu0
    %v2065 = vadd.f32 0.0, %v2064
    %v2066 = vpop.f32.mrb[0].mxu0
    %v2067 = vpop.f32.mrb[0].mxu0
    %2068 = vdwg.mxu0
    %2069 = vmatprep.subr.bf16.mxu0 %v1967
    %2070 = vmatpush1.bf16.msra.mxu0 %v1966
    %2071 = vmatprep.subr.bf16.mxu0 %v1971
    %2072 = vmatpush1.bf16.msra.mxu0 %v1970
    %2073 = vmatprep.subr.bf16.mxu0 %v1975
    %2074 = vmatpush1.bf16.msra.mxu0 %v1974
    %2075 = vmatprep.subr.bf16.mxu0 %v1979
    %2076 = vmatpush1.bf16.msra.mxu0 %v1978
    %2077 = vmatprep.subr.bf16.mxu0 %v1983
    %2078 = vmatpush1.bf16.msra.mxu0 %v1982
    %2079 = vmatprep.subr.bf16.mxu0 %v1987
    %2080 = vmatpush1.bf16.msra.mxu0 %v1986
    %2081 = vmatprep.subr.bf16.mxu0 %v1991
    %2082 = vmatpush1.bf16.msra.mxu0 %v1990
    %2083 = vmatprep.subr.bf16.mxu0 %v1995
    %2084 = vmatpush1.bf16.msra.mxu0 %v1994
    %2085 = vmatprep.subr.bf16.mxu0 0
    %2086 = vmatpush1.bf16.msra.mxu0 0
    %2087 = vmatprep.subr.bf16.mxu0 0
    %2088 = vmatpush1.bf16.msra.mxu0 0
    %2089 = vmatprep.subr.bf16.mxu0 0
    %2090 = vmatpush1.bf16.msra.mxu0 0
    %2091 = vmatprep.subr.bf16.mxu0 0
    %2092 = vmatpush1.bf16.msra.mxu0 0
    %2093 = vmatprep.subr.bf16.mxu0 0
    %2094 = vmatpush1.bf16.msra.mxu0 0
    %2095 = vmatprep.subr.bf16.mxu0 0
    %2096 = vmatpush1.bf16.msra.mxu0 0
    %2097 = vmatprep.subr.bf16.mxu0 0
    %2098 = vmatpush1.bf16.msra.mxu0 0
    %2099 = vmatprep.subr.bf16.mxu0 0
    %2100 = vmatpush1.bf16.msra.mxu0 0
    %2101 = vmatprep.mubr.bf16.mxu0 0
    %2102 = vmatmul.mubr.bf16.gmra.mrb[0].mxu0 %v1835
    %v2103 = vpop.f32.mrb[0].mxu0
    %v2104 = vadd.f32 0.0, %v2103
    %v2105 = vpop.f32.mrb[0].mxu0
    %v2106 = vadd.f32 0.0, %v2105
    %v2107 = vpop.f32.mrb[0].mxu0
    %v2108 = vpop.f32.mrb[0].mxu0
    %2109 = vdwg.mxu0
    %v2110 = vunpack.c.l.bf16 %v1833
    %v2111 = vunpack.c.h.bf16 %v1833
    %v2112 = vunpack.c.l.bf16 %v1834
    %v2113 = vunpack.c.h.bf16 %v1834
    %v2114 = vadd.f32 %v2110, %v2063
    %v2115 = vadd.f32 %v2111, %v2065
    %v2116 = vadd.f32 %v2112, %v2104
    %v2117 = vadd.f32 %v2113, %v2106
    %v2118 = vmul.f32 %v2114, 0.5
    %v2119 = vtanh.pop %v2118
    %v2120 = vmul.f32 %v2119, 0.5
    %v2121 = vadd.f32 %v2120, 0.5
    %v2122 = vmul.f32 %v2115, 0.5
    %v2123 = vtanh.pop %v2122
    %v2124 = vmul.f32 %v2123, 0.5
    %v2125 = vadd.f32 %v2124, 0.5
    %v2126 = vtanh.pop %v2116
    %v2127 = vmul.f32 %v2117, 0.5
    %v2128 = vtanh.pop %v2127
    %v2129 = vmul.f32 %v2128, 0.5
    %v2130 = vadd.f32 %v2129, 0.5
    %v2131 = vmul.f32 %v2125, %v1827
    %v2132 = vmul.f32 %v2121, %v2126
    %v2133 = vadd.f32 %v2131, %v2132
    %v2134 = vtanh.pop %v2133
    %v2135 = vmul.f32 %v2130, %v2134
    %s2136 = scalar_lea.vmem [#allocation14], 32
    %2137 = vst [vmem:[%s2136] sm:$0xff] %v2135
    %s2138 = scalar_lea.vmem [#allocation4], 80
    %v2139 = vld [vmem:[%s2138] sm:$0xff]
    %v2140 = vld [vmem:[%s2138 + $0x8] sm:$0xff]
    %v2141 = vpack.c.bf16 %v2135, %v2135
    %v2142 = vld [vmem:[#allocation11] sm:$0xff]
    %v2143 = vld [vmem:[#allocation11 + $0x8] sm:$0xff]
    %v2144 = vld [vmem:[#allocation11 + $0x10] sm:$0xff]
    %v2145 = vld [vmem:[#allocation11 + $0x18] sm:$0xff]
    %v2146 = vld [vmem:[#allocation11 + $0x20] sm:$0xff]
    %v2147 = vld [vmem:[#allocation11 + $0x28] sm:$0xff]
    %v2148 = vld [vmem:[#allocation11 + $0x30] sm:$0xff]
    %v2149 = vld [vmem:[#allocation11 + $0x38] sm:$0xff]
    %v2150 = vld [vmem:[#allocation11 + $0x40] sm:$0xff]
    %v2151 = vld [vmem:[#allocation11 + $0x48] sm:$0xff]
    %v2152 = vld [vmem:[#allocation11 + $0x50] sm:$0xff]
    %v2153 = vld [vmem:[#allocation11 + $0x58] sm:$0xff]
    %v2154 = vld [vmem:[#allocation11 + $0x60] sm:$0xff]
    %v2155 = vld [vmem:[#allocation11 + $0x68] sm:$0xff]
    %v2156 = vld [vmem:[#allocation11 + $0x70] sm:$0xff]
    %v2157 = vld [vmem:[#allocation11 + $0x78] sm:$0xff]
    %v2158 = vld [vmem:[#allocation11 + $0x80] sm:$0xff]
    %v2159 = vld [vmem:[#allocation11 + $0x88] sm:$0xff]
    %v2160 = vld [vmem:[#allocation11 + $0x90] sm:$0xff]
    %v2161 = vld [vmem:[#allocation11 + $0x98] sm:$0xff]
    %v2162 = vld [vmem:[#allocation11 + $0xa0] sm:$0xff]
    %v2163 = vld [vmem:[#allocation11 + $0xa8] sm:$0xff]
    %v2164 = vld [vmem:[#allocation11 + $0xb0] sm:$0xff]
    %v2165 = vld [vmem:[#allocation11 + $0xb8] sm:$0xff]
    %v2166 = vld [vmem:[#allocation11 + $0xc0] sm:$0xff]
    %v2167 = vld [vmem:[#allocation11 + $0xc8] sm:$0xff]
    %v2168 = vld [vmem:[#allocation11 + $0xd0] sm:$0xff]
    %v2169 = vld [vmem:[#allocation11 + $0xd8] sm:$0xff]
    %v2170 = vld [vmem:[#allocation11 + $0xe0] sm:$0xff]
    %v2171 = vld [vmem:[#allocation11 + $0xe8] sm:$0xff]
    %v2172 = vld [vmem:[#allocation11 + $0xf0] sm:$0xff]
    %v2173 = vld [vmem:[#allocation11 + $0xf8] sm:$0xff]
    %v2206 = vunpack.c.l.b16 %v2142
    %v2207 = vunpack.c.h.b16 %v2142
    %v2208 = vunpack.c.l.b16 %v2143
    %v2209 = vunpack.c.h.b16 %v2143
    %v2210 = vunpack.c.l.b16 %v2144
    %v2211 = vunpack.c.h.b16 %v2144
    %v2212 = vunpack.c.l.b16 %v2145
    %v2213 = vunpack.c.h.b16 %v2145
    %v2214 = vunpack.c.l.b16 %v2146
    %v2215 = vunpack.c.h.b16 %v2146
    %v2216 = vunpack.c.l.b16 %v2147
    %v2217 = vunpack.c.h.b16 %v2147
    %v2218 = vunpack.c.l.b16 %v2148
    %v2219 = vunpack.c.h.b16 %v2148
    %v2220 = vunpack.c.l.b16 %v2149
    %v2221 = vunpack.c.h.b16 %v2149
    %v2222 = vunpack.c.l.b16 %v2150
    %v2223 = vunpack.c.h.b16 %v2150
    %v2224 = vunpack.c.l.b16 %v2151
    %v2225 = vunpack.c.h.b16 %v2151
    %v2226 = vunpack.c.l.b16 %v2152
    %v2227 = vunpack.c.h.b16 %v2152
    %v2228 = vunpack.c.l.b16 %v2153
    %v2229 = vunpack.c.h.b16 %v2153
    %v2230 = vunpack.c.l.b16 %v2154
    %v2231 = vunpack.c.h.b16 %v2154
    %v2232 = vunpack.c.l.b16 %v2155
    %v2233 = vunpack.c.h.b16 %v2155
    %v2234 = vunpack.c.l.b16 %v2156
    %v2235 = vunpack.c.h.b16 %v2156
    %v2236 = vunpack.c.l.b16 %v2157
    %v2237 = vunpack.c.h.b16 %v2157
    %v2238 = vunpack.c.l.b16 %v2158
    %v2239 = vunpack.c.h.b16 %v2158
    %v2240 = vunpack.c.l.b16 %v2159
    %v2241 = vunpack.c.h.b16 %v2159
    %v2242 = vunpack.c.l.b16 %v2160
    %v2243 = vunpack.c.h.b16 %v2160
    %v2244 = vunpack.c.l.b16 %v2161
    %v2245 = vunpack.c.h.b16 %v2161
    %v2246 = vunpack.c.l.b16 %v2162
    %v2247 = vunpack.c.h.b16 %v2162
    %v2248 = vunpack.c.l.b16 %v2163
    %v2249 = vunpack.c.h.b16 %v2163
    %v2250 = vunpack.c.l.b16 %v2164
    %v2251 = vunpack.c.h.b16 %v2164
    %v2252 = vunpack.c.l.b16 %v2165
    %v2253 = vunpack.c.h.b16 %v2165
    %v2254 = vunpack.c.l.b16 %v2166
    %v2255 = vunpack.c.h.b16 %v2166
    %v2256 = vunpack.c.l.b16 %v2167
    %v2257 = vunpack.c.h.b16 %v2167
    %v2258 = vunpack.c.l.b16 %v2168
    %v2259 = vunpack.c.h.b16 %v2168
    %v2260 = vunpack.c.l.b16 %v2169
    %v2261 = vunpack.c.h.b16 %v2169
    %v2262 = vunpack.c.l.b16 %v2170
    %v2263 = vunpack.c.h.b16 %v2170
    %v2264 = vunpack.c.l.b16 %v2171
    %v2265 = vunpack.c.h.b16 %v2171
    %v2266 = vunpack.c.l.b16 %v2172
    %v2267 = vunpack.c.h.b16 %v2172
    %v2268 = vunpack.c.l.b16 %v2173
    %v2269 = vunpack.c.h.b16 %v2173
    %v2270 = vpack.c.b16 %v2210, %v2206
    %v2271 = vpack.c.b16 %v2211, %v2207
    %v2272 = vpack.c.b16 %v2212, %v2208
    %v2273 = vpack.c.b16 %v2213, %v2209
    %v2274 = vpack.c.b16 %v2218, %v2214
    %v2275 = vpack.c.b16 %v2219, %v2215
    %v2276 = vpack.c.b16 %v2220, %v2216
    %v2277 = vpack.c.b16 %v2221, %v2217
    %v2278 = vpack.c.b16 %v2226, %v2222
    %v2279 = vpack.c.b16 %v2227, %v2223
    %v2280 = vpack.c.b16 %v2228, %v2224
    %v2281 = vpack.c.b16 %v2229, %v2225
    %v2282 = vpack.c.b16 %v2234, %v2230
    %v2283 = vpack.c.b16 %v2235, %v2231
    %v2284 = vpack.c.b16 %v2236, %v2232
    %v2285 = vpack.c.b16 %v2237, %v2233
    %v2286 = vpack.c.b16 %v2242, %v2238
    %v2287 = vpack.c.b16 %v2243, %v2239
    %v2288 = vpack.c.b16 %v2244, %v2240
    %v2289 = vpack.c.b16 %v2245, %v2241
    %v2290 = vpack.c.b16 %v2250, %v2246
    %v2291 = vpack.c.b16 %v2251, %v2247
    %v2292 = vpack.c.b16 %v2252, %v2248
    %v2293 = vpack.c.b16 %v2253, %v2249
    %v2294 = vpack.c.b16 %v2258, %v2254
    %v2295 = vpack.c.b16 %v2259, %v2255
    %v2296 = vpack.c.b16 %v2260, %v2256
    %v2297 = vpack.c.b16 %v2261, %v2257
    %v2298 = vpack.c.b16 %v2266, %v2262
    %v2299 = vpack.c.b16 %v2267, %v2263
    %v2300 = vpack.c.b16 %v2268, %v2264
    %v2301 = vpack.c.b16 %v2269, %v2265
    %2334 = vmatprep.subr.bf16.mxu0 %v2271
    %2335 = vmatpush1.bf16.msra.mxu0 %v2270
    %2336 = vmatprep.subr.bf16.mxu0 %v2275
    %2337 = vmatpush1.bf16.msra.mxu0 %v2274
    %2338 = vmatprep.subr.bf16.mxu0 %v2279
    %2339 = vmatpush1.bf16.msra.mxu0 %v2278
    %2340 = vmatprep.subr.bf16.mxu0 %v2283
    %2341 = vmatpush1.bf16.msra.mxu0 %v2282
    %2342 = vmatprep.subr.bf16.mxu0 %v2287
    %2343 = vmatpush1.bf16.msra.mxu0 %v2286
    %2344 = vmatprep.subr.bf16.mxu0 %v2291
    %2345 = vmatpush1.bf16.msra.mxu0 %v2290
    %2346 = vmatprep.subr.bf16.mxu0 %v2295
    %2347 = vmatpush1.bf16.msra.mxu0 %v2294
    %2348 = vmatprep.subr.bf16.mxu0 %v2299
    %2349 = vmatpush1.bf16.msra.mxu0 %v2298
    %2350 = vmatprep.subr.bf16.mxu0 0
    %2351 = vmatpush1.bf16.msra.mxu0 0
    %2352 = vmatprep.subr.bf16.mxu0 0
    %2353 = vmatpush1.bf16.msra.mxu0 0
    %2354 = vmatprep.subr.bf16.mxu0 0
    %2355 = vmatpush1.bf16.msra.mxu0 0
    %2356 = vmatprep.subr.bf16.mxu0 0
    %2357 = vmatpush1.bf16.msra.mxu0 0
    %2358 = vmatprep.subr.bf16.mxu0 0
    %2359 = vmatpush1.bf16.msra.mxu0 0
    %2360 = vmatprep.subr.bf16.mxu0 0
    %2361 = vmatpush1.bf16.msra.mxu0 0
    %2362 = vmatprep.subr.bf16.mxu0 0
    %2363 = vmatpush1.bf16.msra.mxu0 0
    %2364 = vmatprep.subr.bf16.mxu0 0
    %2365 = vmatpush1.bf16.msra.mxu0 0
    %2366 = vmatprep.mubr.bf16.mxu0 0
    %2367 = vmatmul.mubr.bf16.gmra.mrb[0].mxu0 %v2141
    %v2368 = vpop.f32.mrb[0].mxu0
    %v2369 = vadd.f32 0.0, %v2368
    %v2370 = vpop.f32.mrb[0].mxu0
    %v2371 = vadd.f32 0.0, %v2370
    %v2372 = vpop.f32.mrb[0].mxu0
    %v2373 = vpop.f32.mrb[0].mxu0
    %2374 = vdwg.mxu0
    %2375 = vmatprep.subr.bf16.mxu0 %v2273
    %2376 = vmatpush1.bf16.msra.mxu0 %v2272
    %2377 = vmatprep.subr.bf16.mxu0 %v2277
    %2378 = vmatpush1.bf16.msra.mxu0 %v2276
    %2379 = vmatprep.subr.bf16.mxu0 %v2281
    %2380 = vmatpush1.bf16.msra.mxu0 %v2280
    %2381 = vmatprep.subr.bf16.mxu0 %v2285
    %2382 = vmatpush1.bf16.msra.mxu0 %v2284
    %2383 = vmatprep.subr.bf16.mxu0 %v2289
    %2384 = vmatpush1.bf16.msra.mxu0 %v2288
    %2385 = vmatprep.subr.bf16.mxu0 %v2293
    %2386 = vmatpush1.bf16.msra.mxu0 %v2292
    %2387 = vmatprep.subr.bf16.mxu0 %v2297
    %2388 = vmatpush1.bf16.msra.mxu0 %v2296
    %2389 = vmatprep.subr.bf16.mxu0 %v2301
    %2390 = vmatpush1.bf16.msra.mxu0 %v2300
    %2391 = vmatprep.subr.bf16.mxu0 0
    %2392 = vmatpush1.bf16.msra.mxu0 0
    %2393 = vmatprep.subr.bf16.mxu0 0
    %2394 = vmatpush1.bf16.msra.mxu0 0
    %2395 = vmatprep.subr.bf16.mxu0 0
    %2396 = vmatpush1.bf16.msra.mxu0 0
    %2397 = vmatprep.subr.bf16.mxu0 0
    %2398 = vmatpush1.bf16.msra.mxu0 0
    %2399 = vmatprep.subr.bf16.mxu0 0
    %2400 = vmatpush1.bf16.msra.mxu0 0
    %2401 = vmatprep.subr.bf16.mxu0 0
    %2402 = vmatpush1.bf16.msra.mxu0 0
    %2403 = vmatprep.subr.bf16.mxu0 0
    %2404 = vmatpush1.bf16.msra.mxu0 0
    %2405 = vmatprep.subr.bf16.mxu0 0
    %2406 = vmatpush1.bf16.msra.mxu0 0
    %2407 = vmatprep.mubr.bf16.mxu0 0
    %2408 = vmatmul.mubr.bf16.gmra.mrb[0].mxu0 %v2141
    %v2409 = vpop.f32.mrb[0].mxu0
    %v2410 = vadd.f32 0.0, %v2409
    %v2411 = vpop.f32.mrb[0].mxu0
    %v2412 = vadd.f32 0.0, %v2411
    %v2413 = vpop.f32.mrb[0].mxu0
    %v2414 = vpop.f32.mrb[0].mxu0
    %2415 = vdwg.mxu0
    %v2416 = vunpack.c.l.bf16 %v2139
    %v2417 = vunpack.c.h.bf16 %v2139
    %v2418 = vunpack.c.l.bf16 %v2140
    %v2419 = vunpack.c.h.bf16 %v2140
    %v2420 = vadd.f32 %v2416, %v2369
    %v2421 = vadd.f32 %v2417, %v2371
    %v2422 = vadd.f32 %v2418, %v2410
    %v2423 = vadd.f32 %v2419, %v2412
    %v2424 = vmul.f32 %v2420, 0.5
    %v2425 = vtanh.pop %v2424
    %v2426 = vmul.f32 %v2425, 0.5
    %v2427 = vadd.f32 %v2426, 0.5
    %v2428 = vmul.f32 %v2421, 0.5
    %v2429 = vtanh.pop %v2428
    %v2430 = vmul.f32 %v2429, 0.5
    %v2431 = vadd.f32 %v2430, 0.5
    %v2432 = vtanh.pop %v2422
    %v2433 = vmul.f32 %v2423, 0.5
    %v2434 = vtanh.pop %v2433
    %v2435 = vmul.f32 %v2434, 0.5
    %v2436 = vadd.f32 %v2435, 0.5
    %v2437 = vmul.f32 %v2431, %v2133
    %v2438 = vmul.f32 %v2427, %v2432
    %v2439 = vadd.f32 %v2437, %v2438
    %v2440 = vtanh.pop %v2439
    %v2441 = vmul.f32 %v2436, %v2440
    %s2442 = scalar_lea.vmem [#allocation14], 40
    %2443 = vst [vmem:[%s2442] sm:$0xff] %v2441
    %s2444 = scalar_lea.vmem [#allocation4], 96
    %v2445 = vld [vmem:[%s2444] sm:$0xff]
    %v2446 = vld [vmem:[%s2444 + $0x8] sm:$0xff]
    %v2447 = vpack.c.bf16 %v2441, %v2441
    %v2448 = vld [vmem:[#allocation11] sm:$0xff]
    %v2449 = vld [vmem:[#allocation11 + $0x8] sm:$0xff]
    %v2450 = vld [vmem:[#allocation11 + $0x10] sm:$0xff]
    %v2451 = vld [vmem:[#allocation11 + $0x18] sm:$0xff]
    %v2452 = vld [vmem:[#allocation11 + $0x20] sm:$0xff]
    %v2453 = vld [vmem:[#allocation11 + $0x28] sm:$0xff]
    %v2454 = vld [vmem:[#allocation11 + $0x30] sm:$0xff]
    %v2455 = vld [vmem:[#allocation11 + $0x38] sm:$0xff]
    %v2456 = vld [vmem:[#allocation11 + $0x40] sm:$0xff]
    %v2457 = vld [vmem:[#allocation11 + $0x48] sm:$0xff]
    %v2458 = vld [vmem:[#allocation11 + $0x50] sm:$0xff]
    %v2459 = vld [vmem:[#allocation11 + $0x58] sm:$0xff]
    %v2460 = vld [vmem:[#allocation11 + $0x60] sm:$0xff]
    %v2461 = vld [vmem:[#allocation11 + $0x68] sm:$0xff]
    %v2462 = vld [vmem:[#allocation11 + $0x70] sm:$0xff]
    %v2463 = vld [vmem:[#allocation11 + $0x78] sm:$0xff]
    %v2464 = vld [vmem:[#allocation11 + $0x80] sm:$0xff]
    %v2465 = vld [vmem:[#allocation11 + $0x88] sm:$0xff]
    %v2466 = vld [vmem:[#allocation11 + $0x90] sm:$0xff]
    %v2467 = vld [vmem:[#allocation11 + $0x98] sm:$0xff]
    %v2468 = vld [vmem:[#allocation11 + $0xa0] sm:$0xff]
    %v2469 = vld [vmem:[#allocation11 + $0xa8] sm:$0xff]
    %v2470 = vld [vmem:[#allocation11 + $0xb0] sm:$0xff]
    %v2471 = vld [vmem:[#allocation11 + $0xb8] sm:$0xff]
    %v2472 = vld [vmem:[#allocation11 + $0xc0] sm:$0xff]
    %v2473 = vld [vmem:[#allocation11 + $0xc8] sm:$0xff]
    %v2474 = vld [vmem:[#allocation11 + $0xd0] sm:$0xff]
    %v2475 = vld [vmem:[#allocation11 + $0xd8] sm:$0xff]
    %v2476 = vld [vmem:[#allocation11 + $0xe0] sm:$0xff]
    %v2477 = vld [vmem:[#allocation11 + $0xe8] sm:$0xff]
    %v2478 = vld [vmem:[#allocation11 + $0xf0] sm:$0xff]
    %v2479 = vld [vmem:[#allocation11 + $0xf8] sm:$0xff]
    %v2512 = vunpack.c.l.b16 %v2448
    %v2513 = vunpack.c.h.b16 %v2448
    %v2514 = vunpack.c.l.b16 %v2449
    %v2515 = vunpack.c.h.b16 %v2449
    %v2516 = vunpack.c.l.b16 %v2450
    %v2517 = vunpack.c.h.b16 %v2450
    %v2518 = vunpack.c.l.b16 %v2451
    %v2519 = vunpack.c.h.b16 %v2451
    %v2520 = vunpack.c.l.b16 %v2452
    %v2521 = vunpack.c.h.b16 %v2452
    %v2522 = vunpack.c.l.b16 %v2453
    %v2523 = vunpack.c.h.b16 %v2453
    %v2524 = vunpack.c.l.b16 %v2454
    %v2525 = vunpack.c.h.b16 %v2454
    %v2526 = vunpack.c.l.b16 %v2455
    %v2527 = vunpack.c.h.b16 %v2455
    %v2528 = vunpack.c.l.b16 %v2456
    %v2529 = vunpack.c.h.b16 %v2456
    %v2530 = vunpack.c.l.b16 %v2457
    %v2531 = vunpack.c.h.b16 %v2457
    %v2532 = vunpack.c.l.b16 %v2458
    %v2533 = vunpack.c.h.b16 %v2458
    %v2534 = vunpack.c.l.b16 %v2459
    %v2535 = vunpack.c.h.b16 %v2459
    %v2536 = vunpack.c.l.b16 %v2460
    %v2537 = vunpack.c.h.b16 %v2460
    %v2538 = vunpack.c.l.b16 %v2461
    %v2539 = vunpack.c.h.b16 %v2461
    %v2540 = vunpack.c.l.b16 %v2462
    %v2541 = vunpack.c.h.b16 %v2462
    %v2542 = vunpack.c.l.b16 %v2463
    %v2543 = vunpack.c.h.b16 %v2463
    %v2544 = vunpack.c.l.b16 %v2464
    %v2545 = vunpack.c.h.b16 %v2464
    %v2546 = vunpack.c.l.b16 %v2465
    %v2547 = vunpack.c.h.b16 %v2465
    %v2548 = vunpack.c.l.b16 %v2466
    %v2549 = vunpack.c.h.b16 %v2466
    %v2550 = vunpack.c.l.b16 %v2467
    %v2551 = vunpack.c.h.b16 %v2467
    %v2552 = vunpack.c.l.b16 %v2468
    %v2553 = vunpack.c.h.b16 %v2468
    %v2554 = vunpack.c.l.b16 %v2469
    %v2555 = vunpack.c.h.b16 %v2469
    %v2556 = vunpack.c.l.b16 %v2470
    %v2557 = vunpack.c.h.b16 %v2470
    %v2558 = vunpack.c.l.b16 %v2471
    %v2559 = vunpack.c.h.b16 %v2471
    %v2560 = vunpack.c.l.b16 %v2472
    %v2561 = vunpack.c.h.b16 %v2472
    %v2562 = vunpack.c.l.b16 %v2473
    %v2563 = vunpack.c.h.b16 %v2473
    %v2564 = vunpack.c.l.b16 %v2474
    %v2565 = vunpack.c.h.b16 %v2474
    %v2566 = vunpack.c.l.b16 %v2475
    %v2567 = vunpack.c.h.b16 %v2475
    %v2568 = vunpack.c.l.b16 %v2476
    %v2569 = vunpack.c.h.b16 %v2476
    %v2570 = vunpack.c.l.b16 %v2477
    %v2571 = vunpack.c.h.b16 %v2477
    %v2572 = vunpack.c.l.b16 %v2478
    %v2573 = vunpack.c.h.b16 %v2478
    %v2574 = vunpack.c.l.b16 %v2479
    %v2575 = vunpack.c.h.b16 %v2479
    %v2576 = vpack.c.b16 %v2516, %v2512
    %v2577 = vpack.c.b16 %v2517, %v2513
    %v2578 = vpack.c.b16 %v2518, %v2514
    %v2579 = vpack.c.b16 %v2519, %v2515
    %v2580 = vpack.c.b16 %v2524, %v2520
    %v2581 = vpack.c.b16 %v2525, %v2521
    %v2582 = vpack.c.b16 %v2526, %v2522
    %v2583 = vpack.c.b16 %v2527, %v2523
    %v2584 = vpack.c.b16 %v2532, %v2528
    %v2585 = vpack.c.b16 %v2533, %v2529
    %v2586 = vpack.c.b16 %v2534, %v2530
    %v2587 = vpack.c.b16 %v2535, %v2531
    %v2588 = vpack.c.b16 %v2540, %v2536
    %v2589 = vpack.c.b16 %v2541, %v2537
    %v2590 = vpack.c.b16 %v2542, %v2538
    %v2591 = vpack.c.b16 %v2543, %v2539
    %v2592 = vpack.c.b16 %v2548, %v2544
    %v2593 = vpack.c.b16 %v2549, %v2545
    %v2594 = vpack.c.b16 %v2550, %v2546
    %v2595 = vpack.c.b16 %v2551, %v2547
    %v2596 = vpack.c.b16 %v2556, %v2552
    %v2597 = vpack.c.b16 %v2557, %v2553
    %v2598 = vpack.c.b16 %v2558, %v2554
    %v2599 = vpack.c.b16 %v2559, %v2555
    %v2600 = vpack.c.b16 %v2564, %v2560
    %v2601 = vpack.c.b16 %v2565, %v2561
    %v2602 = vpack.c.b16 %v2566, %v2562
    %v2603 = vpack.c.b16 %v2567, %v2563
    %v2604 = vpack.c.b16 %v2572, %v2568
    %v2605 = vpack.c.b16 %v2573, %v2569
    %v2606 = vpack.c.b16 %v2574, %v2570
    %v2607 = vpack.c.b16 %v2575, %v2571
    %2640 = vmatprep.subr.bf16.mxu0 %v2577
    %2641 = vmatpush1.bf16.msra.mxu0 %v2576
    %2642 = vmatprep.subr.bf16.mxu0 %v2581
    %2643 = vmatpush1.bf16.msra.mxu0 %v2580
    %2644 = vmatprep.subr.bf16.mxu0 %v2585
    %2645 = vmatpush1.bf16.msra.mxu0 %v2584
    %2646 = vmatprep.subr.bf16.mxu0 %v2589
    %2647 = vmatpush1.bf16.msra.mxu0 %v2588
    %2648 = vmatprep.subr.bf16.mxu0 %v2593
    %2649 = vmatpush1.bf16.msra.mxu0 %v2592
    %2650 = vmatprep.subr.bf16.mxu0 %v2597
    %2651 = vmatpush1.bf16.msra.mxu0 %v2596
    %2652 = vmatprep.subr.bf16.mxu0 %v2601
    %2653 = vmatpush1.bf16.msra.mxu0 %v2600
    %2654 = vmatprep.subr.bf16.mxu0 %v2605
    %2655 = vmatpush1.bf16.msra.mxu0 %v2604
    %2656 = vmatprep.subr.bf16.mxu0 0
    %2657 = vmatpush1.bf16.msra.mxu0 0
    %2658 = vmatprep.subr.bf16.mxu0 0
    %2659 = vmatpush1.bf16.msra.mxu0 0
    %2660 = vmatprep.subr.bf16.mxu0 0
    %2661 = vmatpush1.bf16.msra.mxu0 0
    %2662 = vmatprep.subr.bf16.mxu0 0
    %2663 = vmatpush1.bf16.msra.mxu0 0
    %2664 = vmatprep.subr.bf16.mxu0 0
    %2665 = vmatpush1.bf16.msra.mxu0 0
    %2666 = vmatprep.subr.bf16.mxu0 0
    %2667 = vmatpush1.bf16.msra.mxu0 0
    %2668 = vmatprep.subr.bf16.mxu0 0
    %2669 = vmatpush1.bf16.msra.mxu0 0
    %2670 = vmatprep.subr.bf16.mxu0 0
    %2671 = vmatpush1.bf16.msra.mxu0 0
    %2672 = vmatprep.mubr.bf16.mxu0 0
    %2673 = vmatmul.mubr.bf16.gmra.mrb[0].mxu0 %v2447
    %v2674 = vpop.f32.mrb[0].mxu0
    %v2675 = vadd.f32 0.0, %v2674
    %v2676 = vpop.f32.mrb[0].mxu0
    %v2677 = vadd.f32 0.0, %v2676
    %v2678 = vpop.f32.mrb[0].mxu0
    %v2679 = vpop.f32.mrb[0].mxu0
    %2680 = vdwg.mxu0
    %2681 = vmatprep.subr.bf16.mxu0 %v2579
    %2682 = vmatpush1.bf16.msra.mxu0 %v2578
    %2683 = vmatprep.subr.bf16.mxu0 %v2583
    %2684 = vmatpush1.bf16.msra.mxu0 %v2582
    %2685 = vmatprep.subr.bf16.mxu0 %v2587
    %2686 = vmatpush1.bf16.msra.mxu0 %v2586
    %2687 = vmatprep.subr.bf16.mxu0 %v2591
    %2688 = vmatpush1.bf16.msra.mxu0 %v2590
    %2689 = vmatprep.subr.bf16.mxu0 %v2595
    %2690 = vmatpush1.bf16.msra.mxu0 %v2594
    %2691 = vmatprep.subr.bf16.mxu0 %v2599
    %2692 = vmatpush1.bf16.msra.mxu0 %v2598
    %2693 = vmatprep.subr.bf16.mxu0 %v2603
    %2694 = vmatpush1.bf16.msra.mxu0 %v2602
    %2695 = vmatprep.subr.bf16.mxu0 %v2607
    %2696 = vmatpush1.bf16.msra.mxu0 %v2606
    %2697 = vmatprep.subr.bf16.mxu0 0
    %2698 = vmatpush1.bf16.msra.mxu0 0
    %2699 = vmatprep.subr.bf16.mxu0 0
    %2700 = vmatpush1.bf16.msra.mxu0 0
    %2701 = vmatprep.subr.bf16.mxu0 0
    %2702 = vmatpush1.bf16.msra.mxu0 0
    %2703 = vmatprep.subr.bf16.mxu0 0
    %2704 = vmatpush1.bf16.msra.mxu0 0
    %2705 = vmatprep.subr.bf16.mxu0 0
    %2706 = vmatpush1.bf16.msra.mxu0 0
    %2707 = vmatprep.subr.bf16.mxu0 0
    %2708 = vmatpush1.bf16.msra.mxu0 0
    %2709 = vmatprep.subr.bf16.mxu0 0
    %2710 = vmatpush1.bf16.msra.mxu0 0
    %2711 = vmatprep.subr.bf16.mxu0 0
    %2712 = vmatpush1.bf16.msra.mxu0 0
    %2713 = vmatprep.mubr.bf16.mxu0 0
    %2714 = vmatmul.mubr.bf16.gmra.mrb[0].mxu0 %v2447
    %v2715 = vpop.f32.mrb[0].mxu0
    %v2716 = vadd.f32 0.0, %v2715
    %v2717 = vpop.f32.mrb[0].mxu0
    %v2718 = vadd.f32 0.0, %v2717
    %v2719 = vpop.f32.mrb[0].mxu0
    %v2720 = vpop.f32.mrb[0].mxu0
    %2721 = vdwg.mxu0
    %v2722 = vunpack.c.l.bf16 %v2445
    %v2723 = vunpack.c.h.bf16 %v2445
    %v2724 = vunpack.c.l.bf16 %v2446
    %v2725 = vunpack.c.h.bf16 %v2446
    %v2726 = vadd.f32 %v2722, %v2675
    %v2727 = vadd.f32 %v2723, %v2677
    %v2728 = vadd.f32 %v2724, %v2716
    %v2729 = vadd.f32 %v2725, %v2718
    %v2730 = vmul.f32 %v2726, 0.5
    %v2731 = vtanh.pop %v2730
    %v2732 = vmul.f32 %v2731, 0.5
    %v2733 = vadd.f32 %v2732, 0.5
    %v2734 = vmul.f32 %v2727, 0.5
    %v2735 = vtanh.pop %v2734
    %v2736 = vmul.f32 %v2735, 0.5
    %v2737 = vadd.f32 %v2736, 0.5
    %v2738 = vtanh.pop %v2728
    %v2739 = vmul.f32 %v2729, 0.5
    %v2740 = vtanh.pop %v2739
    %v2741 = vmul.f32 %v2740, 0.5
    %v2742 = vadd.f32 %v2741, 0.5
    %v2743 = vmul.f32 %v2737, %v2439
    %v2744 = vmul.f32 %v2733, %v2738
    %v2745 = vadd.f32 %v2743, %v2744
    %v2746 = vtanh.pop %v2745
    %v2747 = vmul.f32 %v2742, %v2746
    %s2748 = scalar_lea.vmem [#allocation14], 48
    %2749 = vst [vmem:[%s2748] sm:$0xff] %v2747
    %s2750 = scalar_lea.vmem [#allocation4], 112
    %v2751 = vld [vmem:[%s2750] sm:$0xff]
    %v2752 = vld [vmem:[%s2750 + $0x8] sm:$0xff]
    %v2753 = vpack.c.bf16 %v2747, %v2747
    %v2754 = vld [vmem:[#allocation11] sm:$0xff]
    %v2755 = vld [vmem:[#allocation11 + $0x8] sm:$0xff]
    %v2756 = vld [vmem:[#allocation11 + $0x10] sm:$0xff]
    %v2757 = vld [vmem:[#allocation11 + $0x18] sm:$0xff]
    %v2758 = vld [vmem:[#allocation11 + $0x20] sm:$0xff]
    %v2759 = vld [vmem:[#allocation11 + $0x28] sm:$0xff]
    %v2760 = vld [vmem:[#allocation11 + $0x30] sm:$0xff]
    %v2761 = vld [vmem:[#allocation11 + $0x38] sm:$0xff]
    %v2762 = vld [vmem:[#allocation11 + $0x40] sm:$0xff]
    %v2763 = vld [vmem:[#allocation11 + $0x48] sm:$0xff]
    %v2764 = vld [vmem:[#allocation11 + $0x50] sm:$0xff]
    %v2765 = vld [vmem:[#allocation11 + $0x58] sm:$0xff]
    %v2766 = vld [vmem:[#allocation11 + $0x60] sm:$0xff]
    %v2767 = vld [vmem:[#allocation11 + $0x68] sm:$0xff]
    %v2768 = vld [vmem:[#allocation11 + $0x70] sm:$0xff]
    %v2769 = vld [vmem:[#allocation11 + $0x78] sm:$0xff]
    %v2770 = vld [vmem:[#allocation11 + $0x80] sm:$0xff]
    %v2771 = vld [vmem:[#allocation11 + $0x88] sm:$0xff]
    %v2772 = vld [vmem:[#allocation11 + $0x90] sm:$0xff]
    %v2773 = vld [vmem:[#allocation11 + $0x98] sm:$0xff]
    %v2774 = vld [vmem:[#allocation11 + $0xa0] sm:$0xff]
    %v2775 = vld [vmem:[#allocation11 + $0xa8] sm:$0xff]
    %v2776 = vld [vmem:[#allocation11 + $0xb0] sm:$0xff]
    %v2777 = vld [vmem:[#allocation11 + $0xb8] sm:$0xff]
    %v2778 = vld [vmem:[#allocation11 + $0xc0] sm:$0xff]
    %v2779 = vld [vmem:[#allocation11 + $0xc8] sm:$0xff]
    %v2780 = vld [vmem:[#allocation11 + $0xd0] sm:$0xff]
    %v2781 = vld [vmem:[#allocation11 + $0xd8] sm:$0xff]
    %v2782 = vld [vmem:[#allocation11 + $0xe0] sm:$0xff]
    %v2783 = vld [vmem:[#allocation11 + $0xe8] sm:$0xff]
    %v2784 = vld [vmem:[#allocation11 + $0xf0] sm:$0xff]
    %v2785 = vld [vmem:[#allocation11 + $0xf8] sm:$0xff]
    %v2818 = vunpack.c.l.b16 %v2754
    %v2819 = vunpack.c.h.b16 %v2754
    %v2820 = vunpack.c.l.b16 %v2755
    %v2821 = vunpack.c.h.b16 %v2755
    %v2822 = vunpack.c.l.b16 %v2756
    %v2823 = vunpack.c.h.b16 %v2756
    %v2824 = vunpack.c.l.b16 %v2757
    %v2825 = vunpack.c.h.b16 %v2757
    %v2826 = vunpack.c.l.b16 %v2758
    %v2827 = vunpack.c.h.b16 %v2758
    %v2828 = vunpack.c.l.b16 %v2759
    %v2829 = vunpack.c.h.b16 %v2759
    %v2830 = vunpack.c.l.b16 %v2760
    %v2831 = vunpack.c.h.b16 %v2760
    %v2832 = vunpack.c.l.b16 %v2761
    %v2833 = vunpack.c.h.b16 %v2761
    %v2834 = vunpack.c.l.b16 %v2762
    %v2835 = vunpack.c.h.b16 %v2762
    %v2836 = vunpack.c.l.b16 %v2763
    %v2837 = vunpack.c.h.b16 %v2763
    %v2838 = vunpack.c.l.b16 %v2764
    %v2839 = vunpack.c.h.b16 %v2764
    %v2840 = vunpack.c.l.b16 %v2765
    %v2841 = vunpack.c.h.b16 %v2765
    %v2842 = vunpack.c.l.b16 %v2766
    %v2843 = vunpack.c.h.b16 %v2766
    %v2844 = vunpack.c.l.b16 %v2767
    %v2845 = vunpack.c.h.b16 %v2767
    %v2846 = vunpack.c.l.b16 %v2768
    %v2847 = vunpack.c.h.b16 %v2768
    %v2848 = vunpack.c.l.b16 %v2769
    %v2849 = vunpack.c.h.b16 %v2769
    %v2850 = vunpack.c.l.b16 %v2770
    %v2851 = vunpack.c.h.b16 %v2770
    %v2852 = vunpack.c.l.b16 %v2771
    %v2853 = vunpack.c.h.b16 %v2771
    %v2854 = vunpack.c.l.b16 %v2772
    %v2855 = vunpack.c.h.b16 %v2772
    %v2856 = vunpack.c.l.b16 %v2773
    %v2857 = vunpack.c.h.b16 %v2773
    %v2858 = vunpack.c.l.b16 %v2774
    %v2859 = vunpack.c.h.b16 %v2774
    %v2860 = vunpack.c.l.b16 %v2775
    %v2861 = vunpack.c.h.b16 %v2775
    %v2862 = vunpack.c.l.b16 %v2776
    %v2863 = vunpack.c.h.b16 %v2776
    %v2864 = vunpack.c.l.b16 %v2777
    %v2865 = vunpack.c.h.b16 %v2777
    %v2866 = vunpack.c.l.b16 %v2778
    %v2867 = vunpack.c.h.b16 %v2778
    %v2868 = vunpack.c.l.b16 %v2779
    %v2869 = vunpack.c.h.b16 %v2779
    %v2870 = vunpack.c.l.b16 %v2780
    %v2871 = vunpack.c.h.b16 %v2780
    %v2872 = vunpack.c.l.b16 %v2781
    %v2873 = vunpack.c.h.b16 %v2781
    %v2874 = vunpack.c.l.b16 %v2782
    %v2875 = vunpack.c.h.b16 %v2782
    %v2876 = vunpack.c.l.b16 %v2783
    %v2877 = vunpack.c.h.b16 %v2783
    %v2878 = vunpack.c.l.b16 %v2784
    %v2879 = vunpack.c.h.b16 %v2784
    %v2880 = vunpack.c.l.b16 %v2785
    %v2881 = vunpack.c.h.b16 %v2785
    %v2882 = vpack.c.b16 %v2822, %v2818
    %v2883 = vpack.c.b16 %v2823, %v2819
    %v2884 = vpack.c.b16 %v2824, %v2820
    %v2885 = vpack.c.b16 %v2825, %v2821
    %v2886 = vpack.c.b16 %v2830, %v2826
    %v2887 = vpack.c.b16 %v2831, %v2827
    %v2888 = vpack.c.b16 %v2832, %v2828
    %v2889 = vpack.c.b16 %v2833, %v2829
    %v2890 = vpack.c.b16 %v2838, %v2834
    %v2891 = vpack.c.b16 %v2839, %v2835
    %v2892 = vpack.c.b16 %v2840, %v2836
    %v2893 = vpack.c.b16 %v2841, %v2837
    %v2894 = vpack.c.b16 %v2846, %v2842
    %v2895 = vpack.c.b16 %v2847, %v2843
    %v2896 = vpack.c.b16 %v2848, %v2844
    %v2897 = vpack.c.b16 %v2849, %v2845
    %v2898 = vpack.c.b16 %v2854, %v2850
    %v2899 = vpack.c.b16 %v2855, %v2851
    %v2900 = vpack.c.b16 %v2856, %v2852
    %v2901 = vpack.c.b16 %v2857, %v2853
    %v2902 = vpack.c.b16 %v2862, %v2858
    %v2903 = vpack.c.b16 %v2863, %v2859
    %v2904 = vpack.c.b16 %v2864, %v2860
    %v2905 = vpack.c.b16 %v2865, %v2861
    %v2906 = vpack.c.b16 %v2870, %v2866
    %v2907 = vpack.c.b16 %v2871, %v2867
    %v2908 = vpack.c.b16 %v2872, %v2868
    %v2909 = vpack.c.b16 %v2873, %v2869
    %v2910 = vpack.c.b16 %v2878, %v2874
    %v2911 = vpack.c.b16 %v2879, %v2875
    %v2912 = vpack.c.b16 %v2880, %v2876
    %v2913 = vpack.c.b16 %v2881, %v2877
    %2946 = vmatprep.subr.bf16.mxu0 %v2883
    %2947 = vmatpush1.bf16.msra.mxu0 %v2882
    %2948 = vmatprep.subr.bf16.mxu0 %v2887
    %2949 = vmatpush1.bf16.msra.mxu0 %v2886
    %2950 = vmatprep.subr.bf16.mxu0 %v2891
    %2951 = vmatpush1.bf16.msra.mxu0 %v2890
    %2952 = vmatprep.subr.bf16.mxu0 %v2895
    %2953 = vmatpush1.bf16.msra.mxu0 %v2894
    %2954 = vmatprep.subr.bf16.mxu0 %v2899
    %2955 = vmatpush1.bf16.msra.mxu0 %v2898
    %2956 = vmatprep.subr.bf16.mxu0 %v2903
    %2957 = vmatpush1.bf16.msra.mxu0 %v2902
    %2958 = vmatprep.subr.bf16.mxu0 %v2907
    %2959 = vmatpush1.bf16.msra.mxu0 %v2906
    %2960 = vmatprep.subr.bf16.mxu0 %v2911
    %2961 = vmatpush1.bf16.msra.mxu0 %v2910
    %2962 = vmatprep.subr.bf16.mxu0 0
    %2963 = vmatpush1.bf16.msra.mxu0 0
    %2964 = vmatprep.subr.bf16.mxu0 0
    %2965 = vmatpush1.bf16.msra.mxu0 0
    %2966 = vmatprep.subr.bf16.mxu0 0
    %2967 = vmatpush1.bf16.msra.mxu0 0
    %2968 = vmatprep.subr.bf16.mxu0 0
    %2969 = vmatpush1.bf16.msra.mxu0 0
    %2970 = vmatprep.subr.bf16.mxu0 0
    %2971 = vmatpush1.bf16.msra.mxu0 0
    %2972 = vmatprep.subr.bf16.mxu0 0
    %2973 = vmatpush1.bf16.msra.mxu0 0
    %2974 = vmatprep.subr.bf16.mxu0 0
    %2975 = vmatpush1.bf16.msra.mxu0 0
    %2976 = vmatprep.subr.bf16.mxu0 0
    %2977 = vmatpush1.bf16.msra.mxu0 0
    %2978 = vmatprep.mubr.bf16.mxu0 0
    %2979 = vmatmul.mubr.bf16.gmra.mrb[0].mxu0 %v2753
    %v2980 = vpop.f32.mrb[0].mxu0
    %v2981 = vadd.f32 0.0, %v2980
    %v2982 = vpop.f32.mrb[0].mxu0
    %v2983 = vadd.f32 0.0, %v2982
    %v2984 = vpop.f32.mrb[0].mxu0
    %v2985 = vpop.f32.mrb[0].mxu0
    %2986 = vdwg.mxu0
    %2987 = vmatprep.subr.bf16.mxu0 %v2885
    %2988 = vmatpush1.bf16.msra.mxu0 %v2884
    %2989 = vmatprep.subr.bf16.mxu0 %v2889
    %2990 = vmatpush1.bf16.msra.mxu0 %v2888
    %2991 = vmatprep.subr.bf16.mxu0 %v2893
    %2992 = vmatpush1.bf16.msra.mxu0 %v2892
    %2993 = vmatprep.subr.bf16.mxu0 %v2897
    %2994 = vmatpush1.bf16.msra.mxu0 %v2896
    %2995 = vmatprep.subr.bf16.mxu0 %v2901
    %2996 = vmatpush1.bf16.msra.mxu0 %v2900
    %2997 = vmatprep.subr.bf16.mxu0 %v2905
    %2998 = vmatpush1.bf16.msra.mxu0 %v2904
    %2999 = vmatprep.subr.bf16.mxu0 %v2909
    %3000 = vmatpush1.bf16.msra.mxu0 %v2908
    %3001 = vmatprep.subr.bf16.mxu0 %v2913
    %3002 = vmatpush1.bf16.msra.mxu0 %v2912
    %3003 = vmatprep.subr.bf16.mxu0 0
    %3004 = vmatpush1.bf16.msra.mxu0 0
    %3005 = vmatprep.subr.bf16.mxu0 0
    %3006 = vmatpush1.bf16.msra.mxu0 0
    %3007 = vmatprep.subr.bf16.mxu0 0
    %3008 = vmatpush1.bf16.msra.mxu0 0
    %3009 = vmatprep.subr.bf16.mxu0 0
    %3010 = vmatpush1.bf16.msra.mxu0 0
    %3011 = vmatprep.subr.bf16.mxu0 0
    %3012 = vmatpush1.bf16.msra.mxu0 0
    %3013 = vmatprep.subr.bf16.mxu0 0
    %3014 = vmatpush1.bf16.msra.mxu0 0
    %3015 = vmatprep.subr.bf16.mxu0 0
    %3016 = vmatpush1.bf16.msra.mxu0 0
    %3017 = vmatprep.subr.bf16.mxu0 0
    %3018 = vmatpush1.bf16.msra.mxu0 0
    %3019 = vmatprep.mubr.bf16.mxu0 0
    %3020 = vmatmul.mubr.bf16.gmra.mrb[0].mxu0 %v2753
    %v3021 = vpop.f32.mrb[0].mxu0
    %v3022 = vadd.f32 0.0, %v3021
    %v3023 = vpop.f32.mrb[0].mxu0
    %v3024 = vadd.f32 0.0, %v3023
    %v3025 = vpop.f32.mrb[0].mxu0
    %v3026 = vpop.f32.mrb[0].mxu0
    %3027 = vdwg.mxu0
    %v3028 = vunpack.c.l.bf16 %v2751
    %v3029 = vunpack.c.h.bf16 %v2751
    %v3030 = vunpack.c.l.bf16 %v2752
    %v3031 = vunpack.c.h.bf16 %v2752
    %v3032 = vadd.f32 %v3028, %v2981
    %v3033 = vadd.f32 %v3029, %v2983
    %v3034 = vadd.f32 %v3030, %v3022
    %v3035 = vadd.f32 %v3031, %v3024
    %v3036 = vmul.f32 %v3032, 0.5
    %v3037 = vtanh.pop %v3036
    %v3038 = vmul.f32 %v3037, 0.5
    %v3039 = vadd.f32 %v3038, 0.5
    %v3040 = vmul.f32 %v3033, 0.5
    %v3041 = vtanh.pop %v3040
    %v3042 = vmul.f32 %v3041, 0.5
    %v3043 = vadd.f32 %v3042, 0.5
    %v3044 = vtanh.pop %v3034
    %v3045 = vmul.f32 %v3035, 0.5
    %v3046 = vtanh.pop %v3045
    %v3047 = vmul.f32 %v3046, 0.5
    %v3048 = vadd.f32 %v3047, 0.5
    %v3049 = vmul.f32 %v3043, %v2745
    %v3050 = vmul.f32 %v3039, %v3044
    %v3051 = vadd.f32 %v3049, %v3050
    %v3052 = vtanh.pop %v3051
    %v3053 = vmul.f32 %v3048, %v3052
    %s3054 = scalar_lea.vmem [#allocation14], 56
    %3055 = vst [vmem:[%s3054] sm:$0xff] %v3053
    %3056 = vst [vmem:[#allocation2] sm:$0xff] %v3053
    %3057 = vst [vmem:[#allocation3] sm:$0xff] %v3051
    %s3058 = smul.u32 0, 8
    %v3059 = vstv %s3058
    %v3060 = vadd.s32 %v3059, 1
    %v3061 = vadd.s32 %v3059, 2
    %v3062 = vadd.s32 %v3059, 3
    %v3063 = vadd.s32 %v3059, 4
    %v3064 = vadd.s32 %v3059, 5
    %v3065 = vadd.s32 %v3059, 6
    %v3066 = vadd.s32 %v3059, 7
    %v3067 = vld [vmem:[#allocation8] sm:$0xff]
    %vm3068 = vcmp.lt.s32.totalorder %v3059, %v3067
    %vm3069 = vcmp.lt.s32.totalorder %v3060, %v3067
    %vm3070 = vcmp.lt.s32.totalorder %v3061, %v3067
    %vm3071 = vcmp.lt.s32.totalorder %v3062, %v3067
    %vm3072 = vcmp.lt.s32.totalorder %v3063, %v3067
    %vm3073 = vcmp.lt.s32.totalorder %v3064, %v3067
    %vm3074 = vcmp.lt.s32.totalorder %v3065, %v3067
    %vm3075 = vcmp.lt.s32.totalorder %v3066, %v3067
    %v3076 = vsel %vm3068, 1, 0
    %v3077 = vsel %vm3069, 1, 0
    %v3078 = vsel %vm3070, 1, 0
    %v3079 = vsel %vm3071, 1, 0
    %v3080 = vsel %vm3072, 1, 0
    %v3081 = vsel %vm3073, 1, 0
    %v3082 = vsel %vm3074, 1, 0
    %v3083 = vsel %vm3075, 1, 0
    %v3084 = vcvt.s32.f32 %v3076
    %v3085 = vcvt.s32.f32 %v3077
    %v3086 = vcvt.s32.f32 %v3078
    %v3087 = vcvt.s32.f32 %v3079
    %v3088 = vcvt.s32.f32 %v3080
    %v3089 = vcvt.s32.f32 %v3081
    %v3090 = vcvt.s32.f32 %v3082
    %v3091 = vcvt.s32.f32 %v3083
    %v3092 = vld [vmem:[#allocation14] sm:$0xff]
    %v3093 = vld [vmem:[#allocation14 + $0x8] sm:$0xff]
    %v3094 = vld [vmem:[#allocation14 + $0x10] sm:$0xff]
    %v3095 = vld [vmem:[#allocation14 + $0x18] sm:$0xff]
    %v3096 = vld [vmem:[#allocation14 + $0x20] sm:$0xff]
    %v3097 = vld [vmem:[#allocation14 + $0x28] sm:$0xff]
    %v3098 = vld [vmem:[#allocation14 + $0x30] sm:$0xff]
    %v3099 = vld [vmem:[#allocation14 + $0x38] sm:$0xff]
    %3101 = vset.pattern.permute.xlu0 0
    %3102 = vperm.xlu0 %3101, %v3084
    %v3103 = vpop.permute.xlu0 %3102
    %3106 = vset.pattern.permute.xlu0 0
    %3107 = vperm.xlu0 %3106, %v3085
    %v3108 = vpop.permute.xlu0 %3107
    %3111 = vset.pattern.permute.xlu0 0
    %3112 = vperm.xlu0 %3111, %v3086
    %v3113 = vpop.permute.xlu0 %3112
    %3116 = vset.pattern.permute.xlu0 0
    %3117 = vperm.xlu0 %3116, %v3087
    %v3118 = vpop.permute.xlu0 %3117
    %3121 = vset.pattern.permute.xlu0 0
    %3122 = vperm.xlu0 %3121, %v3088
    %v3123 = vpop.permute.xlu0 %3122
    %3126 = vset.pattern.permute.xlu0 0
    %3127 = vperm.xlu0 %3126, %v3089
    %v3128 = vpop.permute.xlu0 %3127
    %3131 = vset.pattern.permute.xlu0 0
    %3132 = vperm.xlu0 %3131, %v3090
    %v3133 = vpop.permute.xlu0 %3132
    %3136 = vset.pattern.permute.xlu0 0
    %3137 = vperm.xlu0 %3136, %v3091
    %v3138 = vpop.permute.xlu0 %3137
    %v3140 = vmul.f32 %v3092, %v3103
    %v3141 = vmul.f32 %v3093, %v3108
    %v3142 = vmul.f32 %v3094, %v3113
    %v3143 = vmul.f32 %v3095, %v3118
    %v3144 = vmul.f32 %v3096, %v3123
    %v3145 = vmul.f32 %v3097, %v3128
    %v3146 = vmul.f32 %v3098, %v3133
    %v3147 = vmul.f32 %v3099, %v3138
    %3148 = vst [vmem:[#allocation14] sm:$0xff] %v3140
    %3149 = vst [vmem:[#allocation14 + $0x8] sm:$0xff] %v3141
    %3150 = vst [vmem:[#allocation14 + $0x10] sm:$0xff] %v3142
    %3151 = vst [vmem:[#allocation14 + $0x18] sm:$0xff] %v3143
    %3152 = vst [vmem:[#allocation14 + $0x20] sm:$0xff] %v3144
    %3153 = vst [vmem:[#allocation14 + $0x28] sm:$0xff] %v3145
    %3154 = vst [vmem:[#allocation14 + $0x30] sm:$0xff] %v3146
    %3155 = vst [vmem:[#allocation14 + $0x38] sm:$0xff] %v3147
    // Predicated region
    $region46: #{tpu_custom_call.1} parent=1 // pred_check
      _
    $region47: #{tpu_custom_call.1} parent=1 // pred_check_branch
      %3157 = sbr.rel (0) target = $region49
    $region48: #{tpu_custom_call.1} parent=1 // pred_region
      %s3159 = ssub.s32 1024, 1024
      %3160 = vsyncadd [#allocation7], %s3159
      %s3161 = sshll.u32 [#allocation14], 4
      %s3162 = int_to_ptr.vmem [resolvable:$true] %s3161
      %3167 = dma.vmem_to_hbm [thread:$0]  %s3162, 1024, %s5, [#allocation7], 128, 128, 8
    $region49: #{tpu_custom_call.1} parent=1 // pred_fallthru
      _
    // Predicated region
    $region50: #{tpu_custom_call.1} parent=1 // pred_check
      _
    $region51: #{tpu_custom_call.1} parent=1 // pred_check_branch
      %3169 = sbr.rel (0) target = $region53
    $region52: #{tpu_custom_call.1} parent=1 // pred_region
      %3170 = dma.done [#allocation7], 1024
    $region53: #{tpu_custom_call.1} parent=1 // pred_fallthru
      _
    %3171 = vsyncpa [#allocation6], 1
    %3172 = vsyncpa [#allocation9], 1
    %3173 = vsyncpa [#allocation12], 1
    %3174 = vsyncpa [#allocation7], 1

// kernel: tpu_custom_call.1
$region0: #{tpu_custom_call.1}
  #allocation0 [shape = 'u32[]', space=smem, size = 0x4, offset = 0x4, fixed_abs, tag = 'smem constant byte address 0x4 - core index']
  #allocation1 [shape = 'u32[144,128]{1,0:T(1,128)}', space=vmem, size = 0x12000, scoped, tag = 'internal scratch']
  #allocation2 [shape = 'f32[8,128]{1,0:T(8,128)}', space=vmem, size = 0x1000, scoped, tag = 'scratch operand']
  #allocation3 [shape = 'f32[8,128]{1,0:T(8,128)}', space=vmem, size = 0x1000, scoped, tag = 'scratch operand']
  #allocation4 [shape = 'bf16[8,8,512]{2,1,0:T(8,128)(2,1)}', space=vmem, size = 0x10000, scoped, tag = 'scratch operand']
  %s0 = inlined_call_operand.hbm [shape: f32[8,8,128], index: 0, kind: input, shape index: {}]
  %s1 = inlined_call_operand.hbm [shape: s32[8,1], index: 1, kind: input, shape index: {}]
  %s2 = inlined_call_operand.hbm [shape: bf16[128,512], index: 2, kind: input, shape index: {}]
  %s3 = inlined_call_operand.hbm [shape: bf16[128,512], index: 3, kind: input, shape index: {}]
  %s4 = inlined_call_operand.hbm [shape: f32[1,512], index: 4, kind: input, shape index: {}]
  %s5 = inlined_call_operand.hbm [shape: f32[8,8,128], index: 5, kind: output, shape index: {}]
  %s6 = sld [smem:[#allocation0]]
  $region54: #{tpu_custom_call.1} parent=0
    _
  %s8 = ssub.s32 1, %s6
  %s9 = scalar_select 0, %s8, %s6
  $region1: #{tpu_custom_call.1} parent=0
    #allocation5 [shape = 'u8[32768]{0}', space=vmem, size = 0x8000, scoped, tag = 'input window, operand 0, single buffered']
    #allocation6 [shape = 's32[1]{0}', space=sflag, size = 0x4, scoped, tag = 'scoped memory for tpu_custom_call.1']
    #allocation7 [shape = 's32[1]{0}', space=sflag, size = 0x4, scoped, tag = 'scoped memory for tpu_custom_call.1']
    #allocation8 [shape = 'u8[4096]{0}', space=vmem, size = 0x1000, scoped, tag = 'input window, operand 1, single buffered']
    #allocation9 [shape = 's32[1]{0}', space=sflag, size = 0x4, scoped, tag = 'scoped memory for tpu_custom_call.1']
    #allocation10 [shape = 'u8[131072]{0}', space=vmem, size = 0x20000, scoped, tag = 'input window, operand 2, single buffered']
    #allocation11 [shape = 'u8[131072]{0}', space=vmem, size = 0x20000, scoped, tag = 'input window, operand 3, single buffered']
    #allocation12 [shape = 's32[1]{0}', space=sflag, size = 0x4, scoped, tag = 'scoped memory for tpu_custom_call.1']
    #allocation13 [shape = 'u8[2048]{0}', space=vmem, size = 0x800, scoped, tag = 'input window, operand 4, single buffered']
    #allocation14 [shape = 'u8[32768]{0}', space=vmem, size = 0x8000, scoped, tag = 'output window, operand 0, single buffered']
    %10 = vsyncpa [#allocation6], 0
    %11 = vsyncpa [#allocation9], 0
    %12 = vsyncpa [#allocation12], 0
    %13 = vsyncpa [#allocation7], 0
    // Predicated region
    $region2: #{tpu_custom_call.1} parent=1 // pred_check
      _
    $region3: #{tpu_custom_call.1} parent=1 // pred_check_branch
      %15 = sbr.rel (0) target = $region5
    $region4: #{tpu_custom_call.1} parent=1 // pred_region
      %s17 = ssub.s32 1024, 1024
      %18 = vsyncadd [#allocation6], %s17
      %s19 = sshll.u32 [#allocation5], 4
      %s20 = int_to_ptr.vmem [resolvable:$true] %s19
      %25 = dma.hbm_to_vmem [thread:$0]  %s0, 1024, %s20, [#allocation6], 128, 128, 8
    $region5: #{tpu_custom_call.1} parent=1 // pred_fallthru
      _
    // Predicated region
    $region6: #{tpu_custom_call.1} parent=1 // pred_check
      _
    $region7: #{tpu_custom_call.1} parent=1 // pred_check_branch
      %27 = sbr.rel (0) target = $region9
    $region8: #{tpu_custom_call.1} parent=1 // pred_region
      %s29 = ssub.s32 128, 128
      %30 = vsyncadd [#allocation9], %s29
      %s32 = sshll.u32 [#allocation8], 4
      %s33 = int_to_ptr.vmem [resolvable:$true] %s32
      %35 = dma.hbm_to_vmem [thread:$0]  %s1, 128, %s33, [#allocation9]
    $region9: #{tpu_custom_call.1} parent=1 // pred_fallthru
      _
    // Predicated region
    $region10: #{tpu_custom_call.1} parent=1 // pred_check
      _
    $region11: #{tpu_custom_call.1} parent=1 // pred_check_branch
      %37 = sbr.rel (0) target = $region13
    $region12: #{tpu_custom_call.1} parent=1 // pred_region
      %s39 = ssub.s32 4096, 4096
      %40 = vsyncadd [#allocation9], %s39
      %s41 = sshll.u32 [#allocation10], 4
      %s42 = int_to_ptr.vmem [resolvable:$true] %s41
      %47 = dma.hbm_to_vmem [thread:$0]  %s2, 4096, %s42, [#allocation9], 256, 256, 16
    $region13: #{tpu_custom_call.1} parent=1 // pred_fallthru
      _
    // Predicated region
    $region14: #{tpu_custom_call.1} parent=1 // pred_check
      _
    $region15: #{tpu_custom_call.1} parent=1 // pred_check_branch
      %49 = sbr.rel (0) target = $region17
    $region16: #{tpu_custom_call.1} parent=1 // pred_region
      %s51 = ssub.s32 4096, 4096
      %52 = vsyncadd [#allocation12], %s51
      %s53 = sshll.u32 [#allocation11], 4
      %s54 = int_to_ptr.vmem [resolvable:$true] %s53
      %59 = dma.hbm_to_vmem [thread:$0]  %s3, 4096, %s54, [#allocation12], 256, 256, 16
    $region17: #{tpu_custom_call.1} parent=1 // pred_fallthru
      _
    // Predicated region
    $region18: #{tpu_custom_call.1} parent=1 // pred_check
      _
    $region19: #{tpu_custom_call.1} parent=1 // pred_check_branch
      %61 = sbr.rel (0) target = $region21
    $region20: #{tpu_custom_call.1} parent=1 // pred_region
      %s63 = ssub.s32 64, 64
      %64 = vsyncadd [#allocation12], %s63
      %s66 = sshll.u32 [#allocation13], 4
      %s67 = int_to_ptr.vmem [resolvable:$true] %s66
      %69 = dma.hbm_to_vmem [thread:$0]  %s4, 64, %s67, [#allocation12]
    $region21: #{tpu_custom_call.1} parent=1 // pred_fallthru
      _
    // Predicated region
    $region22: #{tpu_custom_call.1} parent=1 // pred_check
      _
    $region23: #{tpu_custom_call.1} parent=1 // pred_check_branch
      %71 = sbr.rel (0) target = $region25
    $region24: #{tpu_custom_call.1} parent=1 // pred_region
      %72 = dma.done [#allocation6], 1024
    $region25: #{tpu_custom_call.1} parent=1 // pred_fallthru
      _
    // Predicated region
    $region26: #{tpu_custom_call.1} parent=1 // pred_check
      _
    $region27: #{tpu_custom_call.1} parent=1 // pred_check_branch
      %74 = sbr.rel (0) target = $region29
    $region28: #{tpu_custom_call.1} parent=1 // pred_region
      %75 = dma.done [#allocation9], 128
    $region29: #{tpu_custom_call.1} parent=1 // pred_fallthru
      _
    // Predicated region
    $region30: #{tpu_custom_call.1} parent=1 // pred_check
      _
    $region31: #{tpu_custom_call.1} parent=1 // pred_check_branch
      %77 = sbr.rel (0) target = $region33
    $region32: #{tpu_custom_call.1} parent=1 // pred_region
      %78 = dma.done [#allocation9], 4096
    $region33: #{tpu_custom_call.1} parent=1 // pred_fallthru
      _
    // Predicated region
    $region34: #{tpu_custom_call.1} parent=1 // pred_check
      _
    $region35: #{tpu_custom_call.1} parent=1 // pred_check_branch
      %80 = sbr.rel (0) target = $region37
    $region36: #{tpu_custom_call.1} parent=1 // pred_region
      %81 = dma.done [#allocation12], 4096
    $region37: #{tpu_custom_call.1} parent=1 // pred_fallthru
      _
    // Predicated region
    $region38: #{tpu_custom_call.1} parent=1 // pred_check
      _
    $region39: #{tpu_custom_call.1} parent=1 // pred_check_branch
      %83 = sbr.rel (0) target = $region41
    $region40: #{tpu_custom_call.1} parent=1 // pred_region
      %84 = dma.done [#allocation12], 64
    $region41: #{tpu_custom_call.1} parent=1 // pred_fallthru
      _
    %p86 = scmp.eq.s32.totalorder 0, 0
    // Predicated region
    $region42: #{tpu_custom_call.1} parent=1 // pred_check
      %p87 = pneg %p86
    $region43: #{tpu_custom_call.1} parent=1 // pred_check_branch
      %89 = sbr.rel (%p87) target = $region45
    $region44: #{tpu_custom_call.1} parent=1 // pred_region
      %90 = vst [vmem:[#allocation2] sm:$0xff] 0.0
      %91 = vst [vmem:[#allocation3] sm:$0xff] 0.0
    $region45: #{tpu_custom_call.1} parent=1 // pred_fallthru
      _
    %v92 = vld [vmem:[#allocation5] sm:$0xff]
    %v93 = vld [vmem:[#allocation5 + $0x8] sm:$0xff]
    %v94 = vld [vmem:[#allocation5 + $0x10] sm:$0xff]
    %v95 = vld [vmem:[#allocation5 + $0x18] sm:$0xff]
    %v96 = vld [vmem:[#allocation5 + $0x20] sm:$0xff]
    %v97 = vld [vmem:[#allocation5 + $0x28] sm:$0xff]
    %v98 = vld [vmem:[#allocation5 + $0x30] sm:$0xff]
    %v99 = vld [vmem:[#allocation5 + $0x38] sm:$0xff]
    %v100 = vpack.c.bf16 %v93, %v92
    %v101 = vpack.c.bf16 %v95, %v94
    %v102 = vpack.c.bf16 %v97, %v96
    %v103 = vpack.c.bf16 %v99, %v98
    %v104 = vld [vmem:[#allocation10] sm:$0xff]
    %v105 = vld [vmem:[#allocation10 + $0x8] sm:$0xff]
    %v106 = vld [vmem:[#allocation10 + $0x10] sm:$0xff]
    %v107 = vld [vmem:[#allocation10 + $0x18] sm:$0xff]
    %v108 = vld [vmem:[#allocation10 + $0x20] sm:$0xff]
    %v109 = vld [vmem:[#allocation10 + $0x28] sm:$0xff]
    %v110 = vld [vmem:[#allocation10 + $0x30] sm:$0xff]
    %v111 = vld [vmem:[#allocation10 + $0x38] sm:$0xff]
    %v112 = vld [vmem:[#allocation10 + $0x40] sm:$0xff]
    %v113 = vld [vmem:[#allocation10 + $0x48] sm:$0xff]
    %v114 = vld [vmem:[#allocation10 + $0x50] sm:$0xff]
    %v115 = vld [vmem:[#allocation10 + $0x58] sm:$0xff]
    %v116 = vld [vmem:[#allocation10 + $0x60] sm:$0xff]
    %v117 = vld [vmem:[#allocation10 + $0x68] sm:$0xff]
    %v118 = vld [vmem:[#allocation10 + $0x70] sm:$0xff]
    %v119 = vld [vmem:[#allocation10 + $0x78] sm:$0xff]
    %v120 = vld [vmem:[#allocation10 + $0x80] sm:$0xff]
    %v121 = vld [vmem:[#allocation10 + $0x88] sm:$0xff]
    %v122 = vld [vmem:[#allocation10 + $0x90] sm:$0xff]
    %v123 = vld [vmem:[#allocation10 + $0x98] sm:$0xff]
    %v124 = vld [vmem:[#allocation10 + $0xa0] sm:$0xff]
    %v125 = vld [vmem:[#allocation10 + $0xa8] sm:$0xff]
    %v126 = vld [vmem:[#allocation10 + $0xb0] sm:$0xff]
    %v127 = vld [vmem:[#allocation10 + $0xb8] sm:$0xff]
    %v128 = vld [vmem:[#allocation10 + $0xc0] sm:$0xff]
    %v129 = vld [vmem:[#allocation10 + $0xc8] sm:$0xff]
    %v130 = vld [vmem:[#allocation10 + $0xd0] sm:$0xff]
    %v131 = vld [vmem:[#allocation10 + $0xd8] sm:$0xff]
    %v132 = vld [vmem:[#allocation10 + $0xe0] sm:$0xff]
    %v133 = vld [vmem:[#allocation10 + $0xe8] sm:$0xff]
    %v134 = vld [vmem:[#allocation10 + $0xf0] sm:$0xff]
    %v135 = vld [vmem:[#allocation10 + $0xf8] sm:$0xff]
    %v136 = vld [vmem:[#allocation13] sm:$0xf]
    %v138 = vlaneseq
    %v139 = vshrl.u32 %v138, 7
    %v140 = vsub.s32 0, %v139
    %v141 = vrot.slane %v136, %v140
    %v142 = vlaneseq
    %v143 = vshrl.u32 %v142, 7
    %v144 = vsub.s32 1, %v143
    %v145 = vrot.slane %v136, %v144
    %v146 = vlaneseq
    %v147 = vshrl.u32 %v146, 7
    %v148 = vsub.s32 2, %v147
    %v149 = vrot.slane %v136, %v148
    %v150 = vlaneseq
    %v151 = vshrl.u32 %v150, 7
    %v152 = vsub.s32 3, %v151
    %v153 = vrot.slane %v136, %v152
    %v190 = vunpack.c.l.b16 %v104
    %v191 = vunpack.c.h.b16 %v104
    %v192 = vunpack.c.l.b16 %v105
    %v193 = vunpack.c.h.b16 %v105
    %v194 = vunpack.c.l.b16 %v106
    %v195 = vunpack.c.h.b16 %v106
    %v196 = vunpack.c.l.b16 %v107
    %v197 = vunpack.c.h.b16 %v107
    %v198 = vunpack.c.l.b16 %v108
    %v199 = vunpack.c.h.b16 %v108
    %v200 = vunpack.c.l.b16 %v109
    %v201 = vunpack.c.h.b16 %v109
    %v202 = vunpack.c.l.b16 %v110
    %v203 = vunpack.c.h.b16 %v110
    %v204 = vunpack.c.l.b16 %v111
    %v205 = vunpack.c.h.b16 %v111
    %v206 = vunpack.c.l.b16 %v112
    %v207 = vunpack.c.h.b16 %v112
    %v208 = vunpack.c.l.b16 %v113
    %v209 = vunpack.c.h.b16 %v113
    %v210 = vunpack.c.l.b16 %v114
    %v211 = vunpack.c.h.b16 %v114
    %v212 = vunpack.c.l.b16 %v115
    %v213 = vunpack.c.h.b16 %v115
    %v214 = vunpack.c.l.b16 %v116
    %v215 = vunpack.c.h.b16 %v116
    %v216 = vunpack.c.l.b16 %v117
    %v217 = vunpack.c.h.b16 %v117
    %v218 = vunpack.c.l.b16 %v118
    %v219 = vunpack.c.h.b16 %v118
    %v220 = vunpack.c.l.b16 %v119
    %v221 = vunpack.c.h.b16 %v119
    %v222 = vunpack.c.l.b16 %v120
    %v223 = vunpack.c.h.b16 %v120
    %v224 = vunpack.c.l.b16 %v121
    %v225 = vunpack.c.h.b16 %v121
    %v226 = vunpack.c.l.b16 %v122
    %v227 = vunpack.c.h.b16 %v122
    %v228 = vunpack.c.l.b16 %v123
    %v229 = vunpack.c.h.b16 %v123
    %v230 = vunpack.c.l.b16 %v124
    %v231 = vunpack.c.h.b16 %v124
    %v232 = vunpack.c.l.b16 %v125
    %v233 = vunpack.c.h.b16 %v125
    %v234 = vunpack.c.l.b16 %v126
    %v235 = vunpack.c.h.b16 %v126
    %v236 = vunpack.c.l.b16 %v127
    %v237 = vunpack.c.h.b16 %v127
    %v238 = vunpack.c.l.b16 %v128
    %v239 = vunpack.c.h.b16 %v128
    %v240 = vunpack.c.l.b16 %v129
    %v241 = vunpack.c.h.b16 %v129
    %v242 = vunpack.c.l.b16 %v130
    %v243 = vunpack.c.h.b16 %v130
    %v244 = vunpack.c.l.b16 %v131
    %v245 = vunpack.c.h.b16 %v131
    %v246 = vunpack.c.l.b16 %v132
    %v247 = vunpack.c.h.b16 %v132
    %v248 = vunpack.c.l.b16 %v133
    %v249 = vunpack.c.h.b16 %v133
    %v250 = vunpack.c.l.b16 %v134
    %v251 = vunpack.c.h.b16 %v134
    %v252 = vunpack.c.l.b16 %v135
    %v253 = vunpack.c.h.b16 %v135
    %v254 = vpack.c.b16 %v194, %v190
    %v255 = vpack.c.b16 %v195, %v191
    %v256 = vpack.c.b16 %v196, %v192
    %v257 = vpack.c.b16 %v197, %v193
    %v258 = vpack.c.b16 %v202, %v198
    %v259 = vpack.c.b16 %v203, %v199
    %v260 = vpack.c.b16 %v204, %v200
    %v261 = vpack.c.b16 %v205, %v201
    %v262 = vpack.c.b16 %v210, %v206
    %v263 = vpack.c.b16 %v211, %v207
    %v264 = vpack.c.b16 %v212, %v208
    %v265 = vpack.c.b16 %v213, %v209
    %v266 = vpack.c.b16 %v218, %v214
    %v267 = vpack.c.b16 %v219, %v215
    %v268 = vpack.c.b16 %v220, %v216
    %v269 = vpack.c.b16 %v221, %v217
    %v270 = vpack.c.b16 %v226, %v222
    %v271 = vpack.c.b16 %v227, %v223
    %v272 = vpack.c.b16 %v228, %v224
    %v273 = vpack.c.b16 %v229, %v225
    %v274 = vpack.c.b16 %v234, %v230
    %v275 = vpack.c.b16 %v235, %v231
    %v276 = vpack.c.b16 %v236, %v232
    %v277 = vpack.c.b16 %v237, %v233
    %v278 = vpack.c.b16 %v242, %v238
    %v279 = vpack.c.b16 %v243, %v239
    %v280 = vpack.c.b16 %v244, %v240
    %v281 = vpack.c.b16 %v245, %v241
    %v282 = vpack.c.b16 %v250, %v246
    %v283 = vpack.c.b16 %v251, %v247
    %v284 = vpack.c.b16 %v252, %v248
    %v285 = vpack.c.b16 %v253, %v249
    %318 = vmatprep.subr.bf16.mxu0 %v255
    %319 = vmatpush1.bf16.msra.mxu0 %v254
    %320 = vmatprep.subr.bf16.mxu0 %v259
    %321 = vmatpush1.bf16.msra.mxu0 %v258
    %322 = vmatprep.subr.bf16.mxu0 %v263
    %323 = vmatpush1.bf16.msra.mxu0 %v262
    %324 = vmatprep.subr.bf16.mxu0 %v267
    %325 = vmatpush1.bf16.msra.mxu0 %v266
    %326 = vmatprep.subr.bf16.mxu0 %v271
    %327 = vmatpush1.bf16.msra.mxu0 %v270
    %328 = vmatprep.subr.bf16.mxu0 %v275
    %329 = vmatpush1.bf16.msra.mxu0 %v274
    %330 = vmatprep.subr.bf16.mxu0 %v279
    %331 = vmatpush1.bf16.msra.mxu0 %v278
    %332 = vmatprep.subr.bf16.mxu0 %v283
    %333 = vmatpush1.bf16.msra.mxu0 %v282
    %334 = vmatprep.subr.bf16.mxu0 0
    %335 = vmatpush1.bf16.msra.mxu0 0
    %336 = vmatprep.subr.bf16.mxu0 0
    %337 = vmatpush1.bf16.msra.mxu0 0
    %338 = vmatprep.subr.bf16.mxu0 0
    %339 = vmatpush1.bf16.msra.mxu0 0
    %340 = vmatprep.subr.bf16.mxu0 0
    %341 = vmatpush1.bf16.msra.mxu0 0
    %342 = vmatprep.subr.bf16.mxu0 0
    %343 = vmatpush1.bf16.msra.mxu0 0
    %344 = vmatprep.subr.bf16.mxu0 0
    %345 = vmatpush1.bf16.msra.mxu0 0
    %346 = vmatprep.subr.bf16.mxu0 0
    %347 = vmatpush1.bf16.msra.mxu0 0
    %348 = vmatprep.subr.bf16.mxu0 0
    %349 = vmatpush1.bf16.msra.mxu0 0
    %350 = vmatprep.mubr.bf16.mxu0 0
    %351 = vmatmul.mubr.bf16.gmra.mrb[0].mxu0 %v100
    %v352 = vpop.f32.mrb[0].mxu0
    %v353 = vadd.f32 %v141, %v352
    %v354 = vpop.f32.mrb[0].mxu0
    %v355 = vadd.f32 %v145, %v354
    %v356 = vpop.f32.mrb[0].mxu0
    %v357 = vadd.f32 %v141, %v356
    %v358 = vpop.f32.mrb[0].mxu0
    %v359 = vadd.f32 %v145, %v358
    %360 = vmatprep.mubr.bf16.mxu0 0
    %361 = vmatmul.mubr.bf16.gmra.mrb[0].mxu0 %v101
    %v362 = vpop.f32.mrb[0].mxu0
    %v363 = vadd.f32 %v141, %v362
    %v364 = vpop.f32.mrb[0].mxu0
    %v365 = vadd.f32 %v145, %v364
    %v366 = vpop.f32.mrb[0].mxu0
    %v367 = vadd.f32 %v141, %v366
    %v368 = vpop.f32.mrb[0].mxu0
    %v369 = vadd.f32 %v145, %v368
    %370 = vmatprep.mubr.bf16.mxu0 0
    %371 = vmatmul.mubr.bf16.gmra.mrb[0].mxu0 %v102
    %v372 = vpop.f32.mrb[0].mxu0
    %v373 = vadd.f32 %v141, %v372
    %v374 = vpop.f32.mrb[0].mxu0
    %v375 = vadd.f32 %v145, %v374
    %v376 = vpop.f32.mrb[0].mxu0
    %v377 = vadd.f32 %v141, %v376
    %v378 = vpop.f32.mrb[0].mxu0
    %v379 = vadd.f32 %v145, %v378
    %380 = vmatprep.mubr.bf16.mxu0 0
    %381 = vmatmul.mubr.bf16.gmra.mrb[0].mxu0 %v103
    %v382 = vpop.f32.mrb[0].mxu0
    %v383 = vadd.f32 %v141, %v382
    %v384 = vpop.f32.mrb[0].mxu0
    %v385 = vadd.f32 %v145, %v384
    %v386 = vpop.f32.mrb[0].mxu0
    %v387 = vadd.f32 %v141, %v386
    %v388 = vpop.f32.mrb[0].mxu0
    %v389 = vadd.f32 %v145, %v388
    %390 = vdwg.mxu0
    %391 = vmatprep.subr.bf16.mxu0 %v257
    %392 = vmatpush1.bf16.msra.mxu0 %v256
    %393 = vmatprep.subr.bf16.mxu0 %v261
    %394 = vmatpush1.bf16.msra.mxu0 %v260
    %395 = vmatprep.subr.bf16.mxu0 %v265
    %396 = vmatpush1.bf16.msra.mxu0 %v264
    %397 = vmatprep.subr.bf16.mxu0 %v269
    %398 = vmatpush1.bf16.msra.mxu0 %v268
    %399 = vmatprep.subr.bf16.mxu0 %v273
    %400 = vmatpush1.bf16.msra.mxu0 %v272
    %401 = vmatprep.subr.bf16.mxu0 %v277
    %402 = vmatpush1.bf16.msra.mxu0 %v276
    %403 = vmatprep.subr.bf16.mxu0 %v281
    %404 = vmatpush1.bf16.msra.mxu0 %v280
    %405 = vmatprep.subr.bf16.mxu0 %v285
    %406 = vmatpush1.bf16.msra.mxu0 %v284
    %407 = vmatprep.subr.bf16.mxu0 0
    %408 = vmatpush1.bf16.msra.mxu0 0
    %409 = vmatprep.subr.bf16.mxu0 0
    %410 = vmatpush1.bf16.msra.mxu0 0
    %411 = vmatprep.subr.bf16.mxu0 0
    %412 = vmatpush1.bf16.msra.mxu0 0
    %413 = vmatprep.subr.bf16.mxu0 0
    %414 = vmatpush1.bf16.msra.mxu0 0
    %415 = vmatprep.subr.bf16.mxu0 0
    %416 = vmatpush1.bf16.msra.mxu0 0
    %417 = vmatprep.subr.bf16.mxu0 0
    %418 = vmatpush1.bf16.msra.mxu0 0
    %419 = vmatprep.subr.bf16.mxu0 0
    %420 = vmatpush1.bf16.msra.mxu0 0
    %421 = vmatprep.subr.bf16.mxu0 0
    %422 = vmatpush1.bf16.msra.mxu0 0
    %423 = vmatprep.mubr.bf16.mxu0 0
    %424 = vmatmul.mubr.bf16.gmra.mrb[0].mxu0 %v100
    %v425 = vpop.f32.mrb[0].mxu0
    %v426 = vadd.f32 %v149, %v425
    %v427 = vpop.f32.mrb[0].mxu0
    %v428 = vadd.f32 %v153, %v427
    %v429 = vpop.f32.mrb[0].mxu0
    %v430 = vadd.f32 %v149, %v429
    %v431 = vpop.f32.mrb[0].mxu0
    %v432 = vadd.f32 %v153, %v431
    %433 = vmatprep.mubr.bf16.mxu0 0
    %434 = vmatmul.mubr.bf16.gmra.mrb[0].mxu0 %v101
    %v435 = vpop.f32.mrb[0].mxu0
    %v436 = vadd.f32 %v149, %v435
    %v437 = vpop.f32.mrb[0].mxu0
    %v438 = vadd.f32 %v153, %v437
    %v439 = vpop.f32.mrb[0].mxu0
    %v440 = vadd.f32 %v149, %v439
    %v441 = vpop.f32.mrb[0].mxu0
    %v442 = vadd.f32 %v153, %v441
    %443 = vmatprep.mubr.bf16.mxu0 0
    %444 = vmatmul.mubr.bf16.gmra.mrb[0].mxu0 %v102
    %v445 = vpop.f32.mrb[0].mxu0
    %v446 = vadd.f32 %v149, %v445
    %v447 = vpop.f32.mrb[0].mxu0
    %v448 = vadd.f32 %v153, %v447
    %v449 = vpop.f32.mrb[0].mxu0
    %v450 = vadd.f32 %v149, %v449
    %v451 = vpop.f32.mrb[0].mxu0
    %v452 = vadd.f32 %v153, %v451
    %453 = vmatprep.mubr.bf16.mxu0 0
    %454 = vmatmul.mubr.bf16.gmra.mrb[0].mxu0 %v103
    %v455 = vpop.f32.mrb[0].mxu0
    %v456 = vadd.f32 %v149, %v455
    %v457 = vpop.f32.mrb[0].mxu0
    %v458 = vadd.f32 %v153, %v457
    %v459 = vpop.f32.mrb[0].mxu0
    %v460 = vadd.f32 %v149, %v459
    %v461 = vpop.f32.mrb[0].mxu0
    %v462 = vadd.f32 %v153, %v461
    %463 = vdwg.mxu0
    %v464 = vpack.c.bf16 %v353, %v353
    %v465 = vpack.c.bf16 %v355, %v355
    %v466 = vpack.c.bf16 %v426, %v426
    %v467 = vpack.c.bf16 %v428, %v428
    %v468 = vpack.c.bf16 %v357, %v357
    %v469 = vpack.c.bf16 %v359, %v359
    %v470 = vpack.c.bf16 %v430, %v430
    %v471 = vpack.c.bf16 %v432, %v432
    %v472 = vpack.c.bf16 %v363, %v363
    %v473 = vpack.c.bf16 %v365, %v365
    %v474 = vpack.c.bf16 %v436, %v436
    %v475 = vpack.c.bf16 %v438, %v438
    %v476 = vpack.c.bf16 %v367, %v367
    %v477 = vpack.c.bf16 %v369, %v369
    %v478 = vpack.c.bf16 %v440, %v440
    %v479 = vpack.c.bf16 %v442, %v442
    %v480 = vpack.c.bf16 %v373, %v373
    %v481 = vpack.c.bf16 %v375, %v375
    %v482 = vpack.c.bf16 %v446, %v446
    %v483 = vpack.c.bf16 %v448, %v448
    %v484 = vpack.c.bf16 %v377, %v377
    %v485 = vpack.c.bf16 %v379, %v379
    %v486 = vpack.c.bf16 %v450, %v450
    %v487 = vpack.c.bf16 %v452, %v452
    %v488 = vpack.c.bf16 %v383, %v383
    %v489 = vpack.c.bf16 %v385, %v385
    %v490 = vpack.c.bf16 %v456, %v456
    %v491 = vpack.c.bf16 %v458, %v458
    %v492 = vpack.c.bf16 %v387, %v387
    %v493 = vpack.c.bf16 %v389, %v389
    %v494 = vpack.c.bf16 %v460, %v460
    %v495 = vpack.c.bf16 %v462, %v462
    %v528 = vunpack.c.l.b16 %v464
    %v529 = vunpack.c.l.b16 %v465
    %v530 = vunpack.c.l.b16 %v466
    %v531 = vunpack.c.l.b16 %v467
    %v532 = vunpack.c.l.b16 %v468
    %v533 = vunpack.c.l.b16 %v469
    %v534 = vunpack.c.l.b16 %v470
    %v535 = vunpack.c.l.b16 %v471
    %v536 = vunpack.c.l.b16 %v472
    %v537 = vunpack.c.l.b16 %v473
    %v538 = vunpack.c.l.b16 %v474
    %v539 = vunpack.c.l.b16 %v475
    %v540 = vunpack.c.l.b16 %v476
    %v541 = vunpack.c.l.b16 %v477
    %v542 = vunpack.c.l.b16 %v478
    %v543 = vunpack.c.l.b16 %v479
    %v544 = vunpack.c.l.b16 %v480
    %v545 = vunpack.c.l.b16 %v481
    %v546 = vunpack.c.l.b16 %v482
    %v547 = vunpack.c.l.b16 %v483
    %v548 = vunpack.c.l.b16 %v484
    %v549 = vunpack.c.l.b16 %v485
    %v550 = vunpack.c.l.b16 %v486
    %v551 = vunpack.c.l.b16 %v487
    %v552 = vunpack.c.l.b16 %v488
    %v553 = vunpack.c.l.b16 %v489
    %v554 = vunpack.c.l.b16 %v490
    %v555 = vunpack.c.l.b16 %v491
    %v556 = vunpack.c.l.b16 %v492
    %v557 = vunpack.c.l.b16 %v493
    %v558 = vunpack.c.l.b16 %v494
    %v559 = vunpack.c.l.b16 %v495
    %v560 = vpack.c.b16 %v529, %v528
    %v561 = vpack.c.b16 %v531, %v530
    %v562 = vpack.c.b16 %v533, %v532
    %v563 = vpack.c.b16 %v535, %v534
    %v564 = vpack.c.b16 %v537, %v536
    %v565 = vpack.c.b16 %v539, %v538
    %v566 = vpack.c.b16 %v541, %v540
    %v567 = vpack.c.b16 %v543, %v542
    %v568 = vpack.c.b16 %v545, %v544
    %v569 = vpack.c.b16 %v547, %v546
    %v570 = vpack.c.b16 %v549, %v548
    %v571 = vpack.c.b16 %v551, %v550
    %v572 = vpack.c.b16 %v553, %v552
    %v573 = vpack.c.b16 %v555, %v554
    %v574 = vpack.c.b16 %v557, %v556
    %v575 = vpack.c.b16 %v559, %v558
    %592 = vst [vmem:[#allocation4] sm:$0xff] %v560
    %593 = vst [vmem:[#allocation4 + $0x8] sm:$0xff] %v561
    %594 = vst [vmem:[#allocation4 + $0x10] sm:$0xff] %v562
    %595 = vst [vmem:[#allocation4 + $0x18] sm:$0xff] %v563
    %596 = vst [vmem:[#allocation4 + $0x20] sm:$0xff] %v564
    %597 = vst [vmem:[#allocation4 + $0x28] sm:$0xff] %v565
    %598 = vst [vmem:[#allocation4 + $0x30] sm:$0xff] %v566
    %599 = vst [vmem:[#allocation4 + $0x38] sm:$0xff] %v567
    %600 = vst [vmem:[#allocation4 + $0x40] sm:$0xff] %v568
    %601 = vst [vmem:[#allocation4 + $0x48] sm:$0xff] %v569
    %602 = vst [vmem:[#allocation4 + $0x50] sm:$0xff] %v570
    %603 = vst [vmem:[#allocation4 + $0x58] sm:$0xff] %v571
    %604 = vst [vmem:[#allocation4 + $0x60] sm:$0xff] %v572
    %605 = vst [vmem:[#allocation4 + $0x68] sm:$0xff] %v573
    %606 = vst [vmem:[#allocation4 + $0x70] sm:$0xff] %v574
    %607 = vst [vmem:[#allocation4 + $0x78] sm:$0xff] %v575
    %v608 = vld [vmem:[#allocation2] sm:$0xff]
    %v609 = vld [vmem:[#allocation3] sm:$0xff]
    %v610 = vld [vmem:[#allocation4] sm:$0xff]
    %v611 = vld [vmem:[#allocation4 + $0x8] sm:$0xff]
    %v612 = vpack.c.bf16 %v608, %v608
    %v613 = vld [vmem:[#allocation11] sm:$0xff]
    %v614 = vld [vmem:[#allocation11 + $0x8] sm:$0xff]
    %v615 = vld [vmem:[#allocation11 + $0x10] sm:$0xff]
    %v616 = vld [vmem:[#allocation11 + $0x18] sm:$0xff]
    %v617 = vld [vmem:[#allocation11 + $0x20] sm:$0xff]
    %v618 = vld [vmem:[#allocation11 + $0x28] sm:$0xff]
    %v619 = vld [vmem:[#allocation11 + $0x30] sm:$0xff]
    %v620 = vld [vmem:[#allocation11 + $0x38] sm:$0xff]
    %v621 = vld [vmem:[#allocation11 + $0x40] sm:$0xff]
    %v622 = vld [vmem:[#allocation11 + $0x48] sm:$0xff]
    %v623 = vld [vmem:[#allocation11 + $0x50] sm:$0xff]
    %v624 = vld [vmem:[#allocation11 + $0x58] sm:$0xff]
    %v625 = vld [vmem:[#allocation11 + $0x60] sm:$0xff]
    %v626 = vld [vmem:[#allocation11 + $0x68] sm:$0xff]
    %v627 = vld [vmem:[#allocation11 + $0x70] sm:$0xff]
    %v628 = vld [vmem:[#allocation11 + $0x78] sm:$0xff]
    %v629 = vld [vmem:[#allocation11 + $0x80] sm:$0xff]
    %v630 = vld [vmem:[#allocation11 + $0x88] sm:$0xff]
    %v631 = vld [vmem:[#allocation11 + $0x90] sm:$0xff]
    %v632 = vld [vmem:[#allocation11 + $0x98] sm:$0xff]
    %v633 = vld [vmem:[#allocation11 + $0xa0] sm:$0xff]
    %v634 = vld [vmem:[#allocation11 + $0xa8] sm:$0xff]
    %v635 = vld [vmem:[#allocation11 + $0xb0] sm:$0xff]
    %v636 = vld [vmem:[#allocation11 + $0xb8] sm:$0xff]
    %v637 = vld [vmem:[#allocation11 + $0xc0] sm:$0xff]
    %v638 = vld [vmem:[#allocation11 + $0xc8] sm:$0xff]
    %v639 = vld [vmem:[#allocation11 + $0xd0] sm:$0xff]
    %v640 = vld [vmem:[#allocation11 + $0xd8] sm:$0xff]
    %v641 = vld [vmem:[#allocation11 + $0xe0] sm:$0xff]
    %v642 = vld [vmem:[#allocation11 + $0xe8] sm:$0xff]
    %v643 = vld [vmem:[#allocation11 + $0xf0] sm:$0xff]
    %v644 = vld [vmem:[#allocation11 + $0xf8] sm:$0xff]
    %v677 = vunpack.c.l.b16 %v613
    %v678 = vunpack.c.h.b16 %v613
    %v679 = vunpack.c.l.b16 %v614
    %v680 = vunpack.c.h.b16 %v614
    %v681 = vunpack.c.l.b16 %v615
    %v682 = vunpack.c.h.b16 %v615
    %v683 = vunpack.c.l.b16 %v616
    %v684 = vunpack.c.h.b16 %v616
    %v685 = vunpack.c.l.b16 %v617
    %v686 = vunpack.c.h.b16 %v617
    %v687 = vunpack.c.l.b16 %v618
    %v688 = vunpack.c.h.b16 %v618
    %v689 = vunpack.c.l.b16 %v619
    %v690 = vunpack.c.h.b16 %v619
    %v691 = vunpack.c.l.b16 %v620
    %v692 = vunpack.c.h.b16 %v620
    %v693 = vunpack.c.l.b16 %v621
    %v694 = vunpack.c.h.b16 %v621
    %v695 = vunpack.c.l.b16 %v622
    %v696 = vunpack.c.h.b16 %v622
    %v697 = vunpack.c.l.b16 %v623
    %v698 = vunpack.c.h.b16 %v623
    %v699 = vunpack.c.l.b16 %v624
    %v700 = vunpack.c.h.b16 %v624
    %v701 = vunpack.c.l.b16 %v625
    %v702 = vunpack.c.h.b16 %v625
    %v703 = vunpack.c.l.b16 %v626
    %v704 = vunpack.c.h.b16 %v626
    %v705 = vunpack.c.l.b16 %v627
    %v706 = vunpack.c.h.b16 %v627
    %v707 = vunpack.c.l.b16 %v628
    %v708 = vunpack.c.h.b16 %v628
    %v709 = vunpack.c.l.b16 %v629
    %v710 = vunpack.c.h.b16 %v629
    %v711 = vunpack.c.l.b16 %v630
    %v712 = vunpack.c.h.b16 %v630
    %v713 = vunpack.c.l.b16 %v631
    %v714 = vunpack.c.h.b16 %v631
    %v715 = vunpack.c.l.b16 %v632
    %v716 = vunpack.c.h.b16 %v632
    %v717 = vunpack.c.l.b16 %v633
    %v718 = vunpack.c.h.b16 %v633
    %v719 = vunpack.c.l.b16 %v634
    %v720 = vunpack.c.h.b16 %v634
    %v721 = vunpack.c.l.b16 %v635
    %v722 = vunpack.c.h.b16 %v635
    %v723 = vunpack.c.l.b16 %v636
    %v724 = vunpack.c.h.b16 %v636
    %v725 = vunpack.c.l.b16 %v637
    %v726 = vunpack.c.h.b16 %v637
    %v727 = vunpack.c.l.b16 %v638
    %v728 = vunpack.c.h.b16 %v638
    %v729 = vunpack.c.l.b16 %v639
    %v730 = vunpack.c.h.b16 %v639
    %v731 = vunpack.c.l.b16 %v640
    %v732 = vunpack.c.h.b16 %v640
    %v733 = vunpack.c.l.b16 %v641
    %v734 = vunpack.c.h.b16 %v641
    %v735 = vunpack.c.l.b16 %v642
    %v736 = vunpack.c.h.b16 %v642
    %v737 = vunpack.c.l.b16 %v643
    %v738 = vunpack.c.h.b16 %v643
    %v739 = vunpack.c.l.b16 %v644
    %v740 = vunpack.c.h.b16 %v644
    %v741 = vpack.c.b16 %v681, %v677
    %v742 = vpack.c.b16 %v682, %v678
    %v743 = vpack.c.b16 %v683, %v679
    %v744 = vpack.c.b16 %v684, %v680
    %v745 = vpack.c.b16 %v689, %v685
    %v746 = vpack.c.b16 %v690, %v686
    %v747 = vpack.c.b16 %v691, %v687
    %v748 = vpack.c.b16 %v692, %v688
    %v749 = vpack.c.b16 %v697, %v693
    %v750 = vpack.c.b16 %v698, %v694
    %v751 = vpack.c.b16 %v699, %v695
    %v752 = vpack.c.b16 %v700, %v696
    %v753 = vpack.c.b16 %v705, %v701
    %v754 = vpack.c.b16 %v706, %v702
    %v755 = vpack.c.b16 %v707, %v703
    %v756 = vpack.c.b16 %v708, %v704
    %v757 = vpack.c.b16 %v713, %v709
    %v758 = vpack.c.b16 %v714, %v710
    %v759 = vpack.c.b16 %v715, %v711
    %v760 = vpack.c.b16 %v716, %v712
    %v761 = vpack.c.b16 %v721, %v717
    %v762 = vpack.c.b16 %v722, %v718
    %v763 = vpack.c.b16 %v723, %v719
    %v764 = vpack.c.b16 %v724, %v720
    %v765 = vpack.c.b16 %v729, %v725
    %v766 = vpack.c.b16 %v730, %v726
    %v767 = vpack.c.b16 %v731, %v727
    %v768 = vpack.c.b16 %v732, %v728
    %v769 = vpack.c.b16 %v737, %v733
    %v770 = vpack.c.b16 %v738, %v734
    %v771 = vpack.c.b16 %v739, %v735
    %v772 = vpack.c.b16 %v740, %v736
    %805 = vmatprep.subr.bf16.mxu0 %v742
    %806 = vmatpush1.bf16.msra.mxu0 %v741
    %807 = vmatprep.subr.bf16.mxu0 %v746
    %808 = vmatpush1.bf16.msra.mxu0 %v745
    %809 = vmatprep.subr.bf16.mxu0 %v750
    %810 = vmatpush1.bf16.msra.mxu0 %v749
    %811 = vmatprep.subr.bf16.mxu0 %v754
    %812 = vmatpush1.bf16.msra.mxu0 %v753
    %813 = vmatprep.subr.bf16.mxu0 %v758
    %814 = vmatpush1.bf16.msra.mxu0 %v757
    %815 = vmatprep.subr.bf16.mxu0 %v762
    %816 = vmatpush1.bf16.msra.mxu0 %v761
    %817 = vmatprep.subr.bf16.mxu0 %v766
    %818 = vmatpush1.bf16.msra.mxu0 %v765
    %819 = vmatprep.subr.bf16.mxu0 %v770
    %820 = vmatpush1.bf16.msra.mxu0 %v769
    %821 = vmatprep.subr.bf16.mxu0 0
    %822 = vmatpush1.bf16.msra.mxu0 0
    %823 = vmatprep.subr.bf16.mxu0 0
    %824 = vmatpush1.bf16.msra.mxu0 0
    %825 = vmatprep.subr.bf16.mxu0 0
    %826 = vmatpush1.bf16.msra.mxu0 0
    %827 = vmatprep.subr.bf16.mxu0 0
    %828 = vmatpush1.bf16.msra.mxu0 0
    %829 = vmatprep.subr.bf16.mxu0 0
    %830 = vmatpush1.bf16.msra.mxu0 0
    %831 = vmatprep.subr.bf16.mxu0 0
    %832 = vmatpush1.bf16.msra.mxu0 0
    %833 = vmatprep.subr.bf16.mxu0 0
    %834 = vmatpush1.bf16.msra.mxu0 0
    %835 = vmatprep.subr.bf16.mxu0 0
    %836 = vmatpush1.bf16.msra.mxu0 0
    %837 = vmatprep.mubr.bf16.mxu0 0
    %838 = vmatmul.mubr.bf16.gmra.mrb[0].mxu0 %v612
    %v839 = vpop.f32.mrb[0].mxu0
    %v840 = vadd.f32 0.0, %v839
    %v841 = vpop.f32.mrb[0].mxu0
    %v842 = vadd.f32 0.0, %v841
    %v843 = vpop.f32.mrb[0].mxu0
    %v844 = vpop.f32.mrb[0].mxu0
    %845 = vdwg.mxu0
    %846 = vmatprep.subr.bf16.mxu0 %v744
    %847 = vmatpush1.bf16.msra.mxu0 %v743
    %848 = vmatprep.subr.bf16.mxu0 %v748
    %849 = vmatpush1.bf16.msra.mxu0 %v747
    %850 = vmatprep.subr.bf16.mxu0 %v752
    %851 = vmatpush1.bf16.msra.mxu0 %v751
    %852 = vmatprep.subr.bf16.mxu0 %v756
    %853 = vmatpush1.bf16.msra.mxu0 %v755
    %854 = vmatprep.subr.bf16.mxu0 %v760
    %855 = vmatpush1.bf16.msra.mxu0 %v759
    %856 = vmatprep.subr.bf16.mxu0 %v764
    %857 = vmatpush1.bf16.msra.mxu0 %v763
    %858 = vmatprep.subr.bf16.mxu0 %v768
    %859 = vmatpush1.bf16.msra.mxu0 %v767
    %860 = vmatprep.subr.bf16.mxu0 %v772
    %861 = vmatpush1.bf16.msra.mxu0 %v771
    %862 = vmatprep.subr.bf16.mxu0 0
    %863 = vmatpush1.bf16.msra.mxu0 0
    %864 = vmatprep.subr.bf16.mxu0 0
    %865 = vmatpush1.bf16.msra.mxu0 0
    %866 = vmatprep.subr.bf16.mxu0 0
    %867 = vmatpush1.bf16.msra.mxu0 0
    %868 = vmatprep.subr.bf16.mxu0 0
    %869 = vmatpush1.bf16.msra.mxu0 0
    %870 = vmatprep.subr.bf16.mxu0 0
    %871 = vmatpush1.bf16.msra.mxu0 0
    %872 = vmatprep.subr.bf16.mxu0 0
    %873 = vmatpush1.bf16.msra.mxu0 0
    %874 = vmatprep.subr.bf16.mxu0 0
    %875 = vmatpush1.bf16.msra.mxu0 0
    %876 = vmatprep.subr.bf16.mxu0 0
    %877 = vmatpush1.bf16.msra.mxu0 0
    %878 = vmatprep.mubr.bf16.mxu0 0
    %879 = vmatmul.mubr.bf16.gmra.mrb[0].mxu0 %v612
    %v880 = vpop.f32.mrb[0].mxu0
    %v881 = vadd.f32 0.0, %v880
    %v882 = vpop.f32.mrb[0].mxu0
    %v883 = vadd.f32 0.0, %v882
    %v884 = vpop.f32.mrb[0].mxu0
    %v885 = vpop.f32.mrb[0].mxu0
    %886 = vdwg.mxu0
    %v887 = vunpack.c.l.bf16 %v610
    %v888 = vunpack.c.h.bf16 %v610
    %v889 = vunpack.c.l.bf16 %v611
    %v890 = vunpack.c.h.bf16 %v611
    %v891 = vadd.f32 %v887, %v840
    %v892 = vadd.f32 %v888, %v842
    %v893 = vadd.f32 %v889, %v881
    %v894 = vadd.f32 %v890, %v883
    %v895 = vmul.f32 %v891, 0.5
    %v896 = vtanh.pop %v895
    %v897 = vmul.f32 %v896, 0.5
    %v898 = vadd.f32 %v897, 0.5
    %v899 = vmul.f32 %v892, 0.5
    %v900 = vtanh.pop %v899
    %v901 = vmul.f32 %v900, 0.5
    %v902 = vadd.f32 %v901, 0.5
    %v903 = vtanh.pop %v893
    %v904 = vmul.f32 %v894, 0.5
    %v905 = vtanh.pop %v904
    %v906 = vmul.f32 %v905, 0.5
    %v907 = vadd.f32 %v906, 0.5
    %v908 = vmul.f32 %v902, %v609
    %v909 = vmul.f32 %v898, %v903
    %v910 = vadd.f32 %v908, %v909
    %v911 = vtanh.pop %v910
    %v912 = vmul.f32 %v907, %v911
    %913 = vst [vmem:[#allocation14] sm:$0xff] %v912
    %s914 = scalar_lea.vmem [#allocation4], 16
    %v915 = vld [vmem:[%s914] sm:$0xff]
    %v916 = vld [vmem:[%s914 + $0x8] sm:$0xff]
    %v917 = vpack.c.bf16 %v912, %v912
    %v918 = vld [vmem:[#allocation11] sm:$0xff]
    %v919 = vld [vmem:[#allocation11 + $0x8] sm:$0xff]
    %v920 = vld [vmem:[#allocation11 + $0x10] sm:$0xff]
    %v921 = vld [vmem:[#allocation11 + $0x18] sm:$0xff]
    %v922 = vld [vmem:[#allocation11 + $0x20] sm:$0xff]
    %v923 = vld [vmem:[#allocation11 + $0x28] sm:$0xff]
    %v924 = vld [vmem:[#allocation11 + $0x30] sm:$0xff]
    %v925 = vld [vmem:[#allocation11 + $0x38] sm:$0xff]
    %v926 = vld [vmem:[#allocation11 + $0x40] sm:$0xff]
    %v927 = vld [vmem:[#allocation11 + $0x48] sm:$0xff]
    %v928 = vld [vmem:[#allocation11 + $0x50] sm:$0xff]
    %v929 = vld [vmem:[#allocation11 + $0x58] sm:$0xff]
    %v930 = vld [vmem:[#allocation11 + $0x60] sm:$0xff]
    %v931 = vld [vmem:[#allocation11 + $0x68] sm:$0xff]
    %v932 = vld [vmem:[#allocation11 + $0x70] sm:$0xff]
    %v933 = vld [vmem:[#allocation11 + $0x78] sm:$0xff]
    %v934 = vld [vmem:[#allocation11 + $0x80] sm:$0xff]
    %v935 = vld [vmem:[#allocation11 + $0x88] sm:$0xff]
    %v936 = vld [vmem:[#allocation11 + $0x90] sm:$0xff]
    %v937 = vld [vmem:[#allocation11 + $0x98] sm:$0xff]
    %v938 = vld [vmem:[#allocation11 + $0xa0] sm:$0xff]
    %v939 = vld [vmem:[#allocation11 + $0xa8] sm:$0xff]
    %v940 = vld [vmem:[#allocation11 + $0xb0] sm:$0xff]
    %v941 = vld [vmem:[#allocation11 + $0xb8] sm:$0xff]
    %v942 = vld [vmem:[#allocation11 + $0xc0] sm:$0xff]
    %v943 = vld [vmem:[#allocation11 + $0xc8] sm:$0xff]
    %v944 = vld [vmem:[#allocation11 + $0xd0] sm:$0xff]
    %v945 = vld [vmem:[#allocation11 + $0xd8] sm:$0xff]
    %v946 = vld [vmem:[#allocation11 + $0xe0] sm:$0xff]
    %v947 = vld [vmem:[#allocation11 + $0xe8] sm:$0xff]
    %v948 = vld [vmem:[#allocation11 + $0xf0] sm:$0xff]
    %v949 = vld [vmem:[#allocation11 + $0xf8] sm:$0xff]
    %v982 = vunpack.c.l.b16 %v918
    %v983 = vunpack.c.h.b16 %v918
    %v984 = vunpack.c.l.b16 %v919
    %v985 = vunpack.c.h.b16 %v919
    %v986 = vunpack.c.l.b16 %v920
    %v987 = vunpack.c.h.b16 %v920
    %v988 = vunpack.c.l.b16 %v921
    %v989 = vunpack.c.h.b16 %v921
    %v990 = vunpack.c.l.b16 %v922
    %v991 = vunpack.c.h.b16 %v922
    %v992 = vunpack.c.l.b16 %v923
    %v993 = vunpack.c.h.b16 %v923
    %v994 = vunpack.c.l.b16 %v924
    %v995 = vunpack.c.h.b16 %v924
    %v996 = vunpack.c.l.b16 %v925
    %v997 = vunpack.c.h.b16 %v925
    %v998 = vunpack.c.l.b16 %v926
    %v999 = vunpack.c.h.b16 %v926
    %v1000 = vunpack.c.l.b16 %v927
    %v1001 = vunpack.c.h.b16 %v927
    %v1002 = vunpack.c.l.b16 %v928
    %v1003 = vunpack.c.h.b16 %v928
    %v1004 = vunpack.c.l.b16 %v929
    %v1005 = vunpack.c.h.b16 %v929
    %v1006 = vunpack.c.l.b16 %v930
    %v1007 = vunpack.c.h.b16 %v930
    %v1008 = vunpack.c.l.b16 %v931
    %v1009 = vunpack.c.h.b16 %v931
    %v1010 = vunpack.c.l.b16 %v932
    %v1011 = vunpack.c.h.b16 %v932
    %v1012 = vunpack.c.l.b16 %v933
    %v1013 = vunpack.c.h.b16 %v933
    %v1014 = vunpack.c.l.b16 %v934
    %v1015 = vunpack.c.h.b16 %v934
    %v1016 = vunpack.c.l.b16 %v935
    %v1017 = vunpack.c.h.b16 %v935
    %v1018 = vunpack.c.l.b16 %v936
    %v1019 = vunpack.c.h.b16 %v936
    %v1020 = vunpack.c.l.b16 %v937
    %v1021 = vunpack.c.h.b16 %v937
    %v1022 = vunpack.c.l.b16 %v938
    %v1023 = vunpack.c.h.b16 %v938
    %v1024 = vunpack.c.l.b16 %v939
    %v1025 = vunpack.c.h.b16 %v939
    %v1026 = vunpack.c.l.b16 %v940
    %v1027 = vunpack.c.h.b16 %v940
    %v1028 = vunpack.c.l.b16 %v941
    %v1029 = vunpack.c.h.b16 %v941
    %v1030 = vunpack.c.l.b16 %v942
    %v1031 = vunpack.c.h.b16 %v942
    %v1032 = vunpack.c.l.b16 %v943
    %v1033 = vunpack.c.h.b16 %v943
    %v1034 = vunpack.c.l.b16 %v944
    %v1035 = vunpack.c.h.b16 %v944
    %v1036 = vunpack.c.l.b16 %v945
    %v1037 = vunpack.c.h.b16 %v945
    %v1038 = vunpack.c.l.b16 %v946
    %v1039 = vunpack.c.h.b16 %v946
    %v1040 = vunpack.c.l.b16 %v947
    %v1041 = vunpack.c.h.b16 %v947
    %v1042 = vunpack.c.l.b16 %v948
    %v1043 = vunpack.c.h.b16 %v948
    %v1044 = vunpack.c.l.b16 %v949
    %v1045 = vunpack.c.h.b16 %v949
    %v1046 = vpack.c.b16 %v986, %v982
    %v1047 = vpack.c.b16 %v987, %v983
    %v1048 = vpack.c.b16 %v988, %v984
    %v1049 = vpack.c.b16 %v989, %v985
    %v1050 = vpack.c.b16 %v994, %v990
    %v1051 = vpack.c.b16 %v995, %v991
    %v1052 = vpack.c.b16 %v996, %v992
    %v1053 = vpack.c.b16 %v997, %v993
    %v1054 = vpack.c.b16 %v1002, %v998
    %v1055 = vpack.c.b16 %v1003, %v999
    %v1056 = vpack.c.b16 %v1004, %v1000
    %v1057 = vpack.c.b16 %v1005, %v1001
    %v1058 = vpack.c.b16 %v1010, %v1006
    %v1059 = vpack.c.b16 %v1011, %v1007
    %v1060 = vpack.c.b16 %v1012, %v1008
    %v1061 = vpack.c.b16 %v1013, %v1009
    %v1062 = vpack.c.b16 %v1018, %v1014
    %v1063 = vpack.c.b16 %v1019, %v1015
    %v1064 = vpack.c.b16 %v1020, %v1016
    %v1065 = vpack.c.b16 %v1021, %v1017
    %v1066 = vpack.c.b16 %v1026, %v1022
    %v1067 = vpack.c.b16 %v1027, %v1023
    %v1068 = vpack.c.b16 %v1028, %v1024
    %v1069 = vpack.c.b16 %v1029, %v1025
    %v1070 = vpack.c.b16 %v1034, %v1030
    %v1071 = vpack.c.b16 %v1035, %v1031
    %v1072 = vpack.c.b16 %v1036, %v1032
    %v1073 = vpack.c.b16 %v1037, %v1033
    %v1074 = vpack.c.b16 %v1042, %v1038
    %v1075 = vpack.c.b16 %v1043, %v1039
    %v1076 = vpack.c.b16 %v1044, %v1040
    %v1077 = vpack.c.b16 %v1045, %v1041
    %1110 = vmatprep.subr.bf16.mxu0 %v1047
    %1111 = vmatpush1.bf16.msra.mxu0 %v1046
    %1112 = vmatprep.subr.bf16.mxu0 %v1051
    %1113 = vmatpush1.bf16.msra.mxu0 %v1050
    %1114 = vmatprep.subr.bf16.mxu0 %v1055
    %1115 = vmatpush1.bf16.msra.mxu0 %v1054
    %1116 = vmatprep.subr.bf16.mxu0 %v1059
    %1117 = vmatpush1.bf16.msra.mxu0 %v1058
    %1118 = vmatprep.subr.bf16.mxu0 %v1063
    %1119 = vmatpush1.bf16.msra.mxu0 %v1062
    %1120 = vmatprep.subr.bf16.mxu0 %v1067
    %1121 = vmatpush1.bf16.msra.mxu0 %v1066
    %1122 = vmatprep.subr.bf16.mxu0 %v1071
    %1123 = vmatpush1.bf16.msra.mxu0 %v1070
    %1124 = vmatprep.subr.bf16.mxu0 %v1075
    %1125 = vmatpush1.bf16.msra.mxu0 %v1074
    %1126 = vmatprep.subr.bf16.mxu0 0
    %1127 = vmatpush1.bf16.msra.mxu0 0
    %1128 = vmatprep.subr.bf16.mxu0 0
    %1129 = vmatpush1.bf16.msra.mxu0 0
    %1130 = vmatprep.subr.bf16.mxu0 0
    %1131 = vmatpush1.bf16.msra.mxu0 0
    %1132 = vmatprep.subr.bf16.mxu0 0
    %1133 = vmatpush1.bf16.msra.mxu0 0
    %1134 = vmatprep.subr.bf16.mxu0 0
    %1135 = vmatpush1.bf16.msra.mxu0 0
    %1136 = vmatprep.subr.bf16.mxu0 0
    %1137 = vmatpush1.bf16.msra.mxu0 0
    %1138 = vmatprep.subr.bf16.mxu0 0
    %1139 = vmatpush1.bf16.msra.mxu0 0
    %1140 = vmatprep.subr.bf16.mxu0 0
    %1141 = vmatpush1.bf16.msra.mxu0 0
    %1142 = vmatprep.mubr.bf16.mxu0 0
    %1143 = vmatmul.mubr.bf16.gmra.mrb[0].mxu0 %v917
    %v1144 = vpop.f32.mrb[0].mxu0
    %v1145 = vadd.f32 0.0, %v1144
    %v1146 = vpop.f32.mrb[0].mxu0
    %v1147 = vadd.f32 0.0, %v1146
    %v1148 = vpop.f32.mrb[0].mxu0
    %v1149 = vpop.f32.mrb[0].mxu0
    %1150 = vdwg.mxu0
    %1151 = vmatprep.subr.bf16.mxu0 %v1049
    %1152 = vmatpush1.bf16.msra.mxu0 %v1048
    %1153 = vmatprep.subr.bf16.mxu0 %v1053
    %1154 = vmatpush1.bf16.msra.mxu0 %v1052
    %1155 = vmatprep.subr.bf16.mxu0 %v1057
    %1156 = vmatpush1.bf16.msra.mxu0 %v1056
    %1157 = vmatprep.subr.bf16.mxu0 %v1061
    %1158 = vmatpush1.bf16.msra.mxu0 %v1060
    %1159 = vmatprep.subr.bf16.mxu0 %v1065
    %1160 = vmatpush1.bf16.msra.mxu0 %v1064
    %1161 = vmatprep.subr.bf16.mxu0 %v1069
    %1162 = vmatpush1.bf16.msra.mxu0 %v1068
    %1163 = vmatprep.subr.bf16.mxu0 %v1073
    %1164 = vmatpush1.bf16.msra.mxu0 %v1072
    %1165 = vmatprep.subr.bf16.mxu0 %v1077
    %1166 = vmatpush1.bf16.msra.mxu0 %v1076
    %1167 = vmatprep.subr.bf16.mxu0 0
    %1168 = vmatpush1.bf16.msra.mxu0 0
    %1169 = vmatprep.subr.bf16.mxu0 0
    %1170 = vmatpush1.bf16.msra.mxu0 0
    %1171 = vmatprep.subr.bf16.mxu0 0
    %1172 = vmatpush1.bf16.msra.mxu0 0
    %1173 = vmatprep.subr.bf16.mxu0 0
    %1174 = vmatpush1.bf16.msra.mxu0 0
    %1175 = vmatprep.subr.bf16.mxu0 0
    %1176 = vmatpush1.bf16.msra.mxu0 0
    %1177 = vmatprep.subr.bf16.mxu0 0
    %1178 = vmatpush1.bf16.msra.mxu0 0
    %1179 = vmatprep.subr.bf16.mxu0 0
    %1180 = vmatpush1.bf16.msra.mxu0 0
    %1181 = vmatprep.subr.bf16.mxu0 0
    %1182 = vmatpush1.bf16.msra.mxu0 0
    %1183 = vmatprep.mubr.bf16.mxu0 0
    %1184 = vmatmul.mubr.bf16.gmra.mrb[0].mxu0 %v917
    %v1185 = vpop.f32.mrb[0].mxu0
    %v1186 = vadd.f32 0.0, %v1185
    %v1187 = vpop.f32.mrb[0].mxu0
    %v1188 = vadd.f32 0.0, %v1187
    %v1189 = vpop.f32.mrb[0].mxu0
    %v1190 = vpop.f32.mrb[0].mxu0
    %1191 = vdwg.mxu0
    %v1192 = vunpack.c.l.bf16 %v915
    %v1193 = vunpack.c.h.bf16 %v915
    %v1194 = vunpack.c.l.bf16 %v916
    %v1195 = vunpack.c.h.bf16 %v916
    %v1196 = vadd.f32 %v1192, %v1145
    %v1197 = vadd.f32 %v1193, %v1147
    %v1198 = vadd.f32 %v1194, %v1186
    %v1199 = vadd.f32 %v1195, %v1188
    %v1200 = vmul.f32 %v1196, 0.5
    %v1201 = vtanh.pop %v1200
    %v1202 = vmul.f32 %v1201, 0.5
    %v1203 = vadd.f32 %v1202, 0.5
    %v1204 = vmul.f32 %v1197, 0.5
    %v1205 = vtanh.pop %v1204
    %v1206 = vmul.f32 %v1205, 0.5
    %v1207 = vadd.f32 %v1206, 0.5
    %v1208 = vtanh.pop %v1198
    %v1209 = vmul.f32 %v1199, 0.5
    %v1210 = vtanh.pop %v1209
    %v1211 = vmul.f32 %v1210, 0.5
    %v1212 = vadd.f32 %v1211, 0.5
    %v1213 = vmul.f32 %v1207, %v910
    %v1214 = vmul.f32 %v1203, %v1208
    %v1215 = vadd.f32 %v1213, %v1214
    %v1216 = vtanh.pop %v1215
    %v1217 = vmul.f32 %v1212, %v1216
    %s1218 = scalar_lea.vmem [#allocation14], 8
    %1219 = vst [vmem:[%s1218] sm:$0xff] %v1217
    %s1220 = scalar_lea.vmem [#allocation4], 32
    %v1221 = vld [vmem:[%s1220] sm:$0xff]
    %v1222 = vld [vmem:[%s1220 + $0x8] sm:$0xff]
    %v1223 = vpack.c.bf16 %v1217, %v1217
    %v1224 = vld [vmem:[#allocation11] sm:$0xff]
    %v1225 = vld [vmem:[#allocation11 + $0x8] sm:$0xff]
    %v1226 = vld [vmem:[#allocation11 + $0x10] sm:$0xff]
    %v1227 = vld [vmem:[#allocation11 + $0x18] sm:$0xff]
    %v1228 = vld [vmem:[#allocation11 + $0x20] sm:$0xff]
    %v1229 = vld [vmem:[#allocation11 + $0x28] sm:$0xff]
    %v1230 = vld [vmem:[#allocation11 + $0x30] sm:$0xff]
    %v1231 = vld [vmem:[#allocation11 + $0x38] sm:$0xff]
    %v1232 = vld [vmem:[#allocation11 + $0x40] sm:$0xff]
    %v1233 = vld [vmem:[#allocation11 + $0x48] sm:$0xff]
    %v1234 = vld [vmem:[#allocation11 + $0x50] sm:$0xff]
    %v1235 = vld [vmem:[#allocation11 + $0x58] sm:$0xff]
    %v1236 = vld [vmem:[#allocation11 + $0x60] sm:$0xff]
    %v1237 = vld [vmem:[#allocation11 + $0x68] sm:$0xff]
    %v1238 = vld [vmem:[#allocation11 + $0x70] sm:$0xff]
    %v1239 = vld [vmem:[#allocation11 + $0x78] sm:$0xff]
    %v1240 = vld [vmem:[#allocation11 + $0x80] sm:$0xff]
    %v1241 = vld [vmem:[#allocation11 + $0x88] sm:$0xff]
    %v1242 = vld [vmem:[#allocation11 + $0x90] sm:$0xff]
    %v1243 = vld [vmem:[#allocation11 + $0x98] sm:$0xff]
    %v1244 = vld [vmem:[#allocation11 + $0xa0] sm:$0xff]
    %v1245 = vld [vmem:[#allocation11 + $0xa8] sm:$0xff]
    %v1246 = vld [vmem:[#allocation11 + $0xb0] sm:$0xff]
    %v1247 = vld [vmem:[#allocation11 + $0xb8] sm:$0xff]
    %v1248 = vld [vmem:[#allocation11 + $0xc0] sm:$0xff]
    %v1249 = vld [vmem:[#allocation11 + $0xc8] sm:$0xff]
    %v1250 = vld [vmem:[#allocation11 + $0xd0] sm:$0xff]
    %v1251 = vld [vmem:[#allocation11 + $0xd8] sm:$0xff]
    %v1252 = vld [vmem:[#allocation11 + $0xe0] sm:$0xff]
    %v1253 = vld [vmem:[#allocation11 + $0xe8] sm:$0xff]
    %v1254 = vld [vmem:[#allocation11 + $0xf0] sm:$0xff]
    %v1255 = vld [vmem:[#allocation11 + $0xf8] sm:$0xff]
    %v1288 = vunpack.c.l.b16 %v1224
    %v1289 = vunpack.c.h.b16 %v1224
    %v1290 = vunpack.c.l.b16 %v1225
    %v1291 = vunpack.c.h.b16 %v1225
    %v1292 = vunpack.c.l.b16 %v1226
    %v1293 = vunpack.c.h.b16 %v1226
    %v1294 = vunpack.c.l.b16 %v1227
    %v1295 = vunpack.c.h.b16 %v1227
    %v1296 = vunpack.c.l.b16 %v1228
    %v1297 = vunpack.c.h.b16 %v1228
    %v1298 = vunpack.c.l.b16 %v1229
    %v1299 = vunpack.c.h.b16 %v1229
    %v1300 = vunpack.c.l.b16 %v1230
    %v1301 = vunpack.c.h.b16 %v1230
    %v1302 = vunpack.c.l.b16 %v1231
    %v1303 = vunpack.c.h.b16 %v1231
    %v1304 = vunpack.c.l.b16 %v1232
    %v1305 = vunpack.c.h.b16 %v1232
    %v1306 = vunpack.c.l.b16 %v1233
    %v1307 = vunpack.c.h.b16 %v1233
    %v1308 = vunpack.c.l.b16 %v1234
    %v1309 = vunpack.c.h.b16 %v1234
    %v1310 = vunpack.c.l.b16 %v1235
    %v1311 = vunpack.c.h.b16 %v1235
    %v1312 = vunpack.c.l.b16 %v1236
    %v1313 = vunpack.c.h.b16 %v1236
    %v1314 = vunpack.c.l.b16 %v1237
    %v1315 = vunpack.c.h.b16 %v1237
    %v1316 = vunpack.c.l.b16 %v1238
    %v1317 = vunpack.c.h.b16 %v1238
    %v1318 = vunpack.c.l.b16 %v1239
    %v1319 = vunpack.c.h.b16 %v1239
    %v1320 = vunpack.c.l.b16 %v1240
    %v1321 = vunpack.c.h.b16 %v1240
    %v1322 = vunpack.c.l.b16 %v1241
    %v1323 = vunpack.c.h.b16 %v1241
    %v1324 = vunpack.c.l.b16 %v1242
    %v1325 = vunpack.c.h.b16 %v1242
    %v1326 = vunpack.c.l.b16 %v1243
    %v1327 = vunpack.c.h.b16 %v1243
    %v1328 = vunpack.c.l.b16 %v1244
    %v1329 = vunpack.c.h.b16 %v1244
    %v1330 = vunpack.c.l.b16 %v1245
    %v1331 = vunpack.c.h.b16 %v1245
    %v1332 = vunpack.c.l.b16 %v1246
    %v1333 = vunpack.c.h.b16 %v1246
    %v1334 = vunpack.c.l.b16 %v1247
    %v1335 = vunpack.c.h.b16 %v1247
    %v1336 = vunpack.c.l.b16 %v1248
    %v1337 = vunpack.c.h.b16 %v1248
    %v1338 = vunpack.c.l.b16 %v1249
    %v1339 = vunpack.c.h.b16 %v1249
    %v1340 = vunpack.c.l.b16 %v1250
    %v1341 = vunpack.c.h.b16 %v1250
    %v1342 = vunpack.c.l.b16 %v1251
    %v1343 = vunpack.c.h.b16 %v1251
    %v1344 = vunpack.c.l.b16 %v1252
    %v1345 = vunpack.c.h.b16 %v1252
    %v1346 = vunpack.c.l.b16 %v1253
    %v1347 = vunpack.c.h.b16 %v1253
    %v1348 = vunpack.c.l.b16 %v1254
    %v1349 = vunpack.c.h.b16 %v1254
    %v1350 = vunpack.c.l.b16 %v1255
    %v1351 = vunpack.c.h.b16 %v1255
    %v1352 = vpack.c.b16 %v1292, %v1288
    %v1353 = vpack.c.b16 %v1293, %v1289
    %v1354 = vpack.c.b16 %v1294, %v1290
    %v1355 = vpack.c.b16 %v1295, %v1291
    %v1356 = vpack.c.b16 %v1300, %v1296
    %v1357 = vpack.c.b16 %v1301, %v1297
    %v1358 = vpack.c.b16 %v1302, %v1298
    %v1359 = vpack.c.b16 %v1303, %v1299
    %v1360 = vpack.c.b16 %v1308, %v1304
    %v1361 = vpack.c.b16 %v1309, %v1305
    %v1362 = vpack.c.b16 %v1310, %v1306
    %v1363 = vpack.c.b16 %v1311, %v1307
    %v1364 = vpack.c.b16 %v1316, %v1312
    %v1365 = vpack.c.b16 %v1317, %v1313
    %v1366 = vpack.c.b16 %v1318, %v1314
    %v1367 = vpack.c.b16 %v1319, %v1315
    %v1368 = vpack.c.b16 %v1324, %v1320
    %v1369 = vpack.c.b16 %v1325, %v1321
    %v1370 = vpack.c.b16 %v1326, %v1322
    %v1371 = vpack.c.b16 %v1327, %v1323
    %v1372 = vpack.c.b16 %v1332, %v1328
    %v1373 = vpack.c.b16 %v1333, %v1329
    %v1374 = vpack.c.b16 %v1334, %v1330
    %v1375 = vpack.c.b16 %v1335, %v1331
    %v1376 = vpack.c.b16 %v1340, %v1336
    %v1377 = vpack.c.b16 %v1341, %v1337
    %v1378 = vpack.c.b16 %v1342, %v1338
    %v1379 = vpack.c.b16 %v1343, %v1339
    %v1380 = vpack.c.b16 %v1348, %v1344
    %v1381 = vpack.c.b16 %v1349, %v1345
    %v1382 = vpack.c.b16 %v1350, %v1346
    %v1383 = vpack.c.b16 %v1351, %v1347
    %1416 = vmatprep.subr.bf16.mxu0 %v1353
    %1417 = vmatpush1.bf16.msra.mxu0 %v1352
    %1418 = vmatprep.subr.bf16.mxu0 %v1357
    %1419 = vmatpush1.bf16.msra.mxu0 %v1356
    %1420 = vmatprep.subr.bf16.mxu0 %v1361
    %1421 = vmatpush1.bf16.msra.mxu0 %v1360
    %1422 = vmatprep.subr.bf16.mxu0 %v1365
    %1423 = vmatpush1.bf16.msra.mxu0 %v1364
    %1424 = vmatprep.subr.bf16.mxu0 %v1369
    %1425 = vmatpush1.bf16.msra.mxu0 %v1368
    %1426 = vmatprep.subr.bf16.mxu0 %v1373
    %1427 = vmatpush1.bf16.msra.mxu0 %v1372
    %1428 = vmatprep.subr.bf16.mxu0 %v1377
    %1429 = vmatpush1.bf16.msra.mxu0 %v1376
    %1430 = vmatprep.subr.bf16.mxu0 %v1381
    %1431 = vmatpush1.bf16.msra.mxu0 %v1380
    %1432 = vmatprep.subr.bf16.mxu0 0
    %1433 = vmatpush1.bf16.msra.mxu0 0
    %1434 = vmatprep.subr.bf16.mxu0 0
    %1435 = vmatpush1.bf16.msra.mxu0 0
    %1436 = vmatprep.subr.bf16.mxu0 0
    %1437 = vmatpush1.bf16.msra.mxu0 0
    %1438 = vmatprep.subr.bf16.mxu0 0
    %1439 = vmatpush1.bf16.msra.mxu0 0
    %1440 = vmatprep.subr.bf16.mxu0 0
    %1441 = vmatpush1.bf16.msra.mxu0 0
    %1442 = vmatprep.subr.bf16.mxu0 0
    %1443 = vmatpush1.bf16.msra.mxu0 0
    %1444 = vmatprep.subr.bf16.mxu0 0
    %1445 = vmatpush1.bf16.msra.mxu0 0
    %1446 = vmatprep.subr.bf16.mxu0 0
    %1447 = vmatpush1.bf16.msra.mxu0 0
    %1448 = vmatprep.mubr.bf16.mxu0 0
    %1449 = vmatmul.mubr.bf16.gmra.mrb[0].mxu0 %v1223
    %v1450 = vpop.f32.mrb[0].mxu0
    %v1451 = vadd.f32 0.0, %v1450
    %v1452 = vpop.f32.mrb[0].mxu0
    %v1453 = vadd.f32 0.0, %v1452
    %v1454 = vpop.f32.mrb[0].mxu0
    %v1455 = vpop.f32.mrb[0].mxu0
    %1456 = vdwg.mxu0
    %1457 = vmatprep.subr.bf16.mxu0 %v1355
    %1458 = vmatpush1.bf16.msra.mxu0 %v1354
    %1459 = vmatprep.subr.bf16.mxu0 %v1359
    %1460 = vmatpush1.bf16.msra.mxu0 %v1358
    %1461 = vmatprep.subr.bf16.mxu0 %v1363
    %1462 = vmatpush1.bf16.msra.mxu0 %v1362
    %1463 = vmatprep.subr.bf16.mxu0 %v1367
    %1464 = vmatpush1.bf16.msra.mxu0 %v1366
    %1465 = vmatprep.subr.bf16.mxu0 %v1371
    %1466 = vmatpush1.bf16.msra.mxu0 %v1370
    %1467 = vmatprep.subr.bf16.mxu0 %v1375
    %1468 = vmatpush1.bf16.msra.mxu0 %v1374
    %1469 = vmatprep.subr.bf16.mxu0 %v1379
    %1470 = vmatpush1.bf16.msra.mxu0 %v1378
    %1471 = vmatprep.subr.bf16.mxu0 %v1383
    %1472 = vmatpush1.bf16.msra.mxu0 %v1382
    %1473 = vmatprep.subr.bf16.mxu0 0
    %1474 = vmatpush1.bf16.msra.mxu0 0
    %1475 = vmatprep.subr.bf16.mxu0 0
    %1476 = vmatpush1.bf16.msra.mxu0 0
    %1477 = vmatprep.subr.bf16.mxu0 0
    %1478 = vmatpush1.bf16.msra.mxu0 0
    %1479 = vmatprep.subr.bf16.mxu0 0
    %1480 = vmatpush1.bf16.msra.mxu0 0
    %1481 = vmatprep.subr.bf16.mxu0 0
    %1482 = vmatpush1.bf16.msra.mxu0 0
    %1483 = vmatprep.subr.bf16.mxu0 0
    %1484 = vmatpush1.bf16.msra.mxu0 0
    %1485 = vmatprep.subr.bf16.mxu0 0
    %1486 = vmatpush1.bf16.msra.mxu0 0
    %1487 = vmatprep.subr.bf16.mxu0 0
    %1488 = vmatpush1.bf16.msra.mxu0 0
    %1489 = vmatprep.mubr.bf16.mxu0 0
    %1490 = vmatmul.mubr.bf16.gmra.mrb[0].mxu0 %v1223
    %v1491 = vpop.f32.mrb[0].mxu0
    %v1492 = vadd.f32 0.0, %v1491
    %v1493 = vpop.f32.mrb[0].mxu0
    %v1494 = vadd.f32 0.0, %v1493
    %v1495 = vpop.f32.mrb[0].mxu0
    %v1496 = vpop.f32.mrb[0].mxu0
    %1497 = vdwg.mxu0
    %v1498 = vunpack.c.l.bf16 %v1221
    %v1499 = vunpack.c.h.bf16 %v1221
    %v1500 = vunpack.c.l.bf16 %v1222
    %v1501 = vunpack.c.h.bf16 %v1222
    %v1502 = vadd.f32 %v1498, %v1451
    %v1503 = vadd.f32 %v1499, %v1453
    %v1504 = vadd.f32 %v1500, %v1492
    %v1505 = vadd.f32 %v1501, %v1494
    %v1506 = vmul.f32 %v1502, 0.5
    %v1507 = vtanh.pop %v1506
    %v1508 = vmul.f32 %v1507, 0.5
    %v1509 = vadd.f32 %v1508, 0.5
    %v1510 = vmul.f32 %v1503, 0.5
    %v1511 = vtanh.pop %v1510
    %v1512 = vmul.f32 %v1511, 0.5
    %v1513 = vadd.f32 %v1512, 0.5
    %v1514 = vtanh.pop %v1504
    %v1515 = vmul.f32 %v1505, 0.5
    %v1516 = vtanh.pop %v1515
    %v1517 = vmul.f32 %v1516, 0.5
    %v1518 = vadd.f32 %v1517, 0.5
    %v1519 = vmul.f32 %v1513, %v1215
    %v1520 = vmul.f32 %v1509, %v1514
    %v1521 = vadd.f32 %v1519, %v1520
    %v1522 = vtanh.pop %v1521
    %v1523 = vmul.f32 %v1518, %v1522
    %s1524 = scalar_lea.vmem [#allocation14], 16
    %1525 = vst [vmem:[%s1524] sm:$0xff] %v1523
    %s1526 = scalar_lea.vmem [#allocation4], 48
    %v1527 = vld [vmem:[%s1526] sm:$0xff]
    %v1528 = vld [vmem:[%s1526 + $0x8] sm:$0xff]
    %v1529 = vpack.c.bf16 %v1523, %v1523
    %v1530 = vld [vmem:[#allocation11] sm:$0xff]
    %v1531 = vld [vmem:[#allocation11 + $0x8] sm:$0xff]
    %v1532 = vld [vmem:[#allocation11 + $0x10] sm:$0xff]
    %v1533 = vld [vmem:[#allocation11 + $0x18] sm:$0xff]
    %v1534 = vld [vmem:[#allocation11 + $0x20] sm:$0xff]
    %v1535 = vld [vmem:[#allocation11 + $0x28] sm:$0xff]
    %v1536 = vld [vmem:[#allocation11 + $0x30] sm:$0xff]
    %v1537 = vld [vmem:[#allocation11 + $0x38] sm:$0xff]
    %v1538 = vld [vmem:[#allocation11 + $0x40] sm:$0xff]
    %v1539 = vld [vmem:[#allocation11 + $0x48] sm:$0xff]
    %v1540 = vld [vmem:[#allocation11 + $0x50] sm:$0xff]
    %v1541 = vld [vmem:[#allocation11 + $0x58] sm:$0xff]
    %v1542 = vld [vmem:[#allocation11 + $0x60] sm:$0xff]
    %v1543 = vld [vmem:[#allocation11 + $0x68] sm:$0xff]
    %v1544 = vld [vmem:[#allocation11 + $0x70] sm:$0xff]
    %v1545 = vld [vmem:[#allocation11 + $0x78] sm:$0xff]
    %v1546 = vld [vmem:[#allocation11 + $0x80] sm:$0xff]
    %v1547 = vld [vmem:[#allocation11 + $0x88] sm:$0xff]
    %v1548 = vld [vmem:[#allocation11 + $0x90] sm:$0xff]
    %v1549 = vld [vmem:[#allocation11 + $0x98] sm:$0xff]
    %v1550 = vld [vmem:[#allocation11 + $0xa0] sm:$0xff]
    %v1551 = vld [vmem:[#allocation11 + $0xa8] sm:$0xff]
    %v1552 = vld [vmem:[#allocation11 + $0xb0] sm:$0xff]
    %v1553 = vld [vmem:[#allocation11 + $0xb8] sm:$0xff]
    %v1554 = vld [vmem:[#allocation11 + $0xc0] sm:$0xff]
    %v1555 = vld [vmem:[#allocation11 + $0xc8] sm:$0xff]
    %v1556 = vld [vmem:[#allocation11 + $0xd0] sm:$0xff]
    %v1557 = vld [vmem:[#allocation11 + $0xd8] sm:$0xff]
    %v1558 = vld [vmem:[#allocation11 + $0xe0] sm:$0xff]
    %v1559 = vld [vmem:[#allocation11 + $0xe8] sm:$0xff]
    %v1560 = vld [vmem:[#allocation11 + $0xf0] sm:$0xff]
    %v1561 = vld [vmem:[#allocation11 + $0xf8] sm:$0xff]
    %v1594 = vunpack.c.l.b16 %v1530
    %v1595 = vunpack.c.h.b16 %v1530
    %v1596 = vunpack.c.l.b16 %v1531
    %v1597 = vunpack.c.h.b16 %v1531
    %v1598 = vunpack.c.l.b16 %v1532
    %v1599 = vunpack.c.h.b16 %v1532
    %v1600 = vunpack.c.l.b16 %v1533
    %v1601 = vunpack.c.h.b16 %v1533
    %v1602 = vunpack.c.l.b16 %v1534
    %v1603 = vunpack.c.h.b16 %v1534
    %v1604 = vunpack.c.l.b16 %v1535
    %v1605 = vunpack.c.h.b16 %v1535
    %v1606 = vunpack.c.l.b16 %v1536
    %v1607 = vunpack.c.h.b16 %v1536
    %v1608 = vunpack.c.l.b16 %v1537
    %v1609 = vunpack.c.h.b16 %v1537
    %v1610 = vunpack.c.l.b16 %v1538
    %v1611 = vunpack.c.h.b16 %v1538
    %v1612 = vunpack.c.l.b16 %v1539
    %v1613 = vunpack.c.h.b16 %v1539
    %v1614 = vunpack.c.l.b16 %v1540
    %v1615 = vunpack.c.h.b16 %v1540
    %v1616 = vunpack.c.l.b16 %v1541
    %v1617 = vunpack.c.h.b16 %v1541
    %v1618 = vunpack.c.l.b16 %v1542
    %v1619 = vunpack.c.h.b16 %v1542
    %v1620 = vunpack.c.l.b16 %v1543
    %v1621 = vunpack.c.h.b16 %v1543
    %v1622 = vunpack.c.l.b16 %v1544
    %v1623 = vunpack.c.h.b16 %v1544
    %v1624 = vunpack.c.l.b16 %v1545
    %v1625 = vunpack.c.h.b16 %v1545
    %v1626 = vunpack.c.l.b16 %v1546
    %v1627 = vunpack.c.h.b16 %v1546
    %v1628 = vunpack.c.l.b16 %v1547
    %v1629 = vunpack.c.h.b16 %v1547
    %v1630 = vunpack.c.l.b16 %v1548
    %v1631 = vunpack.c.h.b16 %v1548
    %v1632 = vunpack.c.l.b16 %v1549
    %v1633 = vunpack.c.h.b16 %v1549
    %v1634 = vunpack.c.l.b16 %v1550
    %v1635 = vunpack.c.h.b16 %v1550
    %v1636 = vunpack.c.l.b16 %v1551
    %v1637 = vunpack.c.h.b16 %v1551
    %v1638 = vunpack.c.l.b16 %v1552
    %v1639 = vunpack.c.h.b16 %v1552
    %v1640 = vunpack.c.l.b16 %v1553
    %v1641 = vunpack.c.h.b16 %v1553
    %v1642 = vunpack.c.l.b16 %v1554
    %v1643 = vunpack.c.h.b16 %v1554
    %v1644 = vunpack.c.l.b16 %v1555
    %v1645 = vunpack.c.h.b16 %v1555
    %v1646 = vunpack.c.l.b16 %v1556
    %v1647 = vunpack.c.h.b16 %v1556
    %v1648 = vunpack.c.l.b16 %v1557
    %v1649 = vunpack.c.h.b16 %v1557
    %v1650 = vunpack.c.l.b16 %v1558
    %v1651 = vunpack.c.h.b16 %v1558
    %v1652 = vunpack.c.l.b16 %v1559
    %v1653 = vunpack.c.h.b16 %v1559
    %v1654 = vunpack.c.l.b16 %v1560
    %v1655 = vunpack.c.h.b16 %v1560
    %v1656 = vunpack.c.l.b16 %v1561
    %v1657 = vunpack.c.h.b16 %v1561
    %v1658 = vpack.c.b16 %v1598, %v1594
    %v1659 = vpack.c.b16 %v1599, %v1595
    %v1660 = vpack.c.b16 %v1600, %v1596
    %v1661 = vpack.c.b16 %v1601, %v1597
    %v1662 = vpack.c.b16 %v1606, %v1602
    %v1663 = vpack.c.b16 %v1607, %v1603
    %v1664 = vpack.c.b16 %v1608, %v1604
    %v1665 = vpack.c.b16 %v1609, %v1605
    %v1666 = vpack.c.b16 %v1614, %v1610
    %v1667 = vpack.c.b16 %v1615, %v1611
    %v1668 = vpack.c.b16 %v1616, %v1612
    %v1669 = vpack.c.b16 %v1617, %v1613
    %v1670 = vpack.c.b16 %v1622, %v1618
    %v1671 = vpack.c.b16 %v1623, %v1619
    %v1672 = vpack.c.b16 %v1624, %v1620
    %v1673 = vpack.c.b16 %v1625, %v1621
    %v1674 = vpack.c.b16 %v1630, %v1626
    %v1675 = vpack.c.b16 %v1631, %v1627
    %v1676 = vpack.c.b16 %v1632, %v1628
    %v1677 = vpack.c.b16 %v1633, %v1629
    %v1678 = vpack.c.b16 %v1638, %v1634
    %v1679 = vpack.c.b16 %v1639, %v1635
    %v1680 = vpack.c.b16 %v1640, %v1636
    %v1681 = vpack.c.b16 %v1641, %v1637
    %v1682 = vpack.c.b16 %v1646, %v1642
    %v1683 = vpack.c.b16 %v1647, %v1643
    %v1684 = vpack.c.b16 %v1648, %v1644
    %v1685 = vpack.c.b16 %v1649, %v1645
    %v1686 = vpack.c.b16 %v1654, %v1650
    %v1687 = vpack.c.b16 %v1655, %v1651
    %v1688 = vpack.c.b16 %v1656, %v1652
    %v1689 = vpack.c.b16 %v1657, %v1653
    %1722 = vmatprep.subr.bf16.mxu0 %v1659
    %1723 = vmatpush1.bf16.msra.mxu0 %v1658
    %1724 = vmatprep.subr.bf16.mxu0 %v1663
    %1725 = vmatpush1.bf16.msra.mxu0 %v1662
    %1726 = vmatprep.subr.bf16.mxu0 %v1667
    %1727 = vmatpush1.bf16.msra.mxu0 %v1666
    %1728 = vmatprep.subr.bf16.mxu0 %v1671
    %1729 = vmatpush1.bf16.msra.mxu0 %v1670
    %1730 = vmatprep.subr.bf16.mxu0 %v1675
    %1731 = vmatpush1.bf16.msra.mxu0 %v1674
    %1732 = vmatprep.subr.bf16.mxu0 %v1679
    %1733 = vmatpush1.bf16.msra.mxu0 %v1678
    %1734 = vmatprep.subr.bf16.mxu0 %v1683
    %1735 = vmatpush1.bf16.msra.mxu0 %v1682
    %1736 = vmatprep.subr.bf16.mxu0 %v1687
    %1737 = vmatpush1.bf16.msra.mxu0 %v1686
    %1738 = vmatprep.subr.bf16.mxu0 0
    %1739 = vmatpush1.bf16.msra.mxu0 0
    %1740 = vmatprep.subr.bf16.mxu0 0
    %1741 = vmatpush1.bf16.msra.mxu0 0
    %1742 = vmatprep.subr.bf16.mxu0 0
    %1743 = vmatpush1.bf16.msra.mxu0 0
    %1744 = vmatprep.subr.bf16.mxu0 0
    %1745 = vmatpush1.bf16.msra.mxu0 0
    %1746 = vmatprep.subr.bf16.mxu0 0
    %1747 = vmatpush1.bf16.msra.mxu0 0
    %1748 = vmatprep.subr.bf16.mxu0 0
    %1749 = vmatpush1.bf16.msra.mxu0 0
    %1750 = vmatprep.subr.bf16.mxu0 0
    %1751 = vmatpush1.bf16.msra.mxu0 0
    %1752 = vmatprep.subr.bf16.mxu0 0
    %1753 = vmatpush1.bf16.msra.mxu0 0
    %1754 = vmatprep.mubr.bf16.mxu0 0
    %1755 = vmatmul.mubr.bf16.gmra.mrb[0].mxu0 %v1529
    %v1756 = vpop.f32.mrb[0].mxu0
    %v1757 = vadd.f32 0.0, %v1756
    %v1758 = vpop.f32.mrb[0].mxu0
    %v1759 = vadd.f32 0.0, %v1758
    %v1760 = vpop.f32.mrb[0].mxu0
    %v1761 = vpop.f32.mrb[0].mxu0
    %1762 = vdwg.mxu0
    %1763 = vmatprep.subr.bf16.mxu0 %v1661
    %1764 = vmatpush1.bf16.msra.mxu0 %v1660
    %1765 = vmatprep.subr.bf16.mxu0 %v1665
    %1766 = vmatpush1.bf16.msra.mxu0 %v1664
    %1767 = vmatprep.subr.bf16.mxu0 %v1669
    %1768 = vmatpush1.bf16.msra.mxu0 %v1668
    %1769 = vmatprep.subr.bf16.mxu0 %v1673
    %1770 = vmatpush1.bf16.msra.mxu0 %v1672
    %1771 = vmatprep.subr.bf16.mxu0 %v1677
    %1772 = vmatpush1.bf16.msra.mxu0 %v1676
    %1773 = vmatprep.subr.bf16.mxu0 %v1681
    %1774 = vmatpush1.bf16.msra.mxu0 %v1680
    %1775 = vmatprep.subr.bf16.mxu0 %v1685
    %1776 = vmatpush1.bf16.msra.mxu0 %v1684
    %1777 = vmatprep.subr.bf16.mxu0 %v1689
    %1778 = vmatpush1.bf16.msra.mxu0 %v1688
    %1779 = vmatprep.subr.bf16.mxu0 0
    %1780 = vmatpush1.bf16.msra.mxu0 0
    %1781 = vmatprep.subr.bf16.mxu0 0
    %1782 = vmatpush1.bf16.msra.mxu0 0
    %1783 = vmatprep.subr.bf16.mxu0 0
    %1784 = vmatpush1.bf16.msra.mxu0 0
    %1785 = vmatprep.subr.bf16.mxu0 0
    %1786 = vmatpush1.bf16.msra.mxu0 0
    %1787 = vmatprep.subr.bf16.mxu0 0
    %1788 = vmatpush1.bf16.msra.mxu0 0
    %1789 = vmatprep.subr.bf16.mxu0 0
    %1790 = vmatpush1.bf16.msra.mxu0 0
    %1791 = vmatprep.subr.bf16.mxu0 0
    %1792 = vmatpush1.bf16.msra.mxu0 0
    %1793 = vmatprep.subr.bf16.mxu0 0
    %1794 = vmatpush1.bf16.msra.mxu0 0
    %1795 = vmatprep.mubr.bf16.mxu0 0
    %1796 = vmatmul.mubr.bf16.gmra.mrb[0].mxu0 %v1529
    %v1797 = vpop.f32.mrb[0].mxu0
    %v1798 = vadd.f32 0.0, %v1797
    %v1799 = vpop.f32.mrb[0].mxu0
    %v1800 = vadd.f32 0.0, %v1799
    %v1801 = vpop.f32.mrb[0].mxu0
    %v1802 = vpop.f32.mrb[0].mxu0
    %1803 = vdwg.mxu0
    %v1804 = vunpack.c.l.bf16 %v1527
    %v1805 = vunpack.c.h.bf16 %v1527
    %v1806 = vunpack.c.l.bf16 %v1528
    %v1807 = vunpack.c.h.bf16 %v1528
    %v1808 = vadd.f32 %v1804, %v1757
    %v1809 = vadd.f32 %v1805, %v1759
    %v1810 = vadd.f32 %v1806, %v1798
    %v1811 = vadd.f32 %v1807, %v1800
    %v1812 = vmul.f32 %v1808, 0.5
    %v1813 = vtanh.pop %v1812
    %v1814 = vmul.f32 %v1813, 0.5
    %v1815 = vadd.f32 %v1814, 0.5
    %v1816 = vmul.f32 %v1809, 0.5
    %v1817 = vtanh.pop %v1816
    %v1818 = vmul.f32 %v1817, 0.5
    %v1819 = vadd.f32 %v1818, 0.5
    %v1820 = vtanh.pop %v1810
    %v1821 = vmul.f32 %v1811, 0.5
    %v1822 = vtanh.pop %v1821
    %v1823 = vmul.f32 %v1822, 0.5
    %v1824 = vadd.f32 %v1823, 0.5
    %v1825 = vmul.f32 %v1819, %v1521
    %v1826 = vmul.f32 %v1815, %v1820
    %v1827 = vadd.f32 %v1825, %v1826
    %v1828 = vtanh.pop %v1827
    %v1829 = vmul.f32 %v1824, %v1828
    %s1830 = scalar_lea.vmem [#allocation14], 24
    %1831 = vst [vmem:[%s1830] sm:$0xff] %v1829
    %s1832 = scalar_lea.vmem [#allocation4], 64
    %v1833 = vld [vmem:[%s1832] sm:$0xff]
    %v1834 = vld [vmem:[%s1832 + $0x8] sm:$0xff]
    %v1835 = vpack.c.bf16 %v1829, %v1829
    %v1836 = vld [vmem:[#allocation11] sm:$0xff]
    %v1837 = vld [vmem:[#allocation11 + $0x8] sm:$0xff]
    %v1838 = vld [vmem:[#allocation11 + $0x10] sm:$0xff]
    %v1839 = vld [vmem:[#allocation11 + $0x18] sm:$0xff]
    %v1840 = vld [vmem:[#allocation11 + $0x20] sm:$0xff]
    %v1841 = vld [vmem:[#allocation11 + $0x28] sm:$0xff]
    %v1842 = vld [vmem:[#allocation11 + $0x30] sm:$0xff]
    %v1843 = vld [vmem:[#allocation11 + $0x38] sm:$0xff]
    %v1844 = vld [vmem:[#allocation11 + $0x40] sm:$0xff]
    %v1845 = vld [vmem:[#allocation11 + $0x48] sm:$0xff]
    %v1846 = vld [vmem:[#allocation11 + $0x50] sm:$0xff]
    %v1847 = vld [vmem:[#allocation11 + $0x58] sm:$0xff]
    %v1848 = vld [vmem:[#allocation11 + $0x60] sm:$0xff]
    %v1849 = vld [vmem:[#allocation11 + $0x68] sm:$0xff]
    %v1850 = vld [vmem:[#allocation11 + $0x70] sm:$0xff]
    %v1851 = vld [vmem:[#allocation11 + $0x78] sm:$0xff]
    %v1852 = vld [vmem:[#allocation11 + $0x80] sm:$0xff]
    %v1853 = vld [vmem:[#allocation11 + $0x88] sm:$0xff]
    %v1854 = vld [vmem:[#allocation11 + $0x90] sm:$0xff]
    %v1855 = vld [vmem:[#allocation11 + $0x98] sm:$0xff]
    %v1856 = vld [vmem:[#allocation11 + $0xa0] sm:$0xff]
    %v1857 = vld [vmem:[#allocation11 + $0xa8] sm:$0xff]
    %v1858 = vld [vmem:[#allocation11 + $0xb0] sm:$0xff]
    %v1859 = vld [vmem:[#allocation11 + $0xb8] sm:$0xff]
    %v1860 = vld [vmem:[#allocation11 + $0xc0] sm:$0xff]
    %v1861 = vld [vmem:[#allocation11 + $0xc8] sm:$0xff]
    %v1862 = vld [vmem:[#allocation11 + $0xd0] sm:$0xff]
    %v1863 = vld [vmem:[#allocation11 + $0xd8] sm:$0xff]
    %v1864 = vld [vmem:[#allocation11 + $0xe0] sm:$0xff]
    %v1865 = vld [vmem:[#allocation11 + $0xe8] sm:$0xff]
    %v1866 = vld [vmem:[#allocation11 + $0xf0] sm:$0xff]
    %v1867 = vld [vmem:[#allocation11 + $0xf8] sm:$0xff]
    %v1900 = vunpack.c.l.b16 %v1836
    %v1901 = vunpack.c.h.b16 %v1836
    %v1902 = vunpack.c.l.b16 %v1837
    %v1903 = vunpack.c.h.b16 %v1837
    %v1904 = vunpack.c.l.b16 %v1838
    %v1905 = vunpack.c.h.b16 %v1838
    %v1906 = vunpack.c.l.b16 %v1839
    %v1907 = vunpack.c.h.b16 %v1839
    %v1908 = vunpack.c.l.b16 %v1840
    %v1909 = vunpack.c.h.b16 %v1840
    %v1910 = vunpack.c.l.b16 %v1841
    %v1911 = vunpack.c.h.b16 %v1841
    %v1912 = vunpack.c.l.b16 %v1842
    %v1913 = vunpack.c.h.b16 %v1842
    %v1914 = vunpack.c.l.b16 %v1843
    %v1915 = vunpack.c.h.b16 %v1843
    %v1916 = vunpack.c.l.b16 %v1844
    %v1917 = vunpack.c.h.b16 %v1844
    %v1918 = vunpack.c.l.b16 %v1845
    %v1919 = vunpack.c.h.b16 %v1845
    %v1920 = vunpack.c.l.b16 %v1846
    %v1921 = vunpack.c.h.b16 %v1846
    %v1922 = vunpack.c.l.b16 %v1847
    %v1923 = vunpack.c.h.b16 %v1847
    %v1924 = vunpack.c.l.b16 %v1848
    %v1925 = vunpack.c.h.b16 %v1848
    %v1926 = vunpack.c.l.b16 %v1849
    %v1927 = vunpack.c.h.b16 %v1849
    %v1928 = vunpack.c.l.b16 %v1850
    %v1929 = vunpack.c.h.b16 %v1850
    %v1930 = vunpack.c.l.b16 %v1851
    %v1931 = vunpack.c.h.b16 %v1851
    %v1932 = vunpack.c.l.b16 %v1852
    %v1933 = vunpack.c.h.b16 %v1852
    %v1934 = vunpack.c.l.b16 %v1853
    %v1935 = vunpack.c.h.b16 %v1853
    %v1936 = vunpack.c.l.b16 %v1854
    %v1937 = vunpack.c.h.b16 %v1854
    %v1938 = vunpack.c.l.b16 %v1855
    %v1939 = vunpack.c.h.b16 %v1855
    %v1940 = vunpack.c.l.b16 %v1856
    %v1941 = vunpack.c.h.b16 %v1856
    %v1942 = vunpack.c.l.b16 %v1857
    %v1943 = vunpack.c.h.b16 %v1857
    %v1944 = vunpack.c.l.b16 %v1858
    %v1945 = vunpack.c.h.b16 %v1858
    %v1946 = vunpack.c.l.b16 %v1859
    %v1947 = vunpack.c.h.b16 %v1859
    %v1948 = vunpack.c.l.b16 %v1860
    %v1949 = vunpack.c.h.b16 %v1860
    %v1950 = vunpack.c.l.b16 %v1861
    %v1951 = vunpack.c.h.b16 %v1861
    %v1952 = vunpack.c.l.b16 %v1862
    %v1953 = vunpack.c.h.b16 %v1862
    %v1954 = vunpack.c.l.b16 %v1863
    %v1955 = vunpack.c.h.b16 %v1863
    %v1956 = vunpack.c.l.b16 %v1864
    %v1957 = vunpack.c.h.b16 %v1864
    %v1958 = vunpack.c.l.b16 %v1865
    %v1959 = vunpack.c.h.b16 %v1865
    %v1960 = vunpack.c.l.b16 %v1866
    %v1961 = vunpack.c.h.b16 %v1866
    %v1962 = vunpack.c.l.b16 %v1867
    %v1963 = vunpack.c.h.b16 %v1867
    %v1964 = vpack.c.b16 %v1904, %v1900
    %v1965 = vpack.c.b16 %v1905, %v1901
    %v1966 = vpack.c.b16 %v1906, %v1902
    %v1967 = vpack.c.b16 %v1907, %v1903
    %v1968 = vpack.c.b16 %v1912, %v1908
    %v1969 = vpack.c.b16 %v1913, %v1909
    %v1970 = vpack.c.b16 %v1914, %v1910
    %v1971 = vpack.c.b16 %v1915, %v1911
    %v1972 = vpack.c.b16 %v1920, %v1916
    %v1973 = vpack.c.b16 %v1921, %v1917
    %v1974 = vpack.c.b16 %v1922, %v1918
    %v1975 = vpack.c.b16 %v1923, %v1919
    %v1976 = vpack.c.b16 %v1928, %v1924
    %v1977 = vpack.c.b16 %v1929, %v1925
    %v1978 = vpack.c.b16 %v1930, %v1926
    %v1979 = vpack.c.b16 %v1931, %v1927
    %v1980 = vpack.c.b16 %v1936, %v1932
    %v1981 = vpack.c.b16 %v1937, %v1933
    %v1982 = vpack.c.b16 %v1938, %v1934
    %v1983 = vpack.c.b16 %v1939, %v1935
    %v1984 = vpack.c.b16 %v1944, %v1940
    %v1985 = vpack.c.b16 %v1945, %v1941
    %v1986 = vpack.c.b16 %v1946, %v1942
    %v1987 = vpack.c.b16 %v1947, %v1943
    %v1988 = vpack.c.b16 %v1952, %v1948
    %v1989 = vpack.c.b16 %v1953, %v1949
    %v1990 = vpack.c.b16 %v1954, %v1950
    %v1991 = vpack.c.b16 %v1955, %v1951
    %v1992 = vpack.c.b16 %v1960, %v1956
    %v1993 = vpack.c.b16 %v1961, %v1957
    %v1994 = vpack.c.b16 %v1962, %v1958
    %v1995 = vpack.c.b16 %v1963, %v1959
    %2028 = vmatprep.subr.bf16.mxu0 %v1965
    %2029 = vmatpush1.bf16.msra.mxu0 %v1964
    %2030 = vmatprep.subr.bf16.mxu0 %v1969
    %2031 = vmatpush1.bf16.msra.mxu0 %v1968
    %2032 = vmatprep.subr.bf16.mxu0 %v1973
    %2033 = vmatpush1.bf16.msra.mxu0 %v1972
    %2034 = vmatprep.subr.bf16.mxu0 %v1977
    %2035 = vmatpush1.bf16.msra.mxu0 %v1976
    %2036 = vmatprep.subr.bf16.mxu0 %v1981
    %2037 = vmatpush1.bf16.msra.mxu0 %v1980
    %2038 = vmatprep.subr.bf16.mxu0 %v1985
    %2039 = vmatpush1.bf16.msra.mxu0 %v1984
    %2040 = vmatprep.subr.bf16.mxu0 %v1989
    %2041 = vmatpush1.bf16.msra.mxu0 %v1988
    %2042 = vmatprep.subr.bf16.mxu0 %v1993
    %2043 = vmatpush1.bf16.msra.mxu0 %v1992
    %2044 = vmatprep.subr.bf16.mxu0 0
    %2045 = vmatpush1.bf16.msra.mxu0 0
    %2046 = vmatprep.subr.bf16.mxu0 0
    %2047 = vmatpush1.bf16.msra.mxu0 0
    %2048 = vmatprep.subr.bf16.mxu0 0
    %2049 = vmatpush1.bf16.msra.mxu0 0
    %2050 = vmatprep.subr.bf16.mxu0 0
    %2051 = vmatpush1.bf16.msra.mxu0 0
    %2052 = vmatprep.subr.bf16.mxu0 0
    %2053 = vmatpush1.bf16.msra.mxu0 0
    %2054 = vmatprep.subr.bf16.mxu0 0
    %2055 = vmatpush1.bf16.msra.mxu0 0
    %2056 = vmatprep.subr.bf16.mxu0 0
    %2057 = vmatpush1.bf16.msra.mxu0 0
    %2058 = vmatprep.subr.bf16.mxu0 0
    %2059 = vmatpush1.bf16.msra.mxu0 0
    %2060 = vmatprep.mubr.bf16.mxu0 0
    %2061 = vmatmul.mubr.bf16.gmra.mrb[0].mxu0 %v1835
    %v2062 = vpop.f32.mrb[0].mxu0
    %v2063 = vadd.f32 0.0, %v2062
    %v2064 = vpop.f32.mrb[0].mxu0
    %v2065 = vadd.f32 0.0, %v2064
    %v2066 = vpop.f32.mrb[0].mxu0
    %v2067 = vpop.f32.mrb[0].mxu0
    %2068 = vdwg.mxu0
    %2069 = vmatprep.subr.bf16.mxu0 %v1967
    %2070 = vmatpush1.bf16.msra.mxu0 %v1966
    %2071 = vmatprep.subr.bf16.mxu0 %v1971
    %2072 = vmatpush1.bf16.msra.mxu0 %v1970
    %2073 = vmatprep.subr.bf16.mxu0 %v1975
    %2074 = vmatpush1.bf16.msra.mxu0 %v1974
    %2075 = vmatprep.subr.bf16.mxu0 %v1979
    %2076 = vmatpush1.bf16.msra.mxu0 %v1978
    %2077 = vmatprep.subr.bf16.mxu0 %v1983
    %2078 = vmatpush1.bf16.msra.mxu0 %v1982
    %2079 = vmatprep.subr.bf16.mxu0 %v1987
    %2080 = vmatpush1.bf16.msra.mxu0 %v1986
    %2081 = vmatprep.subr.bf16.mxu0 %v1991
    %2082 = vmatpush1.bf16.msra.mxu0 %v1990
    %2083 = vmatprep.subr.bf16.mxu0 %v1995
    %2084 = vmatpush1.bf16.msra.mxu0 %v1994
    %2085 = vmatprep.subr.bf16.mxu0 0
    %2086 = vmatpush1.bf16.msra.mxu0 0
    %2087 = vmatprep.subr.bf16.mxu0 0
    %2088 = vmatpush1.bf16.msra.mxu0 0
    %2089 = vmatprep.subr.bf16.mxu0 0
    %2090 = vmatpush1.bf16.msra.mxu0 0
    %2091 = vmatprep.subr.bf16.mxu0 0
    %2092 = vmatpush1.bf16.msra.mxu0 0
    %2093 = vmatprep.subr.bf16.mxu0 0
    %2094 = vmatpush1.bf16.msra.mxu0 0
    %2095 = vmatprep.subr.bf16.mxu0 0
    %2096 = vmatpush1.bf16.msra.mxu0 0
    %2097 = vmatprep.subr.bf16.mxu0 0
    %2098 = vmatpush1.bf16.msra.mxu0 0
    %2099 = vmatprep.subr.bf16.mxu0 0
    %2100 = vmatpush1.bf16.msra.mxu0 0
    %2101 = vmatprep.mubr.bf16.mxu0 0
    %2102 = vmatmul.mubr.bf16.gmra.mrb[0].mxu0 %v1835
    %v2103 = vpop.f32.mrb[0].mxu0
    %v2104 = vadd.f32 0.0, %v2103
    %v2105 = vpop.f32.mrb[0].mxu0
    %v2106 = vadd.f32 0.0, %v2105
    %v2107 = vpop.f32.mrb[0].mxu0
    %v2108 = vpop.f32.mrb[0].mxu0
    %2109 = vdwg.mxu0
    %v2110 = vunpack.c.l.bf16 %v1833
    %v2111 = vunpack.c.h.bf16 %v1833
    %v2112 = vunpack.c.l.bf16 %v1834
    %v2113 = vunpack.c.h.bf16 %v1834
    %v2114 = vadd.f32 %v2110, %v2063
    %v2115 = vadd.f32 %v2111, %v2065
    %v2116 = vadd.f32 %v2112, %v2104
    %v2117 = vadd.f32 %v2113, %v2106
    %v2118 = vmul.f32 %v2114, 0.5
    %v2119 = vtanh.pop %v2118
    %v2120 = vmul.f32 %v2119, 0.5
    %v2121 = vadd.f32 %v2120, 0.5
    %v2122 = vmul.f32 %v2115, 0.5
    %v2123 = vtanh.pop %v2122
    %v2124 = vmul.f32 %v2123, 0.5
    %v2125 = vadd.f32 %v2124, 0.5
    %v2126 = vtanh.pop %v2116
    %v2127 = vmul.f32 %v2117, 0.5
    %v2128 = vtanh.pop %v2127
    %v2129 = vmul.f32 %v2128, 0.5
    %v2130 = vadd.f32 %v2129, 0.5
    %v2131 = vmul.f32 %v2125, %v1827
    %v2132 = vmul.f32 %v2121, %v2126
    %v2133 = vadd.f32 %v2131, %v2132
    %v2134 = vtanh.pop %v2133
    %v2135 = vmul.f32 %v2130, %v2134
    %s2136 = scalar_lea.vmem [#allocation14], 32
    %2137 = vst [vmem:[%s2136] sm:$0xff] %v2135
    %s2138 = scalar_lea.vmem [#allocation4], 80
    %v2139 = vld [vmem:[%s2138] sm:$0xff]
    %v2140 = vld [vmem:[%s2138 + $0x8] sm:$0xff]
    %v2141 = vpack.c.bf16 %v2135, %v2135
    %v2142 = vld [vmem:[#allocation11] sm:$0xff]
    %v2143 = vld [vmem:[#allocation11 + $0x8] sm:$0xff]
    %v2144 = vld [vmem:[#allocation11 + $0x10] sm:$0xff]
    %v2145 = vld [vmem:[#allocation11 + $0x18] sm:$0xff]
    %v2146 = vld [vmem:[#allocation11 + $0x20] sm:$0xff]
    %v2147 = vld [vmem:[#allocation11 + $0x28] sm:$0xff]
    %v2148 = vld [vmem:[#allocation11 + $0x30] sm:$0xff]
    %v2149 = vld [vmem:[#allocation11 + $0x38] sm:$0xff]
    %v2150 = vld [vmem:[#allocation11 + $0x40] sm:$0xff]
    %v2151 = vld [vmem:[#allocation11 + $0x48] sm:$0xff]
    %v2152 = vld [vmem:[#allocation11 + $0x50] sm:$0xff]
    %v2153 = vld [vmem:[#allocation11 + $0x58] sm:$0xff]
    %v2154 = vld [vmem:[#allocation11 + $0x60] sm:$0xff]
    %v2155 = vld [vmem:[#allocation11 + $0x68] sm:$0xff]
    %v2156 = vld [vmem:[#allocation11 + $0x70] sm:$0xff]
    %v2157 = vld [vmem:[#allocation11 + $0x78] sm:$0xff]
    %v2158 = vld [vmem:[#allocation11 + $0x80] sm:$0xff]
    %v2159 = vld [vmem:[#allocation11 + $0x88] sm:$0xff]
    %v2160 = vld [vmem:[#allocation11 + $0x90] sm:$0xff]
    %v2161 = vld [vmem:[#allocation11 + $0x98] sm:$0xff]
    %v2162 = vld [vmem:[#allocation11 + $0xa0] sm:$0xff]
    %v2163 = vld [vmem:[#allocation11 + $0xa8] sm:$0xff]
    %v2164 = vld [vmem:[#allocation11 + $0xb0] sm:$0xff]
    %v2165 = vld [vmem:[#allocation11 + $0xb8] sm:$0xff]
    %v2166 = vld [vmem:[#allocation11 + $0xc0] sm:$0xff]
    %v2167 = vld [vmem:[#allocation11 + $0xc8] sm:$0xff]
    %v2168 = vld [vmem:[#allocation11 + $0xd0] sm:$0xff]
    %v2169 = vld [vmem:[#allocation11 + $0xd8] sm:$0xff]
    %v2170 = vld [vmem:[#allocation11 + $0xe0] sm:$0xff]
    %v2171 = vld [vmem:[#allocation11 + $0xe8] sm:$0xff]
    %v2172 = vld [vmem:[#allocation11 + $0xf0] sm:$0xff]
    %v2173 = vld [vmem:[#allocation11 + $0xf8] sm:$0xff]
    %v2206 = vunpack.c.l.b16 %v2142
    %v2207 = vunpack.c.h.b16 %v2142
    %v2208 = vunpack.c.l.b16 %v2143
    %v2209 = vunpack.c.h.b16 %v2143
    %v2210 = vunpack.c.l.b16 %v2144
    %v2211 = vunpack.c.h.b16 %v2144
    %v2212 = vunpack.c.l.b16 %v2145
    %v2213 = vunpack.c.h.b16 %v2145
    %v2214 = vunpack.c.l.b16 %v2146
    %v2215 = vunpack.c.h.b16 %v2146
    %v2216 = vunpack.c.l.b16 %v2147
    %v2217 = vunpack.c.h.b16 %v2147
    %v2218 = vunpack.c.l.b16 %v2148
    %v2219 = vunpack.c.h.b16 %v2148
    %v2220 = vunpack.c.l.b16 %v2149
    %v2221 = vunpack.c.h.b16 %v2149
    %v2222 = vunpack.c.l.b16 %v2150
    %v2223 = vunpack.c.h.b16 %v2150
    %v2224 = vunpack.c.l.b16 %v2151
    %v2225 = vunpack.c.h.b16 %v2151
    %v2226 = vunpack.c.l.b16 %v2152
    %v2227 = vunpack.c.h.b16 %v2152
    %v2228 = vunpack.c.l.b16 %v2153
    %v2229 = vunpack.c.h.b16 %v2153
    %v2230 = vunpack.c.l.b16 %v2154
    %v2231 = vunpack.c.h.b16 %v2154
    %v2232 = vunpack.c.l.b16 %v2155
    %v2233 = vunpack.c.h.b16 %v2155
    %v2234 = vunpack.c.l.b16 %v2156
    %v2235 = vunpack.c.h.b16 %v2156
    %v2236 = vunpack.c.l.b16 %v2157
    %v2237 = vunpack.c.h.b16 %v2157
    %v2238 = vunpack.c.l.b16 %v2158
    %v2239 = vunpack.c.h.b16 %v2158
    %v2240 = vunpack.c.l.b16 %v2159
    %v2241 = vunpack.c.h.b16 %v2159
    %v2242 = vunpack.c.l.b16 %v2160
    %v2243 = vunpack.c.h.b16 %v2160
    %v2244 = vunpack.c.l.b16 %v2161
    %v2245 = vunpack.c.h.b16 %v2161
    %v2246 = vunpack.c.l.b16 %v2162
    %v2247 = vunpack.c.h.b16 %v2162
    %v2248 = vunpack.c.l.b16 %v2163
    %v2249 = vunpack.c.h.b16 %v2163
    %v2250 = vunpack.c.l.b16 %v2164
    %v2251 = vunpack.c.h.b16 %v2164
    %v2252 = vunpack.c.l.b16 %v2165
    %v2253 = vunpack.c.h.b16 %v2165
    %v2254 = vunpack.c.l.b16 %v2166
    %v2255 = vunpack.c.h.b16 %v2166
    %v2256 = vunpack.c.l.b16 %v2167
    %v2257 = vunpack.c.h.b16 %v2167
    %v2258 = vunpack.c.l.b16 %v2168
    %v2259 = vunpack.c.h.b16 %v2168
    %v2260 = vunpack.c.l.b16 %v2169
    %v2261 = vunpack.c.h.b16 %v2169
    %v2262 = vunpack.c.l.b16 %v2170
    %v2263 = vunpack.c.h.b16 %v2170
    %v2264 = vunpack.c.l.b16 %v2171
    %v2265 = vunpack.c.h.b16 %v2171
    %v2266 = vunpack.c.l.b16 %v2172
    %v2267 = vunpack.c.h.b16 %v2172
    %v2268 = vunpack.c.l.b16 %v2173
    %v2269 = vunpack.c.h.b16 %v2173
    %v2270 = vpack.c.b16 %v2210, %v2206
    %v2271 = vpack.c.b16 %v2211, %v2207
    %v2272 = vpack.c.b16 %v2212, %v2208
    %v2273 = vpack.c.b16 %v2213, %v2209
    %v2274 = vpack.c.b16 %v2218, %v2214
    %v2275 = vpack.c.b16 %v2219, %v2215
    %v2276 = vpack.c.b16 %v2220, %v2216
    %v2277 = vpack.c.b16 %v2221, %v2217
    %v2278 = vpack.c.b16 %v2226, %v2222
    %v2279 = vpack.c.b16 %v2227, %v2223
    %v2280 = vpack.c.b16 %v2228, %v2224
    %v2281 = vpack.c.b16 %v2229, %v2225
    %v2282 = vpack.c.b16 %v2234, %v2230
    %v2283 = vpack.c.b16 %v2235, %v2231
    %v2284 = vpack.c.b16 %v2236, %v2232
    %v2285 = vpack.c.b16 %v2237, %v2233
    %v2286 = vpack.c.b16 %v2242, %v2238
    %v2287 = vpack.c.b16 %v2243, %v2239
    %v2288 = vpack.c.b16 %v2244, %v2240
    %v2289 = vpack.c.b16 %v2245, %v2241
    %v2290 = vpack.c.b16 %v2250, %v2246
    %v2291 = vpack.c.b16 %v2251, %v2247
    %v2292 = vpack.c.b16 %v2252, %v2248
    %v2293 = vpack.c.b16 %v2253, %v2249
    %v2294 = vpack.c.b16 %v2258, %v2254
    %v2295 = vpack.c.b16 %v2259, %v2255
    %v2296 = vpack.c.b16 %v2260, %v2256
    %v2297 = vpack.c.b16 %v2261, %v2257
    %v2298 = vpack.c.b16 %v2266, %v2262
    %v2299 = vpack.c.b16 %v2267, %v2263
    %v2300 = vpack.c.b16 %v2268, %v2264
    %v2301 = vpack.c.b16 %v2269, %v2265
    %2334 = vmatprep.subr.bf16.mxu0 %v2271
    %2335 = vmatpush1.bf16.msra.mxu0 %v2270
    %2336 = vmatprep.subr.bf16.mxu0 %v2275
    %2337 = vmatpush1.bf16.msra.mxu0 %v2274
    %2338 = vmatprep.subr.bf16.mxu0 %v2279
    %2339 = vmatpush1.bf16.msra.mxu0 %v2278
    %2340 = vmatprep.subr.bf16.mxu0 %v2283
    %2341 = vmatpush1.bf16.msra.mxu0 %v2282
    %2342 = vmatprep.subr.bf16.mxu0 %v2287
    %2343 = vmatpush1.bf16.msra.mxu0 %v2286
    %2344 = vmatprep.subr.bf16.mxu0 %v2291
    %2345 = vmatpush1.bf16.msra.mxu0 %v2290
    %2346 = vmatprep.subr.bf16.mxu0 %v2295
    %2347 = vmatpush1.bf16.msra.mxu0 %v2294
    %2348 = vmatprep.subr.bf16.mxu0 %v2299
    %2349 = vmatpush1.bf16.msra.mxu0 %v2298
    %2350 = vmatprep.subr.bf16.mxu0 0
    %2351 = vmatpush1.bf16.msra.mxu0 0
    %2352 = vmatprep.subr.bf16.mxu0 0
    %2353 = vmatpush1.bf16.msra.mxu0 0
    %2354 = vmatprep.subr.bf16.mxu0 0
    %2355 = vmatpush1.bf16.msra.mxu0 0
    %2356 = vmatprep.subr.bf16.mxu0 0
    %2357 = vmatpush1.bf16.msra.mxu0 0
    %2358 = vmatprep.subr.bf16.mxu0 0
    %2359 = vmatpush1.bf16.msra.mxu0 0
    %2360 = vmatprep.subr.bf16.mxu0 0
    %2361 = vmatpush1.bf16.msra.mxu0 0
    %2362 = vmatprep.subr.bf16.mxu0 0
    %2363 = vmatpush1.bf16.msra.mxu0 0
    %2364 = vmatprep.subr.bf16.mxu0 0
    %2365 = vmatpush1.bf16.msra.mxu0 0
    %2366 = vmatprep.mubr.bf16.mxu0 0
    %2367 = vmatmul.mubr.bf16.gmra.mrb[0].mxu0 %v2141
    %v2368 = vpop.f32.mrb[0].mxu0
    %v2369 = vadd.f32 0.0, %v2368
    %v2370 = vpop.f32.mrb[0].mxu0
    %v2371 = vadd.f32 0.0, %v2370
    %v2372 = vpop.f32.mrb[0].mxu0
    %v2373 = vpop.f32.mrb[0].mxu0
    %2374 = vdwg.mxu0
    %2375 = vmatprep.subr.bf16.mxu0 %v2273
    %2376 = vmatpush1.bf16.msra.mxu0 %v2272
    %2377 = vmatprep.subr.bf16.mxu0 %v2277
    %2378 = vmatpush1.bf16.msra.mxu0 %v2276
    %2379 = vmatprep.subr.bf16.mxu0 %v2281
    %2380 = vmatpush1.bf16.msra.mxu0 %v2280
    %2381 = vmatprep.subr.bf16.mxu0 %v2285
    %2382 = vmatpush1.bf16.msra.mxu0 %v2284
    %2383 = vmatprep.subr.bf16.mxu0 %v2289
    %2384 = vmatpush1.bf16.msra.mxu0 %v2288
    %2385 = vmatprep.subr.bf16.mxu0 %v2293
    %2386 = vmatpush1.bf16.msra.mxu0 %v2292
    %2387 = vmatprep.subr.bf16.mxu0 %v2297
    %2388 = vmatpush1.bf16.msra.mxu0 %v2296
    %2389 = vmatprep.subr.bf16.mxu0 %v2301
    %2390 = vmatpush1.bf16.msra.mxu0 %v2300
    %2391 = vmatprep.subr.bf16.mxu0 0
    %2392 = vmatpush1.bf16.msra.mxu0 0
    %2393 = vmatprep.subr.bf16.mxu0 0
    %2394 = vmatpush1.bf16.msra.mxu0 0
    %2395 = vmatprep.subr.bf16.mxu0 0
    %2396 = vmatpush1.bf16.msra.mxu0 0
    %2397 = vmatprep.subr.bf16.mxu0 0
    %2398 = vmatpush1.bf16.msra.mxu0 0
    %2399 = vmatprep.subr.bf16.mxu0 0
    %2400 = vmatpush1.bf16.msra.mxu0 0
    %2401 = vmatprep.subr.bf16.mxu0 0
    %2402 = vmatpush1.bf16.msra.mxu0 0
    %2403 = vmatprep.subr.bf16.mxu0 0
    %2404 = vmatpush1.bf16.msra.mxu0 0
    %2405 = vmatprep.subr.bf16.mxu0 0
    %2406 = vmatpush1.bf16.msra.mxu0 0
    %2407 = vmatprep.mubr.bf16.mxu0 0
    %2408 = vmatmul.mubr.bf16.gmra.mrb[0].mxu0 %v2141
    %v2409 = vpop.f32.mrb[0].mxu0
    %v2410 = vadd.f32 0.0, %v2409
    %v2411 = vpop.f32.mrb[0].mxu0
    %v2412 = vadd.f32 0.0, %v2411
    %v2413 = vpop.f32.mrb[0].mxu0
    %v2414 = vpop.f32.mrb[0].mxu0
    %2415 = vdwg.mxu0
    %v2416 = vunpack.c.l.bf16 %v2139
    %v2417 = vunpack.c.h.bf16 %v2139
    %v2418 = vunpack.c.l.bf16 %v2140
    %v2419 = vunpack.c.h.bf16 %v2140
    %v2420 = vadd.f32 %v2416, %v2369
    %v2421 = vadd.f32 %v2417, %v2371
    %v2422 = vadd.f32 %v2418, %v2410
    %v2423 = vadd.f32 %v2419, %v2412
    %v2424 = vmul.f32 %v2420, 0.5
    %v2425 = vtanh.pop %v2424
    %v2426 = vmul.f32 %v2425, 0.5
    %v2427 = vadd.f32 %v2426, 0.5
    %v2428 = vmul.f32 %v2421, 0.5
    %v2429 = vtanh.pop %v2428
    %v2430 = vmul.f32 %v2429, 0.5
    %v2431 = vadd.f32 %v2430, 0.5
    %v2432 = vtanh.pop %v2422
    %v2433 = vmul.f32 %v2423, 0.5
    %v2434 = vtanh.pop %v2433
    %v2435 = vmul.f32 %v2434, 0.5
    %v2436 = vadd.f32 %v2435, 0.5
    %v2437 = vmul.f32 %v2431, %v2133
    %v2438 = vmul.f32 %v2427, %v2432
    %v2439 = vadd.f32 %v2437, %v2438
    %v2440 = vtanh.pop %v2439
    %v2441 = vmul.f32 %v2436, %v2440
    %s2442 = scalar_lea.vmem [#allocation14], 40
    %2443 = vst [vmem:[%s2442] sm:$0xff] %v2441
    %s2444 = scalar_lea.vmem [#allocation4], 96
    %v2445 = vld [vmem:[%s2444] sm:$0xff]
    %v2446 = vld [vmem:[%s2444 + $0x8] sm:$0xff]
    %v2447 = vpack.c.bf16 %v2441, %v2441
    %v2448 = vld [vmem:[#allocation11] sm:$0xff]
    %v2449 = vld [vmem:[#allocation11 + $0x8] sm:$0xff]
    %v2450 = vld [vmem:[#allocation11 + $0x10] sm:$0xff]
    %v2451 = vld [vmem:[#allocation11 + $0x18] sm:$0xff]
    %v2452 = vld [vmem:[#allocation11 + $0x20] sm:$0xff]
    %v2453 = vld [vmem:[#allocation11 + $0x28] sm:$0xff]
    %v2454 = vld [vmem:[#allocation11 + $0x30] sm:$0xff]
    %v2455 = vld [vmem:[#allocation11 + $0x38] sm:$0xff]
    %v2456 = vld [vmem:[#allocation11 + $0x40] sm:$0xff]
    %v2457 = vld [vmem:[#allocation11 + $0x48] sm:$0xff]
    %v2458 = vld [vmem:[#allocation11 + $0x50] sm:$0xff]
    %v2459 = vld [vmem:[#allocation11 + $0x58] sm:$0xff]
    %v2460 = vld [vmem:[#allocation11 + $0x60] sm:$0xff]
    %v2461 = vld [vmem:[#allocation11 + $0x68] sm:$0xff]
    %v2462 = vld [vmem:[#allocation11 + $0x70] sm:$0xff]
    %v2463 = vld [vmem:[#allocation11 + $0x78] sm:$0xff]
    %v2464 = vld [vmem:[#allocation11 + $0x80] sm:$0xff]
    %v2465 = vld [vmem:[#allocation11 + $0x88] sm:$0xff]
    %v2466 = vld [vmem:[#allocation11 + $0x90] sm:$0xff]
    %v2467 = vld [vmem:[#allocation11 + $0x98] sm:$0xff]
    %v2468 = vld [vmem:[#allocation11 + $0xa0] sm:$0xff]
    %v2469 = vld [vmem:[#allocation11 + $0xa8] sm:$0xff]
    %v2470 = vld [vmem:[#allocation11 + $0xb0] sm:$0xff]
    %v2471 = vld [vmem:[#allocation11 + $0xb8] sm:$0xff]
    %v2472 = vld [vmem:[#allocation11 + $0xc0] sm:$0xff]
    %v2473 = vld [vmem:[#allocation11 + $0xc8] sm:$0xff]
    %v2474 = vld [vmem:[#allocation11 + $0xd0] sm:$0xff]
    %v2475 = vld [vmem:[#allocation11 + $0xd8] sm:$0xff]
    %v2476 = vld [vmem:[#allocation11 + $0xe0] sm:$0xff]
    %v2477 = vld [vmem:[#allocation11 + $0xe8] sm:$0xff]
    %v2478 = vld [vmem:[#allocation11 + $0xf0] sm:$0xff]
    %v2479 = vld [vmem:[#allocation11 + $0xf8] sm:$0xff]
    %v2512 = vunpack.c.l.b16 %v2448
    %v2513 = vunpack.c.h.b16 %v2448
    %v2514 = vunpack.c.l.b16 %v2449
    %v2515 = vunpack.c.h.b16 %v2449
    %v2516 = vunpack.c.l.b16 %v2450
    %v2517 = vunpack.c.h.b16 %v2450
    %v2518 = vunpack.c.l.b16 %v2451
    %v2519 = vunpack.c.h.b16 %v2451
    %v2520 = vunpack.c.l.b16 %v2452
    %v2521 = vunpack.c.h.b16 %v2452
    %v2522 = vunpack.c.l.b16 %v2453
    %v2523 = vunpack.c.h.b16 %v2453
    %v2524 = vunpack.c.l.b16 %v2454
    %v2525 = vunpack.c.h.b16 %v2454
    %v2526 = vunpack.c.l.b16 %v2455
    %v2527 = vunpack.c.h.b16 %v2455
    %v2528 = vunpack.c.l.b16 %v2456
    %v2529 = vunpack.c.h.b16 %v2456
    %v2530 = vunpack.c.l.b16 %v2457
    %v2531 = vunpack.c.h.b16 %v2457
    %v2532 = vunpack.c.l.b16 %v2458
    %v2533 = vunpack.c.h.b16 %v2458
    %v2534 = vunpack.c.l.b16 %v2459
    %v2535 = vunpack.c.h.b16 %v2459
    %v2536 = vunpack.c.l.b16 %v2460
    %v2537 = vunpack.c.h.b16 %v2460
    %v2538 = vunpack.c.l.b16 %v2461
    %v2539 = vunpack.c.h.b16 %v2461
    %v2540 = vunpack.c.l.b16 %v2462
    %v2541 = vunpack.c.h.b16 %v2462
    %v2542 = vunpack.c.l.b16 %v2463
    %v2543 = vunpack.c.h.b16 %v2463
    %v2544 = vunpack.c.l.b16 %v2464
    %v2545 = vunpack.c.h.b16 %v2464
    %v2546 = vunpack.c.l.b16 %v2465
    %v2547 = vunpack.c.h.b16 %v2465
    %v2548 = vunpack.c.l.b16 %v2466
    %v2549 = vunpack.c.h.b16 %v2466
    %v2550 = vunpack.c.l.b16 %v2467
    %v2551 = vunpack.c.h.b16 %v2467
    %v2552 = vunpack.c.l.b16 %v2468
    %v2553 = vunpack.c.h.b16 %v2468
    %v2554 = vunpack.c.l.b16 %v2469
    %v2555 = vunpack.c.h.b16 %v2469
    %v2556 = vunpack.c.l.b16 %v2470
    %v2557 = vunpack.c.h.b16 %v2470
    %v2558 = vunpack.c.l.b16 %v2471
    %v2559 = vunpack.c.h.b16 %v2471
    %v2560 = vunpack.c.l.b16 %v2472
    %v2561 = vunpack.c.h.b16 %v2472
    %v2562 = vunpack.c.l.b16 %v2473
    %v2563 = vunpack.c.h.b16 %v2473
    %v2564 = vunpack.c.l.b16 %v2474
    %v2565 = vunpack.c.h.b16 %v2474
    %v2566 = vunpack.c.l.b16 %v2475
    %v2567 = vunpack.c.h.b16 %v2475
    %v2568 = vunpack.c.l.b16 %v2476
    %v2569 = vunpack.c.h.b16 %v2476
    %v2570 = vunpack.c.l.b16 %v2477
    %v2571 = vunpack.c.h.b16 %v2477
    %v2572 = vunpack.c.l.b16 %v2478
    %v2573 = vunpack.c.h.b16 %v2478
    %v2574 = vunpack.c.l.b16 %v2479
    %v2575 = vunpack.c.h.b16 %v2479
    %v2576 = vpack.c.b16 %v2516, %v2512
    %v2577 = vpack.c.b16 %v2517, %v2513
    %v2578 = vpack.c.b16 %v2518, %v2514
    %v2579 = vpack.c.b16 %v2519, %v2515
    %v2580 = vpack.c.b16 %v2524, %v2520
    %v2581 = vpack.c.b16 %v2525, %v2521
    %v2582 = vpack.c.b16 %v2526, %v2522
    %v2583 = vpack.c.b16 %v2527, %v2523
    %v2584 = vpack.c.b16 %v2532, %v2528
    %v2585 = vpack.c.b16 %v2533, %v2529
    %v2586 = vpack.c.b16 %v2534, %v2530
    %v2587 = vpack.c.b16 %v2535, %v2531
    %v2588 = vpack.c.b16 %v2540, %v2536
    %v2589 = vpack.c.b16 %v2541, %v2537
    %v2590 = vpack.c.b16 %v2542, %v2538
    %v2591 = vpack.c.b16 %v2543, %v2539
    %v2592 = vpack.c.b16 %v2548, %v2544
    %v2593 = vpack.c.b16 %v2549, %v2545
    %v2594 = vpack.c.b16 %v2550, %v2546
    %v2595 = vpack.c.b16 %v2551, %v2547
    %v2596 = vpack.c.b16 %v2556, %v2552
    %v2597 = vpack.c.b16 %v2557, %v2553
    %v2598 = vpack.c.b16 %v2558, %v2554
    %v2599 = vpack.c.b16 %v2559, %v2555
    %v2600 = vpack.c.b16 %v2564, %v2560
    %v2601 = vpack.c.b16 %v2565, %v2561
    %v2602 = vpack.c.b16 %v2566, %v2562
    %v2603 = vpack.c.b16 %v2567, %v2563
    %v2604 = vpack.c.b16 %v2572, %v2568
    %v2605 = vpack.c.b16 %v2573, %v2569
    %v2606 = vpack.c.b16 %v2574, %v2570
    %v2607 = vpack.c.b16 %v2575, %v2571
    %2640 = vmatprep.subr.bf16.mxu0 %v2577
    %2641 = vmatpush1.bf16.msra.mxu0 %v2576
    %2642 = vmatprep.subr.bf16.mxu0 %v2581
    %2643 = vmatpush1.bf16.msra.mxu0 %v2580
    %2644 = vmatprep.subr.bf16.mxu0 %v2585
    %2645 = vmatpush1.bf16.msra.mxu0 %v2584
    %2646 = vmatprep.subr.bf16.mxu0 %v2589
    %2647 = vmatpush1.bf16.msra.mxu0 %v2588
    %2648 = vmatprep.subr.bf16.mxu0 %v2593
    %2649 = vmatpush1.bf16.msra.mxu0 %v2592
    %2650 = vmatprep.subr.bf16.mxu0 %v2597
    %2651 = vmatpush1.bf16.msra.mxu0 %v2596
    %2652 = vmatprep.subr.bf16.mxu0 %v2601
    %2653 = vmatpush1.bf16.msra.mxu0 %v2600
    %2654 = vmatprep.subr.bf16.mxu0 %v2605
    %2655 = vmatpush1.bf16.msra.mxu0 %v2604
    %2656 = vmatprep.subr.bf16.mxu0 0
    %2657 = vmatpush1.bf16.msra.mxu0 0
    %2658 = vmatprep.subr.bf16.mxu0 0
    %2659 = vmatpush1.bf16.msra.mxu0 0
    %2660 = vmatprep.subr.bf16.mxu0 0
    %2661 = vmatpush1.bf16.msra.mxu0 0
    %2662 = vmatprep.subr.bf16.mxu0 0
    %2663 = vmatpush1.bf16.msra.mxu0 0
    %2664 = vmatprep.subr.bf16.mxu0 0
    %2665 = vmatpush1.bf16.msra.mxu0 0
    %2666 = vmatprep.subr.bf16.mxu0 0
    %2667 = vmatpush1.bf16.msra.mxu0 0
    %2668 = vmatprep.subr.bf16.mxu0 0
    %2669 = vmatpush1.bf16.msra.mxu0 0
    %2670 = vmatprep.subr.bf16.mxu0 0
    %2671 = vmatpush1.bf16.msra.mxu0 0
    %2672 = vmatprep.mubr.bf16.mxu0 0
    %2673 = vmatmul.mubr.bf16.gmra.mrb[0].mxu0 %v2447
    %v2674 = vpop.f32.mrb[0].mxu0
    %v2675 = vadd.f32 0.0, %v2674
    %v2676 = vpop.f32.mrb[0].mxu0
    %v2677 = vadd.f32 0.0, %v2676
    %v2678 = vpop.f32.mrb[0].mxu0
    %v2679 = vpop.f32.mrb[0].mxu0
    %2680 = vdwg.mxu0
    %2681 = vmatprep.subr.bf16.mxu0 %v2579
    %2682 = vmatpush1.bf16.msra.mxu0 %v2578
    %2683 = vmatprep.subr.bf16.mxu0 %v2583
    %2684 = vmatpush1.bf16.msra.mxu0 %v2582
    %2685 = vmatprep.subr.bf16.mxu0 %v2587
    %2686 = vmatpush1.bf16.msra.mxu0 %v2586
    %2687 = vmatprep.subr.bf16.mxu0 %v2591
    %2688 = vmatpush1.bf16.msra.mxu0 %v2590
    %2689 = vmatprep.subr.bf16.mxu0 %v2595
    %2690 = vmatpush1.bf16.msra.mxu0 %v2594
    %2691 = vmatprep.subr.bf16.mxu0 %v2599
    %2692 = vmatpush1.bf16.msra.mxu0 %v2598
    %2693 = vmatprep.subr.bf16.mxu0 %v2603
    %2694 = vmatpush1.bf16.msra.mxu0 %v2602
    %2695 = vmatprep.subr.bf16.mxu0 %v2607
    %2696 = vmatpush1.bf16.msra.mxu0 %v2606
    %2697 = vmatprep.subr.bf16.mxu0 0
    %2698 = vmatpush1.bf16.msra.mxu0 0
    %2699 = vmatprep.subr.bf16.mxu0 0
    %2700 = vmatpush1.bf16.msra.mxu0 0
    %2701 = vmatprep.subr.bf16.mxu0 0
    %2702 = vmatpush1.bf16.msra.mxu0 0
    %2703 = vmatprep.subr.bf16.mxu0 0
    %2704 = vmatpush1.bf16.msra.mxu0 0
    %2705 = vmatprep.subr.bf16.mxu0 0
    %2706 = vmatpush1.bf16.msra.mxu0 0
    %2707 = vmatprep.subr.bf16.mxu0 0
    %2708 = vmatpush1.bf16.msra.mxu0 0
    %2709 = vmatprep.subr.bf16.mxu0 0
    %2710 = vmatpush1.bf16.msra.mxu0 0
    %2711 = vmatprep.subr.bf16.mxu0 0
    %2712 = vmatpush1.bf16.msra.mxu0 0
    %2713 = vmatprep.mubr.bf16.mxu0 0
    %2714 = vmatmul.mubr.bf16.gmra.mrb[0].mxu0 %v2447
    %v2715 = vpop.f32.mrb[0].mxu0
    %v2716 = vadd.f32 0.0, %v2715
    %v2717 = vpop.f32.mrb[0].mxu0
    %v2718 = vadd.f32 0.0, %v2717
    %v2719 = vpop.f32.mrb[0].mxu0
    %v2720 = vpop.f32.mrb[0].mxu0
    %2721 = vdwg.mxu0
    %v2722 = vunpack.c.l.bf16 %v2445
    %v2723 = vunpack.c.h.bf16 %v2445
    %v2724 = vunpack.c.l.bf16 %v2446
    %v2725 = vunpack.c.h.bf16 %v2446
    %v2726 = vadd.f32 %v2722, %v2675
    %v2727 = vadd.f32 %v2723, %v2677
    %v2728 = vadd.f32 %v2724, %v2716
    %v2729 = vadd.f32 %v2725, %v2718
    %v2730 = vmul.f32 %v2726, 0.5
    %v2731 = vtanh.pop %v2730
    %v2732 = vmul.f32 %v2731, 0.5
    %v2733 = vadd.f32 %v2732, 0.5
    %v2734 = vmul.f32 %v2727, 0.5
    %v2735 = vtanh.pop %v2734
    %v2736 = vmul.f32 %v2735, 0.5
    %v2737 = vadd.f32 %v2736, 0.5
    %v2738 = vtanh.pop %v2728
    %v2739 = vmul.f32 %v2729, 0.5
    %v2740 = vtanh.pop %v2739
    %v2741 = vmul.f32 %v2740, 0.5
    %v2742 = vadd.f32 %v2741, 0.5
    %v2743 = vmul.f32 %v2737, %v2439
    %v2744 = vmul.f32 %v2733, %v2738
    %v2745 = vadd.f32 %v2743, %v2744
    %v2746 = vtanh.pop %v2745
    %v2747 = vmul.f32 %v2742, %v2746
    %s2748 = scalar_lea.vmem [#allocation14], 48
    %2749 = vst [vmem:[%s2748] sm:$0xff] %v2747
    %s2750 = scalar_lea.vmem [#allocation4], 112
    %v2751 = vld [vmem:[%s2750] sm:$0xff]
    %v2752 = vld [vmem:[%s2750 + $0x8] sm:$0xff]
    %v2753 = vpack.c.bf16 %v2747, %v2747
    %v2754 = vld [vmem:[#allocation11] sm:$0xff]
    %v2755 = vld [vmem:[#allocation11 + $0x8] sm:$0xff]
    %v2756 = vld [vmem:[#allocation11 + $0x10] sm:$0xff]
    %v2757 = vld [vmem:[#allocation11 + $0x18] sm:$0xff]
    %v2758 = vld [vmem:[#allocation11 + $0x20] sm:$0xff]
    %v2759 = vld [vmem:[#allocation11 + $0x28] sm:$0xff]
    %v2760 = vld [vmem:[#allocation11 + $0x30] sm:$0xff]
    %v2761 = vld [vmem:[#allocation11 + $0x38] sm:$0xff]
    %v2762 = vld [vmem:[#allocation11 + $0x40] sm:$0xff]
    %v2763 = vld [vmem:[#allocation11 + $0x48] sm:$0xff]
    %v2764 = vld [vmem:[#allocation11 + $0x50] sm:$0xff]
    %v2765 = vld [vmem:[#allocation11 + $0x58] sm:$0xff]
    %v2766 = vld [vmem:[#allocation11 + $0x60] sm:$0xff]
    %v2767 = vld [vmem:[#allocation11 + $0x68] sm:$0xff]
    %v2768 = vld [vmem:[#allocation11 + $0x70] sm:$0xff]
    %v2769 = vld [vmem:[#allocation11 + $0x78] sm:$0xff]
    %v2770 = vld [vmem:[#allocation11 + $0x80] sm:$0xff]
    %v2771 = vld [vmem:[#allocation11 + $0x88] sm:$0xff]
    %v2772 = vld [vmem:[#allocation11 + $0x90] sm:$0xff]
    %v2773 = vld [vmem:[#allocation11 + $0x98] sm:$0xff]
    %v2774 = vld [vmem:[#allocation11 + $0xa0] sm:$0xff]
    %v2775 = vld [vmem:[#allocation11 + $0xa8] sm:$0xff]
    %v2776 = vld [vmem:[#allocation11 + $0xb0] sm:$0xff]
    %v2777 = vld [vmem:[#allocation11 + $0xb8] sm:$0xff]
    %v2778 = vld [vmem:[#allocation11 + $0xc0] sm:$0xff]
    %v2779 = vld [vmem:[#allocation11 + $0xc8] sm:$0xff]
    %v2780 = vld [vmem:[#allocation11 + $0xd0] sm:$0xff]
    %v2781 = vld [vmem:[#allocation11 + $0xd8] sm:$0xff]
    %v2782 = vld [vmem:[#allocation11 + $0xe0] sm:$0xff]
    %v2783 = vld [vmem:[#allocation11 + $0xe8] sm:$0xff]
    %v2784 = vld [vmem:[#allocation11 + $0xf0] sm:$0xff]
    %v2785 = vld [vmem:[#allocation11 + $0xf8] sm:$0xff]
    %v2818 = vunpack.c.l.b16 %v2754
    %v2819 = vunpack.c.h.b16 %v2754
    %v2820 = vunpack.c.l.b16 %v2755
    %v2821 = vunpack.c.h.b16 %v2755
    %v2822 = vunpack.c.l.b16 %v2756
    %v2823 = vunpack.c.h.b16 %v2756
    %v2824 = vunpack.c.l.b16 %v2757
    %v2825 = vunpack.c.h.b16 %v2757
    %v2826 = vunpack.c.l.b16 %v2758
    %v2827 = vunpack.c.h.b16 %v2758
    %v2828 = vunpack.c.l.b16 %v2759
    %v2829 = vunpack.c.h.b16 %v2759
    %v2830 = vunpack.c.l.b16 %v2760
    %v2831 = vunpack.c.h.b16 %v2760
    %v2832 = vunpack.c.l.b16 %v2761
    %v2833 = vunpack.c.h.b16 %v2761
    %v2834 = vunpack.c.l.b16 %v2762
    %v2835 = vunpack.c.h.b16 %v2762
    %v2836 = vunpack.c.l.b16 %v2763
    %v2837 = vunpack.c.h.b16 %v2763
    %v2838 = vunpack.c.l.b16 %v2764
    %v2839 = vunpack.c.h.b16 %v2764
    %v2840 = vunpack.c.l.b16 %v2765
    %v2841 = vunpack.c.h.b16 %v2765
    %v2842 = vunpack.c.l.b16 %v2766
    %v2843 = vunpack.c.h.b16 %v2766
    %v2844 = vunpack.c.l.b16 %v2767
    %v2845 = vunpack.c.h.b16 %v2767
    %v2846 = vunpack.c.l.b16 %v2768
    %v2847 = vunpack.c.h.b16 %v2768
    %v2848 = vunpack.c.l.b16 %v2769
    %v2849 = vunpack.c.h.b16 %v2769
    %v2850 = vunpack.c.l.b16 %v2770
    %v2851 = vunpack.c.h.b16 %v2770
    %v2852 = vunpack.c.l.b16 %v2771
    %v2853 = vunpack.c.h.b16 %v2771
    %v2854 = vunpack.c.l.b16 %v2772
    %v2855 = vunpack.c.h.b16 %v2772
    %v2856 = vunpack.c.l.b16 %v2773
    %v2857 = vunpack.c.h.b16 %v2773
    %v2858 = vunpack.c.l.b16 %v2774
    %v2859 = vunpack.c.h.b16 %v2774
    %v2860 = vunpack.c.l.b16 %v2775
    %v2861 = vunpack.c.h.b16 %v2775
    %v2862 = vunpack.c.l.b16 %v2776
    %v2863 = vunpack.c.h.b16 %v2776
    %v2864 = vunpack.c.l.b16 %v2777
    %v2865 = vunpack.c.h.b16 %v2777
    %v2866 = vunpack.c.l.b16 %v2778
    %v2867 = vunpack.c.h.b16 %v2778
    %v2868 = vunpack.c.l.b16 %v2779
    %v2869 = vunpack.c.h.b16 %v2779
    %v2870 = vunpack.c.l.b16 %v2780
    %v2871 = vunpack.c.h.b16 %v2780
    %v2872 = vunpack.c.l.b16 %v2781
    %v2873 = vunpack.c.h.b16 %v2781
    %v2874 = vunpack.c.l.b16 %v2782
    %v2875 = vunpack.c.h.b16 %v2782
    %v2876 = vunpack.c.l.b16 %v2783
    %v2877 = vunpack.c.h.b16 %v2783
    %v2878 = vunpack.c.l.b16 %v2784
    %v2879 = vunpack.c.h.b16 %v2784
    %v2880 = vunpack.c.l.b16 %v2785
    %v2881 = vunpack.c.h.b16 %v2785
    %v2882 = vpack.c.b16 %v2822, %v2818
    %v2883 = vpack.c.b16 %v2823, %v2819
    %v2884 = vpack.c.b16 %v2824, %v2820
    %v2885 = vpack.c.b16 %v2825, %v2821
    %v2886 = vpack.c.b16 %v2830, %v2826
    %v2887 = vpack.c.b16 %v2831, %v2827
    %v2888 = vpack.c.b16 %v2832, %v2828
    %v2889 = vpack.c.b16 %v2833, %v2829
    %v2890 = vpack.c.b16 %v2838, %v2834
    %v2891 = vpack.c.b16 %v2839, %v2835
    %v2892 = vpack.c.b16 %v2840, %v2836
    %v2893 = vpack.c.b16 %v2841, %v2837
    %v2894 = vpack.c.b16 %v2846, %v2842
    %v2895 = vpack.c.b16 %v2847, %v2843
    %v2896 = vpack.c.b16 %v2848, %v2844
    %v2897 = vpack.c.b16 %v2849, %v2845
    %v2898 = vpack.c.b16 %v2854, %v2850
    %v2899 = vpack.c.b16 %v2855, %v2851
    %v2900 = vpack.c.b16 %v2856, %v2852
    %v2901 = vpack.c.b16 %v2857, %v2853
    %v2902 = vpack.c.b16 %v2862, %v2858
    %v2903 = vpack.c.b16 %v2863, %v2859
    %v2904 = vpack.c.b16 %v2864, %v2860
    %v2905 = vpack.c.b16 %v2865, %v2861
    %v2906 = vpack.c.b16 %v2870, %v2866
    %v2907 = vpack.c.b16 %v2871, %v2867
    %v2908 = vpack.c.b16 %v2872, %v2868
    %v2909 = vpack.c.b16 %v2873, %v2869
    %v2910 = vpack.c.b16 %v2878, %v2874
    %v2911 = vpack.c.b16 %v2879, %v2875
    %v2912 = vpack.c.b16 %v2880, %v2876
    %v2913 = vpack.c.b16 %v2881, %v2877
    %2946 = vmatprep.subr.bf16.mxu0 %v2883
    %2947 = vmatpush1.bf16.msra.mxu0 %v2882
    %2948 = vmatprep.subr.bf16.mxu0 %v2887
    %2949 = vmatpush1.bf16.msra.mxu0 %v2886
    %2950 = vmatprep.subr.bf16.mxu0 %v2891
    %2951 = vmatpush1.bf16.msra.mxu0 %v2890
    %2952 = vmatprep.subr.bf16.mxu0 %v2895
    %2953 = vmatpush1.bf16.msra.mxu0 %v2894
    %2954 = vmatprep.subr.bf16.mxu0 %v2899
    %2955 = vmatpush1.bf16.msra.mxu0 %v2898
    %2956 = vmatprep.subr.bf16.mxu0 %v2903
    %2957 = vmatpush1.bf16.msra.mxu0 %v2902
    %2958 = vmatprep.subr.bf16.mxu0 %v2907
    %2959 = vmatpush1.bf16.msra.mxu0 %v2906
    %2960 = vmatprep.subr.bf16.mxu0 %v2911
    %2961 = vmatpush1.bf16.msra.mxu0 %v2910
    %2962 = vmatprep.subr.bf16.mxu0 0
    %2963 = vmatpush1.bf16.msra.mxu0 0
    %2964 = vmatprep.subr.bf16.mxu0 0
    %2965 = vmatpush1.bf16.msra.mxu0 0
    %2966 = vmatprep.subr.bf16.mxu0 0
    %2967 = vmatpush1.bf16.msra.mxu0 0
    %2968 = vmatprep.subr.bf16.mxu0 0
    %2969 = vmatpush1.bf16.msra.mxu0 0
    %2970 = vmatprep.subr.bf16.mxu0 0
    %2971 = vmatpush1.bf16.msra.mxu0 0
    %2972 = vmatprep.subr.bf16.mxu0 0
    %2973 = vmatpush1.bf16.msra.mxu0 0
    %2974 = vmatprep.subr.bf16.mxu0 0
    %2975 = vmatpush1.bf16.msra.mxu0 0
    %2976 = vmatprep.subr.bf16.mxu0 0
    %2977 = vmatpush1.bf16.msra.mxu0 0
    %2978 = vmatprep.mubr.bf16.mxu0 0
    %2979 = vmatmul.mubr.bf16.gmra.mrb[0].mxu0 %v2753
    %v2980 = vpop.f32.mrb[0].mxu0
    %v2981 = vadd.f32 0.0, %v2980
    %v2982 = vpop.f32.mrb[0].mxu0
    %v2983 = vadd.f32 0.0, %v2982
    %v2984 = vpop.f32.mrb[0].mxu0
    %v2985 = vpop.f32.mrb[0].mxu0
    %2986 = vdwg.mxu0
    %2987 = vmatprep.subr.bf16.mxu0 %v2885
    %2988 = vmatpush1.bf16.msra.mxu0 %v2884
    %2989 = vmatprep.subr.bf16.mxu0 %v2889
    %2990 = vmatpush1.bf16.msra.mxu0 %v2888
    %2991 = vmatprep.subr.bf16.mxu0 %v2893
    %2992 = vmatpush1.bf16.msra.mxu0 %v2892
    %2993 = vmatprep.subr.bf16.mxu0 %v2897
    %2994 = vmatpush1.bf16.msra.mxu0 %v2896
    %2995 = vmatprep.subr.bf16.mxu0 %v2901
    %2996 = vmatpush1.bf16.msra.mxu0 %v2900
    %2997 = vmatprep.subr.bf16.mxu0 %v2905
    %2998 = vmatpush1.bf16.msra.mxu0 %v2904
    %2999 = vmatprep.subr.bf16.mxu0 %v2909
    %3000 = vmatpush1.bf16.msra.mxu0 %v2908
    %3001 = vmatprep.subr.bf16.mxu0 %v2913
    %3002 = vmatpush1.bf16.msra.mxu0 %v2912
    %3003 = vmatprep.subr.bf16.mxu0 0
    %3004 = vmatpush1.bf16.msra.mxu0 0
    %3005 = vmatprep.subr.bf16.mxu0 0
    %3006 = vmatpush1.bf16.msra.mxu0 0
    %3007 = vmatprep.subr.bf16.mxu0 0
    %3008 = vmatpush1.bf16.msra.mxu0 0
    %3009 = vmatprep.subr.bf16.mxu0 0
    %3010 = vmatpush1.bf16.msra.mxu0 0
    %3011 = vmatprep.subr.bf16.mxu0 0
    %3012 = vmatpush1.bf16.msra.mxu0 0
    %3013 = vmatprep.subr.bf16.mxu0 0
    %3014 = vmatpush1.bf16.msra.mxu0 0
    %3015 = vmatprep.subr.bf16.mxu0 0
    %3016 = vmatpush1.bf16.msra.mxu0 0
    %3017 = vmatprep.subr.bf16.mxu0 0
    %3018 = vmatpush1.bf16.msra.mxu0 0
    %3019 = vmatprep.mubr.bf16.mxu0 0
    %3020 = vmatmul.mubr.bf16.gmra.mrb[0].mxu0 %v2753
    %v3021 = vpop.f32.mrb[0].mxu0
    %v3022 = vadd.f32 0.0, %v3021
    %v3023 = vpop.f32.mrb[0].mxu0
    %v3024 = vadd.f32 0.0, %v3023
    %v3025 = vpop.f32.mrb[0].mxu0
    %v3026 = vpop.f32.mrb[0].mxu0
    %3027 = vdwg.mxu0
    %v3028 = vunpack.c.l.bf16 %v2751
    %v3029 = vunpack.c.h.bf16 %v2751
    %v3030 = vunpack.c.l.bf16 %v2752
    %v3031 = vunpack.c.h.bf16 %v2752
    %v3032 = vadd.f32 %v3028, %v2981
    %v3033 = vadd.f32 %v3029, %v2983
    %v3034 = vadd.f32 %v3030, %v3022
    %v3035 = vadd.f32 %v3031, %v3024
    %v3036 = vmul.f32 %v3032, 0.5
    %v3037 = vtanh.pop %v3036
    %v3038 = vmul.f32 %v3037, 0.5
    %v3039 = vadd.f32 %v3038, 0.5
    %v3040 = vmul.f32 %v3033, 0.5
    %v3041 = vtanh.pop %v3040
    %v3042 = vmul.f32 %v3041, 0.5
    %v3043 = vadd.f32 %v3042, 0.5
    %v3044 = vtanh.pop %v3034
    %v3045 = vmul.f32 %v3035, 0.5
    %v3046 = vtanh.pop %v3045
    %v3047 = vmul.f32 %v3046, 0.5
    %v3048 = vadd.f32 %v3047, 0.5
    %v3049 = vmul.f32 %v3043, %v2745
    %v3050 = vmul.f32 %v3039, %v3044
    %v3051 = vadd.f32 %v3049, %v3050
    %v3052 = vtanh.pop %v3051
    %v3053 = vmul.f32 %v3048, %v3052
    %s3054 = scalar_lea.vmem [#allocation14], 56
    %3055 = vst [vmem:[%s3054] sm:$0xff] %v3053
    %3056 = vst [vmem:[#allocation2] sm:$0xff] %v3053
    %3057 = vst [vmem:[#allocation3] sm:$0xff] %v3051
    %s3058 = smul.u32 0, 8
    %v3059 = vstv %s3058
    %v3060 = vadd.s32 %v3059, 1
    %v3061 = vadd.s32 %v3059, 2
    %v3062 = vadd.s32 %v3059, 3
    %v3063 = vadd.s32 %v3059, 4
    %v3064 = vadd.s32 %v3059, 5
    %v3065 = vadd.s32 %v3059, 6
    %v3066 = vadd.s32 %v3059, 7
    %v3067 = vld [vmem:[#allocation8] sm:$0xff]
    %vm3068 = vcmp.lt.s32.totalorder %v3059, %v3067
    %vm3069 = vcmp.lt.s32.totalorder %v3060, %v3067
    %vm3070 = vcmp.lt.s32.totalorder %v3061, %v3067
    %vm3071 = vcmp.lt.s32.totalorder %v3062, %v3067
    %vm3072 = vcmp.lt.s32.totalorder %v3063, %v3067
    %vm3073 = vcmp.lt.s32.totalorder %v3064, %v3067
    %vm3074 = vcmp.lt.s32.totalorder %v3065, %v3067
    %vm3075 = vcmp.lt.s32.totalorder %v3066, %v3067
    %v3076 = vsel %vm3068, 1, 0
    %v3077 = vsel %vm3069, 1, 0
    %v3078 = vsel %vm3070, 1, 0
    %v3079 = vsel %vm3071, 1, 0
    %v3080 = vsel %vm3072, 1, 0
    %v3081 = vsel %vm3073, 1, 0
    %v3082 = vsel %vm3074, 1, 0
    %v3083 = vsel %vm3075, 1, 0
    %v3084 = vcvt.s32.f32 %v3076
    %v3085 = vcvt.s32.f32 %v3077
    %v3086 = vcvt.s32.f32 %v3078
    %v3087 = vcvt.s32.f32 %v3079
    %v3088 = vcvt.s32.f32 %v3080
    %v3089 = vcvt.s32.f32 %v3081
    %v3090 = vcvt.s32.f32 %v3082
    %v3091 = vcvt.s32.f32 %v3083
    %v3092 = vld [vmem:[#allocation14] sm:$0xff]
    %v3093 = vld [vmem:[#allocation14 + $0x8] sm:$0xff]
    %v3094 = vld [vmem:[#allocation14 + $0x10] sm:$0xff]
    %v3095 = vld [vmem:[#allocation14 + $0x18] sm:$0xff]
    %v3096 = vld [vmem:[#allocation14 + $0x20] sm:$0xff]
    %v3097 = vld [vmem:[#allocation14 + $0x28] sm:$0xff]
    %v3098 = vld [vmem:[#allocation14 + $0x30] sm:$0xff]
    %v3099 = vld [vmem:[#allocation14 + $0x38] sm:$0xff]
    %3101 = vset.pattern.permute.xlu0 0
    %3102 = vperm.xlu0 %3101, %v3084
    %v3103 = vpop.permute.xlu0 %3102
    %3106 = vset.pattern.permute.xlu0 0
    %3107 = vperm.xlu0 %3106, %v3085
    %v3108 = vpop.permute.xlu0 %3107
    %3111 = vset.pattern.permute.xlu0 0
    %3112 = vperm.xlu0 %3111, %v3086
    %v3113 = vpop.permute.xlu0 %3112
    %3116 = vset.pattern.permute.xlu0 0
    %3117 = vperm.xlu0 %3116, %v3087
    %v3118 = vpop.permute.xlu0 %3117
    %3121 = vset.pattern.permute.xlu0 0
    %3122 = vperm.xlu0 %3121, %v3088
    %v3123 = vpop.permute.xlu0 %3122
    %3126 = vset.pattern.permute.xlu0 0
    %3127 = vperm.xlu0 %3126, %v3089
    %v3128 = vpop.permute.xlu0 %3127
    %3131 = vset.pattern.permute.xlu0 0
    %3132 = vperm.xlu0 %3131, %v3090
    %v3133 = vpop.permute.xlu0 %3132
    %3136 = vset.pattern.permute.xlu0 0
    %3137 = vperm.xlu0 %3136, %v3091
    %v3138 = vpop.permute.xlu0 %3137
    %v3140 = vmul.f32 %v3092, %v3103
    %v3141 = vmul.f32 %v3093, %v3108
    %v3142 = vmul.f32 %v3094, %v3113
    %v3143 = vmul.f32 %v3095, %v3118
    %v3144 = vmul.f32 %v3096, %v3123
    %v3145 = vmul.f32 %v3097, %v3128
    %v3146 = vmul.f32 %v3098, %v3133
    %v3147 = vmul.f32 %v3099, %v3138
    %3148 = vst [vmem:[#allocation14] sm:$0xff] %v3140
    %3149 = vst [vmem:[#allocation14 + $0x8] sm:$0xff] %v3141
    %3150 = vst [vmem:[#allocation14 + $0x10] sm:$0xff] %v3142
    %3151 = vst [vmem:[#allocation14 + $0x18] sm:$0xff] %v3143
    %3152 = vst [vmem:[#allocation14 + $0x20] sm:$0xff] %v3144
    %3153 = vst [vmem:[#allocation14 + $0x28] sm:$0xff] %v3145
    %3154 = vst [vmem:[#allocation14 + $0x30] sm:$0xff] %v3146
    %3155 = vst [vmem:[#allocation14 + $0x38] sm:$0xff] %v3147
    // Predicated region
    $region46: #{tpu_custom_call.1} parent=1 // pred_check
      _
    $region47: #{tpu_custom_call.1} parent=1 // pred_check_branch
      %3157 = sbr.rel (0) target = $region49
    $region48: #{tpu_custom_call.1} parent=1 // pred_region
      %s3159 = ssub.s32 1024, 1024
      %3160 = vsyncadd [#allocation7], %s3159
      %s3161 = sshll.u32 [#allocation14], 4
      %s3162 = int_to_ptr.vmem [resolvable:$true] %s3161
      %3167 = dma.vmem_to_hbm [thread:$0]  %s3162, 1024, %s5, [#allocation7], 128, 128, 8
    $region49: #{tpu_custom_call.1} parent=1 // pred_fallthru
      _
    // Predicated region
    $region50: #{tpu_custom_call.1} parent=1 // pred_check
      _
    $region51: #{tpu_custom_call.1} parent=1 // pred_check_branch
      %3169 = sbr.rel (0) target = $region53
    $region52: #{tpu_custom_call.1} parent=1 // pred_region
      %3170 = dma.done [#allocation7], 1024
    $region53: #{tpu_custom_call.1} parent=1 // pred_fallthru
      _
    %3171 = vsyncpa [#allocation6], 1
    %3172 = vsyncpa [#allocation9], 1
    %3173 = vsyncpa [#allocation12], 1
    %3174 = vsyncpa [#allocation7], 1

</llo_original>
